<compile_context>
chip_gen: v6e
topology: v6e:2x2x1
jax: 0.10.0
libtpu: 0.0.40
codegen_flags: <defaults>
</compile_context>

<pallas_src>
import numpy as np
import jax
import jax.numpy as jnp
from jax.experimental import pallas as pl
from jax.experimental.pallas import tpu as pltpu

# ----------------------------- model sizes (small) -----------------------------
B = 2          # batch
T_IN = 12      # in_steps
T_OUT = 12     # out_steps
N = 16         # num_nodes
IN_DIM = 1     # input_dim
OUT_DIM = 1    # output_dim
H = 32         # gru_hidden_dim
CHEB_K = 3     # cheb_k (one adjacency -> supports_len == 3)

BN = B * N                 # 32: batch folded into the node/sublane dimension
GATE = 2 * H               # 64: z|r gate width
XC = GATE + H              # 96: fused per-step x contribution [gate | update]
KG = CHEB_K * GATE         # 192: lane-concat gate h-weights
KH = CHEB_K * H            # 96:  lane-concat candidate h-weights
OUT_FEATS = T_OUT * OUT_DIM
OUT_PAD = 128              # lane-dense output width (unmasked stores)


# ----------------------------- graph preprocessing -----------------------------
def sym_adj(adj):
    """D^-1/2 A^T D^-1/2 (matches the numpy/scipy sym_adj)."""
    rowsum = adj.sum(1)
    d_inv_sqrt = jnp.where(rowsum > 0, rowsum ** -0.5, 0.0)
    return d_inv_sqrt[:, None] * adj.T * d_inv_sqrt[None, :]


def compute_cheby_poly(adjs, cheb_k):
    """Matches STMetaAGCRU.compute_cheby_poly (note the transpose of p)."""
    P_k = []
    for p in adjs:
        p = p.T
        T_k = [jnp.eye(p.shape[0], dtype=jnp.float32), p]
        for _ in range(2, cheb_k):
            T_k.append(2.0 * (p @ T_k[-1]) - T_k[-2])
        P_k += T_k
    return jnp.stack(P_k, axis=0).astype(jnp.float32)   # (K, N, N)


# ----------------------------- Pallas kernel -----------------------------------
def _fused_gcru_kernel(g_ref, x_ref, wx_ref, bxu_ref,
                       wgh_ref, wuh_ref, wd_ref, bd_ref,
                       out_ref, xc_sc):
    # g_ref  : (K*BN, BN) bf16  vertical stack of batch-folded supports kron(I_B, G_k)
    # x_ref  : (BN, T_IN) f32   node values over time (batch folded into rows)
    # wx_ref : (K, 1, XC) f32   per-k x-part weights, lanes = [gate(r|z) | update]
    # bxu_ref: (1, XC)    f32   biases, lanes = [gate(r|z) | update]
    # wgh_ref: (H, K*GATE) bf16 h-part gate weights, lane-concat over k, cols [r|z]
    # wuh_ref: (H, K*H)    bf16 h-part candidate weights, lane-concat over k
    # wd_ref : (H, OUT_PAD) f32 output head (zero lane padding to 128)
    # bd_ref : (1, OUT_PAD) f32
    # out_ref: (BN, OUT_PAD) f32
    # xc_sc  : (T_IN, BN, XC) f32 VMEM scratch: per-step x contributions (+bias)

    # -------- prelude: x-path GCN for all steps, fully off the recurrent chain --------
    g_all = g_ref[...]                                              # (K*BN, BN) bf16
    gx_all = jnp.dot(g_all, x_ref[...].astype(jnp.bfloat16),
                     preferred_element_type=jnp.float32)            # (K*BN, T_IN)
    gx = [gx_all[k * BN:(k + 1) * BN, :] for k in range(CHEB_K)]    # K x (BN, T_IN)

    # loop-invariant broadcasts hoisted (JAX does not CSE broadcast_in_dim)
    bxu_b = jnp.broadcast_to(bxu_ref[...], (BN, XC))
    wx_b = [jnp.broadcast_to(wx_ref[k], (BN, XC)) for k in range(CHEB_K)]
    for t in range(T_IN):
        xc_t = bxu_b
        for k in range(CHEB_K):
            # rank-1 outer product (dim_in == 1): pure VPU work, off the chain
            xc_t = xc_t + gx[k][:, t:t + 1] * wx_b[k]
        xc_sc[t] = xc_t                                             # aligned (BN, XC) store

    # -------- 12-step GRU recurrence: the serial critical path --------
    gk = [g_all[k * BN:(k + 1) * BN, :] for k in range(CHEB_K)]     # K x (BN, BN) bf16
    wgh = wgh_ref[...]                                              # (H, K*GATE) bf16
    wuh = wuh_ref[...]                                              # (H, K*H)    bf16

    h = jnp.zeros((BN, H), jnp.float32)
    for t in range(T_IN):
        xc_t = xc_sc[t]                                             # no dependence on h

        # gate: zr = sigmoid(xz_t + sum_k G_k @ (h @ Wgh_k)); columns ordered [r | z]
        hw = jnp.dot(h.astype(jnp.bfloat16), wgh,
                     preferred_element_type=jnp.float32).astype(jnp.bfloat16)
        zr_pre = xc_t[:, :GATE]
        for k in range(CHEB_K):
            zr_pre = zr_pre + jnp.dot(gk[k], hw[:, k * GATE:(k + 1) * GATE],
                                      preferred_element_type=jnp.float32)
        zr = jax.nn.sigmoid(zr_pre)
        r = zr[:, :H]          # lane-aligned with h (columns pre-swapped in wrapper)
        z = zr[:, H:]

        # candidate: hc = tanh(xu_t + sum_k G_k @ ((r*h) @ Wuh_k))
        rw = jnp.dot((r * h).astype(jnp.bfloat16), wuh,
                     preferred_element_type=jnp.float32).astype(jnp.bfloat16)
        hc_pre = xc_t[:, GATE:]
        for k in range(CHEB_K):
            hc_pre = hc_pre + jnp.dot(gk[k], rw[:, k * H:(k + 1) * H],
                                      preferred_element_type=jnp.float32)
        hc = jnp.tanh(hc_pre)

        h = z * hc + (1.0 - z) * h

    # -------- fused output head, lane-dense (unmasked) store --------
    out_ref[...] = (jnp.dot(h, wd_ref[...], preferred_element_type=jnp.float32)
                    + bd_ref[...])


def run_fused_kernel(g_tall, X, kp):
    """g_tall: (K*BN, BN) bf16; X: (BN, T_IN) f32; kp: kernel parameter arrays."""
    f3 = lambda i: (0, 0, 0)
    f2 = lambda i: (0, 0)
    return pl.pallas_call(
        _fused_gcru_kernel,
        out_shape=jax.ShapeDtypeStruct((BN, OUT_PAD), jnp.float32),
        grid_spec=pltpu.PrefetchScalarGridSpec(
            num_scalar_prefetch=0,
            grid=(1,),                                  # single grid point, whole recurrence
            in_specs=[
                pl.BlockSpec((CHEB_K * BN, BN), f2),    # G (tall stack, bf16)
                pl.BlockSpec((BN, T_IN), f2),           # X values over time
                pl.BlockSpec((CHEB_K, 1, XC), f3),      # x-part weights [gate|update]
                pl.BlockSpec((1, XC), f2),              # biases [gate|update]
                pl.BlockSpec((H, KG), f2),              # h-part gate weights (bf16)
                pl.BlockSpec((H, KH), f2),              # h-part candidate weights (bf16)
                pl.BlockSpec((H, OUT_PAD), f2),         # decoder W (lane-padded)
                pl.BlockSpec((1, OUT_PAD), f2),         # decoder b (lane-padded)
            ],
            out_specs=pl.BlockSpec((BN, OUT_PAD), f2),
            scratch_shapes=[pltpu.VMEM((T_IN, BN, XC), jnp.float32)],
        ),
        compiler_params=pltpu.CompilerParams(
            dimension_semantics=("arbitrary",)),
        cost_estimate=pl.CostEstimate(flops=15_500_000,
                                      transcendentals=36_864,
                                      bytes_accessed=61_000),
    )(g_tall, X, kp["wx"], kp["bxu"], kp["wgh"], kp["wuh"], kp["wd"], kp["bd"])


# ----------------------------- plain-JAX glue -----------------------------------
def _linear_init(key, fan_in, fan_out):
    kw, kb = jax.random.split(key)
    bound = 1.0 / np.sqrt(fan_in)
    W = jax.random.uniform(kw, (fan_in, fan_out), jnp.float32, -bound, bound)
    b = jax.random.uniform(kb, (fan_out,), jnp.float32, -bound, bound)
    return W, b


def stmeta_agcru_forward(x, g_tall, kp):
    """x: (B, T_in, N, 3) = [value, tod(0..1), dow(0..6)].

    Under the default flags (add_meta_adj=False, add_meta_att=False) only the
    value channel feeds the output; the meta/latent-z branches are dead code.
    """
    xv = x[..., 0].astype(jnp.float32)                       # (B, T, N)
    # fold batch into the node/sublane dimension: X[b*N+n, t] = x[b, t, n, 0]
    X = jnp.transpose(xv, (0, 2, 1)).reshape(BN, T_IN)       # (B*N, T_in)

    out = run_fused_kernel(g_tall, X, kp)                    # (B*N, OUT_PAD)
    out = out[:, :OUT_FEATS]                                 # drop lane padding
    out = out.reshape(B, N, T_OUT, OUT_DIM).transpose(0, 2, 1, 3)
    return out                                               # (B, out_steps, N, out_dim)


# ----------------------------- pure-JAX reference --------------------------------
def reference_forward(x, G, Wg, bg, Wu, bu, Wd, bd):
    xv = x[..., :1].astype(jnp.float32)
    hi = jax.lax.Precision.HIGHEST

    def gcn(Wfull, bias, feat):
        K = G.shape[0]
        sup = [jnp.einsum('ij,bjp->bip', G[k], feat, precision=hi) for k in range(K)]
        sc = jnp.concatenate(sup, axis=-1)
        return jnp.einsum('bip,pq->biq', sc, Wfull, precision=hi) + bias

    h = jnp.zeros((B, N, H), jnp.float32)
    for t in range(T_IN):
        xt = xv[:, t]
        combined = jnp.concatenate([xt, h], axis=-1)
        zr = jax.nn.sigmoid(gcn(Wg, bg, combined))
        z, r = zr[..., :H], zr[..., H:]
        cand = jnp.concatenate([xt, r * h], axis=-1)
        hc = jnp.tanh(gcn(Wu, bu, cand))
        h = z * hc + (1.0 - z) * h
    out = jnp.einsum('bnh,hq->bnq', h, Wd, precision=hi) + bd
    return out.reshape(B, N, T_OUT, OUT_DIM).transpose(0, 2, 1, 3)


# ----------------------------- main ----------------------------------------------
if __name__ == "__main__":
    key = jax.random.PRNGKey(0)
    keys = jax.random.split(key, 12)

    # inputs: (B, T, N, 3) = [value, tod in [0,1), dow in {0..6}]
    vals = jax.random.normal(keys[0], (B, T_IN, N, 1), jnp.float32)
    tod = jax.random.uniform(keys[1], (B, T_IN, N), jnp.float32, 0.0, 0.999)
    dow = jax.random.randint(keys[2], (B, T_IN, N), 0, 7).astype(jnp.float32)
    x = jnp.concatenate([vals, tod[..., None], dow[..., None]], axis=-1)

    # synthetic deterministic adjacency -> sym normalization -> Chebyshev supports
    a = (jax.random.uniform(keys[3], (N, N)) > 0.7).astype(jnp.float32)
    a = jnp.minimum(jnp.maximum(a, a.T) + jnp.eye(N, dtype=jnp.float32), 1.0)
    G = compute_cheby_poly([sym_adj(a)], CHEB_K)                 # (K, N, N)

    # batch-folded block-diagonal supports kron(I_B, G_k), stacked tall for the kernel
    G_big = jnp.stack(
        [jnp.kron(jnp.eye(B, dtype=jnp.float32), G[k]) for k in range(CHEB_K)],
        axis=0)                                                  # (K, BN, BN)
    g_tall = G_big.reshape(CHEB_K * BN, BN).astype(jnp.bfloat16)  # (K*BN, BN) bf16

    # ---- GCN / GRU parameters (xavier_normal W; nonzero biases to exercise the
    #      bias path — the module itself inits them to 0) ----
    D_cat = IN_DIM + H
    Wg = jax.random.normal(keys[5], (CHEB_K * D_cat, 2 * H), jnp.float32) * \
        np.sqrt(2.0 / (CHEB_K * D_cat + 2 * H))
    bg = jax.random.uniform(keys[8], (2 * H,), jnp.float32, -0.05, 0.05)
    Wu = jax.random.normal(keys[6], (CHEB_K * D_cat, H), jnp.float32) * \
        np.sqrt(2.0 / (CHEB_K * D_cat + H))
    bu = jax.random.uniform(keys[9], (H,), jnp.float32, -0.05, 0.05)
    Wd, bd = _linear_init(keys[7], H, OUT_FEATS)                 # output Linear

    # ---- kernel-friendly parameter packing (same math) ----
    # Full GCN weight rows are k-major; within each k: [x row, H h rows].
    Wg3 = Wg.reshape(CHEB_K, D_cat, 2 * H)
    Wu3 = Wu.reshape(CHEB_K, D_cat, H)
    # pre-swap gate columns [z | r] -> [r | z] so r is lane-aligned with h in-kernel
    swap = lambda arr: jnp.concatenate([arr[..., H:], arr[..., :H]], axis=-1)

    wgx_sw = swap(Wg3[:, :IN_DIM, :])                            # (K, 1, GATE)
    wux = Wu3[:, :IN_DIM, :]                                     # (K, 1, H)
    wgh_sw = swap(Wg3[:, IN_DIM:, :])                            # (K, H, GATE)

    kernel_params = {
        # fused x-part weights / biases, lanes = [gate(r|z) | update]
        "wx": jnp.concatenate([wgx_sw, wux], axis=-1).astype(jnp.float32),     # (K,1,XC)
        "bxu": jnp.concatenate([swap(bg.reshape(1, GATE)),
                                bu.reshape(1, H)], axis=-1).astype(jnp.float32),
        # h-part weights lane-concatenated over k (for the reassociated GCN), bf16
        "wgh": jnp.concatenate([wgh_sw[k] for k in range(CHEB_K)],
                               axis=-1).astype(jnp.bfloat16),                  # (H, K*GATE)
        "wuh": jnp.concatenate([Wu3[k, IN_DIM:, :] for k in range(CHEB_K)],
                               axis=-1).astype(jnp.bfloat16),                  # (H, K*H)
        # output head, zero-padded to 128 lanes
        "wd": jnp.pad(Wd, ((0, 0), (0, OUT_PAD - OUT_FEATS))),
        "bd": jnp.pad(bd, (0, OUT_PAD - OUT_FEATS)).reshape(1, OUT_PAD),
    }

    out = stmeta_agcru_forward(x, g_tall, kernel_params)
    out = jax.block_until_ready(out)
    assert out.shape == (B, T_OUT, N, OUT_DIM)

    ref = reference_forward(x, G, Wg, bg, Wu, bu, Wd, bd)
    np.testing.assert_allclose(np.asarray(out), np.asarray(ref), rtol=2e-2, atol=2e-2)

    print("KERNEL_OK")
</pallas_src>

<mosaic_0001>
module attributes {stable_mosaic.version = 11 : i64} {
  func.func @_fused_gcru_kernel(%arg0: i32, %arg1: memref<96x32xbf16, #tpu.memory_space<vmem>>, %arg2: memref<32x12xf32, #tpu.memory_space<vmem>>, %arg3: memref<3x1x96xf32, #tpu.memory_space<vmem>>, %arg4: memref<1x96xf32, #tpu.memory_space<vmem>>, %arg5: memref<32x192xbf16, #tpu.memory_space<vmem>>, %arg6: memref<32x96xbf16, #tpu.memory_space<vmem>>, %arg7: memref<32x128xf32, #tpu.memory_space<vmem>>, %arg8: memref<1x128xf32, #tpu.memory_space<vmem>>, %arg9: memref<32x128xf32, #tpu.memory_space<vmem>>, %arg10: memref<12x32x96xf32, #tpu.memory_space<vmem>>) attributes {dimension_semantics = [#tpu.dimension_semantics<arbitrary>], iteration_bounds = array<i64: 1>, scalar_prefetch = 0 : i64, scratch_operands = 1 : i64, tpu.core_type = #tpu.core_type<tc>, window_params = [{pipeline_mode = #tpu.pipeline_mode<synchronous>, transform_indices = @transform_0, window_bounds = array<i64: 96, 32>}, {pipeline_mode = #tpu.pipeline_mode<synchronous>, transform_indices = @transform_1, window_bounds = array<i64: 32, 12>}, {pipeline_mode = #tpu.pipeline_mode<synchronous>, transform_indices = @transform_2, window_bounds = array<i64: 3, 1, 96>}, {pipeline_mode = #tpu.pipeline_mode<synchronous>, transform_indices = @transform_3, window_bounds = array<i64: 1, 96>}, {pipeline_mode = #tpu.pipeline_mode<synchronous>, transform_indices = @transform_4, window_bounds = array<i64: 32, 192>}, {pipeline_mode = #tpu.pipeline_mode<synchronous>, transform_indices = @transform_5, window_bounds = array<i64: 32, 96>}, {pipeline_mode = #tpu.pipeline_mode<synchronous>, transform_indices = @transform_6, window_bounds = array<i64: 32, 128>}, {pipeline_mode = #tpu.pipeline_mode<synchronous>, transform_indices = @transform_7, window_bounds = array<i64: 1, 128>}, {pipeline_mode = #tpu.pipeline_mode<synchronous>, transform_indices = @transform_8, window_bounds = array<i64: 32, 128>}]} {
    %c0 = arith.constant 0 : index
    %c0_0 = arith.constant 0 : index
    %0 = vector.load %arg1[%c0, %c0_0] : memref<96x32xbf16, #tpu.memory_space<vmem>>, vector<96x32xbf16>
    %c0_1 = arith.constant 0 : index
    %c0_2 = arith.constant 0 : index
    %1 = vector.load %arg2[%c0_1, %c0_2] : memref<32x12xf32, #tpu.memory_space<vmem>>, vector<32x12xf32>
    %2 = arith.truncf %1 : vector<32x12xf32> to vector<32x12xbf16>
    %cst = arith.constant dense<0.000000e+00> : vector<96x12xf32>
    %3 = tpu.matmul %0, %2, %cst {dimension_numbers = #tpu.dot_dimension_numbers<[1], [0], [0], [1], [0, 0, 1, 1], [], []>} : vector<96x32xbf16>, vector<32x12xbf16>, vector<96x12xf32> -> vector<96x12xf32>
    %4 = vector.extract_strided_slice %3 {offsets = [0, 0], sizes = [32, 12], strides = [1, 1]} : vector<96x12xf32> to vector<32x12xf32>
    %5 = vector.extract_strided_slice %3 {offsets = [32, 0], sizes = [32, 12], strides = [1, 1]} : vector<96x12xf32> to vector<32x12xf32>
    %6 = vector.extract_strided_slice %3 {offsets = [64, 0], sizes = [32, 12], strides = [1, 1]} : vector<96x12xf32> to vector<32x12xf32>
    %c0_3 = arith.constant 0 : index
    %c0_4 = arith.constant 0 : index
    %7 = vector.load %arg4[%c0_3, %c0_4] : memref<1x96xf32, #tpu.memory_space<vmem>>, vector<1x96xf32>
    %8 = vector.shape_cast %7 : vector<1x96xf32> to vector<1x96xf32>
    %9 = vector.broadcast %8 : vector<1x96xf32> to vector<32x96xf32>
    %c0_5 = arith.constant 0 : index
    %c0_6 = arith.constant 0 : index
    %c0_7 = arith.constant 0 : index
    %10 = vector.load %arg3[%c0_5, %c0_6, %c0_7] : memref<3x1x96xf32, #tpu.memory_space<vmem>>, vector<1x1x96xf32>
    %11 = vector.shape_cast %10 : vector<1x1x96xf32> to vector<1x96xf32>
    %12 = vector.shape_cast %11 : vector<1x96xf32> to vector<1x96xf32>
    %13 = vector.broadcast %12 : vector<1x96xf32> to vector<32x96xf32>
    %c1 = arith.constant 1 : index
    %c0_8 = arith.constant 0 : index
    %c0_9 = arith.constant 0 : index
    %14 = vector.load %arg3[%c1, %c0_8, %c0_9] : memref<3x1x96xf32, #tpu.memory_space<vmem>>, vector<1x1x96xf32>
    %15 = vector.shape_cast %14 : vector<1x1x96xf32> to vector<1x96xf32>
    %16 = vector.shape_cast %15 : vector<1x96xf32> to vector<1x96xf32>
    %17 = vector.broadcast %16 : vector<1x96xf32> to vector<32x96xf32>
    %c2 = arith.constant 2 : index
    %c0_10 = arith.constant 0 : index
    %c0_11 = arith.constant 0 : index
    %18 = vector.load %arg3[%c2, %c0_10, %c0_11] : memref<3x1x96xf32, #tpu.memory_space<vmem>>, vector<1x1x96xf32>
    %19 = vector.shape_cast %18 : vector<1x1x96xf32> to vector<1x96xf32>
    %20 = vector.shape_cast %19 : vector<1x96xf32> to vector<1x96xf32>
    %21 = vector.broadcast %20 : vector<1x96xf32> to vector<32x96xf32>
    %22 = vector.extract_strided_slice %4 {offsets = [0, 0], sizes = [32, 1], strides = [1, 1]} : vector<32x12xf32> to vector<32x1xf32>
    %23 = vector.broadcast %22 : vector<32x1xf32> to vector<32x96xf32>
    %24 = arith.mulf %23, %13 : vector<32x96xf32>
    %25 = arith.addf %9, %24 : vector<32x96xf32>
    %26 = vector.extract_strided_slice %5 {offsets = [0, 0], sizes = [32, 1], strides = [1, 1]} : vector<32x12xf32> to vector<32x1xf32>
    %27 = vector.broadcast %26 : vector<32x1xf32> to vector<32x96xf32>
    %28 = arith.mulf %27, %17 : vector<32x96xf32>
    %29 = arith.addf %25, %28 : vector<32x96xf32>
    %30 = vector.extract_strided_slice %6 {offsets = [0, 0], sizes = [32, 1], strides = [1, 1]} : vector<32x12xf32> to vector<32x1xf32>
    %31 = vector.broadcast %30 : vector<32x1xf32> to vector<32x96xf32>
    %32 = arith.mulf %31, %21 : vector<32x96xf32>
    %33 = arith.addf %29, %32 : vector<32x96xf32>
    %c0_12 = arith.constant 0 : index
    %c0_13 = arith.constant 0 : index
    %c0_14 = arith.constant 0 : index
    %34 = vector.load %arg10[%c0_12, %c0_13, %c0_14] : memref<12x32x96xf32, #tpu.memory_space<vmem>>, vector<1x32x96xf32>
    %35 = vector.shape_cast %34 : vector<1x32x96xf32> to vector<32x96xf32>
    %36 = vector.shape_cast %33 : vector<32x96xf32> to vector<1x32x96xf32>
    tpu.vector_store %arg10[%c0_12, %c0_13, %c0_14], %36 {strides = array<i32>} : memref<12x32x96xf32, #tpu.memory_space<vmem>>, vector<1x32x96xf32>,
    %37 = vector.extract_strided_slice %4 {offsets = [0, 1], sizes = [32, 1], strides = [1, 1]} : vector<32x12xf32> to vector<32x1xf32>
    %38 = vector.broadcast %37 : vector<32x1xf32> to vector<32x96xf32>
    %39 = arith.mulf %38, %13 : vector<32x96xf32>
    %40 = arith.addf %9, %39 : vector<32x96xf32>
    %41 = vector.extract_strided_slice %5 {offsets = [0, 1], sizes = [32, 1], strides = [1, 1]} : vector<32x12xf32> to vector<32x1xf32>
    %42 = vector.broadcast %41 : vector<32x1xf32> to vector<32x96xf32>
    %43 = arith.mulf %42, %17 : vector<32x96xf32>
    %44 = arith.addf %40, %43 : vector<32x96xf32>
    %45 = vector.extract_strided_slice %6 {offsets = [0, 1], sizes = [32, 1], strides = [1, 1]} : vector<32x12xf32> to vector<32x1xf32>
    %46 = vector.broadcast %45 : vector<32x1xf32> to vector<32x96xf32>
    %47 = arith.mulf %46, %21 : vector<32x96xf32>
    %48 = arith.addf %44, %47 : vector<32x96xf32>
    %c1_15 = arith.constant 1 : index
    %c0_16 = arith.constant 0 : index
    %c0_17 = arith.constant 0 : index
    %49 = vector.load %arg10[%c1_15, %c0_16, %c0_17] : memref<12x32x96xf32, #tpu.memory_space<vmem>>, vector<1x32x96xf32>
    %50 = vector.shape_cast %49 : vector<1x32x96xf32> to vector<32x96xf32>
    %51 = vector.shape_cast %48 : vector<32x96xf32> to vector<1x32x96xf32>
    tpu.vector_store %arg10[%c1_15, %c0_16, %c0_17], %51 {strides = array<i32>} : memref<12x32x96xf32, #tpu.memory_space<vmem>>, vector<1x32x96xf32>,
    %52 = vector.extract_strided_slice %4 {offsets = [0, 2], sizes = [32, 1], strides = [1, 1]} : vector<32x12xf32> to vector<32x1xf32>
    %53 = vector.broadcast %52 : vector<32x1xf32> to vector<32x96xf32>
    %54 = arith.mulf %53, %13 : vector<32x96xf32>
    %55 = arith.addf %9, %54 : vector<32x96xf32>
    %56 = vector.extract_strided_slice %5 {offsets = [0, 2], sizes = [32, 1], strides = [1, 1]} : vector<32x12xf32> to vector<32x1xf32>
    %57 = vector.broadcast %56 : vector<32x1xf32> to vector<32x96xf32>
    %58 = arith.mulf %57, %17 : vector<32x96xf32>
    %59 = arith.addf %55, %58 : vector<32x96xf32>
    %60 = vector.extract_strided_slice %6 {offsets = [0, 2], sizes = [32, 1], strides = [1, 1]} : vector<32x12xf32> to vector<32x1xf32>
    %61 = vector.broadcast %60 : vector<32x1xf32> to vector<32x96xf32>
    %62 = arith.mulf %61, %21 : vector<32x96xf32>
    %63 = arith.addf %59, %62 : vector<32x96xf32>
    %c2_18 = arith.constant 2 : index
    %c0_19 = arith.constant 0 : index
    %c0_20 = arith.constant 0 : index
    %64 = vector.load %arg10[%c2_18, %c0_19, %c0_20] : memref<12x32x96xf32, #tpu.memory_space<vmem>>, vector<1x32x96xf32>
    %65 = vector.shape_cast %64 : vector<1x32x96xf32> to vector<32x96xf32>
    %66 = vector.shape_cast %63 : vector<32x96xf32> to vector<1x32x96xf32>
    tpu.vector_store %arg10[%c2_18, %c0_19, %c0_20], %66 {strides = array<i32>} : memref<12x32x96xf32, #tpu.memory_space<vmem>>, vector<1x32x96xf32>,
    %67 = vector.extract_strided_slice %4 {offsets = [0, 3], sizes = [32, 1], strides = [1, 1]} : vector<32x12xf32> to vector<32x1xf32>
    %68 = vector.broadcast %67 : vector<32x1xf32> to vector<32x96xf32>
    %69 = arith.mulf %68, %13 : vector<32x96xf32>
    %70 = arith.addf %9, %69 : vector<32x96xf32>
    %71 = vector.extract_strided_slice %5 {offsets = [0, 3], sizes = [32, 1], strides = [1, 1]} : vector<32x12xf32> to vector<32x1xf32>
    %72 = vector.broadcast %71 : vector<32x1xf32> to vector<32x96xf32>
    %73 = arith.mulf %72, %17 : vector<32x96xf32>
    %74 = arith.addf %70, %73 : vector<32x96xf32>
    %75 = vector.extract_strided_slice %6 {offsets = [0, 3], sizes = [32, 1], strides = [1, 1]} : vector<32x12xf32> to vector<32x1xf32>
    %76 = vector.broadcast %75 : vector<32x1xf32> to vector<32x96xf32>
    %77 = arith.mulf %76, %21 : vector<32x96xf32>
    %78 = arith.addf %74, %77 : vector<32x96xf32>
    %c3 = arith.constant 3 : index
    %c0_21 = arith.constant 0 : index
    %c0_22 = arith.constant 0 : index
    %79 = vector.load %arg10[%c3, %c0_21, %c0_22] : memref<12x32x96xf32, #tpu.memory_space<vmem>>, vector<1x32x96xf32>
    %80 = vector.shape_cast %79 : vector<1x32x96xf32> to vector<32x96xf32>
    %81 = vector.shape_cast %78 : vector<32x96xf32> to vector<1x32x96xf32>
    tpu.vector_store %arg10[%c3, %c0_21, %c0_22], %81 {strides = array<i32>} : memref<12x32x96xf32, #tpu.memory_space<vmem>>, vector<1x32x96xf32>,
    %82 = vector.extract_strided_slice %4 {offsets = [0, 4], sizes = [32, 1], strides = [1, 1]} : vector<32x12xf32> to vector<32x1xf32>
    %83 = vector.broadcast %82 : vector<32x1xf32> to vector<32x96xf32>
    %84 = arith.mulf %83, %13 : vector<32x96xf32>
    %85 = arith.addf %9, %84 : vector<32x96xf32>
    %86 = vector.extract_strided_slice %5 {offsets = [0, 4], sizes = [32, 1], strides = [1, 1]} : vector<32x12xf32> to vector<32x1xf32>
    %87 = vector.broadcast %86 : vector<32x1xf32> to vector<32x96xf32>
    %88 = arith.mulf %87, %17 : vector<32x96xf32>
    %89 = arith.addf %85, %88 : vector<32x96xf32>
    %90 = vector.extract_strided_slice %6 {offsets = [0, 4], sizes = [32, 1], strides = [1, 1]} : vector<32x12xf32> to vector<32x1xf32>
    %91 = vector.broadcast %90 : vector<32x1xf32> to vector<32x96xf32>
    %92 = arith.mulf %91, %21 : vector<32x96xf32>
    %93 = arith.addf %89, %92 : vector<32x96xf32>
    %c4 = arith.constant 4 : index
    %c0_23 = arith.constant 0 : index
    %c0_24 = arith.constant 0 : index
    %94 = vector.load %arg10[%c4, %c0_23, %c0_24] : memref<12x32x96xf32, #tpu.memory_space<vmem>>, vector<1x32x96xf32>
    %95 = vector.shape_cast %94 : vector<1x32x96xf32> to vector<32x96xf32>
    %96 = vector.shape_cast %93 : vector<32x96xf32> to vector<1x32x96xf32>
    tpu.vector_store %arg10[%c4, %c0_23, %c0_24], %96 {strides = array<i32>} : memref<12x32x96xf32, #tpu.memory_space<vmem>>, vector<1x32x96xf32>,
    %97 = vector.extract_strided_slice %4 {offsets = [0, 5], sizes = [32, 1], strides = [1, 1]} : vector<32x12xf32> to vector<32x1xf32>
    %98 = vector.broadcast %97 : vector<32x1xf32> to vector<32x96xf32>
    %99 = arith.mulf %98, %13 : vector<32x96xf32>
    %100 = arith.addf %9, %99 : vector<32x96xf32>
    %101 = vector.extract_strided_slice %5 {offsets = [0, 5], sizes = [32, 1], strides = [1, 1]} : vector<32x12xf32> to vector<32x1xf32>
    %102 = vector.broadcast %101 : vector<32x1xf32> to vector<32x96xf32>
    %103 = arith.mulf %102, %17 : vector<32x96xf32>
    %104 = arith.addf %100, %103 : vector<32x96xf32>
    %105 = vector.extract_strided_slice %6 {offsets = [0, 5], sizes = [32, 1], strides = [1, 1]} : vector<32x12xf32> to vector<32x1xf32>
    %106 = vector.broadcast %105 : vector<32x1xf32> to vector<32x96xf32>
    %107 = arith.mulf %106, %21 : vector<32x96xf32>
    %108 = arith.addf %104, %107 : vector<32x96xf32>
    %c5 = arith.constant 5 : index
    %c0_25 = arith.constant 0 : index
    %c0_26 = arith.constant 0 : index
    %109 = vector.load %arg10[%c5, %c0_25, %c0_26] : memref<12x32x96xf32, #tpu.memory_space<vmem>>, vector<1x32x96xf32>
    %110 = vector.shape_cast %109 : vector<1x32x96xf32> to vector<32x96xf32>
    %111 = vector.shape_cast %108 : vector<32x96xf32> to vector<1x32x96xf32>
    tpu.vector_store %arg10[%c5, %c0_25, %c0_26], %111 {strides = array<i32>} : memref<12x32x96xf32, #tpu.memory_space<vmem>>, vector<1x32x96xf32>,
    %112 = vector.extract_strided_slice %4 {offsets = [0, 6], sizes = [32, 1], strides = [1, 1]} : vector<32x12xf32> to vector<32x1xf32>
    %113 = vector.broadcast %112 : vector<32x1xf32> to vector<32x96xf32>
    %114 = arith.mulf %113, %13 : vector<32x96xf32>
    %115 = arith.addf %9, %114 : vector<32x96xf32>
    %116 = vector.extract_strided_slice %5 {offsets = [0, 6], sizes = [32, 1], strides = [1, 1]} : vector<32x12xf32> to vector<32x1xf32>
    %117 = vector.broadcast %116 : vector<32x1xf32> to vector<32x96xf32>
    %118 = arith.mulf %117, %17 : vector<32x96xf32>
    %119 = arith.addf %115, %118 : vector<32x96xf32>
    %120 = vector.extract_strided_slice %6 {offsets = [0, 6], sizes = [32, 1], strides = [1, 1]} : vector<32x12xf32> to vector<32x1xf32>
    %121 = vector.broadcast %120 : vector<32x1xf32> to vector<32x96xf32>
    %122 = arith.mulf %121, %21 : vector<32x96xf32>
    %123 = arith.addf %119, %122 : vector<32x96xf32>
    %c6 = arith.constant 6 : index
    %c0_27 = arith.constant 0 : index
    %c0_28 = arith.constant 0 : index
    %124 = vector.load %arg10[%c6, %c0_27, %c0_28] : memref<12x32x96xf32, #tpu.memory_space<vmem>>, vector<1x32x96xf32>
    %125 = vector.shape_cast %124 : vector<1x32x96xf32> to vector<32x96xf32>
    %126 = vector.shape_cast %123 : vector<32x96xf32> to vector<1x32x96xf32>
    tpu.vector_store %arg10[%c6, %c0_27, %c0_28], %126 {strides = array<i32>} : memref<12x32x96xf32, #tpu.memory_space<vmem>>, vector<1x32x96xf32>,
    %127 = vector.extract_strided_slice %4 {offsets = [0, 7], sizes = [32, 1], strides = [1, 1]} : vector<32x12xf32> to vector<32x1xf32>
    %128 = vector.broadcast %127 : vector<32x1xf32> to vector<32x96xf32>
    %129 = arith.mulf %128, %13 : vector<32x96xf32>
    %130 = arith.addf %9, %129 : vector<32x96xf32>
    %131 = vector.extract_strided_slice %5 {offsets = [0, 7], sizes = [32, 1], strides = [1, 1]} : vector<32x12xf32> to vector<32x1xf32>
    %132 = vector.broadcast %131 : vector<32x1xf32> to vector<32x96xf32>
    %133 = arith.mulf %132, %17 : vector<32x96xf32>
    %134 = arith.addf %130, %133 : vector<32x96xf32>
    %135 = vector.extract_strided_slice %6 {offsets = [0, 7], sizes = [32, 1], strides = [1, 1]} : vector<32x12xf32> to vector<32x1xf32>
    %136 = vector.broadcast %135 : vector<32x1xf32> to vector<32x96xf32>
    %137 = arith.mulf %136, %21 : vector<32x96xf32>
    %138 = arith.addf %134, %137 : vector<32x96xf32>
    %c7 = arith.constant 7 : index
    %c0_29 = arith.constant 0 : index
    %c0_30 = arith.constant 0 : index
    %139 = vector.load %arg10[%c7, %c0_29, %c0_30] : memref<12x32x96xf32, #tpu.memory_space<vmem>>, vector<1x32x96xf32>
    %140 = vector.shape_cast %139 : vector<1x32x96xf32> to vector<32x96xf32>
    %141 = vector.shape_cast %138 : vector<32x96xf32> to vector<1x32x96xf32>
    tpu.vector_store %arg10[%c7, %c0_29, %c0_30], %141 {strides = array<i32>} : memref<12x32x96xf32, #tpu.memory_space<vmem>>, vector<1x32x96xf32>,
    %142 = vector.extract_strided_slice %4 {offsets = [0, 8], sizes = [32, 1], strides = [1, 1]} : vector<32x12xf32> to vector<32x1xf32>
    %143 = vector.broadcast %142 : vector<32x1xf32> to vector<32x96xf32>
    %144 = arith.mulf %143, %13 : vector<32x96xf32>
    %145 = arith.addf %9, %144 : vector<32x96xf32>
    %146 = vector.extract_strided_slice %5 {offsets = [0, 8], sizes = [32, 1], strides = [1, 1]} : vector<32x12xf32> to vector<32x1xf32>
    %147 = vector.broadcast %146 : vector<32x1xf32> to vector<32x96xf32>
    %148 = arith.mulf %147, %17 : vector<32x96xf32>
    %149 = arith.addf %145, %148 : vector<32x96xf32>
    %150 = vector.extract_strided_slice %6 {offsets = [0, 8], sizes = [32, 1], strides = [1, 1]} : vector<32x12xf32> to vector<32x1xf32>
    %151 = vector.broadcast %150 : vector<32x1xf32> to vector<32x96xf32>
    %152 = arith.mulf %151, %21 : vector<32x96xf32>
    %153 = arith.addf %149, %152 : vector<32x96xf32>
    %c8 = arith.constant 8 : index
    %c0_31 = arith.constant 0 : index
    %c0_32 = arith.constant 0 : index
    %154 = vector.load %arg10[%c8, %c0_31, %c0_32] : memref<12x32x96xf32, #tpu.memory_space<vmem>>, vector<1x32x96xf32>
    %155 = vector.shape_cast %154 : vector<1x32x96xf32> to vector<32x96xf32>
    %156 = vector.shape_cast %153 : vector<32x96xf32> to vector<1x32x96xf32>
    tpu.vector_store %arg10[%c8, %c0_31, %c0_32], %156 {strides = array<i32>} : memref<12x32x96xf32, #tpu.memory_space<vmem>>, vector<1x32x96xf32>,
    %157 = vector.extract_strided_slice %4 {offsets = [0, 9], sizes = [32, 1], strides = [1, 1]} : vector<32x12xf32> to vector<32x1xf32>
    %158 = vector.broadcast %157 : vector<32x1xf32> to vector<32x96xf32>
    %159 = arith.mulf %158, %13 : vector<32x96xf32>
    %160 = arith.addf %9, %159 : vector<32x96xf32>
    %161 = vector.extract_strided_slice %5 {offsets = [0, 9], sizes = [32, 1], strides = [1, 1]} : vector<32x12xf32> to vector<32x1xf32>
    %162 = vector.broadcast %161 : vector<32x1xf32> to vector<32x96xf32>
    %163 = arith.mulf %162, %17 : vector<32x96xf32>
    %164 = arith.addf %160, %163 : vector<32x96xf32>
    %165 = vector.extract_strided_slice %6 {offsets = [0, 9], sizes = [32, 1], strides = [1, 1]} : vector<32x12xf32> to vector<32x1xf32>
    %166 = vector.broadcast %165 : vector<32x1xf32> to vector<32x96xf32>
    %167 = arith.mulf %166, %21 : vector<32x96xf32>
    %168 = arith.addf %164, %167 : vector<32x96xf32>
    %c9 = arith.constant 9 : index
    %c0_33 = arith.constant 0 : index
    %c0_34 = arith.constant 0 : index
    %169 = vector.load %arg10[%c9, %c0_33, %c0_34] : memref<12x32x96xf32, #tpu.memory_space<vmem>>, vector<1x32x96xf32>
    %170 = vector.shape_cast %169 : vector<1x32x96xf32> to vector<32x96xf32>
    %171 = vector.shape_cast %168 : vector<32x96xf32> to vector<1x32x96xf32>
    tpu.vector_store %arg10[%c9, %c0_33, %c0_34], %171 {strides = array<i32>} : memref<12x32x96xf32, #tpu.memory_space<vmem>>, vector<1x32x96xf32>,
    %172 = vector.extract_strided_slice %4 {offsets = [0, 10], sizes = [32, 1], strides = [1, 1]} : vector<32x12xf32> to vector<32x1xf32>
    %173 = vector.broadcast %172 : vector<32x1xf32> to vector<32x96xf32>
    %174 = arith.mulf %173, %13 : vector<32x96xf32>
    %175 = arith.addf %9, %174 : vector<32x96xf32>
    %176 = vector.extract_strided_slice %5 {offsets = [0, 10], sizes = [32, 1], strides = [1, 1]} : vector<32x12xf32> to vector<32x1xf32>
    %177 = vector.broadcast %176 : vector<32x1xf32> to vector<32x96xf32>
    %178 = arith.mulf %177, %17 : vector<32x96xf32>
    %179 = arith.addf %175, %178 : vector<32x96xf32>
    %180 = vector.extract_strided_slice %6 {offsets = [0, 10], sizes = [32, 1], strides = [1, 1]} : vector<32x12xf32> to vector<32x1xf32>
    %181 = vector.broadcast %180 : vector<32x1xf32> to vector<32x96xf32>
    %182 = arith.mulf %181, %21 : vector<32x96xf32>
    %183 = arith.addf %179, %182 : vector<32x96xf32>
    %c10 = arith.constant 10 : index
    %c0_35 = arith.constant 0 : index
    %c0_36 = arith.constant 0 : index
    %184 = vector.load %arg10[%c10, %c0_35, %c0_36] : memref<12x32x96xf32, #tpu.memory_space<vmem>>, vector<1x32x96xf32>
    %185 = vector.shape_cast %184 : vector<1x32x96xf32> to vector<32x96xf32>
    %186 = vector.shape_cast %183 : vector<32x96xf32> to vector<1x32x96xf32>
    tpu.vector_store %arg10[%c10, %c0_35, %c0_36], %186 {strides = array<i32>} : memref<12x32x96xf32, #tpu.memory_space<vmem>>, vector<1x32x96xf32>,
    %187 = vector.extract_strided_slice %4 {offsets = [0, 11], sizes = [32, 1], strides = [1, 1]} : vector<32x12xf32> to vector<32x1xf32>
    %188 = vector.broadcast %187 : vector<32x1xf32> to vector<32x96xf32>
    %189 = arith.mulf %188, %13 : vector<32x96xf32>
    %190 = arith.addf %9, %189 : vector<32x96xf32>
    %191 = vector.extract_strided_slice %5 {offsets = [0, 11], sizes = [32, 1], strides = [1, 1]} : vector<32x12xf32> to vector<32x1xf32>
    %192 = vector.broadcast %191 : vector<32x1xf32> to vector<32x96xf32>
    %193 = arith.mulf %192, %17 : vector<32x96xf32>
    %194 = arith.addf %190, %193 : vector<32x96xf32>
    %195 = vector.extract_strided_slice %6 {offsets = [0, 11], sizes = [32, 1], strides = [1, 1]} : vector<32x12xf32> to vector<32x1xf32>
    %196 = vector.broadcast %195 : vector<32x1xf32> to vector<32x96xf32>
    %197 = arith.mulf %196, %21 : vector<32x96xf32>
    %198 = arith.addf %194, %197 : vector<32x96xf32>
    %c11 = arith.constant 11 : index
    %c0_37 = arith.constant 0 : index
    %c0_38 = arith.constant 0 : index
    %199 = vector.load %arg10[%c11, %c0_37, %c0_38] : memref<12x32x96xf32, #tpu.memory_space<vmem>>, vector<1x32x96xf32>
    %200 = vector.shape_cast %199 : vector<1x32x96xf32> to vector<32x96xf32>
    %201 = vector.shape_cast %198 : vector<32x96xf32> to vector<1x32x96xf32>
    tpu.vector_store %arg10[%c11, %c0_37, %c0_38], %201 {strides = array<i32>} : memref<12x32x96xf32, #tpu.memory_space<vmem>>, vector<1x32x96xf32>,
    %202 = vector.extract_strided_slice %0 {offsets = [0, 0], sizes = [32, 32], strides = [1, 1]} : vector<96x32xbf16> to vector<32x32xbf16>
    %203 = vector.extract_strided_slice %0 {offsets = [32, 0], sizes = [32, 32], strides = [1, 1]} : vector<96x32xbf16> to vector<32x32xbf16>
    %204 = vector.extract_strided_slice %0 {offsets = [64, 0], sizes = [32, 32], strides = [1, 1]} : vector<96x32xbf16> to vector<32x32xbf16>
    %c0_39 = arith.constant 0 : index
    %c0_40 = arith.constant 0 : index
    %205 = vector.load %arg5[%c0_39, %c0_40] : memref<32x192xbf16, #tpu.memory_space<vmem>>, vector<32x192xbf16>
    %c0_41 = arith.constant 0 : index
    %c0_42 = arith.constant 0 : index
    %206 = vector.load %arg6[%c0_41, %c0_42] : memref<32x96xbf16, #tpu.memory_space<vmem>>, vector<32x96xbf16>
    %cst_43 = arith.constant 0.000000e+00 : f32
    %207 = vector.broadcast %cst_43 : f32 to vector<32x32xf32>
    %c0_44 = arith.constant 0 : index
    %c0_45 = arith.constant 0 : index
    %c0_46 = arith.constant 0 : index
    %208 = vector.load %arg10[%c0_44, %c0_45, %c0_46] : memref<12x32x96xf32, #tpu.memory_space<vmem>>, vector<1x32x96xf32>
    %209 = vector.shape_cast %208 : vector<1x32x96xf32> to vector<32x96xf32>
    %210 = arith.truncf %207 : vector<32x32xf32> to vector<32x32xbf16>
    %cst_47 = arith.constant dense<0.000000e+00> : vector<32x192xf32>
    %211 = tpu.matmul %210, %205, %cst_47 {dimension_numbers = #tpu.dot_dimension_numbers<[1], [0], [0], [1], [0, 0, 1, 1], [], []>} : vector<32x32xbf16>, vector<32x192xbf16>, vector<32x192xf32> -> vector<32x192xf32>
    %212 = arith.truncf %211 : vector<32x192xf32> to vector<32x192xbf16>
    %213 = vector.extract_strided_slice %209 {offsets = [0, 0], sizes = [32, 64], strides = [1, 1]} : vector<32x96xf32> to vector<32x64xf32>
    %214 = vector.extract_strided_slice %212 {offsets = [0, 0], sizes = [32, 64], strides = [1, 1]} : vector<32x192xbf16> to vector<32x64xbf16>
    %cst_48 = arith.constant dense<0.000000e+00> : vector<32x64xf32>
    %215 = tpu.matmul %202, %214, %cst_48 {dimension_numbers = #tpu.dot_dimension_numbers<[1], [0], [0], [1], [0, 0, 1, 1], [], []>} : vector<32x32xbf16>, vector<32x64xbf16>, vector<32x64xf32> -> vector<32x64xf32>
    %216 = arith.addf %213, %215 : vector<32x64xf32>
    %217 = vector.extract_strided_slice %212 {offsets = [0, 64], sizes = [32, 64], strides = [1, 1]} : vector<32x192xbf16> to vector<32x64xbf16>
    %cst_49 = arith.constant dense<0.000000e+00> : vector<32x64xf32>
    %218 = tpu.matmul %203, %217, %cst_49 {dimension_numbers = #tpu.dot_dimension_numbers<[1], [0], [0], [1], [0, 0, 1, 1], [], []>} : vector<32x32xbf16>, vector<32x64xbf16>, vector<32x64xf32> -> vector<32x64xf32>
    %219 = arith.addf %216, %218 : vector<32x64xf32>
    %220 = vector.extract_strided_slice %212 {offsets = [0, 128], sizes = [32, 64], strides = [1, 1]} : vector<32x192xbf16> to vector<32x64xbf16>
    %cst_50 = arith.constant dense<0.000000e+00> : vector<32x64xf32>
    %221 = tpu.matmul %204, %220, %cst_50 {dimension_numbers = #tpu.dot_dimension_numbers<[1], [0], [0], [1], [0, 0, 1, 1], [], []>} : vector<32x32xbf16>, vector<32x64xbf16>, vector<32x64xf32> -> vector<32x64xf32>
    %222 = arith.addf %219, %221 : vector<32x64xf32>
    %223 = arith.negf %222 : vector<32x64xf32>
    %224 = math.exp %223 : vector<32x64xf32>
    %cst_51 = arith.constant 1.000000e+00 : f32
    %225 = vector.broadcast %cst_51 : f32 to vector<32x64xf32>
    %226 = arith.addf %225, %224 : vector<32x64xf32>
    %227 = arith.divf %225, %226 : vector<32x64xf32>
    %228 = vector.extract_strided_slice %227 {offsets = [0, 0], sizes = [32, 32], strides = [1, 1]} : vector<32x64xf32> to vector<32x32xf32>
    %229 = vector.extract_strided_slice %227 {offsets = [0, 32], sizes = [32, 32], strides = [1, 1]} : vector<32x64xf32> to vector<32x32xf32>
    %230 = arith.mulf %228, %207 : vector<32x32xf32>
    %231 = arith.truncf %230 : vector<32x32xf32> to vector<32x32xbf16>
    %cst_52 = arith.constant dense<0.000000e+00> : vector<32x96xf32>
    %232 = tpu.matmul %231, %206, %cst_52 {dimension_numbers = #tpu.dot_dimension_numbers<[1], [0], [0], [1], [0, 0, 1, 1], [], []>} : vector<32x32xbf16>, vector<32x96xbf16>, vector<32x96xf32> -> vector<32x96xf32>
    %233 = arith.truncf %232 : vector<32x96xf32> to vector<32x96xbf16>
    %234 = vector.extract_strided_slice %209 {offsets = [0, 64], sizes = [32, 32], strides = [1, 1]} : vector<32x96xf32> to vector<32x32xf32>
    %235 = vector.extract_strided_slice %233 {offsets = [0, 0], sizes = [32, 32], strides = [1, 1]} : vector<32x96xbf16> to vector<32x32xbf16>
    %cst_53 = arith.constant dense<0.000000e+00> : vector<32x32xf32>
    %236 = tpu.matmul %202, %235, %cst_53 {dimension_numbers = #tpu.dot_dimension_numbers<[1], [0], [0], [1], [0, 0, 1, 1], [], []>} : vector<32x32xbf16>, vector<32x32xbf16>, vector<32x32xf32> -> vector<32x32xf32>
    %237 = arith.addf %234, %236 : vector<32x32xf32>
    %238 = vector.extract_strided_slice %233 {offsets = [0, 32], sizes = [32, 32], strides = [1, 1]} : vector<32x96xbf16> to vector<32x32xbf16>
    %cst_54 = arith.constant dense<0.000000e+00> : vector<32x32xf32>
    %239 = tpu.matmul %203, %238, %cst_54 {dimension_numbers = #tpu.dot_dimension_numbers<[1], [0], [0], [1], [0, 0, 1, 1], [], []>} : vector<32x32xbf16>, vector<32x32xbf16>, vector<32x32xf32> -> vector<32x32xf32>
    %240 = arith.addf %237, %239 : vector<32x32xf32>
    %241 = vector.extract_strided_slice %233 {offsets = [0, 64], sizes = [32, 32], strides = [1, 1]} : vector<32x96xbf16> to vector<32x32xbf16>
    %cst_55 = arith.constant dense<0.000000e+00> : vector<32x32xf32>
    %242 = tpu.matmul %204, %241, %cst_55 {dimension_numbers = #tpu.dot_dimension_numbers<[1], [0], [0], [1], [0, 0, 1, 1], [], []>} : vector<32x32xbf16>, vector<32x32xbf16>, vector<32x32xf32> -> vector<32x32xf32>
    %243 = arith.addf %240, %242 : vector<32x32xf32>
    %244 = math.tanh %243 : vector<32x32xf32>
    %245 = arith.mulf %229, %244 : vector<32x32xf32>
    %cst_56 = arith.constant 1.000000e+00 : f32
    %246 = vector.broadcast %cst_56 : f32 to vector<32x32xf32>
    %247 = arith.subf %246, %229 : vector<32x32xf32>
    %248 = arith.mulf %247, %207 : vector<32x32xf32>
    %249 = arith.addf %245, %248 : vector<32x32xf32>
    %c1_57 = arith.constant 1 : index
    %c0_58 = arith.constant 0 : index
    %c0_59 = arith.constant 0 : index
    %250 = vector.load %arg10[%c1_57, %c0_58, %c0_59] : memref<12x32x96xf32, #tpu.memory_space<vmem>>, vector<1x32x96xf32>
    %251 = vector.shape_cast %250 : vector<1x32x96xf32> to vector<32x96xf32>
    %252 = arith.truncf %249 : vector<32x32xf32> to vector<32x32xbf16>
    %cst_60 = arith.constant dense<0.000000e+00> : vector<32x192xf32>
    %253 = tpu.matmul %252, %205, %cst_60 {dimension_numbers = #tpu.dot_dimension_numbers<[1], [0], [0], [1], [0, 0, 1, 1], [], []>} : vector<32x32xbf16>, vector<32x192xbf16>, vector<32x192xf32> -> vector<32x192xf32>
    %254 = arith.truncf %253 : vector<32x192xf32> to vector<32x192xbf16>
    %255 = vector.extract_strided_slice %251 {offsets = [0, 0], sizes = [32, 64], strides = [1, 1]} : vector<32x96xf32> to vector<32x64xf32>
    %256 = vector.extract_strided_slice %254 {offsets = [0, 0], sizes = [32, 64], strides = [1, 1]} : vector<32x192xbf16> to vector<32x64xbf16>
    %cst_61 = arith.constant dense<0.000000e+00> : vector<32x64xf32>
    %257 = tpu.matmul %202, %256, %cst_61 {dimension_numbers = #tpu.dot_dimension_numbers<[1], [0], [0], [1], [0, 0, 1, 1], [], []>} : vector<32x32xbf16>, vector<32x64xbf16>, vector<32x64xf32> -> vector<32x64xf32>
    %258 = arith.addf %255, %257 : vector<32x64xf32>
    %259 = vector.extract_strided_slice %254 {offsets = [0, 64], sizes = [32, 64], strides = [1, 1]} : vector<32x192xbf16> to vector<32x64xbf16>
    %cst_62 = arith.constant dense<0.000000e+00> : vector<32x64xf32>
    %260 = tpu.matmul %203, %259, %cst_62 {dimension_numbers = #tpu.dot_dimension_numbers<[1], [0], [0], [1], [0, 0, 1, 1], [], []>} : vector<32x32xbf16>, vector<32x64xbf16>, vector<32x64xf32> -> vector<32x64xf32>
    %261 = arith.addf %258, %260 : vector<32x64xf32>
    %262 = vector.extract_strided_slice %254 {offsets = [0, 128], sizes = [32, 64], strides = [1, 1]} : vector<32x192xbf16> to vector<32x64xbf16>
    %cst_63 = arith.constant dense<0.000000e+00> : vector<32x64xf32>
    %263 = tpu.matmul %204, %262, %cst_63 {dimension_numbers = #tpu.dot_dimension_numbers<[1], [0], [0], [1], [0, 0, 1, 1], [], []>} : vector<32x32xbf16>, vector<32x64xbf16>, vector<32x64xf32> -> vector<32x64xf32>
    %264 = arith.addf %261, %263 : vector<32x64xf32>
    %265 = arith.negf %264 : vector<32x64xf32>
    %266 = math.exp %265 : vector<32x64xf32>
    %cst_64 = arith.constant 1.000000e+00 : f32
    %267 = vector.broadcast %cst_64 : f32 to vector<32x64xf32>
    %268 = arith.addf %267, %266 : vector<32x64xf32>
    %269 = arith.divf %267, %268 : vector<32x64xf32>
    %270 = vector.extract_strided_slice %269 {offsets = [0, 0], sizes = [32, 32], strides = [1, 1]} : vector<32x64xf32> to vector<32x32xf32>
    %271 = vector.extract_strided_slice %269 {offsets = [0, 32], sizes = [32, 32], strides = [1, 1]} : vector<32x64xf32> to vector<32x32xf32>
    %272 = arith.mulf %270, %249 : vector<32x32xf32>
    %273 = arith.truncf %272 : vector<32x32xf32> to vector<32x32xbf16>
    %cst_65 = arith.constant dense<0.000000e+00> : vector<32x96xf32>
    %274 = tpu.matmul %273, %206, %cst_65 {dimension_numbers = #tpu.dot_dimension_numbers<[1], [0], [0], [1], [0, 0, 1, 1], [], []>} : vector<32x32xbf16>, vector<32x96xbf16>, vector<32x96xf32> -> vector<32x96xf32>
    %275 = arith.truncf %274 : vector<32x96xf32> to vector<32x96xbf16>
    %276 = vector.extract_strided_slice %251 {offsets = [0, 64], sizes = [32, 32], strides = [1, 1]} : vector<32x96xf32> to vector<32x32xf32>
    %277 = vector.extract_strided_slice %275 {offsets = [0, 0], sizes = [32, 32], strides = [1, 1]} : vector<32x96xbf16> to vector<32x32xbf16>
    %cst_66 = arith.constant dense<0.000000e+00> : vector<32x32xf32>
    %278 = tpu.matmul %202, %277, %cst_66 {dimension_numbers = #tpu.dot_dimension_numbers<[1], [0], [0], [1], [0, 0, 1, 1], [], []>} : vector<32x32xbf16>, vector<32x32xbf16>, vector<32x32xf32> -> vector<32x32xf32>
    %279 = arith.addf %276, %278 : vector<32x32xf32>
    %280 = vector.extract_strided_slice %275 {offsets = [0, 32], sizes = [32, 32], strides = [1, 1]} : vector<32x96xbf16> to vector<32x32xbf16>
    %cst_67 = arith.constant dense<0.000000e+00> : vector<32x32xf32>
    %281 = tpu.matmul %203, %280, %cst_67 {dimension_numbers = #tpu.dot_dimension_numbers<[1], [0], [0], [1], [0, 0, 1, 1], [], []>} : vector<32x32xbf16>, vector<32x32xbf16>, vector<32x32xf32> -> vector<32x32xf32>
    %282 = arith.addf %279, %281 : vector<32x32xf32>
    %283 = vector.extract_strided_slice %275 {offsets = [0, 64], sizes = [32, 32], strides = [1, 1]} : vector<32x96xbf16> to vector<32x32xbf16>
    %cst_68 = arith.constant dense<0.000000e+00> : vector<32x32xf32>
    %284 = tpu.matmul %204, %283, %cst_68 {dimension_numbers = #tpu.dot_dimension_numbers<[1], [0], [0], [1], [0, 0, 1, 1], [], []>} : vector<32x32xbf16>, vector<32x32xbf16>, vector<32x32xf32> -> vector<32x32xf32>
    %285 = arith.addf %282, %284 : vector<32x32xf32>
    %286 = math.tanh %285 : vector<32x32xf32>
    %287 = arith.mulf %271, %286 : vector<32x32xf32>
    %cst_69 = arith.constant 1.000000e+00 : f32
    %288 = vector.broadcast %cst_69 : f32 to vector<32x32xf32>
    %289 = arith.subf %288, %271 : vector<32x32xf32>
    %290 = arith.mulf %289, %249 : vector<32x32xf32>
    %291 = arith.addf %287, %290 : vector<32x32xf32>
    %c2_70 = arith.constant 2 : index
    %c0_71 = arith.constant 0 : index
    %c0_72 = arith.constant 0 : index
    %292 = vector.load %arg10[%c2_70, %c0_71, %c0_72] : memref<12x32x96xf32, #tpu.memory_space<vmem>>, vector<1x32x96xf32>
    %293 = vector.shape_cast %292 : vector<1x32x96xf32> to vector<32x96xf32>
    %294 = arith.truncf %291 : vector<32x32xf32> to vector<32x32xbf16>
    %cst_73 = arith.constant dense<0.000000e+00> : vector<32x192xf32>
    %295 = tpu.matmul %294, %205, %cst_73 {dimension_numbers = #tpu.dot_dimension_numbers<[1], [0], [0], [1], [0, 0, 1, 1], [], []>} : vector<32x32xbf16>, vector<32x192xbf16>, vector<32x192xf32> -> vector<32x192xf32>
    %296 = arith.truncf %295 : vector<32x192xf32> to vector<32x192xbf16>
    %297 = vector.extract_strided_slice %293 {offsets = [0, 0], sizes = [32, 64], strides = [1, 1]} : vector<32x96xf32> to vector<32x64xf32>
    %298 = vector.extract_strided_slice %296 {offsets = [0, 0], sizes = [32, 64], strides = [1, 1]} : vector<32x192xbf16> to vector<32x64xbf16>
    %cst_74 = arith.constant dense<0.000000e+00> : vector<32x64xf32>
    %299 = tpu.matmul %202, %298, %cst_74 {dimension_numbers = #tpu.dot_dimension_numbers<[1], [0], [0], [1], [0, 0, 1, 1], [], []>} : vector<32x32xbf16>, vector<32x64xbf16>, vector<32x64xf32> -> vector<32x64xf32>
    %300 = arith.addf %297, %299 : vector<32x64xf32>
    %301 = vector.extract_strided_slice %296 {offsets = [0, 64], sizes = [32, 64], strides = [1, 1]} : vector<32x192xbf16> to vector<32x64xbf16>
    %cst_75 = arith.constant dense<0.000000e+00> : vector<32x64xf32>
    %302 = tpu.matmul %203, %301, %cst_75 {dimension_numbers = #tpu.dot_dimension_numbers<[1], [0], [0], [1], [0, 0, 1, 1], [], []>} : vector<32x32xbf16>, vector<32x64xbf16>, vector<32x64xf32> -> vector<32x64xf32>
    %303 = arith.addf %300, %302 : vector<32x64xf32>
    %304 = vector.extract_strided_slice %296 {offsets = [0, 128], sizes = [32, 64], strides = [1, 1]} : vector<32x192xbf16> to vector<32x64xbf16>
    %cst_76 = arith.constant dense<0.000000e+00> : vector<32x64xf32>
    %305 = tpu.matmul %204, %304, %cst_76 {dimension_numbers = #tpu.dot_dimension_numbers<[1], [0], [0], [1], [0, 0, 1, 1], [], []>} : vector<32x32xbf16>, vector<32x64xbf16>, vector<32x64xf32> -> vector<32x64xf32>
    %306 = arith.addf %303, %305 : vector<32x64xf32>
    %307 = arith.negf %306 : vector<32x64xf32>
    %308 = math.exp %307 : vector<32x64xf32>
    %cst_77 = arith.constant 1.000000e+00 : f32
    %309 = vector.broadcast %cst_77 : f32 to vector<32x64xf32>
    %310 = arith.addf %309, %308 : vector<32x64xf32>
    %311 = arith.divf %309, %310 : vector<32x64xf32>
    %312 = vector.extract_strided_slice %311 {offsets = [0, 0], sizes = [32, 32], strides = [1, 1]} : vector<32x64xf32> to vector<32x32xf32>
    %313 = vector.extract_strided_slice %311 {offsets = [0, 32], sizes = [32, 32], strides = [1, 1]} : vector<32x64xf32> to vector<32x32xf32>
    %314 = arith.mulf %312, %291 : vector<32x32xf32>
    %315 = arith.truncf %314 : vector<32x32xf32> to vector<32x32xbf16>
    %cst_78 = arith.constant dense<0.000000e+00> : vector<32x96xf32>
    %316 = tpu.matmul %315, %206, %cst_78 {dimension_numbers = #tpu.dot_dimension_numbers<[1], [0], [0], [1], [0, 0, 1, 1], [], []>} : vector<32x32xbf16>, vector<32x96xbf16>, vector<32x96xf32> -> vector<32x96xf32>
    %317 = arith.truncf %316 : vector<32x96xf32> to vector<32x96xbf16>
    %318 = vector.extract_strided_slice %293 {offsets = [0, 64], sizes = [32, 32], strides = [1, 1]} : vector<32x96xf32> to vector<32x32xf32>
    %319 = vector.extract_strided_slice %317 {offsets = [0, 0], sizes = [32, 32], strides = [1, 1]} : vector<32x96xbf16> to vector<32x32xbf16>
    %cst_79 = arith.constant dense<0.000000e+00> : vector<32x32xf32>
    %320 = tpu.matmul %202, %319, %cst_79 {dimension_numbers = #tpu.dot_dimension_numbers<[1], [0], [0], [1], [0, 0, 1, 1], [], []>} : vector<32x32xbf16>, vector<32x32xbf16>, vector<32x32xf32> -> vector<32x32xf32>
    %321 = arith.addf %318, %320 : vector<32x32xf32>
    %322 = vector.extract_strided_slice %317 {offsets = [0, 32], sizes = [32, 32], strides = [1, 1]} : vector<32x96xbf16> to vector<32x32xbf16>
    %cst_80 = arith.constant dense<0.000000e+00> : vector<32x32xf32>
    %323 = tpu.matmul %203, %322, %cst_80 {dimension_numbers = #tpu.dot_dimension_numbers<[1], [0], [0], [1], [0, 0, 1, 1], [], []>} : vector<32x32xbf16>, vector<32x32xbf16>, vector<32x32xf32> -> vector<32x32xf32>
    %324 = arith.addf %321, %323 : vector<32x32xf32>
    %325 = vector.extract_strided_slice %317 {offsets = [0, 64], sizes = [32, 32], strides = [1, 1]} : vector<32x96xbf16> to vector<32x32xbf16>
    %cst_81 = arith.constant dense<0.000000e+00> : vector<32x32xf32>
    %326 = tpu.matmul %204, %325, %cst_81 {dimension_numbers = #tpu.dot_dimension_numbers<[1], [0], [0], [1], [0, 0, 1, 1], [], []>} : vector<32x32xbf16>, vector<32x32xbf16>, vector<32x32xf32> -> vector<32x32xf32>
    %327 = arith.addf %324, %326 : vector<32x32xf32>
    %328 = math.tanh %327 : vector<32x32xf32>
    %329 = arith.mulf %313, %328 : vector<32x32xf32>
    %cst_82 = arith.constant 1.000000e+00 : f32
    %330 = vector.broadcast %cst_82 : f32 to vector<32x32xf32>
    %331 = arith.subf %330, %313 : vector<32x32xf32>
    %332 = arith.mulf %331, %291 : vector<32x32xf32>
    %333 = arith.addf %329, %332 : vector<32x32xf32>
    %c3_83 = arith.constant 3 : index
    %c0_84 = arith.constant 0 : index
    %c0_85 = arith.constant 0 : index
    %334 = vector.load %arg10[%c3_83, %c0_84, %c0_85] : memref<12x32x96xf32, #tpu.memory_space<vmem>>, vector<1x32x96xf32>
    %335 = vector.shape_cast %334 : vector<1x32x96xf32> to vector<32x96xf32>
    %336 = arith.truncf %333 : vector<32x32xf32> to vector<32x32xbf16>
    %cst_86 = arith.constant dense<0.000000e+00> : vector<32x192xf32>
    %337 = tpu.matmul %336, %205, %cst_86 {dimension_numbers = #tpu.dot_dimension_numbers<[1], [0], [0], [1], [0, 0, 1, 1], [], []>} : vector<32x32xbf16>, vector<32x192xbf16>, vector<32x192xf32> -> vector<32x192xf32>
    %338 = arith.truncf %337 : vector<32x192xf32> to vector<32x192xbf16>
    %339 = vector.extract_strided_slice %335 {offsets = [0, 0], sizes = [32, 64], strides = [1, 1]} : vector<32x96xf32> to vector<32x64xf32>
    %340 = vector.extract_strided_slice %338 {offsets = [0, 0], sizes = [32, 64], strides = [1, 1]} : vector<32x192xbf16> to vector<32x64xbf16>
    %cst_87 = arith.constant dense<0.000000e+00> : vector<32x64xf32>
    %341 = tpu.matmul %202, %340, %cst_87 {dimension_numbers = #tpu.dot_dimension_numbers<[1], [0], [0], [1], [0, 0, 1, 1], [], []>} : vector<32x32xbf16>, vector<32x64xbf16>, vector<32x64xf32> -> vector<32x64xf32>
    %342 = arith.addf %339, %341 : vector<32x64xf32>
    %343 = vector.extract_strided_slice %338 {offsets = [0, 64], sizes = [32, 64], strides = [1, 1]} : vector<32x192xbf16> to vector<32x64xbf16>
    %cst_88 = arith.constant dense<0.000000e+00> : vector<32x64xf32>
    %344 = tpu.matmul %203, %343, %cst_88 {dimension_numbers = #tpu.dot_dimension_numbers<[1], [0], [0], [1], [0, 0, 1, 1], [], []>} : vector<32x32xbf16>, vector<32x64xbf16>, vector<32x64xf32> -> vector<32x64xf32>
    %345 = arith.addf %342, %344 : vector<32x64xf32>
    %346 = vector.extract_strided_slice %338 {offsets = [0, 128], sizes = [32, 64], strides = [1, 1]} : vector<32x192xbf16> to vector<32x64xbf16>
    %cst_89 = arith.constant dense<0.000000e+00> : vector<32x64xf32>
    %347 = tpu.matmul %204, %346, %cst_89 {dimension_numbers = #tpu.dot_dimension_numbers<[1], [0], [0], [1], [0, 0, 1, 1], [], []>} : vector<32x32xbf16>, vector<32x64xbf16>, vector<32x64xf32> -> vector<32x64xf32>
    %348 = arith.addf %345, %347 : vector<32x64xf32>
    %349 = arith.negf %348 : vector<32x64xf32>
    %350 = math.exp %349 : vector<32x64xf32>
    %cst_90 = arith.constant 1.000000e+00 : f32
    %351 = vector.broadcast %cst_90 : f32 to vector<32x64xf32>
    %352 = arith.addf %351, %350 : vector<32x64xf32>
    %353 = arith.divf %351, %352 : vector<32x64xf32>
    %354 = vector.extract_strided_slice %353 {offsets = [0, 0], sizes = [32, 32], strides = [1, 1]} : vector<32x64xf32> to vector<32x32xf32>
    %355 = vector.extract_strided_slice %353 {offsets = [0, 32], sizes = [32, 32], strides = [1, 1]} : vector<32x64xf32> to vector<32x32xf32>
    %356 = arith.mulf %354, %333 : vector<32x32xf32>
    %357 = arith.truncf %356 : vector<32x32xf32> to vector<32x32xbf16>
    %cst_91 = arith.constant dense<0.000000e+00> : vector<32x96xf32>
    %358 = tpu.matmul %357, %206, %cst_91 {dimension_numbers = #tpu.dot_dimension_numbers<[1], [0], [0], [1], [0, 0, 1, 1], [], []>} : vector<32x32xbf16>, vector<32x96xbf16>, vector<32x96xf32> -> vector<32x96xf32>
    %359 = arith.truncf %358 : vector<32x96xf32> to vector<32x96xbf16>
    %360 = vector.extract_strided_slice %335 {offsets = [0, 64], sizes = [32, 32], strides = [1, 1]} : vector<32x96xf32> to vector<32x32xf32>
    %361 = vector.extract_strided_slice %359 {offsets = [0, 0], sizes = [32, 32], strides = [1, 1]} : vector<32x96xbf16> to vector<32x32xbf16>
    %cst_92 = arith.constant dense<0.000000e+00> : vector<32x32xf32>
    %362 = tpu.matmul %202, %361, %cst_92 {dimension_numbers = #tpu.dot_dimension_numbers<[1], [0], [0], [1], [0, 0, 1, 1], [], []>} : vector<32x32xbf16>, vector<32x32xbf16>, vector<32x32xf32> -> vector<32x32xf32>
    %363 = arith.addf %360, %362 : vector<32x32xf32>
    %364 = vector.extract_strided_slice %359 {offsets = [0, 32], sizes = [32, 32], strides = [1, 1]} : vector<32x96xbf16> to vector<32x32xbf16>
    %cst_93 = arith.constant dense<0.000000e+00> : vector<32x32xf32>
    %365 = tpu.matmul %203, %364, %cst_93 {dimension_numbers = #tpu.dot_dimension_numbers<[1], [0], [0], [1], [0, 0, 1, 1], [], []>} : vector<32x32xbf16>, vector<32x32xbf16>, vector<32x32xf32> -> vector<32x32xf32>
    %366 = arith.addf %363, %365 : vector<32x32xf32>
    %367 = vector.extract_strided_slice %359 {offsets = [0, 64], sizes = [32, 32], strides = [1, 1]} : vector<32x96xbf16> to vector<32x32xbf16>
    %cst_94 = arith.constant dense<0.000000e+00> : vector<32x32xf32>
    %368 = tpu.matmul %204, %367, %cst_94 {dimension_numbers = #tpu.dot_dimension_numbers<[1], [0], [0], [1], [0, 0, 1, 1], [], []>} : vector<32x32xbf16>, vector<32x32xbf16>, vector<32x32xf32> -> vector<32x32xf32>
    %369 = arith.addf %366, %368 : vector<32x32xf32>
    %370 = math.tanh %369 : vector<32x32xf32>
    %371 = arith.mulf %355, %370 : vector<32x32xf32>
    %cst_95 = arith.constant 1.000000e+00 : f32
    %372 = vector.broadcast %cst_95 : f32 to vector<32x32xf32>
    %373 = arith.subf %372, %355 : vector<32x32xf32>
    %374 = arith.mulf %373, %333 : vector<32x32xf32>
    %375 = arith.addf %371, %374 : vector<32x32xf32>
    %c4_96 = arith.constant 4 : index
    %c0_97 = arith.constant 0 : index
    %c0_98 = arith.constant 0 : index
    %376 = vector.load %arg10[%c4_96, %c0_97, %c0_98] : memref<12x32x96xf32, #tpu.memory_space<vmem>>, vector<1x32x96xf32>
    %377 = vector.shape_cast %376 : vector<1x32x96xf32> to vector<32x96xf32>
    %378 = arith.truncf %375 : vector<32x32xf32> to vector<32x32xbf16>
    %cst_99 = arith.constant dense<0.000000e+00> : vector<32x192xf32>
    %379 = tpu.matmul %378, %205, %cst_99 {dimension_numbers = #tpu.dot_dimension_numbers<[1], [0], [0], [1], [0, 0, 1, 1], [], []>} : vector<32x32xbf16>, vector<32x192xbf16>, vector<32x192xf32> -> vector<32x192xf32>
    %380 = arith.truncf %379 : vector<32x192xf32> to vector<32x192xbf16>
    %381 = vector.extract_strided_slice %377 {offsets = [0, 0], sizes = [32, 64], strides = [1, 1]} : vector<32x96xf32> to vector<32x64xf32>
    %382 = vector.extract_strided_slice %380 {offsets = [0, 0], sizes = [32, 64], strides = [1, 1]} : vector<32x192xbf16> to vector<32x64xbf16>
    %cst_100 = arith.constant dense<0.000000e+00> : vector<32x64xf32>
    %383 = tpu.matmul %202, %382, %cst_100 {dimension_numbers = #tpu.dot_dimension_numbers<[1], [0], [0], [1], [0, 0, 1, 1], [], []>} : vector<32x32xbf16>, vector<32x64xbf16>, vector<32x64xf32> -> vector<32x64xf32>
    %384 = arith.addf %381, %383 : vector<32x64xf32>
    %385 = vector.extract_strided_slice %380 {offsets = [0, 64], sizes = [32, 64], strides = [1, 1]} : vector<32x192xbf16> to vector<32x64xbf16>
    %cst_101 = arith.constant dense<0.000000e+00> : vector<32x64xf32>
    %386 = tpu.matmul %203, %385, %cst_101 {dimension_numbers = #tpu.dot_dimension_numbers<[1], [0], [0], [1], [0, 0, 1, 1], [], []>} : vector<32x32xbf16>, vector<32x64xbf16>, vector<32x64xf32> -> vector<32x64xf32>
    %387 = arith.addf %384, %386 : vector<32x64xf32>
    %388 = vector.extract_strided_slice %380 {offsets = [0, 128], sizes = [32, 64], strides = [1, 1]} : vector<32x192xbf16> to vector<32x64xbf16>
    %cst_102 = arith.constant dense<0.000000e+00> : vector<32x64xf32>
    %389 = tpu.matmul %204, %388, %cst_102 {dimension_numbers = #tpu.dot_dimension_numbers<[1], [0], [0], [1], [0, 0, 1, 1], [], []>} : vector<32x32xbf16>, vector<32x64xbf16>, vector<32x64xf32> -> vector<32x64xf32>
    %390 = arith.addf %387, %389 : vector<32x64xf32>
    %391 = arith.negf %390 : vector<32x64xf32>
    %392 = math.exp %391 : vector<32x64xf32>
    %cst_103 = arith.constant 1.000000e+00 : f32
    %393 = vector.broadcast %cst_103 : f32 to vector<32x64xf32>
    %394 = arith.addf %393, %392 : vector<32x64xf32>
    %395 = arith.divf %393, %394 : vector<32x64xf32>
    %396 = vector.extract_strided_slice %395 {offsets = [0, 0], sizes = [32, 32], strides = [1, 1]} : vector<32x64xf32> to vector<32x32xf32>
    %397 = vector.extract_strided_slice %395 {offsets = [0, 32], sizes = [32, 32], strides = [1, 1]} : vector<32x64xf32> to vector<32x32xf32>
    %398 = arith.mulf %396, %375 : vector<32x32xf32>
    %399 = arith.truncf %398 : vector<32x32xf32> to vector<32x32xbf16>
    %cst_104 = arith.constant dense<0.000000e+00> : vector<32x96xf32>
    %400 = tpu.matmul %399, %206, %cst_104 {dimension_numbers = #tpu.dot_dimension_numbers<[1], [0], [0], [1], [0, 0, 1, 1], [], []>} : vector<32x32xbf16>, vector<32x96xbf16>, vector<32x96xf32> -> vector<32x96xf32>
    %401 = arith.truncf %400 : vector<32x96xf32> to vector<32x96xbf16>
    %402 = vector.extract_strided_slice %377 {offsets = [0, 64], sizes = [32, 32], strides = [1, 1]} : vector<32x96xf32> to vector<32x32xf32>
    %403 = vector.extract_strided_slice %401 {offsets = [0, 0], sizes = [32, 32], strides = [1, 1]} : vector<32x96xbf16> to vector<32x32xbf16>
    %cst_105 = arith.constant dense<0.000000e+00> : vector<32x32xf32>
    %404 = tpu.matmul %202, %403, %cst_105 {dimension_numbers = #tpu.dot_dimension_numbers<[1], [0], [0], [1], [0, 0, 1, 1], [], []>} : vector<32x32xbf16>, vector<32x32xbf16>, vector<32x32xf32> -> vector<32x32xf32>
    %405 = arith.addf %402, %404 : vector<32x32xf32>
    %406 = vector.extract_strided_slice %401 {offsets = [0, 32], sizes = [32, 32], strides = [1, 1]} : vector<32x96xbf16> to vector<32x32xbf16>
    %cst_106 = arith.constant dense<0.000000e+00> : vector<32x32xf32>
    %407 = tpu.matmul %203, %406, %cst_106 {dimension_numbers = #tpu.dot_dimension_numbers<[1], [0], [0], [1], [0, 0, 1, 1], [], []>} : vector<32x32xbf16>, vector<32x32xbf16>, vector<32x32xf32> -> vector<32x32xf32>
    %408 = arith.addf %405, %407 : vector<32x32xf32>
    %409 = vector.extract_strided_slice %401 {offsets = [0, 64], sizes = [32, 32], strides = [1, 1]} : vector<32x96xbf16> to vector<32x32xbf16>
    %cst_107 = arith.constant dense<0.000000e+00> : vector<32x32xf32>
    %410 = tpu.matmul %204, %409, %cst_107 {dimension_numbers = #tpu.dot_dimension_numbers<[1], [0], [0], [1], [0, 0, 1, 1], [], []>} : vector<32x32xbf16>, vector<32x32xbf16>, vector<32x32xf32> -> vector<32x32xf32>
    %411 = arith.addf %408, %410 : vector<32x32xf32>
    %412 = math.tanh %411 : vector<32x32xf32>
    %413 = arith.mulf %397, %412 : vector<32x32xf32>
    %cst_108 = arith.constant 1.000000e+00 : f32
    %414 = vector.broadcast %cst_108 : f32 to vector<32x32xf32>
    %415 = arith.subf %414, %397 : vector<32x32xf32>
    %416 = arith.mulf %415, %375 : vector<32x32xf32>
    %417 = arith.addf %413, %416 : vector<32x32xf32>
    %c5_109 = arith.constant 5 : index
    %c0_110 = arith.constant 0 : index
    %c0_111 = arith.constant 0 : index
    %418 = vector.load %arg10[%c5_109, %c0_110, %c0_111] : memref<12x32x96xf32, #tpu.memory_space<vmem>>, vector<1x32x96xf32>
    %419 = vector.shape_cast %418 : vector<1x32x96xf32> to vector<32x96xf32>
    %420 = arith.truncf %417 : vector<32x32xf32> to vector<32x32xbf16>
    %cst_112 = arith.constant dense<0.000000e+00> : vector<32x192xf32>
    %421 = tpu.matmul %420, %205, %cst_112 {dimension_numbers = #tpu.dot_dimension_numbers<[1], [0], [0], [1], [0, 0, 1, 1], [], []>} : vector<32x32xbf16>, vector<32x192xbf16>, vector<32x192xf32> -> vector<32x192xf32>
    %422 = arith.truncf %421 : vector<32x192xf32> to vector<32x192xbf16>
    %423 = vector.extract_strided_slice %419 {offsets = [0, 0], sizes = [32, 64], strides = [1, 1]} : vector<32x96xf32> to vector<32x64xf32>
    %424 = vector.extract_strided_slice %422 {offsets = [0, 0], sizes = [32, 64], strides = [1, 1]} : vector<32x192xbf16> to vector<32x64xbf16>
    %cst_113 = arith.constant dense<0.000000e+00> : vector<32x64xf32>
    %425 = tpu.matmul %202, %424, %cst_113 {dimension_numbers = #tpu.dot_dimension_numbers<[1], [0], [0], [1], [0, 0, 1, 1], [], []>} : vector<32x32xbf16>, vector<32x64xbf16>, vector<32x64xf32> -> vector<32x64xf32>
    %426 = arith.addf %423, %425 : vector<32x64xf32>
    %427 = vector.extract_strided_slice %422 {offsets = [0, 64], sizes = [32, 64], strides = [1, 1]} : vector<32x192xbf16> to vector<32x64xbf16>
    %cst_114 = arith.constant dense<0.000000e+00> : vector<32x64xf32>
    %428 = tpu.matmul %203, %427, %cst_114 {dimension_numbers = #tpu.dot_dimension_numbers<[1], [0], [0], [1], [0, 0, 1, 1], [], []>} : vector<32x32xbf16>, vector<32x64xbf16>, vector<32x64xf32> -> vector<32x64xf32>
    %429 = arith.addf %426, %428 : vector<32x64xf32>
    %430 = vector.extract_strided_slice %422 {offsets = [0, 128], sizes = [32, 64], strides = [1, 1]} : vector<32x192xbf16> to vector<32x64xbf16>
    %cst_115 = arith.constant dense<0.000000e+00> : vector<32x64xf32>
    %431 = tpu.matmul %204, %430, %cst_115 {dimension_numbers = #tpu.dot_dimension_numbers<[1], [0], [0], [1], [0, 0, 1, 1], [], []>} : vector<32x32xbf16>, vector<32x64xbf16>, vector<32x64xf32> -> vector<32x64xf32>
    %432 = arith.addf %429, %431 : vector<32x64xf32>
    %433 = arith.negf %432 : vector<32x64xf32>
    %434 = math.exp %433 : vector<32x64xf32>
    %cst_116 = arith.constant 1.000000e+00 : f32
    %435 = vector.broadcast %cst_116 : f32 to vector<32x64xf32>
    %436 = arith.addf %435, %434 : vector<32x64xf32>
    %437 = arith.divf %435, %436 : vector<32x64xf32>
    %438 = vector.extract_strided_slice %437 {offsets = [0, 0], sizes = [32, 32], strides = [1, 1]} : vector<32x64xf32> to vector<32x32xf32>
    %439 = vector.extract_strided_slice %437 {offsets = [0, 32], sizes = [32, 32], strides = [1, 1]} : vector<32x64xf32> to vector<32x32xf32>
    %440 = arith.mulf %438, %417 : vector<32x32xf32>
    %441 = arith.truncf %440 : vector<32x32xf32> to vector<32x32xbf16>
    %cst_117 = arith.constant dense<0.000000e+00> : vector<32x96xf32>
    %442 = tpu.matmul %441, %206, %cst_117 {dimension_numbers = #tpu.dot_dimension_numbers<[1], [0], [0], [1], [0, 0, 1, 1], [], []>} : vector<32x32xbf16>, vector<32x96xbf16>, vector<32x96xf32> -> vector<32x96xf32>
    %443 = arith.truncf %442 : vector<32x96xf32> to vector<32x96xbf16>
    %444 = vector.extract_strided_slice %419 {offsets = [0, 64], sizes = [32, 32], strides = [1, 1]} : vector<32x96xf32> to vector<32x32xf32>
    %445 = vector.extract_strided_slice %443 {offsets = [0, 0], sizes = [32, 32], strides = [1, 1]} : vector<32x96xbf16> to vector<32x32xbf16>
    %cst_118 = arith.constant dense<0.000000e+00> : vector<32x32xf32>
    %446 = tpu.matmul %202, %445, %cst_118 {dimension_numbers = #tpu.dot_dimension_numbers<[1], [0], [0], [1], [0, 0, 1, 1], [], []>} : vector<32x32xbf16>, vector<32x32xbf16>, vector<32x32xf32> -> vector<32x32xf32>
    %447 = arith.addf %444, %446 : vector<32x32xf32>
    %448 = vector.extract_strided_slice %443 {offsets = [0, 32], sizes = [32, 32], strides = [1, 1]} : vector<32x96xbf16> to vector<32x32xbf16>
    %cst_119 = arith.constant dense<0.000000e+00> : vector<32x32xf32>
    %449 = tpu.matmul %203, %448, %cst_119 {dimension_numbers = #tpu.dot_dimension_numbers<[1], [0], [0], [1], [0, 0, 1, 1], [], []>} : vector<32x32xbf16>, vector<32x32xbf16>, vector<32x32xf32> -> vector<32x32xf32>
    %450 = arith.addf %447, %449 : vector<32x32xf32>
    %451 = vector.extract_strided_slice %443 {offsets = [0, 64], sizes = [32, 32], strides = [1, 1]} : vector<32x96xbf16> to vector<32x32xbf16>
    %cst_120 = arith.constant dense<0.000000e+00> : vector<32x32xf32>
    %452 = tpu.matmul %204, %451, %cst_120 {dimension_numbers = #tpu.dot_dimension_numbers<[1], [0], [0], [1], [0, 0, 1, 1], [], []>} : vector<32x32xbf16>, vector<32x32xbf16>, vector<32x32xf32> -> vector<32x32xf32>
    %453 = arith.addf %450, %452 : vector<32x32xf32>
    %454 = math.tanh %453 : vector<32x32xf32>
    %455 = arith.mulf %439, %454 : vector<32x32xf32>
    %cst_121 = arith.constant 1.000000e+00 : f32
    %456 = vector.broadcast %cst_121 : f32 to vector<32x32xf32>
    %457 = arith.subf %456, %439 : vector<32x32xf32>
    %458 = arith.mulf %457, %417 : vector<32x32xf32>
    %459 = arith.addf %455, %458 : vector<32x32xf32>
    %c6_122 = arith.constant 6 : index
    %c0_123 = arith.constant 0 : index
    %c0_124 = arith.constant 0 : index
    %460 = vector.load %arg10[%c6_122, %c0_123, %c0_124] : memref<12x32x96xf32, #tpu.memory_space<vmem>>, vector<1x32x96xf32>
    %461 = vector.shape_cast %460 : vector<1x32x96xf32> to vector<32x96xf32>
    %462 = arith.truncf %459 : vector<32x32xf32> to vector<32x32xbf16>
    %cst_125 = arith.constant dense<0.000000e+00> : vector<32x192xf32>
    %463 = tpu.matmul %462, %205, %cst_125 {dimension_numbers = #tpu.dot_dimension_numbers<[1], [0], [0], [1], [0, 0, 1, 1], [], []>} : vector<32x32xbf16>, vector<32x192xbf16>, vector<32x192xf32> -> vector<32x192xf32>
    %464 = arith.truncf %463 : vector<32x192xf32> to vector<32x192xbf16>
    %465 = vector.extract_strided_slice %461 {offsets = [0, 0], sizes = [32, 64], strides = [1, 1]} : vector<32x96xf32> to vector<32x64xf32>
    %466 = vector.extract_strided_slice %464 {offsets = [0, 0], sizes = [32, 64], strides = [1, 1]} : vector<32x192xbf16> to vector<32x64xbf16>
    %cst_126 = arith.constant dense<0.000000e+00> : vector<32x64xf32>
    %467 = tpu.matmul %202, %466, %cst_126 {dimension_numbers = #tpu.dot_dimension_numbers<[1], [0], [0], [1], [0, 0, 1, 1], [], []>} : vector<32x32xbf16>, vector<32x64xbf16>, vector<32x64xf32> -> vector<32x64xf32>
    %468 = arith.addf %465, %467 : vector<32x64xf32>
    %469 = vector.extract_strided_slice %464 {offsets = [0, 64], sizes = [32, 64], strides = [1, 1]} : vector<32x192xbf16> to vector<32x64xbf16>
    %cst_127 = arith.constant dense<0.000000e+00> : vector<32x64xf32>
    %470 = tpu.matmul %203, %469, %cst_127 {dimension_numbers = #tpu.dot_dimension_numbers<[1], [0], [0], [1], [0, 0, 1, 1], [], []>} : vector<32x32xbf16>, vector<32x64xbf16>, vector<32x64xf32> -> vector<32x64xf32>
    %471 = arith.addf %468, %470 : vector<32x64xf32>
    %472 = vector.extract_strided_slice %464 {offsets = [0, 128], sizes = [32, 64], strides = [1, 1]} : vector<32x192xbf16> to vector<32x64xbf16>
    %cst_128 = arith.constant dense<0.000000e+00> : vector<32x64xf32>
    %473 = tpu.matmul %204, %472, %cst_128 {dimension_numbers = #tpu.dot_dimension_numbers<[1], [0], [0], [1], [0, 0, 1, 1], [], []>} : vector<32x32xbf16>, vector<32x64xbf16>, vector<32x64xf32> -> vector<32x64xf32>
    %474 = arith.addf %471, %473 : vector<32x64xf32>
    %475 = arith.negf %474 : vector<32x64xf32>
    %476 = math.exp %475 : vector<32x64xf32>
    %cst_129 = arith.constant 1.000000e+00 : f32
    %477 = vector.broadcast %cst_129 : f32 to vector<32x64xf32>
    %478 = arith.addf %477, %476 : vector<32x64xf32>
    %479 = arith.divf %477, %478 : vector<32x64xf32>
    %480 = vector.extract_strided_slice %479 {offsets = [0, 0], sizes = [32, 32], strides = [1, 1]} : vector<32x64xf32> to vector<32x32xf32>
    %481 = vector.extract_strided_slice %479 {offsets = [0, 32], sizes = [32, 32], strides = [1, 1]} : vector<32x64xf32> to vector<32x32xf32>
    %482 = arith.mulf %480, %459 : vector<32x32xf32>
    %483 = arith.truncf %482 : vector<32x32xf32> to vector<32x32xbf16>
    %cst_130 = arith.constant dense<0.000000e+00> : vector<32x96xf32>
    %484 = tpu.matmul %483, %206, %cst_130 {dimension_numbers = #tpu.dot_dimension_numbers<[1], [0], [0], [1], [0, 0, 1, 1], [], []>} : vector<32x32xbf16>, vector<32x96xbf16>, vector<32x96xf32> -> vector<32x96xf32>
    %485 = arith.truncf %484 : vector<32x96xf32> to vector<32x96xbf16>
    %486 = vector.extract_strided_slice %461 {offsets = [0, 64], sizes = [32, 32], strides = [1, 1]} : vector<32x96xf32> to vector<32x32xf32>
    %487 = vector.extract_strided_slice %485 {offsets = [0, 0], sizes = [32, 32], strides = [1, 1]} : vector<32x96xbf16> to vector<32x32xbf16>
    %cst_131 = arith.constant dense<0.000000e+00> : vector<32x32xf32>
    %488 = tpu.matmul %202, %487, %cst_131 {dimension_numbers = #tpu.dot_dimension_numbers<[1], [0], [0], [1], [0, 0, 1, 1], [], []>} : vector<32x32xbf16>, vector<32x32xbf16>, vector<32x32xf32> -> vector<32x32xf32>
    %489 = arith.addf %486, %488 : vector<32x32xf32>
    %490 = vector.extract_strided_slice %485 {offsets = [0, 32], sizes = [32, 32], strides = [1, 1]} : vector<32x96xbf16> to vector<32x32xbf16>
    %cst_132 = arith.constant dense<0.000000e+00> : vector<32x32xf32>
    %491 = tpu.matmul %203, %490, %cst_132 {dimension_numbers = #tpu.dot_dimension_numbers<[1], [0], [0], [1], [0, 0, 1, 1], [], []>} : vector<32x32xbf16>, vector<32x32xbf16>, vector<32x32xf32> -> vector<32x32xf32>
    %492 = arith.addf %489, %491 : vector<32x32xf32>
    %493 = vector.extract_strided_slice %485 {offsets = [0, 64], sizes = [32, 32], strides = [1, 1]} : vector<32x96xbf16> to vector<32x32xbf16>
    %cst_133 = arith.constant dense<0.000000e+00> : vector<32x32xf32>
    %494 = tpu.matmul %204, %493, %cst_133 {dimension_numbers = #tpu.dot_dimension_numbers<[1], [0], [0], [1], [0, 0, 1, 1], [], []>} : vector<32x32xbf16>, vector<32x32xbf16>, vector<32x32xf32> -> vector<32x32xf32>
    %495 = arith.addf %492, %494 : vector<32x32xf32>
    %496 = math.tanh %495 : vector<32x32xf32>
    %497 = arith.mulf %481, %496 : vector<32x32xf32>
    %cst_134 = arith.constant 1.000000e+00 : f32
    %498 = vector.broadcast %cst_134 : f32 to vector<32x32xf32>
    %499 = arith.subf %498, %481 : vector<32x32xf32>
    %500 = arith.mulf %499, %459 : vector<32x32xf32>
    %501 = arith.addf %497, %500 : vector<32x32xf32>
    %c7_135 = arith.constant 7 : index
    %c0_136 = arith.constant 0 : index
    %c0_137 = arith.constant 0 : index
    %502 = vector.load %arg10[%c7_135, %c0_136, %c0_137] : memref<12x32x96xf32, #tpu.memory_space<vmem>>, vector<1x32x96xf32>
    %503 = vector.shape_cast %502 : vector<1x32x96xf32> to vector<32x96xf32>
    %504 = arith.truncf %501 : vector<32x32xf32> to vector<32x32xbf16>
    %cst_138 = arith.constant dense<0.000000e+00> : vector<32x192xf32>
    %505 = tpu.matmul %504, %205, %cst_138 {dimension_numbers = #tpu.dot_dimension_numbers<[1], [0], [0], [1], [0, 0, 1, 1], [], []>} : vector<32x32xbf16>, vector<32x192xbf16>, vector<32x192xf32> -> vector<32x192xf32>
    %506 = arith.truncf %505 : vector<32x192xf32> to vector<32x192xbf16>
    %507 = vector.extract_strided_slice %503 {offsets = [0, 0], sizes = [32, 64], strides = [1, 1]} : vector<32x96xf32> to vector<32x64xf32>
    %508 = vector.extract_strided_slice %506 {offsets = [0, 0], sizes = [32, 64], strides = [1, 1]} : vector<32x192xbf16> to vector<32x64xbf16>
    %cst_139 = arith.constant dense<0.000000e+00> : vector<32x64xf32>
    %509 = tpu.matmul %202, %508, %cst_139 {dimension_numbers = #tpu.dot_dimension_numbers<[1], [0], [0], [1], [0, 0, 1, 1], [], []>} : vector<32x32xbf16>, vector<32x64xbf16>, vector<32x64xf32> -> vector<32x64xf32>
    %510 = arith.addf %507, %509 : vector<32x64xf32>
    %511 = vector.extract_strided_slice %506 {offsets = [0, 64], sizes = [32, 64], strides = [1, 1]} : vector<32x192xbf16> to vector<32x64xbf16>
    %cst_140 = arith.constant dense<0.000000e+00> : vector<32x64xf32>
    %512 = tpu.matmul %203, %511, %cst_140 {dimension_numbers = #tpu.dot_dimension_numbers<[1], [0], [0], [1], [0, 0, 1, 1], [], []>} : vector<32x32xbf16>, vector<32x64xbf16>, vector<32x64xf32> -> vector<32x64xf32>
    %513 = arith.addf %510, %512 : vector<32x64xf32>
    %514 = vector.extract_strided_slice %506 {offsets = [0, 128], sizes = [32, 64], strides = [1, 1]} : vector<32x192xbf16> to vector<32x64xbf16>
    %cst_141 = arith.constant dense<0.000000e+00> : vector<32x64xf32>
    %515 = tpu.matmul %204, %514, %cst_141 {dimension_numbers = #tpu.dot_dimension_numbers<[1], [0], [0], [1], [0, 0, 1, 1], [], []>} : vector<32x32xbf16>, vector<32x64xbf16>, vector<32x64xf32> -> vector<32x64xf32>
    %516 = arith.addf %513, %515 : vector<32x64xf32>
    %517 = arith.negf %516 : vector<32x64xf32>
    %518 = math.exp %517 : vector<32x64xf32>
    %cst_142 = arith.constant 1.000000e+00 : f32
    %519 = vector.broadcast %cst_142 : f32 to vector<32x64xf32>
    %520 = arith.addf %519, %518 : vector<32x64xf32>
    %521 = arith.divf %519, %520 : vector<32x64xf32>
    %522 = vector.extract_strided_slice %521 {offsets = [0, 0], sizes = [32, 32], strides = [1, 1]} : vector<32x64xf32> to vector<32x32xf32>
    %523 = vector.extract_strided_slice %521 {offsets = [0, 32], sizes = [32, 32], strides = [1, 1]} : vector<32x64xf32> to vector<32x32xf32>
    %524 = arith.mulf %522, %501 : vector<32x32xf32>
    %525 = arith.truncf %524 : vector<32x32xf32> to vector<32x32xbf16>
    %cst_143 = arith.constant dense<0.000000e+00> : vector<32x96xf32>
    %526 = tpu.matmul %525, %206, %cst_143 {dimension_numbers = #tpu.dot_dimension_numbers<[1], [0], [0], [1], [0, 0, 1, 1], [], []>} : vector<32x32xbf16>, vector<32x96xbf16>, vector<32x96xf32> -> vector<32x96xf32>
    %527 = arith.truncf %526 : vector<32x96xf32> to vector<32x96xbf16>
    %528 = vector.extract_strided_slice %503 {offsets = [0, 64], sizes = [32, 32], strides = [1, 1]} : vector<32x96xf32> to vector<32x32xf32>
    %529 = vector.extract_strided_slice %527 {offsets = [0, 0], sizes = [32, 32], strides = [1, 1]} : vector<32x96xbf16> to vector<32x32xbf16>
    %cst_144 = arith.constant dense<0.000000e+00> : vector<32x32xf32>
    %530 = tpu.matmul %202, %529, %cst_144 {dimension_numbers = #tpu.dot_dimension_numbers<[1], [0], [0], [1], [0, 0, 1, 1], [], []>} : vector<32x32xbf16>, vector<32x32xbf16>, vector<32x32xf32> -> vector<32x32xf32>
    %531 = arith.addf %528, %530 : vector<32x32xf32>
    %532 = vector.extract_strided_slice %527 {offsets = [0, 32], sizes = [32, 32], strides = [1, 1]} : vector<32x96xbf16> to vector<32x32xbf16>
    %cst_145 = arith.constant dense<0.000000e+00> : vector<32x32xf32>
    %533 = tpu.matmul %203, %532, %cst_145 {dimension_numbers = #tpu.dot_dimension_numbers<[1], [0], [0], [1], [0, 0, 1, 1], [], []>} : vector<32x32xbf16>, vector<32x32xbf16>, vector<32x32xf32> -> vector<32x32xf32>
    %534 = arith.addf %531, %533 : vector<32x32xf32>
    %535 = vector.extract_strided_slice %527 {offsets = [0, 64], sizes = [32, 32], strides = [1, 1]} : vector<32x96xbf16> to vector<32x32xbf16>
    %cst_146 = arith.constant dense<0.000000e+00> : vector<32x32xf32>
    %536 = tpu.matmul %204, %535, %cst_146 {dimension_numbers = #tpu.dot_dimension_numbers<[1], [0], [0], [1], [0, 0, 1, 1], [], []>} : vector<32x32xbf16>, vector<32x32xbf16>, vector<32x32xf32> -> vector<32x32xf32>
    %537 = arith.addf %534, %536 : vector<32x32xf32>
    %538 = math.tanh %537 : vector<32x32xf32>
    %539 = arith.mulf %523, %538 : vector<32x32xf32>
    %cst_147 = arith.constant 1.000000e+00 : f32
    %540 = vector.broadcast %cst_147 : f32 to vector<32x32xf32>
    %541 = arith.subf %540, %523 : vector<32x32xf32>
    %542 = arith.mulf %541, %501 : vector<32x32xf32>
    %543 = arith.addf %539, %542 : vector<32x32xf32>
    %c8_148 = arith.constant 8 : index
    %c0_149 = arith.constant 0 : index
    %c0_150 = arith.constant 0 : index
    %544 = vector.load %arg10[%c8_148, %c0_149, %c0_150] : memref<12x32x96xf32, #tpu.memory_space<vmem>>, vector<1x32x96xf32>
    %545 = vector.shape_cast %544 : vector<1x32x96xf32> to vector<32x96xf32>
    %546 = arith.truncf %543 : vector<32x32xf32> to vector<32x32xbf16>
    %cst_151 = arith.constant dense<0.000000e+00> : vector<32x192xf32>
    %547 = tpu.matmul %546, %205, %cst_151 {dimension_numbers = #tpu.dot_dimension_numbers<[1], [0], [0], [1], [0, 0, 1, 1], [], []>} : vector<32x32xbf16>, vector<32x192xbf16>, vector<32x192xf32> -> vector<32x192xf32>
    %548 = arith.truncf %547 : vector<32x192xf32> to vector<32x192xbf16>
    %549 = vector.extract_strided_slice %545 {offsets = [0, 0], sizes = [32, 64], strides = [1, 1]} : vector<32x96xf32> to vector<32x64xf32>
    %550 = vector.extract_strided_slice %548 {offsets = [0, 0], sizes = [32, 64], strides = [1, 1]} : vector<32x192xbf16> to vector<32x64xbf16>
    %cst_152 = arith.constant dense<0.000000e+00> : vector<32x64xf32>
    %551 = tpu.matmul %202, %550, %cst_152 {dimension_numbers = #tpu.dot_dimension_numbers<[1], [0], [0], [1], [0, 0, 1, 1], [], []>} : vector<32x32xbf16>, vector<32x64xbf16>, vector<32x64xf32> -> vector<32x64xf32>
    %552 = arith.addf %549, %551 : vector<32x64xf32>
    %553 = vector.extract_strided_slice %548 {offsets = [0, 64], sizes = [32, 64], strides = [1, 1]} : vector<32x192xbf16> to vector<32x64xbf16>
    %cst_153 = arith.constant dense<0.000000e+00> : vector<32x64xf32>
    %554 = tpu.matmul %203, %553, %cst_153 {dimension_numbers = #tpu.dot_dimension_numbers<[1], [0], [0], [1], [0, 0, 1, 1], [], []>} : vector<32x32xbf16>, vector<32x64xbf16>, vector<32x64xf32> -> vector<32x64xf32>
    %555 = arith.addf %552, %554 : vector<32x64xf32>
    %556 = vector.extract_strided_slice %548 {offsets = [0, 128], sizes = [32, 64], strides = [1, 1]} : vector<32x192xbf16> to vector<32x64xbf16>
    %cst_154 = arith.constant dense<0.000000e+00> : vector<32x64xf32>
    %557 = tpu.matmul %204, %556, %cst_154 {dimension_numbers = #tpu.dot_dimension_numbers<[1], [0], [0], [1], [0, 0, 1, 1], [], []>} : vector<32x32xbf16>, vector<32x64xbf16>, vector<32x64xf32> -> vector<32x64xf32>
    %558 = arith.addf %555, %557 : vector<32x64xf32>
    %559 = arith.negf %558 : vector<32x64xf32>
    %560 = math.exp %559 : vector<32x64xf32>
    %cst_155 = arith.constant 1.000000e+00 : f32
    %561 = vector.broadcast %cst_155 : f32 to vector<32x64xf32>
    %562 = arith.addf %561, %560 : vector<32x64xf32>
    %563 = arith.divf %561, %562 : vector<32x64xf32>
    %564 = vector.extract_strided_slice %563 {offsets = [0, 0], sizes = [32, 32], strides = [1, 1]} : vector<32x64xf32> to vector<32x32xf32>
    %565 = vector.extract_strided_slice %563 {offsets = [0, 32], sizes = [32, 32], strides = [1, 1]} : vector<32x64xf32> to vector<32x32xf32>
    %566 = arith.mulf %564, %543 : vector<32x32xf32>
    %567 = arith.truncf %566 : vector<32x32xf32> to vector<32x32xbf16>
    %cst_156 = arith.constant dense<0.000000e+00> : vector<32x96xf32>
    %568 = tpu.matmul %567, %206, %cst_156 {dimension_numbers = #tpu.dot_dimension_numbers<[1], [0], [0], [1], [0, 0, 1, 1], [], []>} : vector<32x32xbf16>, vector<32x96xbf16>, vector<32x96xf32> -> vector<32x96xf32>
    %569 = arith.truncf %568 : vector<32x96xf32> to vector<32x96xbf16>
    %570 = vector.extract_strided_slice %545 {offsets = [0, 64], sizes = [32, 32], strides = [1, 1]} : vector<32x96xf32> to vector<32x32xf32>
    %571 = vector.extract_strided_slice %569 {offsets = [0, 0], sizes = [32, 32], strides = [1, 1]} : vector<32x96xbf16> to vector<32x32xbf16>
    %cst_157 = arith.constant dense<0.000000e+00> : vector<32x32xf32>
    %572 = tpu.matmul %202, %571, %cst_157 {dimension_numbers = #tpu.dot_dimension_numbers<[1], [0], [0], [1], [0, 0, 1, 1], [], []>} : vector<32x32xbf16>, vector<32x32xbf16>, vector<32x32xf32> -> vector<32x32xf32>
    %573 = arith.addf %570, %572 : vector<32x32xf32>
    %574 = vector.extract_strided_slice %569 {offsets = [0, 32], sizes = [32, 32], strides = [1, 1]} : vector<32x96xbf16> to vector<32x32xbf16>
    %cst_158 = arith.constant dense<0.000000e+00> : vector<32x32xf32>
    %575 = tpu.matmul %203, %574, %cst_158 {dimension_numbers = #tpu.dot_dimension_numbers<[1], [0], [0], [1], [0, 0, 1, 1], [], []>} : vector<32x32xbf16>, vector<32x32xbf16>, vector<32x32xf32> -> vector<32x32xf32>
    %576 = arith.addf %573, %575 : vector<32x32xf32>
    %577 = vector.extract_strided_slice %569 {offsets = [0, 64], sizes = [32, 32], strides = [1, 1]} : vector<32x96xbf16> to vector<32x32xbf16>
    %cst_159 = arith.constant dense<0.000000e+00> : vector<32x32xf32>
    %578 = tpu.matmul %204, %577, %cst_159 {dimension_numbers = #tpu.dot_dimension_numbers<[1], [0], [0], [1], [0, 0, 1, 1], [], []>} : vector<32x32xbf16>, vector<32x32xbf16>, vector<32x32xf32> -> vector<32x32xf32>
    %579 = arith.addf %576, %578 : vector<32x32xf32>
    %580 = math.tanh %579 : vector<32x32xf32>
    %581 = arith.mulf %565, %580 : vector<32x32xf32>
    %cst_160 = arith.constant 1.000000e+00 : f32
    %582 = vector.broadcast %cst_160 : f32 to vector<32x32xf32>
    %583 = arith.subf %582, %565 : vector<32x32xf32>
    %584 = arith.mulf %583, %543 : vector<32x32xf32>
    %585 = arith.addf %581, %584 : vector<32x32xf32>
    %c9_161 = arith.constant 9 : index
    %c0_162 = arith.constant 0 : index
    %c0_163 = arith.constant 0 : index
    %586 = vector.load %arg10[%c9_161, %c0_162, %c0_163] : memref<12x32x96xf32, #tpu.memory_space<vmem>>, vector<1x32x96xf32>
    %587 = vector.shape_cast %586 : vector<1x32x96xf32> to vector<32x96xf32>
    %588 = arith.truncf %585 : vector<32x32xf32> to vector<32x32xbf16>
    %cst_164 = arith.constant dense<0.000000e+00> : vector<32x192xf32>
    %589 = tpu.matmul %588, %205, %cst_164 {dimension_numbers = #tpu.dot_dimension_numbers<[1], [0], [0], [1], [0, 0, 1, 1], [], []>} : vector<32x32xbf16>, vector<32x192xbf16>, vector<32x192xf32> -> vector<32x192xf32>
    %590 = arith.truncf %589 : vector<32x192xf32> to vector<32x192xbf16>
    %591 = vector.extract_strided_slice %587 {offsets = [0, 0], sizes = [32, 64], strides = [1, 1]} : vector<32x96xf32> to vector<32x64xf32>
    %592 = vector.extract_strided_slice %590 {offsets = [0, 0], sizes = [32, 64], strides = [1, 1]} : vector<32x192xbf16> to vector<32x64xbf16>
    %cst_165 = arith.constant dense<0.000000e+00> : vector<32x64xf32>
    %593 = tpu.matmul %202, %592, %cst_165 {dimension_numbers = #tpu.dot_dimension_numbers<[1], [0], [0], [1], [0, 0, 1, 1], [], []>} : vector<32x32xbf16>, vector<32x64xbf16>, vector<32x64xf32> -> vector<32x64xf32>
    %594 = arith.addf %591, %593 : vector<32x64xf32>
    %595 = vector.extract_strided_slice %590 {offsets = [0, 64], sizes = [32, 64], strides = [1, 1]} : vector<32x192xbf16> to vector<32x64xbf16>
    %cst_166 = arith.constant dense<0.000000e+00> : vector<32x64xf32>
    %596 = tpu.matmul %203, %595, %cst_166 {dimension_numbers = #tpu.dot_dimension_numbers<[1], [0], [0], [1], [0, 0, 1, 1], [], []>} : vector<32x32xbf16>, vector<32x64xbf16>, vector<32x64xf32> -> vector<32x64xf32>
    %597 = arith.addf %594, %596 : vector<32x64xf32>
    %598 = vector.extract_strided_slice %590 {offsets = [0, 128], sizes = [32, 64], strides = [1, 1]} : vector<32x192xbf16> to vector<32x64xbf16>
    %cst_167 = arith.constant dense<0.000000e+00> : vector<32x64xf32>
    %599 = tpu.matmul %204, %598, %cst_167 {dimension_numbers = #tpu.dot_dimension_numbers<[1], [0], [0], [1], [0, 0, 1, 1], [], []>} : vector<32x32xbf16>, vector<32x64xbf16>, vector<32x64xf32> -> vector<32x64xf32>
    %600 = arith.addf %597, %599 : vector<32x64xf32>
    %601 = arith.negf %600 : vector<32x64xf32>
    %602 = math.exp %601 : vector<32x64xf32>
    %cst_168 = arith.constant 1.000000e+00 : f32
    %603 = vector.broadcast %cst_168 : f32 to vector<32x64xf32>
    %604 = arith.addf %603, %602 : vector<32x64xf32>
    %605 = arith.divf %603, %604 : vector<32x64xf32>
    %606 = vector.extract_strided_slice %605 {offsets = [0, 0], sizes = [32, 32], strides = [1, 1]} : vector<32x64xf32> to vector<32x32xf32>
    %607 = vector.extract_strided_slice %605 {offsets = [0, 32], sizes = [32, 32], strides = [1, 1]} : vector<32x64xf32> to vector<32x32xf32>
    %608 = arith.mulf %606, %585 : vector<32x32xf32>
    %609 = arith.truncf %608 : vector<32x32xf32> to vector<32x32xbf16>
    %cst_169 = arith.constant dense<0.000000e+00> : vector<32x96xf32>
    %610 = tpu.matmul %609, %206, %cst_169 {dimension_numbers = #tpu.dot_dimension_numbers<[1], [0], [0], [1], [0, 0, 1, 1], [], []>} : vector<32x32xbf16>, vector<32x96xbf16>, vector<32x96xf32> -> vector<32x96xf32>
    %611 = arith.truncf %610 : vector<32x96xf32> to vector<32x96xbf16>
    %612 = vector.extract_strided_slice %587 {offsets = [0, 64], sizes = [32, 32], strides = [1, 1]} : vector<32x96xf32> to vector<32x32xf32>
    %613 = vector.extract_strided_slice %611 {offsets = [0, 0], sizes = [32, 32], strides = [1, 1]} : vector<32x96xbf16> to vector<32x32xbf16>
    %cst_170 = arith.constant dense<0.000000e+00> : vector<32x32xf32>
    %614 = tpu.matmul %202, %613, %cst_170 {dimension_numbers = #tpu.dot_dimension_numbers<[1], [0], [0], [1], [0, 0, 1, 1], [], []>} : vector<32x32xbf16>, vector<32x32xbf16>, vector<32x32xf32> -> vector<32x32xf32>
    %615 = arith.addf %612, %614 : vector<32x32xf32>
    %616 = vector.extract_strided_slice %611 {offsets = [0, 32], sizes = [32, 32], strides = [1, 1]} : vector<32x96xbf16> to vector<32x32xbf16>
    %cst_171 = arith.constant dense<0.000000e+00> : vector<32x32xf32>
    %617 = tpu.matmul %203, %616, %cst_171 {dimension_numbers = #tpu.dot_dimension_numbers<[1], [0], [0], [1], [0, 0, 1, 1], [], []>} : vector<32x32xbf16>, vector<32x32xbf16>, vector<32x32xf32> -> vector<32x32xf32>
    %618 = arith.addf %615, %617 : vector<32x32xf32>
    %619 = vector.extract_strided_slice %611 {offsets = [0, 64], sizes = [32, 32], strides = [1, 1]} : vector<32x96xbf16> to vector<32x32xbf16>
    %cst_172 = arith.constant dense<0.000000e+00> : vector<32x32xf32>
    %620 = tpu.matmul %204, %619, %cst_172 {dimension_numbers = #tpu.dot_dimension_numbers<[1], [0], [0], [1], [0, 0, 1, 1], [], []>} : vector<32x32xbf16>, vector<32x32xbf16>, vector<32x32xf32> -> vector<32x32xf32>
    %621 = arith.addf %618, %620 : vector<32x32xf32>
    %622 = math.tanh %621 : vector<32x32xf32>
    %623 = arith.mulf %607, %622 : vector<32x32xf32>
    %cst_173 = arith.constant 1.000000e+00 : f32
    %624 = vector.broadcast %cst_173 : f32 to vector<32x32xf32>
    %625 = arith.subf %624, %607 : vector<32x32xf32>
    %626 = arith.mulf %625, %585 : vector<32x32xf32>
    %627 = arith.addf %623, %626 : vector<32x32xf32>
    %c10_174 = arith.constant 10 : index
    %c0_175 = arith.constant 0 : index
    %c0_176 = arith.constant 0 : index
    %628 = vector.load %arg10[%c10_174, %c0_175, %c0_176] : memref<12x32x96xf32, #tpu.memory_space<vmem>>, vector<1x32x96xf32>
    %629 = vector.shape_cast %628 : vector<1x32x96xf32> to vector<32x96xf32>
    %630 = arith.truncf %627 : vector<32x32xf32> to vector<32x32xbf16>
    %cst_177 = arith.constant dense<0.000000e+00> : vector<32x192xf32>
    %631 = tpu.matmul %630, %205, %cst_177 {dimension_numbers = #tpu.dot_dimension_numbers<[1], [0], [0], [1], [0, 0, 1, 1], [], []>} : vector<32x32xbf16>, vector<32x192xbf16>, vector<32x192xf32> -> vector<32x192xf32>
    %632 = arith.truncf %631 : vector<32x192xf32> to vector<32x192xbf16>
    %633 = vector.extract_strided_slice %629 {offsets = [0, 0], sizes = [32, 64], strides = [1, 1]} : vector<32x96xf32> to vector<32x64xf32>
    %634 = vector.extract_strided_slice %632 {offsets = [0, 0], sizes = [32, 64], strides = [1, 1]} : vector<32x192xbf16> to vector<32x64xbf16>
    %cst_178 = arith.constant dense<0.000000e+00> : vector<32x64xf32>
    %635 = tpu.matmul %202, %634, %cst_178 {dimension_numbers = #tpu.dot_dimension_numbers<[1], [0], [0], [1], [0, 0, 1, 1], [], []>} : vector<32x32xbf16>, vector<32x64xbf16>, vector<32x64xf32> -> vector<32x64xf32>
    %636 = arith.addf %633, %635 : vector<32x64xf32>
    %637 = vector.extract_strided_slice %632 {offsets = [0, 64], sizes = [32, 64], strides = [1, 1]} : vector<32x192xbf16> to vector<32x64xbf16>
    %cst_179 = arith.constant dense<0.000000e+00> : vector<32x64xf32>
    %638 = tpu.matmul %203, %637, %cst_179 {dimension_numbers = #tpu.dot_dimension_numbers<[1], [0], [0], [1], [0, 0, 1, 1], [], []>} : vector<32x32xbf16>, vector<32x64xbf16>, vector<32x64xf32> -> vector<32x64xf32>
    %639 = arith.addf %636, %638 : vector<32x64xf32>
    %640 = vector.extract_strided_slice %632 {offsets = [0, 128], sizes = [32, 64], strides = [1, 1]} : vector<32x192xbf16> to vector<32x64xbf16>
    %cst_180 = arith.constant dense<0.000000e+00> : vector<32x64xf32>
    %641 = tpu.matmul %204, %640, %cst_180 {dimension_numbers = #tpu.dot_dimension_numbers<[1], [0], [0], [1], [0, 0, 1, 1], [], []>} : vector<32x32xbf16>, vector<32x64xbf16>, vector<32x64xf32> -> vector<32x64xf32>
    %642 = arith.addf %639, %641 : vector<32x64xf32>
    %643 = arith.negf %642 : vector<32x64xf32>
    %644 = math.exp %643 : vector<32x64xf32>
    %cst_181 = arith.constant 1.000000e+00 : f32
    %645 = vector.broadcast %cst_181 : f32 to vector<32x64xf32>
    %646 = arith.addf %645, %644 : vector<32x64xf32>
    %647 = arith.divf %645, %646 : vector<32x64xf32>
    %648 = vector.extract_strided_slice %647 {offsets = [0, 0], sizes = [32, 32], strides = [1, 1]} : vector<32x64xf32> to vector<32x32xf32>
    %649 = vector.extract_strided_slice %647 {offsets = [0, 32], sizes = [32, 32], strides = [1, 1]} : vector<32x64xf32> to vector<32x32xf32>
    %650 = arith.mulf %648, %627 : vector<32x32xf32>
    %651 = arith.truncf %650 : vector<32x32xf32> to vector<32x32xbf16>
    %cst_182 = arith.constant dense<0.000000e+00> : vector<32x96xf32>
    %652 = tpu.matmul %651, %206, %cst_182 {dimension_numbers = #tpu.dot_dimension_numbers<[1], [0], [0], [1], [0, 0, 1, 1], [], []>} : vector<32x32xbf16>, vector<32x96xbf16>, vector<32x96xf32> -> vector<32x96xf32>
    %653 = arith.truncf %652 : vector<32x96xf32> to vector<32x96xbf16>
    %654 = vector.extract_strided_slice %629 {offsets = [0, 64], sizes = [32, 32], strides = [1, 1]} : vector<32x96xf32> to vector<32x32xf32>
    %655 = vector.extract_strided_slice %653 {offsets = [0, 0], sizes = [32, 32], strides = [1, 1]} : vector<32x96xbf16> to vector<32x32xbf16>
    %cst_183 = arith.constant dense<0.000000e+00> : vector<32x32xf32>
    %656 = tpu.matmul %202, %655, %cst_183 {dimension_numbers = #tpu.dot_dimension_numbers<[1], [0], [0], [1], [0, 0, 1, 1], [], []>} : vector<32x32xbf16>, vector<32x32xbf16>, vector<32x32xf32> -> vector<32x32xf32>
    %657 = arith.addf %654, %656 : vector<32x32xf32>
    %658 = vector.extract_strided_slice %653 {offsets = [0, 32], sizes = [32, 32], strides = [1, 1]} : vector<32x96xbf16> to vector<32x32xbf16>
    %cst_184 = arith.constant dense<0.000000e+00> : vector<32x32xf32>
    %659 = tpu.matmul %203, %658, %cst_184 {dimension_numbers = #tpu.dot_dimension_numbers<[1], [0], [0], [1], [0, 0, 1, 1], [], []>} : vector<32x32xbf16>, vector<32x32xbf16>, vector<32x32xf32> -> vector<32x32xf32>
    %660 = arith.addf %657, %659 : vector<32x32xf32>
    %661 = vector.extract_strided_slice %653 {offsets = [0, 64], sizes = [32, 32], strides = [1, 1]} : vector<32x96xbf16> to vector<32x32xbf16>
    %cst_185 = arith.constant dense<0.000000e+00> : vector<32x32xf32>
    %662 = tpu.matmul %204, %661, %cst_185 {dimension_numbers = #tpu.dot_dimension_numbers<[1], [0], [0], [1], [0, 0, 1, 1], [], []>} : vector<32x32xbf16>, vector<32x32xbf16>, vector<32x32xf32> -> vector<32x32xf32>
    %663 = arith.addf %660, %662 : vector<32x32xf32>
    %664 = math.tanh %663 : vector<32x32xf32>
    %665 = arith.mulf %649, %664 : vector<32x32xf32>
    %cst_186 = arith.constant 1.000000e+00 : f32
    %666 = vector.broadcast %cst_186 : f32 to vector<32x32xf32>
    %667 = arith.subf %666, %649 : vector<32x32xf32>
    %668 = arith.mulf %667, %627 : vector<32x32xf32>
    %669 = arith.addf %665, %668 : vector<32x32xf32>
    %c11_187 = arith.constant 11 : index
    %c0_188 = arith.constant 0 : index
    %c0_189 = arith.constant 0 : index
    %670 = vector.load %arg10[%c11_187, %c0_188, %c0_189] : memref<12x32x96xf32, #tpu.memory_space<vmem>>, vector<1x32x96xf32>
    %671 = vector.shape_cast %670 : vector<1x32x96xf32> to vector<32x96xf32>
    %672 = arith.truncf %669 : vector<32x32xf32> to vector<32x32xbf16>
    %cst_190 = arith.constant dense<0.000000e+00> : vector<32x192xf32>
    %673 = tpu.matmul %672, %205, %cst_190 {dimension_numbers = #tpu.dot_dimension_numbers<[1], [0], [0], [1], [0, 0, 1, 1], [], []>} : vector<32x32xbf16>, vector<32x192xbf16>, vector<32x192xf32> -> vector<32x192xf32>
    %674 = arith.truncf %673 : vector<32x192xf32> to vector<32x192xbf16>
    %675 = vector.extract_strided_slice %671 {offsets = [0, 0], sizes = [32, 64], strides = [1, 1]} : vector<32x96xf32> to vector<32x64xf32>
    %676 = vector.extract_strided_slice %674 {offsets = [0, 0], sizes = [32, 64], strides = [1, 1]} : vector<32x192xbf16> to vector<32x64xbf16>
    %cst_191 = arith.constant dense<0.000000e+00> : vector<32x64xf32>
    %677 = tpu.matmul %202, %676, %cst_191 {dimension_numbers = #tpu.dot_dimension_numbers<[1], [0], [0], [1], [0, 0, 1, 1], [], []>} : vector<32x32xbf16>, vector<32x64xbf16>, vector<32x64xf32> -> vector<32x64xf32>
    %678 = arith.addf %675, %677 : vector<32x64xf32>
    %679 = vector.extract_strided_slice %674 {offsets = [0, 64], sizes = [32, 64], strides = [1, 1]} : vector<32x192xbf16> to vector<32x64xbf16>
    %cst_192 = arith.constant dense<0.000000e+00> : vector<32x64xf32>
    %680 = tpu.matmul %203, %679, %cst_192 {dimension_numbers = #tpu.dot_dimension_numbers<[1], [0], [0], [1], [0, 0, 1, 1], [], []>} : vector<32x32xbf16>, vector<32x64xbf16>, vector<32x64xf32> -> vector<32x64xf32>
    %681 = arith.addf %678, %680 : vector<32x64xf32>
    %682 = vector.extract_strided_slice %674 {offsets = [0, 128], sizes = [32, 64], strides = [1, 1]} : vector<32x192xbf16> to vector<32x64xbf16>
    %cst_193 = arith.constant dense<0.000000e+00> : vector<32x64xf32>
    %683 = tpu.matmul %204, %682, %cst_193 {dimension_numbers = #tpu.dot_dimension_numbers<[1], [0], [0], [1], [0, 0, 1, 1], [], []>} : vector<32x32xbf16>, vector<32x64xbf16>, vector<32x64xf32> -> vector<32x64xf32>
    %684 = arith.addf %681, %683 : vector<32x64xf32>
    %685 = arith.negf %684 : vector<32x64xf32>
    %686 = math.exp %685 : vector<32x64xf32>
    %cst_194 = arith.constant 1.000000e+00 : f32
    %687 = vector.broadcast %cst_194 : f32 to vector<32x64xf32>
    %688 = arith.addf %687, %686 : vector<32x64xf32>
    %689 = arith.divf %687, %688 : vector<32x64xf32>
    %690 = vector.extract_strided_slice %689 {offsets = [0, 0], sizes = [32, 32], strides = [1, 1]} : vector<32x64xf32> to vector<32x32xf32>
    %691 = vector.extract_strided_slice %689 {offsets = [0, 32], sizes = [32, 32], strides = [1, 1]} : vector<32x64xf32> to vector<32x32xf32>
    %692 = arith.mulf %690, %669 : vector<32x32xf32>
    %693 = arith.truncf %692 : vector<32x32xf32> to vector<32x32xbf16>
    %cst_195 = arith.constant dense<0.000000e+00> : vector<32x96xf32>
    %694 = tpu.matmul %693, %206, %cst_195 {dimension_numbers = #tpu.dot_dimension_numbers<[1], [0], [0], [1], [0, 0, 1, 1], [], []>} : vector<32x32xbf16>, vector<32x96xbf16>, vector<32x96xf32> -> vector<32x96xf32>
    %695 = arith.truncf %694 : vector<32x96xf32> to vector<32x96xbf16>
    %696 = vector.extract_strided_slice %671 {offsets = [0, 64], sizes = [32, 32], strides = [1, 1]} : vector<32x96xf32> to vector<32x32xf32>
    %697 = vector.extract_strided_slice %695 {offsets = [0, 0], sizes = [32, 32], strides = [1, 1]} : vector<32x96xbf16> to vector<32x32xbf16>
    %cst_196 = arith.constant dense<0.000000e+00> : vector<32x32xf32>
    %698 = tpu.matmul %202, %697, %cst_196 {dimension_numbers = #tpu.dot_dimension_numbers<[1], [0], [0], [1], [0, 0, 1, 1], [], []>} : vector<32x32xbf16>, vector<32x32xbf16>, vector<32x32xf32> -> vector<32x32xf32>
    %699 = arith.addf %696, %698 : vector<32x32xf32>
    %700 = vector.extract_strided_slice %695 {offsets = [0, 32], sizes = [32, 32], strides = [1, 1]} : vector<32x96xbf16> to vector<32x32xbf16>
    %cst_197 = arith.constant dense<0.000000e+00> : vector<32x32xf32>
    %701 = tpu.matmul %203, %700, %cst_197 {dimension_numbers = #tpu.dot_dimension_numbers<[1], [0], [0], [1], [0, 0, 1, 1], [], []>} : vector<32x32xbf16>, vector<32x32xbf16>, vector<32x32xf32> -> vector<32x32xf32>
    %702 = arith.addf %699, %701 : vector<32x32xf32>
    %703 = vector.extract_strided_slice %695 {offsets = [0, 64], sizes = [32, 32], strides = [1, 1]} : vector<32x96xbf16> to vector<32x32xbf16>
    %cst_198 = arith.constant dense<0.000000e+00> : vector<32x32xf32>
    %704 = tpu.matmul %204, %703, %cst_198 {dimension_numbers = #tpu.dot_dimension_numbers<[1], [0], [0], [1], [0, 0, 1, 1], [], []>} : vector<32x32xbf16>, vector<32x32xbf16>, vector<32x32xf32> -> vector<32x32xf32>
    %705 = arith.addf %702, %704 : vector<32x32xf32>
    %706 = math.tanh %705 : vector<32x32xf32>
    %707 = arith.mulf %691, %706 : vector<32x32xf32>
    %cst_199 = arith.constant 1.000000e+00 : f32
    %708 = vector.broadcast %cst_199 : f32 to vector<32x32xf32>
    %709 = arith.subf %708, %691 : vector<32x32xf32>
    %710 = arith.mulf %709, %669 : vector<32x32xf32>
    %711 = arith.addf %707, %710 : vector<32x32xf32>
    %c0_200 = arith.constant 0 : index
    %c0_201 = arith.constant 0 : index
    %712 = vector.load %arg7[%c0_200, %c0_201] : memref<32x128xf32, #tpu.memory_space<vmem>>, vector<32x128xf32>
    %cst_202 = arith.constant dense<0.000000e+00> : vector<32x128xf32>
    %713 = tpu.matmul %711, %712, %cst_202 {dimension_numbers = #tpu.dot_dimension_numbers<[1], [0], [0], [1], [0, 0, 1, 1], [], []>} : vector<32x32xf32>, vector<32x128xf32>, vector<32x128xf32> -> vector<32x128xf32>
    %c0_203 = arith.constant 0 : index
    %c0_204 = arith.constant 0 : index
    %714 = vector.load %arg8[%c0_203, %c0_204] : memref<1x128xf32, #tpu.memory_space<vmem>>, vector<1x128xf32>
    %715 = vector.broadcast %714 : vector<1x128xf32> to vector<32x128xf32>
    %716 = arith.addf %713, %715 : vector<32x128xf32>
    %c0_205 = arith.constant 0 : index
    %c0_206 = arith.constant 0 : index
    %717 = vector.load %arg9[%c0_205, %c0_206] : memref<32x128xf32, #tpu.memory_space<vmem>>, vector<32x128xf32>
    tpu.vector_store %arg9[%c0_205, %c0_206], %716 {strides = array<i32>} : memref<32x128xf32, #tpu.memory_space<vmem>>, vector<32x128xf32>,
    return
  }
  func.func @transform_0(%arg0: i32) -> (i32, i32) {
    %c0_i32 = arith.constant 0 : i32
    %c0_i32_0 = arith.constant 0 : i32
    %c0_i32_1 = arith.constant 0 : i32
    return %c0_i32, %c0_i32_0 : i32, i32
  }
  func.func @transform_1(%arg0: i32) -> (i32, i32) {
    %c0_i32 = arith.constant 0 : i32
    %c0_i32_0 = arith.constant 0 : i32
    %c0_i32_1 = arith.constant 0 : i32
    return %c0_i32, %c0_i32_0 : i32, i32
  }
  func.func @transform_2(%arg0: i32) -> (i32, i32, i32) {
    %c0_i32 = arith.constant 0 : i32
    %c0_i32_0 = arith.constant 0 : i32
    %c0_i32_1 = arith.constant 0 : i32
    %c0_i32_2 = arith.constant 0 : i32
    return %c0_i32, %c0_i32_0, %c0_i32_1 : i32, i32, i32
  }
  func.func @transform_3(%arg0: i32) -> (i32, i32) {
    %c0_i32 = arith.constant 0 : i32
    %c0_i32_0 = arith.constant 0 : i32
    %c0_i32_1 = arith.constant 0 : i32
    return %c0_i32, %c0_i32_0 : i32, i32
  }
  func.func @transform_4(%arg0: i32) -> (i32, i32) {
    %c0_i32 = arith.constant 0 : i32
    %c0_i32_0 = arith.constant 0 : i32
    %c0_i32_1 = arith.constant 0 : i32
    return %c0_i32, %c0_i32_0 : i32, i32
  }
  func.func @transform_5(%arg0: i32) -> (i32, i32) {
    %c0_i32 = arith.constant 0 : i32
    %c0_i32_0 = arith.constant 0 : i32
    %c0_i32_1 = arith.constant 0 : i32
    return %c0_i32, %c0_i32_0 : i32, i32
  }
  func.func @transform_6(%arg0: i32) -> (i32, i32) {
    %c0_i32 = arith.constant 0 : i32
    %c0_i32_0 = arith.constant 0 : i32
    %c0_i32_1 = arith.constant 0 : i32
    return %c0_i32, %c0_i32_0 : i32, i32
  }
  func.func @transform_7(%arg0: i32) -> (i32, i32) {
    %c0_i32 = arith.constant 0 : i32
    %c0_i32_0 = arith.constant 0 : i32
    %c0_i32_1 = arith.constant 0 : i32
    return %c0_i32, %c0_i32_0 : i32, i32
  }
  func.func @transform_8(%arg0: i32) -> (i32, i32) {
    %c0_i32 = arith.constant 0 : i32
    %c0_i32_0 = arith.constant 0 : i32
    %c0_i32_1 = arith.constant 0 : i32
    return %c0_i32, %c0_i32_0 : i32, i32
  }
}

</mosaic_0001>

<llo_original>
// kernel: tpu_custom_call.1
$region0: #{tpu_custom_call.1}
  #allocation0 [shape = 'u32[]', space=smem, size = 0x4, offset = 0x4, fixed_abs, tag = 'smem constant byte address 0x4 - core index']
  #allocation1 [shape = 'u32[144,128]{1,0:T(1,128)}', space=vmem, size = 0x12000, scoped, tag = 'internal scratch']
  #allocation2 [shape = 'f32[12,32,96]{2,1,0:T(8,128)}', space=vmem, size = 0x30000, scoped, tag = 'scratch operand']
  %s0 = inlined_call_operand.vmem [shape: bf16[96,32], index: 0, kind: input, shape index: {}]
  %s1 = inlined_call_operand.vmem [shape: f32[32,12], index: 1, kind: input, shape index: {}]
  %s2 = inlined_call_operand.vmem [shape: f32[3,1,96], index: 2, kind: input, shape index: {}]
  %s3 = inlined_call_operand.vmem [shape: f32[1,96], index: 3, kind: input, shape index: {}]
  %s4 = inlined_call_operand.vmem [shape: bf16[32,192], index: 4, kind: input, shape index: {}]
  %s5 = inlined_call_operand.vmem [shape: bf16[32,96], index: 5, kind: input, shape index: {}]
  %s6 = inlined_call_operand.vmem [shape: f32[32,128], index: 6, kind: input, shape index: {}]
  %s7 = inlined_call_operand.vmem [shape: f32[1,128], index: 7, kind: input, shape index: {}]
  %s8 = inlined_call_operand.hbm [shape: f32[32,128], index: 8, kind: output, shape index: {}]
  %s9 = sld [smem:[#allocation0]]
  $region42: #{tpu_custom_call.1} parent=0
    _
  %s11 = ssub.s32 1, %s9
  %s12 = scalar_select 0, %s11, %s9
  $region1: #{tpu_custom_call.1} parent=0
    #allocation3 [shape = 'u8[16384]{0}', space=vmem, size = 0x4000, scoped, tag = 'output window, operand 0, single buffered']
    #allocation4 [shape = 's32[1]{0}', space=sflag, size = 0x4, scoped, tag = 'scoped memory for tpu_custom_call.1']
    %13 = vsyncpa [#allocation4], 0
    // Predicated region
    $region2: #{tpu_custom_call.1} parent=1 // pred_check
      _
    $region3: #{tpu_custom_call.1} parent=1 // pred_check_branch
      %15 = sbr.rel (0) target = $region5
    $region4: #{tpu_custom_call.1} parent=1 // pred_region
      _
    $region5: #{tpu_custom_call.1} parent=1 // pred_fallthru
      _
    // Predicated region
    $region6: #{tpu_custom_call.1} parent=1 // pred_check
      _
    $region7: #{tpu_custom_call.1} parent=1 // pred_check_branch
      %17 = sbr.rel (0) target = $region9
    $region8: #{tpu_custom_call.1} parent=1 // pred_region
      _
    $region9: #{tpu_custom_call.1} parent=1 // pred_fallthru
      _
    // Predicated region
    $region10: #{tpu_custom_call.1} parent=1 // pred_check
      _
    $region11: #{tpu_custom_call.1} parent=1 // pred_check_branch
      %19 = sbr.rel (0) target = $region13
    $region12: #{tpu_custom_call.1} parent=1 // pred_region
      _
    $region13: #{tpu_custom_call.1} parent=1 // pred_fallthru
      _
    // Predicated region
    $region14: #{tpu_custom_call.1} parent=1 // pred_check
      _
    $region15: #{tpu_custom_call.1} parent=1 // pred_check_branch
      %21 = sbr.rel (0) target = $region17
    $region16: #{tpu_custom_call.1} parent=1 // pred_region
      _
    $region17: #{tpu_custom_call.1} parent=1 // pred_fallthru
      _
    // Predicated region
    $region18: #{tpu_custom_call.1} parent=1 // pred_check
      _
    $region19: #{tpu_custom_call.1} parent=1 // pred_check_branch
      %23 = sbr.rel (0) target = $region21
    $region20: #{tpu_custom_call.1} parent=1 // pred_region
      _
    $region21: #{tpu_custom_call.1} parent=1 // pred_fallthru
      _
    // Predicated region
    $region22: #{tpu_custom_call.1} parent=1 // pred_check
      _
    $region23: #{tpu_custom_call.1} parent=1 // pred_check_branch
      %25 = sbr.rel (0) target = $region25
    $region24: #{tpu_custom_call.1} parent=1 // pred_region
      _
    $region25: #{tpu_custom_call.1} parent=1 // pred_fallthru
      _
    // Predicated region
    $region26: #{tpu_custom_call.1} parent=1 // pred_check
      _
    $region27: #{tpu_custom_call.1} parent=1 // pred_check_branch
      %27 = sbr.rel (0) target = $region29
    $region28: #{tpu_custom_call.1} parent=1 // pred_region
      _
    $region29: #{tpu_custom_call.1} parent=1 // pred_fallthru
      _
    // Predicated region
    $region30: #{tpu_custom_call.1} parent=1 // pred_check
      _
    $region31: #{tpu_custom_call.1} parent=1 // pred_check_branch
      %29 = sbr.rel (0) target = $region33
    $region32: #{tpu_custom_call.1} parent=1 // pred_region
      _
    $region33: #{tpu_custom_call.1} parent=1 // pred_fallthru
      _
    %v31 = vld [vmem:[%s0] sm:$0xf]
    %v32 = vld [vmem:[%s0 + $0x4] sm:$0xf]
    %v33 = vld [vmem:[%s0 + $0x8] sm:$0xf]
    %v34 = vld [vmem:[%s0 + $0xc] sm:$0xf]
    %v35 = vld [vmem:[%s0 + $0x10] sm:$0xf]
    %v36 = vld [vmem:[%s0 + $0x14] sm:$0xf]
    %v37 = vld [vmem:[%s0 + $0x18] sm:$0xf]
    %v38 = vld [vmem:[%s0 + $0x1c] sm:$0xf]
    %v39 = vld [vmem:[%s0 + $0x20] sm:$0xf]
    %v40 = vld [vmem:[%s0 + $0x24] sm:$0xf]
    %v41 = vld [vmem:[%s0 + $0x28] sm:$0xf]
    %v42 = vld [vmem:[%s0 + $0x2c] sm:$0xf]
    %v43 = vld [vmem:[%s1] sm:$0xff]
    %v44 = vld [vmem:[%s1 + $0x8] sm:$0xff]
    %v45 = vld [vmem:[%s1 + $0x10] sm:$0xff]
    %v46 = vld [vmem:[%s1 + $0x18] sm:$0xff]
    %v47 = vpack.c.bf16 %v44, %v43
    %v48 = vpack.c.bf16 %v46, %v45
    %v61 = vunpack.c.l.b16 %v31
    %v62 = vunpack.c.l.b16 %v32
    %v63 = vunpack.c.l.b16 %v33
    %v64 = vunpack.c.l.b16 %v34
    %v65 = vunpack.c.l.b16 %v35
    %v66 = vunpack.c.l.b16 %v36
    %v67 = vunpack.c.l.b16 %v37
    %v68 = vunpack.c.l.b16 %v38
    %v69 = vunpack.c.l.b16 %v39
    %v70 = vunpack.c.l.b16 %v40
    %v71 = vunpack.c.l.b16 %v41
    %v72 = vunpack.c.l.b16 %v42
    %v73 = vpack.c.b16 %v62, %v61
    %v74 = vpack.c.b16 %v64, %v63
    %v75 = vpack.c.b16 %v66, %v65
    %v76 = vpack.c.b16 %v68, %v67
    %v77 = vpack.c.b16 %v70, %v69
    %v78 = vpack.c.b16 %v72, %v71
    %vm79 = vcmask 261120
    %v81 = vsel %vm79, %v73, 0
    %v84 = vsel %vm79, %v74, 0
    %v87 = vsel %vm79, %v75, 0
    %v90 = vsel %vm79, %v76, 0
    %v93 = vsel %vm79, %v77, 0
    %v96 = vsel %vm79, %v78, 0
    %98 = vmatprep.subr.bf16.mxu0 0
    %99 = vmatpush1.bf16.msra.mxu0 0
    %100 = vmatprep.subr.bf16.mxu0 0
    %101 = vmatpush1.bf16.msra.mxu0 0
    %102 = vmatprep.subr.bf16.mxu0 0
    %103 = vmatpush1.bf16.msra.mxu0 0
    %104 = vmatprep.subr.bf16.mxu0 0
    %105 = vmatpush1.bf16.msra.mxu0 0
    %106 = vmatprep.subr.bf16.mxu0 0
    %107 = vmatpush1.bf16.msra.mxu0 0
    %108 = vmatprep.subr.bf16.mxu0 0
    %109 = vmatpush1.bf16.msra.mxu0 0
    %110 = vmatprep.subr.bf16.mxu0 0
    %111 = vmatpush1.bf16.msra.mxu0 %v48
    %112 = vmatprep.subr.bf16.mxu0 0
    %113 = vmatpush1.bf16.msra.mxu0 %v47
    %114 = vmatprep.subr.bf16.mxu0 0
    %115 = vmatpush2.bf16.msra.mxu0 0
    %116 = vmatprep.subr.bf16.mxu0 0
    %117 = vmatpush2.bf16.msra.mxu0 0
    %118 = vmatprep.subr.bf16.mxu0 0
    %119 = vmatpush2.bf16.msra.mxu0 0
    %120 = vmatprep.subr.bf16.mxu0 0
    %121 = vmatpush2.bf16.msra.mxu0 0
    %122 = vmatprep.subr.bf16.mxu0 0
    %123 = vmatpush2.bf16.msra.mxu0 0
    %124 = vmatprep.subr.bf16.mxu0 0
    %125 = vmatpush2.bf16.msra.mxu0 0
    %126 = vmatprep.subr.bf16.mxu0 0
    %127 = vmatpush2.bf16.msra.mxu0 0
    %128 = vmatprep.subr.bf16.mxu0 0
    %129 = vmatpush2.bf16.msra.mxu0 0
    %130 = vmatprep.mubr.bf16.mxu0 0
    %131 = vmatmul.mubr.bf16.gmra.mxu0 %v81
    %v132 = vpop.f32.mrf.mxu0
    %v133 = vadd.f32 0.0, %v132
    %v134 = vpop.f32.mrf.mxu0
    %v135 = vpop.f32.mrf.mxu0
    %v136 = vadd.f32 0.0, %v135
    %v137 = vpop.f32.mrf.mxu0
    %138 = vmatprep.mubr.bf16.mxu0 0
    %139 = vmatmul.mubr.bf16.gmra.mxu0 %v84
    %v140 = vpop.f32.mrf.mxu0
    %v141 = vadd.f32 0.0, %v140
    %v142 = vpop.f32.mrf.mxu0
    %v143 = vpop.f32.mrf.mxu0
    %v144 = vadd.f32 0.0, %v143
    %v145 = vpop.f32.mrf.mxu0
    %146 = vmatprep.mubr.bf16.mxu0 0
    %147 = vmatmul.mubr.bf16.gmra.mxu0 %v87
    %v148 = vpop.f32.mrf.mxu0
    %v149 = vadd.f32 0.0, %v148
    %v150 = vpop.f32.mrf.mxu0
    %v151 = vpop.f32.mrf.mxu0
    %v152 = vadd.f32 0.0, %v151
    %v153 = vpop.f32.mrf.mxu0
    %154 = vmatprep.mubr.bf16.mxu0 0
    %155 = vmatmul.mubr.bf16.gmra.mxu0 %v90
    %v156 = vpop.f32.mrf.mxu0
    %v157 = vadd.f32 0.0, %v156
    %v158 = vpop.f32.mrf.mxu0
    %v159 = vpop.f32.mrf.mxu0
    %v160 = vadd.f32 0.0, %v159
    %v161 = vpop.f32.mrf.mxu0
    %162 = vmatprep.mubr.bf16.mxu0 0
    %163 = vmatmul.mubr.bf16.gmra.mxu0 %v93
    %v164 = vpop.f32.mrf.mxu0
    %v165 = vadd.f32 0.0, %v164
    %v166 = vpop.f32.mrf.mxu0
    %v167 = vpop.f32.mrf.mxu0
    %v168 = vadd.f32 0.0, %v167
    %v169 = vpop.f32.mrf.mxu0
    %170 = vmatprep.mubr.bf16.mxu0 0
    %171 = vmatmul.mubr.bf16.gmra.mxu0 %v96
    %v172 = vpop.f32.mrf.mxu0
    %v173 = vadd.f32 0.0, %v172
    %v174 = vpop.f32.mrf.mxu0
    %v175 = vpop.f32.mrf.mxu0
    %v176 = vadd.f32 0.0, %v175
    %v177 = vpop.f32.mrf.mxu0
    %178 = vdwg.mxu0
    %v179 = vld [vmem:[%s3] sm:$0x1]
    %v181 = vlaneseq
    %v182 = vshrl.u32 %v181, 7
    %v183 = vsub.s32 0, %v182
    %v184 = vrot.slane %v179, %v183
    %v186 = vld [vmem:[%s2] sm:$0x1]
    %v188 = vlaneseq
    %v189 = vshrl.u32 %v188, 7
    %v190 = vsub.s32 0, %v189
    %v191 = vrot.slane %v186, %v190
    %s193 = scalar_lea.vmem %s2, 1
    %v194 = vld [vmem:[%s193] sm:$0x1]
    %v196 = vlaneseq
    %v197 = vshrl.u32 %v196, 7
    %v198 = vsub.s32 0, %v197
    %v199 = vrot.slane %v194, %v198
    %s201 = scalar_lea.vmem %s2, 2
    %v202 = vld [vmem:[%s201] sm:$0x1]
    %v204 = vlaneseq
    %v205 = vshrl.u32 %v204, 7
    %v206 = vsub.s32 0, %v205
    %v207 = vrot.slane %v202, %v206
    %210 = vset.pattern.permute.xlu0 0
    %211 = vperm.xlu0 %210, %v133
    %v212 = vpop.permute.xlu0 %211
    %215 = vset.pattern.permute.xlu0 0
    %216 = vperm.xlu0 %215, %v136
    %v217 = vpop.permute.xlu0 %216
    %220 = vset.pattern.permute.xlu0 0
    %221 = vperm.xlu0 %220, %v141
    %v222 = vpop.permute.xlu0 %221
    %225 = vset.pattern.permute.xlu0 0
    %226 = vperm.xlu0 %225, %v144
    %v227 = vpop.permute.xlu0 %226
    %v229 = vmul.f32 %v212, %v191
    %v230 = vmul.f32 %v217, %v191
    %v231 = vmul.f32 %v222, %v191
    %v232 = vmul.f32 %v227, %v191
    %v233 = vadd.f32 %v184, %v229
    %v234 = vadd.f32 %v184, %v230
    %v235 = vadd.f32 %v184, %v231
    %v236 = vadd.f32 %v184, %v232
    %238 = vset.pattern.permute.xlu0 0
    %239 = vperm.xlu0 %238, %v149
    %v240 = vpop.permute.xlu0 %239
    %243 = vset.pattern.permute.xlu0 0
    %244 = vperm.xlu0 %243, %v152
    %v245 = vpop.permute.xlu0 %244
    %248 = vset.pattern.permute.xlu0 0
    %249 = vperm.xlu0 %248, %v157
    %v250 = vpop.permute.xlu0 %249
    %253 = vset.pattern.permute.xlu0 0
    %254 = vperm.xlu0 %253, %v160
    %v255 = vpop.permute.xlu0 %254
    %v257 = vmul.f32 %v240, %v199
    %v258 = vmul.f32 %v245, %v199
    %v259 = vmul.f32 %v250, %v199
    %v260 = vmul.f32 %v255, %v199
    %v261 = vadd.f32 %v233, %v257
    %v262 = vadd.f32 %v234, %v258
    %v263 = vadd.f32 %v235, %v259
    %v264 = vadd.f32 %v236, %v260
    %266 = vset.pattern.permute.xlu0 0
    %267 = vperm.xlu0 %266, %v165
    %v268 = vpop.permute.xlu0 %267
    %271 = vset.pattern.permute.xlu0 0
    %272 = vperm.xlu0 %271, %v168
    %v273 = vpop.permute.xlu0 %272
    %276 = vset.pattern.permute.xlu0 0
    %277 = vperm.xlu0 %276, %v173
    %v278 = vpop.permute.xlu0 %277
    %281 = vset.pattern.permute.xlu0 0
    %282 = vperm.xlu0 %281, %v176
    %v283 = vpop.permute.xlu0 %282
    %v285 = vmul.f32 %v268, %v207
    %v286 = vmul.f32 %v273, %v207
    %v287 = vmul.f32 %v278, %v207
    %v288 = vmul.f32 %v283, %v207
    %v289 = vadd.f32 %v261, %v285
    %v290 = vadd.f32 %v262, %v286
    %v291 = vadd.f32 %v263, %v287
    %v292 = vadd.f32 %v264, %v288
    %vm293 = vcmask 785408
    %294 = vst.msk [vmem:[#allocation2] sm:$0xff] %vm293, %v289
    %295 = vst.msk [vmem:[#allocation2 + $0x8] sm:$0xff] %vm293, %v290
    %296 = vst.msk [vmem:[#allocation2 + $0x10] sm:$0xff] %vm293, %v291
    %297 = vst.msk [vmem:[#allocation2 + $0x18] sm:$0xff] %vm293, %v292
    %298 = vset.pattern.permute.xlu0 1
    %299 = vperm.xlu0 %298, %v133
    %v300 = vpop.permute.xlu0 %299
    %302 = vset.pattern.permute.xlu0 1
    %303 = vperm.xlu0 %302, %v136
    %v304 = vpop.permute.xlu0 %303
    %306 = vset.pattern.permute.xlu0 1
    %307 = vperm.xlu0 %306, %v141
    %v308 = vpop.permute.xlu0 %307
    %310 = vset.pattern.permute.xlu0 1
    %311 = vperm.xlu0 %310, %v144
    %v312 = vpop.permute.xlu0 %311
    %v314 = vmul.f32 %v300, %v191
    %v315 = vmul.f32 %v304, %v191
    %v316 = vmul.f32 %v308, %v191
    %v317 = vmul.f32 %v312, %v191
    %v318 = vadd.f32 %v184, %v314
    %v319 = vadd.f32 %v184, %v315
    %v320 = vadd.f32 %v184, %v316
    %v321 = vadd.f32 %v184, %v317
    %322 = vset.pattern.permute.xlu0 1
    %323 = vperm.xlu0 %322, %v149
    %v324 = vpop.permute.xlu0 %323
    %326 = vset.pattern.permute.xlu0 1
    %327 = vperm.xlu0 %326, %v152
    %v328 = vpop.permute.xlu0 %327
    %330 = vset.pattern.permute.xlu0 1
    %331 = vperm.xlu0 %330, %v157
    %v332 = vpop.permute.xlu0 %331
    %334 = vset.pattern.permute.xlu0 1
    %335 = vperm.xlu0 %334, %v160
    %v336 = vpop.permute.xlu0 %335
    %v338 = vmul.f32 %v324, %v199
    %v339 = vmul.f32 %v328, %v199
    %v340 = vmul.f32 %v332, %v199
    %v341 = vmul.f32 %v336, %v199
    %v342 = vadd.f32 %v318, %v338
    %v343 = vadd.f32 %v319, %v339
    %v344 = vadd.f32 %v320, %v340
    %v345 = vadd.f32 %v321, %v341
    %346 = vset.pattern.permute.xlu0 1
    %347 = vperm.xlu0 %346, %v165
    %v348 = vpop.permute.xlu0 %347
    %350 = vset.pattern.permute.xlu0 1
    %351 = vperm.xlu0 %350, %v168
    %v352 = vpop.permute.xlu0 %351
    %354 = vset.pattern.permute.xlu0 1
    %355 = vperm.xlu0 %354, %v173
    %v356 = vpop.permute.xlu0 %355
    %358 = vset.pattern.permute.xlu0 1
    %359 = vperm.xlu0 %358, %v176
    %v360 = vpop.permute.xlu0 %359
    %v362 = vmul.f32 %v348, %v207
    %v363 = vmul.f32 %v352, %v207
    %v364 = vmul.f32 %v356, %v207
    %v365 = vmul.f32 %v360, %v207
    %v366 = vadd.f32 %v342, %v362
    %v367 = vadd.f32 %v343, %v363
    %v368 = vadd.f32 %v344, %v364
    %v369 = vadd.f32 %v345, %v365
    %s370 = scalar_lea.vmem [#allocation2], 32
    %371 = vst.msk [vmem:[%s370] sm:$0xff] %vm293, %v366
    %372 = vst.msk [vmem:[%s370 + $0x8] sm:$0xff] %vm293, %v367
    %373 = vst.msk [vmem:[%s370 + $0x10] sm:$0xff] %vm293, %v368
    %374 = vst.msk [vmem:[%s370 + $0x18] sm:$0xff] %vm293, %v369
    %375 = vset.pattern.permute.xlu0 2
    %376 = vperm.xlu0 %375, %v133
    %v377 = vpop.permute.xlu0 %376
    %379 = vset.pattern.permute.xlu0 2
    %380 = vperm.xlu0 %379, %v136
    %v381 = vpop.permute.xlu0 %380
    %383 = vset.pattern.permute.xlu0 2
    %384 = vperm.xlu0 %383, %v141
    %v385 = vpop.permute.xlu0 %384
    %387 = vset.pattern.permute.xlu0 2
    %388 = vperm.xlu0 %387, %v144
    %v389 = vpop.permute.xlu0 %388
    %v391 = vmul.f32 %v377, %v191
    %v392 = vmul.f32 %v381, %v191
    %v393 = vmul.f32 %v385, %v191
    %v394 = vmul.f32 %v389, %v191
    %v395 = vadd.f32 %v184, %v391
    %v396 = vadd.f32 %v184, %v392
    %v397 = vadd.f32 %v184, %v393
    %v398 = vadd.f32 %v184, %v394
    %399 = vset.pattern.permute.xlu0 2
    %400 = vperm.xlu0 %399, %v149
    %v401 = vpop.permute.xlu0 %400
    %403 = vset.pattern.permute.xlu0 2
    %404 = vperm.xlu0 %403, %v152
    %v405 = vpop.permute.xlu0 %404
    %407 = vset.pattern.permute.xlu0 2
    %408 = vperm.xlu0 %407, %v157
    %v409 = vpop.permute.xlu0 %408
    %411 = vset.pattern.permute.xlu0 2
    %412 = vperm.xlu0 %411, %v160
    %v413 = vpop.permute.xlu0 %412
    %v415 = vmul.f32 %v401, %v199
    %v416 = vmul.f32 %v405, %v199
    %v417 = vmul.f32 %v409, %v199
    %v418 = vmul.f32 %v413, %v199
    %v419 = vadd.f32 %v395, %v415
    %v420 = vadd.f32 %v396, %v416
    %v421 = vadd.f32 %v397, %v417
    %v422 = vadd.f32 %v398, %v418
    %423 = vset.pattern.permute.xlu0 2
    %424 = vperm.xlu0 %423, %v165
    %v425 = vpop.permute.xlu0 %424
    %427 = vset.pattern.permute.xlu0 2
    %428 = vperm.xlu0 %427, %v168
    %v429 = vpop.permute.xlu0 %428
    %431 = vset.pattern.permute.xlu0 2
    %432 = vperm.xlu0 %431, %v173
    %v433 = vpop.permute.xlu0 %432
    %435 = vset.pattern.permute.xlu0 2
    %436 = vperm.xlu0 %435, %v176
    %v437 = vpop.permute.xlu0 %436
    %v439 = vmul.f32 %v425, %v207
    %v440 = vmul.f32 %v429, %v207
    %v441 = vmul.f32 %v433, %v207
    %v442 = vmul.f32 %v437, %v207
    %v443 = vadd.f32 %v419, %v439
    %v444 = vadd.f32 %v420, %v440
    %v445 = vadd.f32 %v421, %v441
    %v446 = vadd.f32 %v422, %v442
    %s447 = scalar_lea.vmem [#allocation2], 64
    %448 = vst.msk [vmem:[%s447] sm:$0xff] %vm293, %v443
    %449 = vst.msk [vmem:[%s447 + $0x8] sm:$0xff] %vm293, %v444
    %450 = vst.msk [vmem:[%s447 + $0x10] sm:$0xff] %vm293, %v445
    %451 = vst.msk [vmem:[%s447 + $0x18] sm:$0xff] %vm293, %v446
    %452 = vset.pattern.permute.xlu0 3
    %453 = vperm.xlu0 %452, %v133
    %v454 = vpop.permute.xlu0 %453
    %456 = vset.pattern.permute.xlu0 3
    %457 = vperm.xlu0 %456, %v136
    %v458 = vpop.permute.xlu0 %457
    %460 = vset.pattern.permute.xlu0 3
    %461 = vperm.xlu0 %460, %v141
    %v462 = vpop.permute.xlu0 %461
    %464 = vset.pattern.permute.xlu0 3
    %465 = vperm.xlu0 %464, %v144
    %v466 = vpop.permute.xlu0 %465
    %v468 = vmul.f32 %v454, %v191
    %v469 = vmul.f32 %v458, %v191
    %v470 = vmul.f32 %v462, %v191
    %v471 = vmul.f32 %v466, %v191
    %v472 = vadd.f32 %v184, %v468
    %v473 = vadd.f32 %v184, %v469
    %v474 = vadd.f32 %v184, %v470
    %v475 = vadd.f32 %v184, %v471
    %476 = vset.pattern.permute.xlu0 3
    %477 = vperm.xlu0 %476, %v149
    %v478 = vpop.permute.xlu0 %477
    %480 = vset.pattern.permute.xlu0 3
    %481 = vperm.xlu0 %480, %v152
    %v482 = vpop.permute.xlu0 %481
    %484 = vset.pattern.permute.xlu0 3
    %485 = vperm.xlu0 %484, %v157
    %v486 = vpop.permute.xlu0 %485
    %488 = vset.pattern.permute.xlu0 3
    %489 = vperm.xlu0 %488, %v160
    %v490 = vpop.permute.xlu0 %489
    %v492 = vmul.f32 %v478, %v199
    %v493 = vmul.f32 %v482, %v199
    %v494 = vmul.f32 %v486, %v199
    %v495 = vmul.f32 %v490, %v199
    %v496 = vadd.f32 %v472, %v492
    %v497 = vadd.f32 %v473, %v493
    %v498 = vadd.f32 %v474, %v494
    %v499 = vadd.f32 %v475, %v495
    %500 = vset.pattern.permute.xlu0 3
    %501 = vperm.xlu0 %500, %v165
    %v502 = vpop.permute.xlu0 %501
    %504 = vset.pattern.permute.xlu0 3
    %505 = vperm.xlu0 %504, %v168
    %v506 = vpop.permute.xlu0 %505
    %508 = vset.pattern.permute.xlu0 3
    %509 = vperm.xlu0 %508, %v173
    %v510 = vpop.permute.xlu0 %509
    %512 = vset.pattern.permute.xlu0 3
    %513 = vperm.xlu0 %512, %v176
    %v514 = vpop.permute.xlu0 %513
    %v516 = vmul.f32 %v502, %v207
    %v517 = vmul.f32 %v506, %v207
    %v518 = vmul.f32 %v510, %v207
    %v519 = vmul.f32 %v514, %v207
    %v520 = vadd.f32 %v496, %v516
    %v521 = vadd.f32 %v497, %v517
    %v522 = vadd.f32 %v498, %v518
    %v523 = vadd.f32 %v499, %v519
    %s524 = scalar_lea.vmem [#allocation2], 96
    %525 = vst.msk [vmem:[%s524] sm:$0xff] %vm293, %v520
    %526 = vst.msk [vmem:[%s524 + $0x8] sm:$0xff] %vm293, %v521
    %527 = vst.msk [vmem:[%s524 + $0x10] sm:$0xff] %vm293, %v522
    %528 = vst.msk [vmem:[%s524 + $0x18] sm:$0xff] %vm293, %v523
    %529 = vset.pattern.permute.xlu0 4
    %530 = vperm.xlu0 %529, %v133
    %v531 = vpop.permute.xlu0 %530
    %533 = vset.pattern.permute.xlu0 4
    %534 = vperm.xlu0 %533, %v136
    %v535 = vpop.permute.xlu0 %534
    %537 = vset.pattern.permute.xlu0 4
    %538 = vperm.xlu0 %537, %v141
    %v539 = vpop.permute.xlu0 %538
    %541 = vset.pattern.permute.xlu0 4
    %542 = vperm.xlu0 %541, %v144
    %v543 = vpop.permute.xlu0 %542
    %v545 = vmul.f32 %v531, %v191
    %v546 = vmul.f32 %v535, %v191
    %v547 = vmul.f32 %v539, %v191
    %v548 = vmul.f32 %v543, %v191
    %v549 = vadd.f32 %v184, %v545
    %v550 = vadd.f32 %v184, %v546
    %v551 = vadd.f32 %v184, %v547
    %v552 = vadd.f32 %v184, %v548
    %553 = vset.pattern.permute.xlu0 4
    %554 = vperm.xlu0 %553, %v149
    %v555 = vpop.permute.xlu0 %554
    %557 = vset.pattern.permute.xlu0 4
    %558 = vperm.xlu0 %557, %v152
    %v559 = vpop.permute.xlu0 %558
    %561 = vset.pattern.permute.xlu0 4
    %562 = vperm.xlu0 %561, %v157
    %v563 = vpop.permute.xlu0 %562
    %565 = vset.pattern.permute.xlu0 4
    %566 = vperm.xlu0 %565, %v160
    %v567 = vpop.permute.xlu0 %566
    %v569 = vmul.f32 %v555, %v199
    %v570 = vmul.f32 %v559, %v199
    %v571 = vmul.f32 %v563, %v199
    %v572 = vmul.f32 %v567, %v199
    %v573 = vadd.f32 %v549, %v569
    %v574 = vadd.f32 %v550, %v570
    %v575 = vadd.f32 %v551, %v571
    %v576 = vadd.f32 %v552, %v572
    %577 = vset.pattern.permute.xlu0 4
    %578 = vperm.xlu0 %577, %v165
    %v579 = vpop.permute.xlu0 %578
    %581 = vset.pattern.permute.xlu0 4
    %582 = vperm.xlu0 %581, %v168
    %v583 = vpop.permute.xlu0 %582
    %585 = vset.pattern.permute.xlu0 4
    %586 = vperm.xlu0 %585, %v173
    %v587 = vpop.permute.xlu0 %586
    %589 = vset.pattern.permute.xlu0 4
    %590 = vperm.xlu0 %589, %v176
    %v591 = vpop.permute.xlu0 %590
    %v593 = vmul.f32 %v579, %v207
    %v594 = vmul.f32 %v583, %v207
    %v595 = vmul.f32 %v587, %v207
    %v596 = vmul.f32 %v591, %v207
    %v597 = vadd.f32 %v573, %v593
    %v598 = vadd.f32 %v574, %v594
    %v599 = vadd.f32 %v575, %v595
    %v600 = vadd.f32 %v576, %v596
    %s601 = scalar_lea.vmem [#allocation2], 128
    %602 = vst.msk [vmem:[%s601] sm:$0xff] %vm293, %v597
    %603 = vst.msk [vmem:[%s601 + $0x8] sm:$0xff] %vm293, %v598
    %604 = vst.msk [vmem:[%s601 + $0x10] sm:$0xff] %vm293, %v599
    %605 = vst.msk [vmem:[%s601 + $0x18] sm:$0xff] %vm293, %v600
    %606 = vset.pattern.permute.xlu0 5
    %607 = vperm.xlu0 %606, %v133
    %v608 = vpop.permute.xlu0 %607
    %610 = vset.pattern.permute.xlu0 5
    %611 = vperm.xlu0 %610, %v136
    %v612 = vpop.permute.xlu0 %611
    %614 = vset.pattern.permute.xlu0 5
    %615 = vperm.xlu0 %614, %v141
    %v616 = vpop.permute.xlu0 %615
    %618 = vset.pattern.permute.xlu0 5
    %619 = vperm.xlu0 %618, %v144
    %v620 = vpop.permute.xlu0 %619
    %v622 = vmul.f32 %v608, %v191
    %v623 = vmul.f32 %v612, %v191
    %v624 = vmul.f32 %v616, %v191
    %v625 = vmul.f32 %v620, %v191
    %v626 = vadd.f32 %v184, %v622
    %v627 = vadd.f32 %v184, %v623
    %v628 = vadd.f32 %v184, %v624
    %v629 = vadd.f32 %v184, %v625
    %630 = vset.pattern.permute.xlu0 5
    %631 = vperm.xlu0 %630, %v149
    %v632 = vpop.permute.xlu0 %631
    %634 = vset.pattern.permute.xlu0 5
    %635 = vperm.xlu0 %634, %v152
    %v636 = vpop.permute.xlu0 %635
    %638 = vset.pattern.permute.xlu0 5
    %639 = vperm.xlu0 %638, %v157
    %v640 = vpop.permute.xlu0 %639
    %642 = vset.pattern.permute.xlu0 5
    %643 = vperm.xlu0 %642, %v160
    %v644 = vpop.permute.xlu0 %643
    %v646 = vmul.f32 %v632, %v199
    %v647 = vmul.f32 %v636, %v199
    %v648 = vmul.f32 %v640, %v199
    %v649 = vmul.f32 %v644, %v199
    %v650 = vadd.f32 %v626, %v646
    %v651 = vadd.f32 %v627, %v647
    %v652 = vadd.f32 %v628, %v648
    %v653 = vadd.f32 %v629, %v649
    %654 = vset.pattern.permute.xlu0 5
    %655 = vperm.xlu0 %654, %v165
    %v656 = vpop.permute.xlu0 %655
    %658 = vset.pattern.permute.xlu0 5
    %659 = vperm.xlu0 %658, %v168
    %v660 = vpop.permute.xlu0 %659
    %662 = vset.pattern.permute.xlu0 5
    %663 = vperm.xlu0 %662, %v173
    %v664 = vpop.permute.xlu0 %663
    %666 = vset.pattern.permute.xlu0 5
    %667 = vperm.xlu0 %666, %v176
    %v668 = vpop.permute.xlu0 %667
    %v670 = vmul.f32 %v656, %v207
    %v671 = vmul.f32 %v660, %v207
    %v672 = vmul.f32 %v664, %v207
    %v673 = vmul.f32 %v668, %v207
    %v674 = vadd.f32 %v650, %v670
    %v675 = vadd.f32 %v651, %v671
    %v676 = vadd.f32 %v652, %v672
    %v677 = vadd.f32 %v653, %v673
    %s678 = scalar_lea.vmem [#allocation2], 160
    %679 = vst.msk [vmem:[%s678] sm:$0xff] %vm293, %v674
    %680 = vst.msk [vmem:[%s678 + $0x8] sm:$0xff] %vm293, %v675
    %681 = vst.msk [vmem:[%s678 + $0x10] sm:$0xff] %vm293, %v676
    %682 = vst.msk [vmem:[%s678 + $0x18] sm:$0xff] %vm293, %v677
    %683 = vset.pattern.permute.xlu0 6
    %684 = vperm.xlu0 %683, %v133
    %v685 = vpop.permute.xlu0 %684
    %687 = vset.pattern.permute.xlu0 6
    %688 = vperm.xlu0 %687, %v136
    %v689 = vpop.permute.xlu0 %688
    %691 = vset.pattern.permute.xlu0 6
    %692 = vperm.xlu0 %691, %v141
    %v693 = vpop.permute.xlu0 %692
    %695 = vset.pattern.permute.xlu0 6
    %696 = vperm.xlu0 %695, %v144
    %v697 = vpop.permute.xlu0 %696
    %v699 = vmul.f32 %v685, %v191
    %v700 = vmul.f32 %v689, %v191
    %v701 = vmul.f32 %v693, %v191
    %v702 = vmul.f32 %v697, %v191
    %v703 = vadd.f32 %v184, %v699
    %v704 = vadd.f32 %v184, %v700
    %v705 = vadd.f32 %v184, %v701
    %v706 = vadd.f32 %v184, %v702
    %707 = vset.pattern.permute.xlu0 6
    %708 = vperm.xlu0 %707, %v149
    %v709 = vpop.permute.xlu0 %708
    %711 = vset.pattern.permute.xlu0 6
    %712 = vperm.xlu0 %711, %v152
    %v713 = vpop.permute.xlu0 %712
    %715 = vset.pattern.permute.xlu0 6
    %716 = vperm.xlu0 %715, %v157
    %v717 = vpop.permute.xlu0 %716
    %719 = vset.pattern.permute.xlu0 6
    %720 = vperm.xlu0 %719, %v160
    %v721 = vpop.permute.xlu0 %720
    %v723 = vmul.f32 %v709, %v199
    %v724 = vmul.f32 %v713, %v199
    %v725 = vmul.f32 %v717, %v199
    %v726 = vmul.f32 %v721, %v199
    %v727 = vadd.f32 %v703, %v723
    %v728 = vadd.f32 %v704, %v724
    %v729 = vadd.f32 %v705, %v725
    %v730 = vadd.f32 %v706, %v726
    %731 = vset.pattern.permute.xlu0 6
    %732 = vperm.xlu0 %731, %v165
    %v733 = vpop.permute.xlu0 %732
    %735 = vset.pattern.permute.xlu0 6
    %736 = vperm.xlu0 %735, %v168
    %v737 = vpop.permute.xlu0 %736
    %739 = vset.pattern.permute.xlu0 6
    %740 = vperm.xlu0 %739, %v173
    %v741 = vpop.permute.xlu0 %740
    %743 = vset.pattern.permute.xlu0 6
    %744 = vperm.xlu0 %743, %v176
    %v745 = vpop.permute.xlu0 %744
    %v747 = vmul.f32 %v733, %v207
    %v748 = vmul.f32 %v737, %v207
    %v749 = vmul.f32 %v741, %v207
    %v750 = vmul.f32 %v745, %v207
    %v751 = vadd.f32 %v727, %v747
    %v752 = vadd.f32 %v728, %v748
    %v753 = vadd.f32 %v729, %v749
    %v754 = vadd.f32 %v730, %v750
    %s755 = scalar_lea.vmem [#allocation2], 192
    %756 = vst.msk [vmem:[%s755] sm:$0xff] %vm293, %v751
    %757 = vst.msk [vmem:[%s755 + $0x8] sm:$0xff] %vm293, %v752
    %758 = vst.msk [vmem:[%s755 + $0x10] sm:$0xff] %vm293, %v753
    %759 = vst.msk [vmem:[%s755 + $0x18] sm:$0xff] %vm293, %v754
    %760 = vset.pattern.permute.xlu0 7
    %761 = vperm.xlu0 %760, %v133
    %v762 = vpop.permute.xlu0 %761
    %764 = vset.pattern.permute.xlu0 7
    %765 = vperm.xlu0 %764, %v136
    %v766 = vpop.permute.xlu0 %765
    %768 = vset.pattern.permute.xlu0 7
    %769 = vperm.xlu0 %768, %v141
    %v770 = vpop.permute.xlu0 %769
    %772 = vset.pattern.permute.xlu0 7
    %773 = vperm.xlu0 %772, %v144
    %v774 = vpop.permute.xlu0 %773
    %v776 = vmul.f32 %v762, %v191
    %v777 = vmul.f32 %v766, %v191
    %v778 = vmul.f32 %v770, %v191
    %v779 = vmul.f32 %v774, %v191
    %v780 = vadd.f32 %v184, %v776
    %v781 = vadd.f32 %v184, %v777
    %v782 = vadd.f32 %v184, %v778
    %v783 = vadd.f32 %v184, %v779
    %784 = vset.pattern.permute.xlu0 7
    %785 = vperm.xlu0 %784, %v149
    %v786 = vpop.permute.xlu0 %785
    %788 = vset.pattern.permute.xlu0 7
    %789 = vperm.xlu0 %788, %v152
    %v790 = vpop.permute.xlu0 %789
    %792 = vset.pattern.permute.xlu0 7
    %793 = vperm.xlu0 %792, %v157
    %v794 = vpop.permute.xlu0 %793
    %796 = vset.pattern.permute.xlu0 7
    %797 = vperm.xlu0 %796, %v160
    %v798 = vpop.permute.xlu0 %797
    %v800 = vmul.f32 %v786, %v199
    %v801 = vmul.f32 %v790, %v199
    %v802 = vmul.f32 %v794, %v199
    %v803 = vmul.f32 %v798, %v199
    %v804 = vadd.f32 %v780, %v800
    %v805 = vadd.f32 %v781, %v801
    %v806 = vadd.f32 %v782, %v802
    %v807 = vadd.f32 %v783, %v803
    %808 = vset.pattern.permute.xlu0 7
    %809 = vperm.xlu0 %808, %v165
    %v810 = vpop.permute.xlu0 %809
    %812 = vset.pattern.permute.xlu0 7
    %813 = vperm.xlu0 %812, %v168
    %v814 = vpop.permute.xlu0 %813
    %816 = vset.pattern.permute.xlu0 7
    %817 = vperm.xlu0 %816, %v173
    %v818 = vpop.permute.xlu0 %817
    %820 = vset.pattern.permute.xlu0 7
    %821 = vperm.xlu0 %820, %v176
    %v822 = vpop.permute.xlu0 %821
    %v824 = vmul.f32 %v810, %v207
    %v825 = vmul.f32 %v814, %v207
    %v826 = vmul.f32 %v818, %v207
    %v827 = vmul.f32 %v822, %v207
    %v828 = vadd.f32 %v804, %v824
    %v829 = vadd.f32 %v805, %v825
    %v830 = vadd.f32 %v806, %v826
    %v831 = vadd.f32 %v807, %v827
    %s832 = scalar_lea.vmem [#allocation2], 224
    %833 = vst.msk [vmem:[%s832] sm:$0xff] %vm293, %v828
    %834 = vst.msk [vmem:[%s832 + $0x8] sm:$0xff] %vm293, %v829
    %835 = vst.msk [vmem:[%s832 + $0x10] sm:$0xff] %vm293, %v830
    %836 = vst.msk [vmem:[%s832 + $0x18] sm:$0xff] %vm293, %v831
    %837 = vset.pattern.permute.xlu0 8
    %838 = vperm.xlu0 %837, %v133
    %v839 = vpop.permute.xlu0 %838
    %841 = vset.pattern.permute.xlu0 8
    %842 = vperm.xlu0 %841, %v136
    %v843 = vpop.permute.xlu0 %842
    %845 = vset.pattern.permute.xlu0 8
    %846 = vperm.xlu0 %845, %v141
    %v847 = vpop.permute.xlu0 %846
    %849 = vset.pattern.permute.xlu0 8
    %850 = vperm.xlu0 %849, %v144
    %v851 = vpop.permute.xlu0 %850
    %v853 = vmul.f32 %v839, %v191
    %v854 = vmul.f32 %v843, %v191
    %v855 = vmul.f32 %v847, %v191
    %v856 = vmul.f32 %v851, %v191
    %v857 = vadd.f32 %v184, %v853
    %v858 = vadd.f32 %v184, %v854
    %v859 = vadd.f32 %v184, %v855
    %v860 = vadd.f32 %v184, %v856
    %861 = vset.pattern.permute.xlu0 8
    %862 = vperm.xlu0 %861, %v149
    %v863 = vpop.permute.xlu0 %862
    %865 = vset.pattern.permute.xlu0 8
    %866 = vperm.xlu0 %865, %v152
    %v867 = vpop.permute.xlu0 %866
    %869 = vset.pattern.permute.xlu0 8
    %870 = vperm.xlu0 %869, %v157
    %v871 = vpop.permute.xlu0 %870
    %873 = vset.pattern.permute.xlu0 8
    %874 = vperm.xlu0 %873, %v160
    %v875 = vpop.permute.xlu0 %874
    %v877 = vmul.f32 %v863, %v199
    %v878 = vmul.f32 %v867, %v199
    %v879 = vmul.f32 %v871, %v199
    %v880 = vmul.f32 %v875, %v199
    %v881 = vadd.f32 %v857, %v877
    %v882 = vadd.f32 %v858, %v878
    %v883 = vadd.f32 %v859, %v879
    %v884 = vadd.f32 %v860, %v880
    %885 = vset.pattern.permute.xlu0 8
    %886 = vperm.xlu0 %885, %v165
    %v887 = vpop.permute.xlu0 %886
    %889 = vset.pattern.permute.xlu0 8
    %890 = vperm.xlu0 %889, %v168
    %v891 = vpop.permute.xlu0 %890
    %893 = vset.pattern.permute.xlu0 8
    %894 = vperm.xlu0 %893, %v173
    %v895 = vpop.permute.xlu0 %894
    %897 = vset.pattern.permute.xlu0 8
    %898 = vperm.xlu0 %897, %v176
    %v899 = vpop.permute.xlu0 %898
    %v901 = vmul.f32 %v887, %v207
    %v902 = vmul.f32 %v891, %v207
    %v903 = vmul.f32 %v895, %v207
    %v904 = vmul.f32 %v899, %v207
    %v905 = vadd.f32 %v881, %v901
    %v906 = vadd.f32 %v882, %v902
    %v907 = vadd.f32 %v883, %v903
    %v908 = vadd.f32 %v884, %v904
    %s909 = scalar_lea.vmem [#allocation2], 256
    %910 = vst.msk [vmem:[%s909] sm:$0xff] %vm293, %v905
    %911 = vst.msk [vmem:[%s909 + $0x8] sm:$0xff] %vm293, %v906
    %912 = vst.msk [vmem:[%s909 + $0x10] sm:$0xff] %vm293, %v907
    %913 = vst.msk [vmem:[%s909 + $0x18] sm:$0xff] %vm293, %v908
    %914 = vset.pattern.permute.xlu0 9
    %915 = vperm.xlu0 %914, %v133
    %v916 = vpop.permute.xlu0 %915
    %918 = vset.pattern.permute.xlu0 9
    %919 = vperm.xlu0 %918, %v136
    %v920 = vpop.permute.xlu0 %919
    %922 = vset.pattern.permute.xlu0 9
    %923 = vperm.xlu0 %922, %v141
    %v924 = vpop.permute.xlu0 %923
    %926 = vset.pattern.permute.xlu0 9
    %927 = vperm.xlu0 %926, %v144
    %v928 = vpop.permute.xlu0 %927
    %v930 = vmul.f32 %v916, %v191
    %v931 = vmul.f32 %v920, %v191
    %v932 = vmul.f32 %v924, %v191
    %v933 = vmul.f32 %v928, %v191
    %v934 = vadd.f32 %v184, %v930
    %v935 = vadd.f32 %v184, %v931
    %v936 = vadd.f32 %v184, %v932
    %v937 = vadd.f32 %v184, %v933
    %938 = vset.pattern.permute.xlu0 9
    %939 = vperm.xlu0 %938, %v149
    %v940 = vpop.permute.xlu0 %939
    %942 = vset.pattern.permute.xlu0 9
    %943 = vperm.xlu0 %942, %v152
    %v944 = vpop.permute.xlu0 %943
    %946 = vset.pattern.permute.xlu0 9
    %947 = vperm.xlu0 %946, %v157
    %v948 = vpop.permute.xlu0 %947
    %950 = vset.pattern.permute.xlu0 9
    %951 = vperm.xlu0 %950, %v160
    %v952 = vpop.permute.xlu0 %951
    %v954 = vmul.f32 %v940, %v199
    %v955 = vmul.f32 %v944, %v199
    %v956 = vmul.f32 %v948, %v199
    %v957 = vmul.f32 %v952, %v199
    %v958 = vadd.f32 %v934, %v954
    %v959 = vadd.f32 %v935, %v955
    %v960 = vadd.f32 %v936, %v956
    %v961 = vadd.f32 %v937, %v957
    %962 = vset.pattern.permute.xlu0 9
    %963 = vperm.xlu0 %962, %v165
    %v964 = vpop.permute.xlu0 %963
    %966 = vset.pattern.permute.xlu0 9
    %967 = vperm.xlu0 %966, %v168
    %v968 = vpop.permute.xlu0 %967
    %970 = vset.pattern.permute.xlu0 9
    %971 = vperm.xlu0 %970, %v173
    %v972 = vpop.permute.xlu0 %971
    %974 = vset.pattern.permute.xlu0 9
    %975 = vperm.xlu0 %974, %v176
    %v976 = vpop.permute.xlu0 %975
    %v978 = vmul.f32 %v964, %v207
    %v979 = vmul.f32 %v968, %v207
    %v980 = vmul.f32 %v972, %v207
    %v981 = vmul.f32 %v976, %v207
    %v982 = vadd.f32 %v958, %v978
    %v983 = vadd.f32 %v959, %v979
    %v984 = vadd.f32 %v960, %v980
    %v985 = vadd.f32 %v961, %v981
    %s986 = scalar_lea.vmem [#allocation2], 288
    %987 = vst.msk [vmem:[%s986] sm:$0xff] %vm293, %v982
    %988 = vst.msk [vmem:[%s986 + $0x8] sm:$0xff] %vm293, %v983
    %989 = vst.msk [vmem:[%s986 + $0x10] sm:$0xff] %vm293, %v984
    %990 = vst.msk [vmem:[%s986 + $0x18] sm:$0xff] %vm293, %v985
    %991 = vset.pattern.permute.xlu0 10
    %992 = vperm.xlu0 %991, %v133
    %v993 = vpop.permute.xlu0 %992
    %995 = vset.pattern.permute.xlu0 10
    %996 = vperm.xlu0 %995, %v136
    %v997 = vpop.permute.xlu0 %996
    %999 = vset.pattern.permute.xlu0 10
    %1000 = vperm.xlu0 %999, %v141
    %v1001 = vpop.permute.xlu0 %1000
    %1003 = vset.pattern.permute.xlu0 10
    %1004 = vperm.xlu0 %1003, %v144
    %v1005 = vpop.permute.xlu0 %1004
    %v1007 = vmul.f32 %v993, %v191
    %v1008 = vmul.f32 %v997, %v191
    %v1009 = vmul.f32 %v1001, %v191
    %v1010 = vmul.f32 %v1005, %v191
    %v1011 = vadd.f32 %v184, %v1007
    %v1012 = vadd.f32 %v184, %v1008
    %v1013 = vadd.f32 %v184, %v1009
    %v1014 = vadd.f32 %v184, %v1010
    %1015 = vset.pattern.permute.xlu0 10
    %1016 = vperm.xlu0 %1015, %v149
    %v1017 = vpop.permute.xlu0 %1016
    %1019 = vset.pattern.permute.xlu0 10
    %1020 = vperm.xlu0 %1019, %v152
    %v1021 = vpop.permute.xlu0 %1020
    %1023 = vset.pattern.permute.xlu0 10
    %1024 = vperm.xlu0 %1023, %v157
    %v1025 = vpop.permute.xlu0 %1024
    %1027 = vset.pattern.permute.xlu0 10
    %1028 = vperm.xlu0 %1027, %v160
    %v1029 = vpop.permute.xlu0 %1028
    %v1031 = vmul.f32 %v1017, %v199
    %v1032 = vmul.f32 %v1021, %v199
    %v1033 = vmul.f32 %v1025, %v199
    %v1034 = vmul.f32 %v1029, %v199
    %v1035 = vadd.f32 %v1011, %v1031
    %v1036 = vadd.f32 %v1012, %v1032
    %v1037 = vadd.f32 %v1013, %v1033
    %v1038 = vadd.f32 %v1014, %v1034
    %1039 = vset.pattern.permute.xlu0 10
    %1040 = vperm.xlu0 %1039, %v165
    %v1041 = vpop.permute.xlu0 %1040
    %1043 = vset.pattern.permute.xlu0 10
    %1044 = vperm.xlu0 %1043, %v168
    %v1045 = vpop.permute.xlu0 %1044
    %1047 = vset.pattern.permute.xlu0 10
    %1048 = vperm.xlu0 %1047, %v173
    %v1049 = vpop.permute.xlu0 %1048
    %1051 = vset.pattern.permute.xlu0 10
    %1052 = vperm.xlu0 %1051, %v176
    %v1053 = vpop.permute.xlu0 %1052
    %v1055 = vmul.f32 %v1041, %v207
    %v1056 = vmul.f32 %v1045, %v207
    %v1057 = vmul.f32 %v1049, %v207
    %v1058 = vmul.f32 %v1053, %v207
    %v1059 = vadd.f32 %v1035, %v1055
    %v1060 = vadd.f32 %v1036, %v1056
    %v1061 = vadd.f32 %v1037, %v1057
    %v1062 = vadd.f32 %v1038, %v1058
    %s1063 = scalar_lea.vmem [#allocation2], 320
    %1064 = vst.msk [vmem:[%s1063] sm:$0xff] %vm293, %v1059
    %1065 = vst.msk [vmem:[%s1063 + $0x8] sm:$0xff] %vm293, %v1060
    %1066 = vst.msk [vmem:[%s1063 + $0x10] sm:$0xff] %vm293, %v1061
    %1067 = vst.msk [vmem:[%s1063 + $0x18] sm:$0xff] %vm293, %v1062
    %1068 = vset.pattern.permute.xlu0 11
    %1069 = vperm.xlu0 %1068, %v133
    %v1070 = vpop.permute.xlu0 %1069
    %1072 = vset.pattern.permute.xlu0 11
    %1073 = vperm.xlu0 %1072, %v136
    %v1074 = vpop.permute.xlu0 %1073
    %1076 = vset.pattern.permute.xlu0 11
    %1077 = vperm.xlu0 %1076, %v141
    %v1078 = vpop.permute.xlu0 %1077
    %1080 = vset.pattern.permute.xlu0 11
    %1081 = vperm.xlu0 %1080, %v144
    %v1082 = vpop.permute.xlu0 %1081
    %v1084 = vmul.f32 %v1070, %v191
    %v1085 = vmul.f32 %v1074, %v191
    %v1086 = vmul.f32 %v1078, %v191
    %v1087 = vmul.f32 %v1082, %v191
    %v1088 = vadd.f32 %v184, %v1084
    %v1089 = vadd.f32 %v184, %v1085
    %v1090 = vadd.f32 %v184, %v1086
    %v1091 = vadd.f32 %v184, %v1087
    %1092 = vset.pattern.permute.xlu0 11
    %1093 = vperm.xlu0 %1092, %v149
    %v1094 = vpop.permute.xlu0 %1093
    %1096 = vset.pattern.permute.xlu0 11
    %1097 = vperm.xlu0 %1096, %v152
    %v1098 = vpop.permute.xlu0 %1097
    %1100 = vset.pattern.permute.xlu0 11
    %1101 = vperm.xlu0 %1100, %v157
    %v1102 = vpop.permute.xlu0 %1101
    %1104 = vset.pattern.permute.xlu0 11
    %1105 = vperm.xlu0 %1104, %v160
    %v1106 = vpop.permute.xlu0 %1105
    %v1108 = vmul.f32 %v1094, %v199
    %v1109 = vmul.f32 %v1098, %v199
    %v1110 = vmul.f32 %v1102, %v199
    %v1111 = vmul.f32 %v1106, %v199
    %v1112 = vadd.f32 %v1088, %v1108
    %v1113 = vadd.f32 %v1089, %v1109
    %v1114 = vadd.f32 %v1090, %v1110
    %v1115 = vadd.f32 %v1091, %v1111
    %1116 = vset.pattern.permute.xlu0 11
    %1117 = vperm.xlu0 %1116, %v165
    %v1118 = vpop.permute.xlu0 %1117
    %1120 = vset.pattern.permute.xlu0 11
    %1121 = vperm.xlu0 %1120, %v168
    %v1122 = vpop.permute.xlu0 %1121
    %1124 = vset.pattern.permute.xlu0 11
    %1125 = vperm.xlu0 %1124, %v173
    %v1126 = vpop.permute.xlu0 %1125
    %1128 = vset.pattern.permute.xlu0 11
    %1129 = vperm.xlu0 %1128, %v176
    %v1130 = vpop.permute.xlu0 %1129
    %v1132 = vmul.f32 %v1118, %v207
    %v1133 = vmul.f32 %v1122, %v207
    %v1134 = vmul.f32 %v1126, %v207
    %v1135 = vmul.f32 %v1130, %v207
    %v1136 = vadd.f32 %v1112, %v1132
    %v1137 = vadd.f32 %v1113, %v1133
    %v1138 = vadd.f32 %v1114, %v1134
    %v1139 = vadd.f32 %v1115, %v1135
    %s1140 = scalar_lea.vmem [#allocation2], 352
    %1141 = vst.msk [vmem:[%s1140] sm:$0xff] %vm293, %v1136
    %1142 = vst.msk [vmem:[%s1140 + $0x8] sm:$0xff] %vm293, %v1137
    %1143 = vst.msk [vmem:[%s1140 + $0x10] sm:$0xff] %vm293, %v1138
    %1144 = vst.msk [vmem:[%s1140 + $0x18] sm:$0xff] %vm293, %v1139
    %v1145 = vld [vmem:[%s4] sm:$0xff]
    %v1146 = vld [vmem:[%s4 + $0x8] sm:$0xff]
    %v1147 = vld [vmem:[%s4 + $0x10] sm:$0xff]
    %v1148 = vld [vmem:[%s4 + $0x18] sm:$0xff]
    %v1149 = vld [vmem:[%s5] sm:$0xf]
    %v1150 = vld [vmem:[%s5 + $0x4] sm:$0xf]
    %v1151 = vld [vmem:[%s5 + $0x8] sm:$0xf]
    %v1152 = vld [vmem:[%s5 + $0xc] sm:$0xf]
    %v1153 = vld [vmem:[#allocation2] sm:$0xff]
    %v1154 = vld [vmem:[#allocation2 + $0x8] sm:$0xff]
    %v1155 = vld [vmem:[#allocation2 + $0x10] sm:$0xff]
    %v1156 = vld [vmem:[#allocation2 + $0x18] sm:$0xff]
    %v1161 = vunpack.c.l.b16 %v1145
    %v1162 = vunpack.c.h.b16 %v1145
    %v1163 = vunpack.c.l.b16 %v1146
    %v1164 = vunpack.c.h.b16 %v1146
    %v1165 = vunpack.c.l.b16 %v1147
    %v1166 = vunpack.c.h.b16 %v1147
    %v1167 = vunpack.c.l.b16 %v1148
    %v1168 = vunpack.c.h.b16 %v1148
    %v1169 = vpack.c.b16 %v1163, %v1161
    %v1170 = vpack.c.b16 %v1164, %v1162
    %v1171 = vpack.c.b16 %v1167, %v1165
    %v1172 = vpack.c.b16 %v1168, %v1166
    %v1178 = vsel %vm79, 0, 0
    %1180 = vmatprep.subr.bf16.mxu0 0
    %1181 = vmatpush1.bf16.msra.mxu0 0
    %1182 = vmatprep.subr.bf16.mxu0 0
    %1183 = vmatpush1.bf16.msra.mxu0 0
    %1184 = vmatprep.subr.bf16.mxu0 0
    %1185 = vmatpush1.bf16.msra.mxu0 0
    %1186 = vmatprep.subr.bf16.mxu0 0
    %1187 = vmatpush1.bf16.msra.mxu0 0
    %1188 = vmatprep.subr.bf16.mxu0 0
    %1189 = vmatpush1.bf16.msra.mxu0 0
    %1190 = vmatprep.subr.bf16.mxu0 0
    %1191 = vmatpush1.bf16.msra.mxu0 0
    %1192 = vmatprep.subr.bf16.mxu0 %v1172
    %1193 = vmatpush1.bf16.msra.mxu0 %v1171
    %1194 = vmatprep.subr.bf16.mxu0 %v1170
    %1195 = vmatpush1.bf16.msra.mxu0 %v1169
    %1196 = vmatprep.subr.bf16.mxu0 0
    %1197 = vmatpush2.bf16.msra.mxu0 0
    %1198 = vmatprep.subr.bf16.mxu0 0
    %1199 = vmatpush2.bf16.msra.mxu0 0
    %1200 = vmatprep.subr.bf16.mxu0 0
    %1201 = vmatpush2.bf16.msra.mxu0 0
    %1202 = vmatprep.subr.bf16.mxu0 0
    %1203 = vmatpush2.bf16.msra.mxu0 0
    %1204 = vmatprep.subr.bf16.mxu0 0
    %1205 = vmatpush2.bf16.msra.mxu0 0
    %1206 = vmatprep.subr.bf16.mxu0 0
    %1207 = vmatpush2.bf16.msra.mxu0 0
    %1208 = vmatprep.subr.bf16.mxu0 0
    %1209 = vmatpush2.bf16.msra.mxu0 0
    %1210 = vmatprep.subr.bf16.mxu0 0
    %1211 = vmatpush2.bf16.msra.mxu0 0
    %1212 = vmatprep.mubr.bf16.mxu0 0
    %1213 = vmatmul.mubr.bf16.gmra.mxu0 %v1178
    %v1214 = vpop.f32.mrf.mxu0
    %v1215 = vadd.f32 0.0, %v1214
    %v1216 = vpop.f32.mrf.mxu0
    %v1217 = vadd.f32 0.0, %v1216
    %v1218 = vpop.f32.mrf.mxu0
    %v1219 = vadd.f32 0.0, %v1218
    %v1220 = vpop.f32.mrf.mxu0
    %v1221 = vadd.f32 0.0, %v1220
    %1222 = vmatprep.mubr.bf16.mxu0 0
    %1223 = vmatmul.mubr.bf16.gmra.mxu0 %v1178
    %v1224 = vpop.f32.mrf.mxu0
    %v1225 = vadd.f32 0.0, %v1224
    %v1226 = vpop.f32.mrf.mxu0
    %v1227 = vadd.f32 0.0, %v1226
    %v1228 = vpop.f32.mrf.mxu0
    %v1229 = vadd.f32 0.0, %v1228
    %v1230 = vpop.f32.mrf.mxu0
    %v1231 = vadd.f32 0.0, %v1230
    %1232 = vdwg.mxu0
    %v1233 = vpack.c.bf16 %v1219, %v1215
    %v1234 = vpack.c.bf16 %v1221, %v1217
    %v1235 = vpack.c.bf16 %v1229, %v1225
    %v1236 = vpack.c.bf16 %v1231, %v1227
    %1237 = vmatprep.subr.bf16.mxu0 0
    %1238 = vmatpush1.bf16.msra.mxu0 0
    %1239 = vmatprep.subr.bf16.mxu0 0
    %1240 = vmatpush1.bf16.msra.mxu0 0
    %1241 = vmatprep.subr.bf16.mxu0 0
    %1242 = vmatpush1.bf16.msra.mxu0 0
    %1243 = vmatprep.subr.bf16.mxu0 0
    %1244 = vmatpush1.bf16.msra.mxu0 0
    %1245 = vmatprep.subr.bf16.mxu0 0
    %1246 = vmatpush1.bf16.msra.mxu0 0
    %1247 = vmatprep.subr.bf16.mxu0 0
    %1248 = vmatpush1.bf16.msra.mxu0 0
    %1249 = vmatprep.subr.bf16.mxu0 0
    %1250 = vmatpush1.bf16.msra.mxu0 %v1235
    %1251 = vmatprep.subr.bf16.mxu0 0
    %1252 = vmatpush1.bf16.msra.mxu0 %v1233
    %1253 = vmatprep.subr.bf16.mxu0 0
    %1254 = vmatpush2.bf16.msra.mxu0 0
    %1255 = vmatprep.subr.bf16.mxu0 0
    %1256 = vmatpush2.bf16.msra.mxu0 0
    %1257 = vmatprep.subr.bf16.mxu0 0
    %1258 = vmatpush2.bf16.msra.mxu0 0
    %1259 = vmatprep.subr.bf16.mxu0 0
    %1260 = vmatpush2.bf16.msra.mxu0 0
    %1261 = vmatprep.subr.bf16.mxu0 0
    %1262 = vmatpush2.bf16.msra.mxu0 0
    %1263 = vmatprep.subr.bf16.mxu0 0
    %1264 = vmatpush2.bf16.msra.mxu0 0
    %1265 = vmatprep.subr.bf16.mxu0 0
    %1266 = vmatpush2.bf16.msra.mxu0 0
    %1267 = vmatprep.subr.bf16.mxu0 0
    %1268 = vmatpush2.bf16.msra.mxu0 0
    %1269 = vmatprep.mubr.bf16.mxu0 0
    %1270 = vmatmul.mubr.bf16.gmra.mxu0 %v81
    %v1271 = vpop.f32.mrf.mxu0
    %v1272 = vadd.f32 0.0, %v1271
    %v1273 = vpop.f32.mrf.mxu0
    %v1274 = vpop.f32.mrf.mxu0
    %v1275 = vadd.f32 0.0, %v1274
    %v1276 = vpop.f32.mrf.mxu0
    %1277 = vmatprep.mubr.bf16.mxu0 0
    %1278 = vmatmul.mubr.bf16.gmra.mxu0 %v84
    %v1279 = vpop.f32.mrf.mxu0
    %v1280 = vadd.f32 0.0, %v1279
    %v1281 = vpop.f32.mrf.mxu0
    %v1282 = vpop.f32.mrf.mxu0
    %v1283 = vadd.f32 0.0, %v1282
    %v1284 = vpop.f32.mrf.mxu0
    %1285 = vdwg.mxu0
    %v1286 = vadd.f32 %v1153, %v1272
    %v1287 = vadd.f32 %v1154, %v1275
    %v1288 = vadd.f32 %v1155, %v1280
    %v1289 = vadd.f32 %v1156, %v1283
    %1292 = vrot.lane.b32.xlu0 %v1233, 64
    %v1293 = vpop.permute.xlu0 %1292
    %1294 = vrot.lane.b32.xlu0 %v1235, 64
    %v1295 = vpop.permute.xlu0 %1294
    %1298 = vmatprep.subr.bf16.mxu0 0
    %1299 = vmatpush1.bf16.msra.mxu0 0
    %1300 = vmatprep.subr.bf16.mxu0 0
    %1301 = vmatpush1.bf16.msra.mxu0 0
    %1302 = vmatprep.subr.bf16.mxu0 0
    %1303 = vmatpush1.bf16.msra.mxu0 0
    %1304 = vmatprep.subr.bf16.mxu0 0
    %1305 = vmatpush1.bf16.msra.mxu0 0
    %1306 = vmatprep.subr.bf16.mxu0 0
    %1307 = vmatpush1.bf16.msra.mxu0 0
    %1308 = vmatprep.subr.bf16.mxu0 0
    %1309 = vmatpush1.bf16.msra.mxu0 0
    %1310 = vmatprep.subr.bf16.mxu0 0
    %1311 = vmatpush1.bf16.msra.mxu0 %v1295
    %1312 = vmatprep.subr.bf16.mxu0 0
    %1313 = vmatpush1.bf16.msra.mxu0 %v1293
    %1314 = vmatprep.subr.bf16.mxu0 0
    %1315 = vmatpush2.bf16.msra.mxu0 0
    %1316 = vmatprep.subr.bf16.mxu0 0
    %1317 = vmatpush2.bf16.msra.mxu0 0
    %1318 = vmatprep.subr.bf16.mxu0 0
    %1319 = vmatpush2.bf16.msra.mxu0 0
    %1320 = vmatprep.subr.bf16.mxu0 0
    %1321 = vmatpush2.bf16.msra.mxu0 0
    %1322 = vmatprep.subr.bf16.mxu0 0
    %1323 = vmatpush2.bf16.msra.mxu0 0
    %1324 = vmatprep.subr.bf16.mxu0 0
    %1325 = vmatpush2.bf16.msra.mxu0 0
    %1326 = vmatprep.subr.bf16.mxu0 0
    %1327 = vmatpush2.bf16.msra.mxu0 0
    %1328 = vmatprep.subr.bf16.mxu0 0
    %1329 = vmatpush2.bf16.msra.mxu0 0
    %1330 = vmatprep.mubr.bf16.mxu0 0
    %1331 = vmatmul.mubr.bf16.gmra.mxu0 %v87
    %v1332 = vpop.f32.mrf.mxu0
    %v1333 = vadd.f32 0.0, %v1332
    %v1334 = vpop.f32.mrf.mxu0
    %v1335 = vpop.f32.mrf.mxu0
    %v1336 = vadd.f32 0.0, %v1335
    %v1337 = vpop.f32.mrf.mxu0
    %1338 = vmatprep.mubr.bf16.mxu0 0
    %1339 = vmatmul.mubr.bf16.gmra.mxu0 %v90
    %v1340 = vpop.f32.mrf.mxu0
    %v1341 = vadd.f32 0.0, %v1340
    %v1342 = vpop.f32.mrf.mxu0
    %v1343 = vpop.f32.mrf.mxu0
    %v1344 = vadd.f32 0.0, %v1343
    %v1345 = vpop.f32.mrf.mxu0
    %1346 = vdwg.mxu0
    %v1347 = vadd.f32 %v1286, %v1333
    %v1348 = vadd.f32 %v1287, %v1336
    %v1349 = vadd.f32 %v1288, %v1341
    %v1350 = vadd.f32 %v1289, %v1344
    %1351 = vmatprep.subr.bf16.mxu0 0
    %1352 = vmatpush1.bf16.msra.mxu0 0
    %1353 = vmatprep.subr.bf16.mxu0 0
    %1354 = vmatpush1.bf16.msra.mxu0 0
    %1355 = vmatprep.subr.bf16.mxu0 0
    %1356 = vmatpush1.bf16.msra.mxu0 0
    %1357 = vmatprep.subr.bf16.mxu0 0
    %1358 = vmatpush1.bf16.msra.mxu0 0
    %1359 = vmatprep.subr.bf16.mxu0 0
    %1360 = vmatpush1.bf16.msra.mxu0 0
    %1361 = vmatprep.subr.bf16.mxu0 0
    %1362 = vmatpush1.bf16.msra.mxu0 0
    %1363 = vmatprep.subr.bf16.mxu0 0
    %1364 = vmatpush1.bf16.msra.mxu0 %v1236
    %1365 = vmatprep.subr.bf16.mxu0 0
    %1366 = vmatpush1.bf16.msra.mxu0 %v1234
    %1367 = vmatprep.subr.bf16.mxu0 0
    %1368 = vmatpush2.bf16.msra.mxu0 0
    %1369 = vmatprep.subr.bf16.mxu0 0
    %1370 = vmatpush2.bf16.msra.mxu0 0
    %1371 = vmatprep.subr.bf16.mxu0 0
    %1372 = vmatpush2.bf16.msra.mxu0 0
    %1373 = vmatprep.subr.bf16.mxu0 0
    %1374 = vmatpush2.bf16.msra.mxu0 0
    %1375 = vmatprep.subr.bf16.mxu0 0
    %1376 = vmatpush2.bf16.msra.mxu0 0
    %1377 = vmatprep.subr.bf16.mxu0 0
    %1378 = vmatpush2.bf16.msra.mxu0 0
    %1379 = vmatprep.subr.bf16.mxu0 0
    %1380 = vmatpush2.bf16.msra.mxu0 0
    %1381 = vmatprep.subr.bf16.mxu0 0
    %1382 = vmatpush2.bf16.msra.mxu0 0
    %1383 = vmatprep.mubr.bf16.mxu0 0
    %1384 = vmatmul.mubr.bf16.gmra.mxu0 %v93
    %v1385 = vpop.f32.mrf.mxu0
    %v1386 = vadd.f32 0.0, %v1385
    %v1387 = vpop.f32.mrf.mxu0
    %v1388 = vpop.f32.mrf.mxu0
    %v1389 = vadd.f32 0.0, %v1388
    %v1390 = vpop.f32.mrf.mxu0
    %1391 = vmatprep.mubr.bf16.mxu0 0
    %1392 = vmatmul.mubr.bf16.gmra.mxu0 %v96
    %v1393 = vpop.f32.mrf.mxu0
    %v1394 = vadd.f32 0.0, %v1393
    %v1395 = vpop.f32.mrf.mxu0
    %v1396 = vpop.f32.mrf.mxu0
    %v1397 = vadd.f32 0.0, %v1396
    %v1398 = vpop.f32.mrf.mxu0
    %1399 = vdwg.mxu0
    %v1400 = vadd.f32 %v1347, %v1386
    %v1401 = vadd.f32 %v1348, %v1389
    %v1402 = vadd.f32 %v1349, %v1394
    %v1403 = vadd.f32 %v1350, %v1397
    %v1404 = vxor.u32 %v1400, 2147483648
    %v1405 = vxor.u32 %v1401, 2147483648
    %v1406 = vxor.u32 %v1402, 2147483648
    %v1407 = vxor.u32 %v1403, 2147483648
    %v1408 = vmul.f32 %v1404, 1.442695
    %v1409 = vpow.pop %v1408
    %v1410 = vmul.f32 %v1405, 1.442695
    %v1411 = vpow.pop %v1410
    %v1412 = vmul.f32 %v1406, 1.442695
    %v1413 = vpow.pop %v1412
    %v1414 = vmul.f32 %v1407, 1.442695
    %v1415 = vpow.pop %v1414
    %v1416 = vadd.f32 %v1409, 1.0
    %v1417 = vadd.f32 %v1411, 1.0
    %v1418 = vadd.f32 %v1413, 1.0
    %v1419 = vadd.f32 %v1415, 1.0
    %v1420 = vrcp.pop %v1416
    %v1421 = vmul.f32 1.0, %v1420
    %v1422 = vrcp.pop %v1417
    %v1423 = vmul.f32 1.0, %v1422
    %v1424 = vrcp.pop %v1418
    %v1425 = vmul.f32 1.0, %v1424
    %v1426 = vrcp.pop %v1419
    %v1427 = vmul.f32 1.0, %v1426
    %v1428 = vmul.f32 %v1421, 0.0
    %v1429 = vmul.f32 %v1423, 0.0
    %v1430 = vmul.f32 %v1425, 0.0
    %v1431 = vmul.f32 %v1427, 0.0
    %v1432 = vpack.c.bf16 %v1429, %v1428
    %v1433 = vpack.c.bf16 %v1431, %v1430
    %v1438 = vunpack.c.l.b16 %v1149
    %v1439 = vunpack.c.l.b16 %v1150
    %v1440 = vunpack.c.l.b16 %v1151
    %v1441 = vunpack.c.l.b16 %v1152
    %v1442 = vpack.c.b16 %v1439, %v1438
    %v1443 = vpack.c.b16 %v1441, %v1440
    %v1447 = vsel %vm79, %v1432, 0
    %v1450 = vsel %vm79, %v1433, 0
    %1452 = vmatprep.subr.bf16.mxu0 0
    %1453 = vmatpush1.bf16.msra.mxu0 0
    %1454 = vmatprep.subr.bf16.mxu0 0
    %1455 = vmatpush1.bf16.msra.mxu0 0
    %1456 = vmatprep.subr.bf16.mxu0 0
    %1457 = vmatpush1.bf16.msra.mxu0 0
    %1458 = vmatprep.subr.bf16.mxu0 0
    %1459 = vmatpush1.bf16.msra.mxu0 0
    %1460 = vmatprep.subr.bf16.mxu0 0
    %1461 = vmatpush1.bf16.msra.mxu0 0
    %1462 = vmatprep.subr.bf16.mxu0 0
    %1463 = vmatpush1.bf16.msra.mxu0 0
    %1464 = vmatprep.subr.bf16.mxu0 0
    %1465 = vmatpush1.bf16.msra.mxu0 %v1443
    %1466 = vmatprep.subr.bf16.mxu0 0
    %1467 = vmatpush1.bf16.msra.mxu0 %v1442
    %1468 = vmatprep.subr.bf16.mxu0 0
    %1469 = vmatpush2.bf16.msra.mxu0 0
    %1470 = vmatprep.subr.bf16.mxu0 0
    %1471 = vmatpush2.bf16.msra.mxu0 0
    %1472 = vmatprep.subr.bf16.mxu0 0
    %1473 = vmatpush2.bf16.msra.mxu0 0
    %1474 = vmatprep.subr.bf16.mxu0 0
    %1475 = vmatpush2.bf16.msra.mxu0 0
    %1476 = vmatprep.subr.bf16.mxu0 0
    %1477 = vmatpush2.bf16.msra.mxu0 0
    %1478 = vmatprep.subr.bf16.mxu0 0
    %1479 = vmatpush2.bf16.msra.mxu0 0
    %1480 = vmatprep.subr.bf16.mxu0 0
    %1481 = vmatpush2.bf16.msra.mxu0 0
    %1482 = vmatprep.subr.bf16.mxu0 0
    %1483 = vmatpush2.bf16.msra.mxu0 0
    %1484 = vmatprep.mubr.bf16.mxu0 0
    %1485 = vmatmul.mubr.bf16.gmra.mxu0 %v1447
    %v1486 = vpop.f32.mrf.mxu0
    %v1487 = vadd.f32 0.0, %v1486
    %v1488 = vpop.f32.mrf.mxu0
    %v1489 = vpop.f32.mrf.mxu0
    %v1490 = vadd.f32 0.0, %v1489
    %v1491 = vpop.f32.mrf.mxu0
    %1492 = vmatprep.mubr.bf16.mxu0 0
    %1493 = vmatmul.mubr.bf16.gmra.mxu0 %v1450
    %v1494 = vpop.f32.mrf.mxu0
    %v1495 = vadd.f32 0.0, %v1494
    %v1496 = vpop.f32.mrf.mxu0
    %v1497 = vpop.f32.mrf.mxu0
    %v1498 = vadd.f32 0.0, %v1497
    %v1499 = vpop.f32.mrf.mxu0
    %1500 = vdwg.mxu0
    %v1501 = vpack.c.bf16 %v1490, %v1487
    %v1502 = vpack.c.bf16 %v1498, %v1495
    %1503 = vmatprep.subr.bf16.mxu0 0
    %1504 = vmatpush1.bf16.msra.mxu0 0
    %1505 = vmatprep.subr.bf16.mxu0 0
    %1506 = vmatpush1.bf16.msra.mxu0 0
    %1507 = vmatprep.subr.bf16.mxu0 0
    %1508 = vmatpush1.bf16.msra.mxu0 0
    %1509 = vmatprep.subr.bf16.mxu0 0
    %1510 = vmatpush1.bf16.msra.mxu0 0
    %1511 = vmatprep.subr.bf16.mxu0 0
    %1512 = vmatpush1.bf16.msra.mxu0 0
    %1513 = vmatprep.subr.bf16.mxu0 0
    %1514 = vmatpush1.bf16.msra.mxu0 0
    %1515 = vmatprep.subr.bf16.mxu0 0
    %1516 = vmatpush1.bf16.msra.mxu0 %v1502
    %1517 = vmatprep.subr.bf16.mxu0 0
    %1518 = vmatpush1.bf16.msra.mxu0 %v1501
    %1519 = vmatprep.subr.bf16.mxu0 0
    %1520 = vmatpush2.bf16.msra.mxu0 0
    %1521 = vmatprep.subr.bf16.mxu0 0
    %1522 = vmatpush2.bf16.msra.mxu0 0
    %1523 = vmatprep.subr.bf16.mxu0 0
    %1524 = vmatpush2.bf16.msra.mxu0 0
    %1525 = vmatprep.subr.bf16.mxu0 0
    %1526 = vmatpush2.bf16.msra.mxu0 0
    %1527 = vmatprep.subr.bf16.mxu0 0
    %1528 = vmatpush2.bf16.msra.mxu0 0
    %1529 = vmatprep.subr.bf16.mxu0 0
    %1530 = vmatpush2.bf16.msra.mxu0 0
    %1531 = vmatprep.subr.bf16.mxu0 0
    %1532 = vmatpush2.bf16.msra.mxu0 0
    %1533 = vmatprep.subr.bf16.mxu0 0
    %1534 = vmatpush2.bf16.msra.mxu0 0
    %1535 = vmatprep.mubr.bf16.mxu0 0
    %1536 = vmatmul.mubr.bf16.gmra.mxu0 %v81
    %v1537 = vpop.f32.mrf.mxu0
    %v1538 = vadd.f32 0.0, %v1537
    %v1539 = vpop.f32.mrf.mxu0
    %v1540 = vpop.f32.mrf.mxu0
    %v1541 = vadd.f32 0.0, %v1540
    %v1542 = vpop.f32.mrf.mxu0
    %1543 = vmatprep.mubr.bf16.mxu0 0
    %1544 = vmatmul.mubr.bf16.gmra.mxu0 %v84
    %v1545 = vpop.f32.mrf.mxu0
    %v1546 = vadd.f32 0.0, %v1545
    %v1547 = vpop.f32.mrf.mxu0
    %v1548 = vpop.f32.mrf.mxu0
    %v1549 = vadd.f32 0.0, %v1548
    %v1550 = vpop.f32.mrf.mxu0
    %1551 = vdwg.mxu0
    %1556 = vrot.lane.b32.xlu0 %v1538, 64
    %v1557 = vpop.permute.xlu0 %1556
    %1558 = vrot.lane.b32.xlu0 %v1541, 64
    %v1559 = vpop.permute.xlu0 %1558
    %1560 = vrot.lane.b32.xlu0 %v1546, 64
    %v1561 = vpop.permute.xlu0 %1560
    %1562 = vrot.lane.b32.xlu0 %v1549, 64
    %v1563 = vpop.permute.xlu0 %1562
    %v1568 = vadd.f32 %v1153, %v1557
    %v1569 = vadd.f32 %v1154, %v1559
    %v1570 = vadd.f32 %v1155, %v1561
    %v1571 = vadd.f32 %v1156, %v1563
    %1574 = vrot.lane.b32.xlu0 %v1501, 96
    %v1575 = vpop.permute.xlu0 %1574
    %1576 = vrot.lane.b32.xlu0 %v1502, 96
    %v1577 = vpop.permute.xlu0 %1576
    %1580 = vmatprep.subr.bf16.mxu0 0
    %1581 = vmatpush1.bf16.msra.mxu0 0
    %1582 = vmatprep.subr.bf16.mxu0 0
    %1583 = vmatpush1.bf16.msra.mxu0 0
    %1584 = vmatprep.subr.bf16.mxu0 0
    %1585 = vmatpush1.bf16.msra.mxu0 0
    %1586 = vmatprep.subr.bf16.mxu0 0
    %1587 = vmatpush1.bf16.msra.mxu0 0
    %1588 = vmatprep.subr.bf16.mxu0 0
    %1589 = vmatpush1.bf16.msra.mxu0 0
    %1590 = vmatprep.subr.bf16.mxu0 0
    %1591 = vmatpush1.bf16.msra.mxu0 0
    %1592 = vmatprep.subr.bf16.mxu0 0
    %1593 = vmatpush1.bf16.msra.mxu0 %v1577
    %1594 = vmatprep.subr.bf16.mxu0 0
    %1595 = vmatpush1.bf16.msra.mxu0 %v1575
    %1596 = vmatprep.subr.bf16.mxu0 0
    %1597 = vmatpush2.bf16.msra.mxu0 0
    %1598 = vmatprep.subr.bf16.mxu0 0
    %1599 = vmatpush2.bf16.msra.mxu0 0
    %1600 = vmatprep.subr.bf16.mxu0 0
    %1601 = vmatpush2.bf16.msra.mxu0 0
    %1602 = vmatprep.subr.bf16.mxu0 0
    %1603 = vmatpush2.bf16.msra.mxu0 0
    %1604 = vmatprep.subr.bf16.mxu0 0
    %1605 = vmatpush2.bf16.msra.mxu0 0
    %1606 = vmatprep.subr.bf16.mxu0 0
    %1607 = vmatpush2.bf16.msra.mxu0 0
    %1608 = vmatprep.subr.bf16.mxu0 0
    %1609 = vmatpush2.bf16.msra.mxu0 0
    %1610 = vmatprep.subr.bf16.mxu0 0
    %1611 = vmatpush2.bf16.msra.mxu0 0
    %1612 = vmatprep.mubr.bf16.mxu0 0
    %1613 = vmatmul.mubr.bf16.gmra.mxu0 %v87
    %v1614 = vpop.f32.mrf.mxu0
    %v1615 = vadd.f32 0.0, %v1614
    %v1616 = vpop.f32.mrf.mxu0
    %v1617 = vpop.f32.mrf.mxu0
    %v1618 = vadd.f32 0.0, %v1617
    %v1619 = vpop.f32.mrf.mxu0
    %1620 = vmatprep.mubr.bf16.mxu0 0
    %1621 = vmatmul.mubr.bf16.gmra.mxu0 %v90
    %v1622 = vpop.f32.mrf.mxu0
    %v1623 = vadd.f32 0.0, %v1622
    %v1624 = vpop.f32.mrf.mxu0
    %v1625 = vpop.f32.mrf.mxu0
    %v1626 = vadd.f32 0.0, %v1625
    %v1627 = vpop.f32.mrf.mxu0
    %1628 = vdwg.mxu0
    %1633 = vrot.lane.b32.xlu0 %v1615, 64
    %v1634 = vpop.permute.xlu0 %1633
    %1635 = vrot.lane.b32.xlu0 %v1618, 64
    %v1636 = vpop.permute.xlu0 %1635
    %1637 = vrot.lane.b32.xlu0 %v1623, 64
    %v1638 = vpop.permute.xlu0 %1637
    %1639 = vrot.lane.b32.xlu0 %v1626, 64
    %v1640 = vpop.permute.xlu0 %1639
    %v1645 = vadd.f32 %v1568, %v1634
    %v1646 = vadd.f32 %v1569, %v1636
    %v1647 = vadd.f32 %v1570, %v1638
    %v1648 = vadd.f32 %v1571, %v1640
    %1649 = vrot.lane.b32.xlu0 %v1501, 64
    %v1650 = vpop.permute.xlu0 %1649
    %1651 = vrot.lane.b32.xlu0 %v1502, 64
    %v1652 = vpop.permute.xlu0 %1651
    %1655 = vmatprep.subr.bf16.mxu0 0
    %1656 = vmatpush1.bf16.msra.mxu0 0
    %1657 = vmatprep.subr.bf16.mxu0 0
    %1658 = vmatpush1.bf16.msra.mxu0 0
    %1659 = vmatprep.subr.bf16.mxu0 0
    %1660 = vmatpush1.bf16.msra.mxu0 0
    %1661 = vmatprep.subr.bf16.mxu0 0
    %1662 = vmatpush1.bf16.msra.mxu0 0
    %1663 = vmatprep.subr.bf16.mxu0 0
    %1664 = vmatpush1.bf16.msra.mxu0 0
    %1665 = vmatprep.subr.bf16.mxu0 0
    %1666 = vmatpush1.bf16.msra.mxu0 0
    %1667 = vmatprep.subr.bf16.mxu0 0
    %1668 = vmatpush1.bf16.msra.mxu0 %v1652
    %1669 = vmatprep.subr.bf16.mxu0 0
    %1670 = vmatpush1.bf16.msra.mxu0 %v1650
    %1671 = vmatprep.subr.bf16.mxu0 0
    %1672 = vmatpush2.bf16.msra.mxu0 0
    %1673 = vmatprep.subr.bf16.mxu0 0
    %1674 = vmatpush2.bf16.msra.mxu0 0
    %1675 = vmatprep.subr.bf16.mxu0 0
    %1676 = vmatpush2.bf16.msra.mxu0 0
    %1677 = vmatprep.subr.bf16.mxu0 0
    %1678 = vmatpush2.bf16.msra.mxu0 0
    %1679 = vmatprep.subr.bf16.mxu0 0
    %1680 = vmatpush2.bf16.msra.mxu0 0
    %1681 = vmatprep.subr.bf16.mxu0 0
    %1682 = vmatpush2.bf16.msra.mxu0 0
    %1683 = vmatprep.subr.bf16.mxu0 0
    %1684 = vmatpush2.bf16.msra.mxu0 0
    %1685 = vmatprep.subr.bf16.mxu0 0
    %1686 = vmatpush2.bf16.msra.mxu0 0
    %1687 = vmatprep.mubr.bf16.mxu0 0
    %1688 = vmatmul.mubr.bf16.gmra.mxu0 %v93
    %v1689 = vpop.f32.mrf.mxu0
    %v1690 = vadd.f32 0.0, %v1689
    %v1691 = vpop.f32.mrf.mxu0
    %v1692 = vpop.f32.mrf.mxu0
    %v1693 = vadd.f32 0.0, %v1692
    %v1694 = vpop.f32.mrf.mxu0
    %1695 = vmatprep.mubr.bf16.mxu0 0
    %1696 = vmatmul.mubr.bf16.gmra.mxu0 %v96
    %v1697 = vpop.f32.mrf.mxu0
    %v1698 = vadd.f32 0.0, %v1697
    %v1699 = vpop.f32.mrf.mxu0
    %v1700 = vpop.f32.mrf.mxu0
    %v1701 = vadd.f32 0.0, %v1700
    %v1702 = vpop.f32.mrf.mxu0
    %1703 = vdwg.mxu0
    %1708 = vrot.lane.b32.xlu0 %v1690, 64
    %v1709 = vpop.permute.xlu0 %1708
    %1710 = vrot.lane.b32.xlu0 %v1693, 64
    %v1711 = vpop.permute.xlu0 %1710
    %1712 = vrot.lane.b32.xlu0 %v1698, 64
    %v1713 = vpop.permute.xlu0 %1712
    %1714 = vrot.lane.b32.xlu0 %v1701, 64
    %v1715 = vpop.permute.xlu0 %1714
    %v1720 = vadd.f32 %v1645, %v1709
    %v1721 = vadd.f32 %v1646, %v1711
    %v1722 = vadd.f32 %v1647, %v1713
    %v1723 = vadd.f32 %v1648, %v1715
    %v1724 = vtanh.pop %v1720
    %v1725 = vtanh.pop %v1721
    %v1726 = vtanh.pop %v1722
    %v1727 = vtanh.pop %v1723
    %1732 = vrot.lane.b32.xlu0 %v1724, 96
    %v1733 = vpop.permute.xlu0 %1732
    %1734 = vrot.lane.b32.xlu0 %v1725, 96
    %v1735 = vpop.permute.xlu0 %1734
    %1736 = vrot.lane.b32.xlu0 %v1726, 96
    %v1737 = vpop.permute.xlu0 %1736
    %1738 = vrot.lane.b32.xlu0 %v1727, 96
    %v1739 = vpop.permute.xlu0 %1738
    %v1744 = vmul.f32 %v1421, %v1733
    %v1745 = vmul.f32 %v1423, %v1735
    %v1746 = vmul.f32 %v1425, %v1737
    %v1747 = vmul.f32 %v1427, %v1739
    %v1748 = vsub.f32 1.0, %v1421
    %v1749 = vsub.f32 1.0, %v1423
    %v1750 = vsub.f32 1.0, %v1425
    %v1751 = vsub.f32 1.0, %v1427
    %v1752 = vmul.f32 %v1748, 0.0
    %v1753 = vmul.f32 %v1749, 0.0
    %v1754 = vmul.f32 %v1750, 0.0
    %v1755 = vmul.f32 %v1751, 0.0
    %v1756 = vadd.f32 %v1744, %v1752
    %v1757 = vadd.f32 %v1745, %v1753
    %v1758 = vadd.f32 %v1746, %v1754
    %v1759 = vadd.f32 %v1747, %v1755
    %v1760 = vld [vmem:[%s370] sm:$0xff]
    %v1761 = vld [vmem:[%s370 + $0x8] sm:$0xff]
    %v1762 = vld [vmem:[%s370 + $0x10] sm:$0xff]
    %v1763 = vld [vmem:[%s370 + $0x18] sm:$0xff]
    %v1764 = vpack.c.bf16 %v1757, %v1756
    %v1765 = vpack.c.bf16 %v1759, %v1758
    %1768 = vrot.lane.b32.xlu0 %v1764, 96
    %v1769 = vpop.permute.xlu0 %1768
    %1770 = vrot.lane.b32.xlu0 %v1765, 96
    %v1771 = vpop.permute.xlu0 %1770
    %v1773 = vsel %vm79, %v1769, 0
    %v1776 = vsel %vm79, %v1771, 0
    %1778 = vmatprep.subr.bf16.mxu0 0
    %1779 = vmatpush1.bf16.msra.mxu0 0
    %1780 = vmatprep.subr.bf16.mxu0 0
    %1781 = vmatpush1.bf16.msra.mxu0 0
    %1782 = vmatprep.subr.bf16.mxu0 0
    %1783 = vmatpush1.bf16.msra.mxu0 0
    %1784 = vmatprep.subr.bf16.mxu0 0
    %1785 = vmatpush1.bf16.msra.mxu0 0
    %1786 = vmatprep.subr.bf16.mxu0 0
    %1787 = vmatpush1.bf16.msra.mxu0 0
    %1788 = vmatprep.subr.bf16.mxu0 0
    %1789 = vmatpush1.bf16.msra.mxu0 0
    %1790 = vmatprep.subr.bf16.mxu0 %v1172
    %1791 = vmatpush1.bf16.msra.mxu0 %v1171
    %1792 = vmatprep.subr.bf16.mxu0 %v1170
    %1793 = vmatpush1.bf16.msra.mxu0 %v1169
    %1794 = vmatprep.subr.bf16.mxu0 0
    %1795 = vmatpush2.bf16.msra.mxu0 0
    %1796 = vmatprep.subr.bf16.mxu0 0
    %1797 = vmatpush2.bf16.msra.mxu0 0
    %1798 = vmatprep.subr.bf16.mxu0 0
    %1799 = vmatpush2.bf16.msra.mxu0 0
    %1800 = vmatprep.subr.bf16.mxu0 0
    %1801 = vmatpush2.bf16.msra.mxu0 0
    %1802 = vmatprep.subr.bf16.mxu0 0
    %1803 = vmatpush2.bf16.msra.mxu0 0
    %1804 = vmatprep.subr.bf16.mxu0 0
    %1805 = vmatpush2.bf16.msra.mxu0 0
    %1806 = vmatprep.subr.bf16.mxu0 0
    %1807 = vmatpush2.bf16.msra.mxu0 0
    %1808 = vmatprep.subr.bf16.mxu0 0
    %1809 = vmatpush2.bf16.msra.mxu0 0
    %1810 = vmatprep.mubr.bf16.mxu0 0
    %1811 = vmatmul.mubr.bf16.gmra.mxu0 %v1773
    %v1812 = vpop.f32.mrf.mxu0
    %v1813 = vadd.f32 0.0, %v1812
    %v1814 = vpop.f32.mrf.mxu0
    %v1815 = vadd.f32 0.0, %v1814
    %v1816 = vpop.f32.mrf.mxu0
    %v1817 = vadd.f32 0.0, %v1816
    %v1818 = vpop.f32.mrf.mxu0
    %v1819 = vadd.f32 0.0, %v1818
    %1820 = vmatprep.mubr.bf16.mxu0 0
    %1821 = vmatmul.mubr.bf16.gmra.mxu0 %v1776
    %v1822 = vpop.f32.mrf.mxu0
    %v1823 = vadd.f32 0.0, %v1822
    %v1824 = vpop.f32.mrf.mxu0
    %v1825 = vadd.f32 0.0, %v1824
    %v1826 = vpop.f32.mrf.mxu0
    %v1827 = vadd.f32 0.0, %v1826
    %v1828 = vpop.f32.mrf.mxu0
    %v1829 = vadd.f32 0.0, %v1828
    %1830 = vdwg.mxu0
    %v1831 = vpack.c.bf16 %v1817, %v1813
    %v1832 = vpack.c.bf16 %v1819, %v1815
    %v1833 = vpack.c.bf16 %v1827, %v1823
    %v1834 = vpack.c.bf16 %v1829, %v1825
    %1835 = vmatprep.subr.bf16.mxu0 0
    %1836 = vmatpush1.bf16.msra.mxu0 0
    %1837 = vmatprep.subr.bf16.mxu0 0
    %1838 = vmatpush1.bf16.msra.mxu0 0
    %1839 = vmatprep.subr.bf16.mxu0 0
    %1840 = vmatpush1.bf16.msra.mxu0 0
    %1841 = vmatprep.subr.bf16.mxu0 0
    %1842 = vmatpush1.bf16.msra.mxu0 0
    %1843 = vmatprep.subr.bf16.mxu0 0
    %1844 = vmatpush1.bf16.msra.mxu0 0
    %1845 = vmatprep.subr.bf16.mxu0 0
    %1846 = vmatpush1.bf16.msra.mxu0 0
    %1847 = vmatprep.subr.bf16.mxu0 0
    %1848 = vmatpush1.bf16.msra.mxu0 %v1833
    %1849 = vmatprep.subr.bf16.mxu0 0
    %1850 = vmatpush1.bf16.msra.mxu0 %v1831
    %1851 = vmatprep.subr.bf16.mxu0 0
    %1852 = vmatpush2.bf16.msra.mxu0 0
    %1853 = vmatprep.subr.bf16.mxu0 0
    %1854 = vmatpush2.bf16.msra.mxu0 0
    %1855 = vmatprep.subr.bf16.mxu0 0
    %1856 = vmatpush2.bf16.msra.mxu0 0
    %1857 = vmatprep.subr.bf16.mxu0 0
    %1858 = vmatpush2.bf16.msra.mxu0 0
    %1859 = vmatprep.subr.bf16.mxu0 0
    %1860 = vmatpush2.bf16.msra.mxu0 0
    %1861 = vmatprep.subr.bf16.mxu0 0
    %1862 = vmatpush2.bf16.msra.mxu0 0
    %1863 = vmatprep.subr.bf16.mxu0 0
    %1864 = vmatpush2.bf16.msra.mxu0 0
    %1865 = vmatprep.subr.bf16.mxu0 0
    %1866 = vmatpush2.bf16.msra.mxu0 0
    %1867 = vmatprep.mubr.bf16.mxu0 0
    %1868 = vmatmul.mubr.bf16.gmra.mxu0 %v81
    %v1869 = vpop.f32.mrf.mxu0
    %v1870 = vadd.f32 0.0, %v1869
    %v1871 = vpop.f32.mrf.mxu0
    %v1872 = vpop.f32.mrf.mxu0
    %v1873 = vadd.f32 0.0, %v1872
    %v1874 = vpop.f32.mrf.mxu0
    %1875 = vmatprep.mubr.bf16.mxu0 0
    %1876 = vmatmul.mubr.bf16.gmra.mxu0 %v84
    %v1877 = vpop.f32.mrf.mxu0
    %v1878 = vadd.f32 0.0, %v1877
    %v1879 = vpop.f32.mrf.mxu0
    %v1880 = vpop.f32.mrf.mxu0
    %v1881 = vadd.f32 0.0, %v1880
    %v1882 = vpop.f32.mrf.mxu0
    %1883 = vdwg.mxu0
    %v1884 = vadd.f32 %v1760, %v1870
    %v1885 = vadd.f32 %v1761, %v1873
    %v1886 = vadd.f32 %v1762, %v1878
    %v1887 = vadd.f32 %v1763, %v1881
    %1890 = vrot.lane.b32.xlu0 %v1831, 64
    %v1891 = vpop.permute.xlu0 %1890
    %1892 = vrot.lane.b32.xlu0 %v1833, 64
    %v1893 = vpop.permute.xlu0 %1892
    %1896 = vmatprep.subr.bf16.mxu0 0
    %1897 = vmatpush1.bf16.msra.mxu0 0
    %1898 = vmatprep.subr.bf16.mxu0 0
    %1899 = vmatpush1.bf16.msra.mxu0 0
    %1900 = vmatprep.subr.bf16.mxu0 0
    %1901 = vmatpush1.bf16.msra.mxu0 0
    %1902 = vmatprep.subr.bf16.mxu0 0
    %1903 = vmatpush1.bf16.msra.mxu0 0
    %1904 = vmatprep.subr.bf16.mxu0 0
    %1905 = vmatpush1.bf16.msra.mxu0 0
    %1906 = vmatprep.subr.bf16.mxu0 0
    %1907 = vmatpush1.bf16.msra.mxu0 0
    %1908 = vmatprep.subr.bf16.mxu0 0
    %1909 = vmatpush1.bf16.msra.mxu0 %v1893
    %1910 = vmatprep.subr.bf16.mxu0 0
    %1911 = vmatpush1.bf16.msra.mxu0 %v1891
    %1912 = vmatprep.subr.bf16.mxu0 0
    %1913 = vmatpush2.bf16.msra.mxu0 0
    %1914 = vmatprep.subr.bf16.mxu0 0
    %1915 = vmatpush2.bf16.msra.mxu0 0
    %1916 = vmatprep.subr.bf16.mxu0 0
    %1917 = vmatpush2.bf16.msra.mxu0 0
    %1918 = vmatprep.subr.bf16.mxu0 0
    %1919 = vmatpush2.bf16.msra.mxu0 0
    %1920 = vmatprep.subr.bf16.mxu0 0
    %1921 = vmatpush2.bf16.msra.mxu0 0
    %1922 = vmatprep.subr.bf16.mxu0 0
    %1923 = vmatpush2.bf16.msra.mxu0 0
    %1924 = vmatprep.subr.bf16.mxu0 0
    %1925 = vmatpush2.bf16.msra.mxu0 0
    %1926 = vmatprep.subr.bf16.mxu0 0
    %1927 = vmatpush2.bf16.msra.mxu0 0
    %1928 = vmatprep.mubr.bf16.mxu0 0
    %1929 = vmatmul.mubr.bf16.gmra.mxu0 %v87
    %v1930 = vpop.f32.mrf.mxu0
    %v1931 = vadd.f32 0.0, %v1930
    %v1932 = vpop.f32.mrf.mxu0
    %v1933 = vpop.f32.mrf.mxu0
    %v1934 = vadd.f32 0.0, %v1933
    %v1935 = vpop.f32.mrf.mxu0
    %1936 = vmatprep.mubr.bf16.mxu0 0
    %1937 = vmatmul.mubr.bf16.gmra.mxu0 %v90
    %v1938 = vpop.f32.mrf.mxu0
    %v1939 = vadd.f32 0.0, %v1938
    %v1940 = vpop.f32.mrf.mxu0
    %v1941 = vpop.f32.mrf.mxu0
    %v1942 = vadd.f32 0.0, %v1941
    %v1943 = vpop.f32.mrf.mxu0
    %1944 = vdwg.mxu0
    %v1945 = vadd.f32 %v1884, %v1931
    %v1946 = vadd.f32 %v1885, %v1934
    %v1947 = vadd.f32 %v1886, %v1939
    %v1948 = vadd.f32 %v1887, %v1942
    %1949 = vmatprep.subr.bf16.mxu0 0
    %1950 = vmatpush1.bf16.msra.mxu0 0
    %1951 = vmatprep.subr.bf16.mxu0 0
    %1952 = vmatpush1.bf16.msra.mxu0 0
    %1953 = vmatprep.subr.bf16.mxu0 0
    %1954 = vmatpush1.bf16.msra.mxu0 0
    %1955 = vmatprep.subr.bf16.mxu0 0
    %1956 = vmatpush1.bf16.msra.mxu0 0
    %1957 = vmatprep.subr.bf16.mxu0 0
    %1958 = vmatpush1.bf16.msra.mxu0 0
    %1959 = vmatprep.subr.bf16.mxu0 0
    %1960 = vmatpush1.bf16.msra.mxu0 0
    %1961 = vmatprep.subr.bf16.mxu0 0
    %1962 = vmatpush1.bf16.msra.mxu0 %v1834
    %1963 = vmatprep.subr.bf16.mxu0 0
    %1964 = vmatpush1.bf16.msra.mxu0 %v1832
    %1965 = vmatprep.subr.bf16.mxu0 0
    %1966 = vmatpush2.bf16.msra.mxu0 0
    %1967 = vmatprep.subr.bf16.mxu0 0
    %1968 = vmatpush2.bf16.msra.mxu0 0
    %1969 = vmatprep.subr.bf16.mxu0 0
    %1970 = vmatpush2.bf16.msra.mxu0 0
    %1971 = vmatprep.subr.bf16.mxu0 0
    %1972 = vmatpush2.bf16.msra.mxu0 0
    %1973 = vmatprep.subr.bf16.mxu0 0
    %1974 = vmatpush2.bf16.msra.mxu0 0
    %1975 = vmatprep.subr.bf16.mxu0 0
    %1976 = vmatpush2.bf16.msra.mxu0 0
    %1977 = vmatprep.subr.bf16.mxu0 0
    %1978 = vmatpush2.bf16.msra.mxu0 0
    %1979 = vmatprep.subr.bf16.mxu0 0
    %1980 = vmatpush2.bf16.msra.mxu0 0
    %1981 = vmatprep.mubr.bf16.mxu0 0
    %1982 = vmatmul.mubr.bf16.gmra.mxu0 %v93
    %v1983 = vpop.f32.mrf.mxu0
    %v1984 = vadd.f32 0.0, %v1983
    %v1985 = vpop.f32.mrf.mxu0
    %v1986 = vpop.f32.mrf.mxu0
    %v1987 = vadd.f32 0.0, %v1986
    %v1988 = vpop.f32.mrf.mxu0
    %1989 = vmatprep.mubr.bf16.mxu0 0
    %1990 = vmatmul.mubr.bf16.gmra.mxu0 %v96
    %v1991 = vpop.f32.mrf.mxu0
    %v1992 = vadd.f32 0.0, %v1991
    %v1993 = vpop.f32.mrf.mxu0
    %v1994 = vpop.f32.mrf.mxu0
    %v1995 = vadd.f32 0.0, %v1994
    %v1996 = vpop.f32.mrf.mxu0
    %1997 = vdwg.mxu0
    %v1998 = vadd.f32 %v1945, %v1984
    %v1999 = vadd.f32 %v1946, %v1987
    %v2000 = vadd.f32 %v1947, %v1992
    %v2001 = vadd.f32 %v1948, %v1995
    %v2002 = vxor.u32 %v1998, 2147483648
    %v2003 = vxor.u32 %v1999, 2147483648
    %v2004 = vxor.u32 %v2000, 2147483648
    %v2005 = vxor.u32 %v2001, 2147483648
    %v2006 = vmul.f32 %v2002, 1.442695
    %v2007 = vpow.pop %v2006
    %v2008 = vmul.f32 %v2003, 1.442695
    %v2009 = vpow.pop %v2008
    %v2010 = vmul.f32 %v2004, 1.442695
    %v2011 = vpow.pop %v2010
    %v2012 = vmul.f32 %v2005, 1.442695
    %v2013 = vpow.pop %v2012
    %v2014 = vadd.f32 %v2007, 1.0
    %v2015 = vadd.f32 %v2009, 1.0
    %v2016 = vadd.f32 %v2011, 1.0
    %v2017 = vadd.f32 %v2013, 1.0
    %v2018 = vrcp.pop %v2014
    %v2019 = vmul.f32 1.0, %v2018
    %v2020 = vrcp.pop %v2015
    %v2021 = vmul.f32 1.0, %v2020
    %v2022 = vrcp.pop %v2016
    %v2023 = vmul.f32 1.0, %v2022
    %v2024 = vrcp.pop %v2017
    %v2025 = vmul.f32 1.0, %v2024
    %2030 = vrot.lane.b32.xlu0 %v1756, 96
    %v2031 = vpop.permute.xlu0 %2030
    %2032 = vrot.lane.b32.xlu0 %v1757, 96
    %v2033 = vpop.permute.xlu0 %2032
    %2034 = vrot.lane.b32.xlu0 %v1758, 96
    %v2035 = vpop.permute.xlu0 %2034
    %2036 = vrot.lane.b32.xlu0 %v1759, 96
    %v2037 = vpop.permute.xlu0 %2036
    %v2042 = vmul.f32 %v2019, %v2031
    %v2043 = vmul.f32 %v2021, %v2033
    %v2044 = vmul.f32 %v2023, %v2035
    %v2045 = vmul.f32 %v2025, %v2037
    %v2046 = vpack.c.bf16 %v2043, %v2042
    %v2047 = vpack.c.bf16 %v2045, %v2044
    %v2049 = vsel %vm79, %v2046, 0
    %v2052 = vsel %vm79, %v2047, 0
    %2054 = vmatprep.subr.bf16.mxu0 0
    %2055 = vmatpush1.bf16.msra.mxu0 0
    %2056 = vmatprep.subr.bf16.mxu0 0
    %2057 = vmatpush1.bf16.msra.mxu0 0
    %2058 = vmatprep.subr.bf16.mxu0 0
    %2059 = vmatpush1.bf16.msra.mxu0 0
    %2060 = vmatprep.subr.bf16.mxu0 0
    %2061 = vmatpush1.bf16.msra.mxu0 0
    %2062 = vmatprep.subr.bf16.mxu0 0
    %2063 = vmatpush1.bf16.msra.mxu0 0
    %2064 = vmatprep.subr.bf16.mxu0 0
    %2065 = vmatpush1.bf16.msra.mxu0 0
    %2066 = vmatprep.subr.bf16.mxu0 0
    %2067 = vmatpush1.bf16.msra.mxu0 %v1443
    %2068 = vmatprep.subr.bf16.mxu0 0
    %2069 = vmatpush1.bf16.msra.mxu0 %v1442
    %2070 = vmatprep.subr.bf16.mxu0 0
    %2071 = vmatpush2.bf16.msra.mxu0 0
    %2072 = vmatprep.subr.bf16.mxu0 0
    %2073 = vmatpush2.bf16.msra.mxu0 0
    %2074 = vmatprep.subr.bf16.mxu0 0
    %2075 = vmatpush2.bf16.msra.mxu0 0
    %2076 = vmatprep.subr.bf16.mxu0 0
    %2077 = vmatpush2.bf16.msra.mxu0 0
    %2078 = vmatprep.subr.bf16.mxu0 0
    %2079 = vmatpush2.bf16.msra.mxu0 0
    %2080 = vmatprep.subr.bf16.mxu0 0
    %2081 = vmatpush2.bf16.msra.mxu0 0
    %2082 = vmatprep.subr.bf16.mxu0 0
    %2083 = vmatpush2.bf16.msra.mxu0 0
    %2084 = vmatprep.subr.bf16.mxu0 0
    %2085 = vmatpush2.bf16.msra.mxu0 0
    %2086 = vmatprep.mubr.bf16.mxu0 0
    %2087 = vmatmul.mubr.bf16.gmra.mxu0 %v2049
    %v2088 = vpop.f32.mrf.mxu0
    %v2089 = vadd.f32 0.0, %v2088
    %v2090 = vpop.f32.mrf.mxu0
    %v2091 = vpop.f32.mrf.mxu0
    %v2092 = vadd.f32 0.0, %v2091
    %v2093 = vpop.f32.mrf.mxu0
    %2094 = vmatprep.mubr.bf16.mxu0 0
    %2095 = vmatmul.mubr.bf16.gmra.mxu0 %v2052
    %v2096 = vpop.f32.mrf.mxu0
    %v2097 = vadd.f32 0.0, %v2096
    %v2098 = vpop.f32.mrf.mxu0
    %v2099 = vpop.f32.mrf.mxu0
    %v2100 = vadd.f32 0.0, %v2099
    %v2101 = vpop.f32.mrf.mxu0
    %2102 = vdwg.mxu0
    %v2103 = vpack.c.bf16 %v2092, %v2089
    %v2104 = vpack.c.bf16 %v2100, %v2097
    %2105 = vmatprep.subr.bf16.mxu0 0
    %2106 = vmatpush1.bf16.msra.mxu0 0
    %2107 = vmatprep.subr.bf16.mxu0 0
    %2108 = vmatpush1.bf16.msra.mxu0 0
    %2109 = vmatprep.subr.bf16.mxu0 0
    %2110 = vmatpush1.bf16.msra.mxu0 0
    %2111 = vmatprep.subr.bf16.mxu0 0
    %2112 = vmatpush1.bf16.msra.mxu0 0
    %2113 = vmatprep.subr.bf16.mxu0 0
    %2114 = vmatpush1.bf16.msra.mxu0 0
    %2115 = vmatprep.subr.bf16.mxu0 0
    %2116 = vmatpush1.bf16.msra.mxu0 0
    %2117 = vmatprep.subr.bf16.mxu0 0
    %2118 = vmatpush1.bf16.msra.mxu0 %v2104
    %2119 = vmatprep.subr.bf16.mxu0 0
    %2120 = vmatpush1.bf16.msra.mxu0 %v2103
    %2121 = vmatprep.subr.bf16.mxu0 0
    %2122 = vmatpush2.bf16.msra.mxu0 0
    %2123 = vmatprep.subr.bf16.mxu0 0
    %2124 = vmatpush2.bf16.msra.mxu0 0
    %2125 = vmatprep.subr.bf16.mxu0 0
    %2126 = vmatpush2.bf16.msra.mxu0 0
    %2127 = vmatprep.subr.bf16.mxu0 0
    %2128 = vmatpush2.bf16.msra.mxu0 0
    %2129 = vmatprep.subr.bf16.mxu0 0
    %2130 = vmatpush2.bf16.msra.mxu0 0
    %2131 = vmatprep.subr.bf16.mxu0 0
    %2132 = vmatpush2.bf16.msra.mxu0 0
    %2133 = vmatprep.subr.bf16.mxu0 0
    %2134 = vmatpush2.bf16.msra.mxu0 0
    %2135 = vmatprep.subr.bf16.mxu0 0
    %2136 = vmatpush2.bf16.msra.mxu0 0
    %2137 = vmatprep.mubr.bf16.mxu0 0
    %2138 = vmatmul.mubr.bf16.gmra.mxu0 %v81
    %v2139 = vpop.f32.mrf.mxu0
    %v2140 = vadd.f32 0.0, %v2139
    %v2141 = vpop.f32.mrf.mxu0
    %v2142 = vpop.f32.mrf.mxu0
    %v2143 = vadd.f32 0.0, %v2142
    %v2144 = vpop.f32.mrf.mxu0
    %2145 = vmatprep.mubr.bf16.mxu0 0
    %2146 = vmatmul.mubr.bf16.gmra.mxu0 %v84
    %v2147 = vpop.f32.mrf.mxu0
    %v2148 = vadd.f32 0.0, %v2147
    %v2149 = vpop.f32.mrf.mxu0
    %v2150 = vpop.f32.mrf.mxu0
    %v2151 = vadd.f32 0.0, %v2150
    %v2152 = vpop.f32.mrf.mxu0
    %2153 = vdwg.mxu0
    %2158 = vrot.lane.b32.xlu0 %v2140, 64
    %v2159 = vpop.permute.xlu0 %2158
    %2160 = vrot.lane.b32.xlu0 %v2143, 64
    %v2161 = vpop.permute.xlu0 %2160
    %2162 = vrot.lane.b32.xlu0 %v2148, 64
    %v2163 = vpop.permute.xlu0 %2162
    %2164 = vrot.lane.b32.xlu0 %v2151, 64
    %v2165 = vpop.permute.xlu0 %2164
    %v2170 = vadd.f32 %v1760, %v2159
    %v2171 = vadd.f32 %v1761, %v2161
    %v2172 = vadd.f32 %v1762, %v2163
    %v2173 = vadd.f32 %v1763, %v2165
    %2176 = vrot.lane.b32.xlu0 %v2103, 96
    %v2177 = vpop.permute.xlu0 %2176
    %2178 = vrot.lane.b32.xlu0 %v2104, 96
    %v2179 = vpop.permute.xlu0 %2178
    %2182 = vmatprep.subr.bf16.mxu0 0
    %2183 = vmatpush1.bf16.msra.mxu0 0
    %2184 = vmatprep.subr.bf16.mxu0 0
    %2185 = vmatpush1.bf16.msra.mxu0 0
    %2186 = vmatprep.subr.bf16.mxu0 0
    %2187 = vmatpush1.bf16.msra.mxu0 0
    %2188 = vmatprep.subr.bf16.mxu0 0
    %2189 = vmatpush1.bf16.msra.mxu0 0
    %2190 = vmatprep.subr.bf16.mxu0 0
    %2191 = vmatpush1.bf16.msra.mxu0 0
    %2192 = vmatprep.subr.bf16.mxu0 0
    %2193 = vmatpush1.bf16.msra.mxu0 0
    %2194 = vmatprep.subr.bf16.mxu0 0
    %2195 = vmatpush1.bf16.msra.mxu0 %v2179
    %2196 = vmatprep.subr.bf16.mxu0 0
    %2197 = vmatpush1.bf16.msra.mxu0 %v2177
    %2198 = vmatprep.subr.bf16.mxu0 0
    %2199 = vmatpush2.bf16.msra.mxu0 0
    %2200 = vmatprep.subr.bf16.mxu0 0
    %2201 = vmatpush2.bf16.msra.mxu0 0
    %2202 = vmatprep.subr.bf16.mxu0 0
    %2203 = vmatpush2.bf16.msra.mxu0 0
    %2204 = vmatprep.subr.bf16.mxu0 0
    %2205 = vmatpush2.bf16.msra.mxu0 0
    %2206 = vmatprep.subr.bf16.mxu0 0
    %2207 = vmatpush2.bf16.msra.mxu0 0
    %2208 = vmatprep.subr.bf16.mxu0 0
    %2209 = vmatpush2.bf16.msra.mxu0 0
    %2210 = vmatprep.subr.bf16.mxu0 0
    %2211 = vmatpush2.bf16.msra.mxu0 0
    %2212 = vmatprep.subr.bf16.mxu0 0
    %2213 = vmatpush2.bf16.msra.mxu0 0
    %2214 = vmatprep.mubr.bf16.mxu0 0
    %2215 = vmatmul.mubr.bf16.gmra.mxu0 %v87
    %v2216 = vpop.f32.mrf.mxu0
    %v2217 = vadd.f32 0.0, %v2216
    %v2218 = vpop.f32.mrf.mxu0
    %v2219 = vpop.f32.mrf.mxu0
    %v2220 = vadd.f32 0.0, %v2219
    %v2221 = vpop.f32.mrf.mxu0
    %2222 = vmatprep.mubr.bf16.mxu0 0
    %2223 = vmatmul.mubr.bf16.gmra.mxu0 %v90
    %v2224 = vpop.f32.mrf.mxu0
    %v2225 = vadd.f32 0.0, %v2224
    %v2226 = vpop.f32.mrf.mxu0
    %v2227 = vpop.f32.mrf.mxu0
    %v2228 = vadd.f32 0.0, %v2227
    %v2229 = vpop.f32.mrf.mxu0
    %2230 = vdwg.mxu0
    %2235 = vrot.lane.b32.xlu0 %v2217, 64
    %v2236 = vpop.permute.xlu0 %2235
    %2237 = vrot.lane.b32.xlu0 %v2220, 64
    %v2238 = vpop.permute.xlu0 %2237
    %2239 = vrot.lane.b32.xlu0 %v2225, 64
    %v2240 = vpop.permute.xlu0 %2239
    %2241 = vrot.lane.b32.xlu0 %v2228, 64
    %v2242 = vpop.permute.xlu0 %2241
    %v2247 = vadd.f32 %v2170, %v2236
    %v2248 = vadd.f32 %v2171, %v2238
    %v2249 = vadd.f32 %v2172, %v2240
    %v2250 = vadd.f32 %v2173, %v2242
    %2251 = vrot.lane.b32.xlu0 %v2103, 64
    %v2252 = vpop.permute.xlu0 %2251
    %2253 = vrot.lane.b32.xlu0 %v2104, 64
    %v2254 = vpop.permute.xlu0 %2253
    %2257 = vmatprep.subr.bf16.mxu0 0
    %2258 = vmatpush1.bf16.msra.mxu0 0
    %2259 = vmatprep.subr.bf16.mxu0 0
    %2260 = vmatpush1.bf16.msra.mxu0 0
    %2261 = vmatprep.subr.bf16.mxu0 0
    %2262 = vmatpush1.bf16.msra.mxu0 0
    %2263 = vmatprep.subr.bf16.mxu0 0
    %2264 = vmatpush1.bf16.msra.mxu0 0
    %2265 = vmatprep.subr.bf16.mxu0 0
    %2266 = vmatpush1.bf16.msra.mxu0 0
    %2267 = vmatprep.subr.bf16.mxu0 0
    %2268 = vmatpush1.bf16.msra.mxu0 0
    %2269 = vmatprep.subr.bf16.mxu0 0
    %2270 = vmatpush1.bf16.msra.mxu0 %v2254
    %2271 = vmatprep.subr.bf16.mxu0 0
    %2272 = vmatpush1.bf16.msra.mxu0 %v2252
    %2273 = vmatprep.subr.bf16.mxu0 0
    %2274 = vmatpush2.bf16.msra.mxu0 0
    %2275 = vmatprep.subr.bf16.mxu0 0
    %2276 = vmatpush2.bf16.msra.mxu0 0
    %2277 = vmatprep.subr.bf16.mxu0 0
    %2278 = vmatpush2.bf16.msra.mxu0 0
    %2279 = vmatprep.subr.bf16.mxu0 0
    %2280 = vmatpush2.bf16.msra.mxu0 0
    %2281 = vmatprep.subr.bf16.mxu0 0
    %2282 = vmatpush2.bf16.msra.mxu0 0
    %2283 = vmatprep.subr.bf16.mxu0 0
    %2284 = vmatpush2.bf16.msra.mxu0 0
    %2285 = vmatprep.subr.bf16.mxu0 0
    %2286 = vmatpush2.bf16.msra.mxu0 0
    %2287 = vmatprep.subr.bf16.mxu0 0
    %2288 = vmatpush2.bf16.msra.mxu0 0
    %2289 = vmatprep.mubr.bf16.mxu0 0
    %2290 = vmatmul.mubr.bf16.gmra.mxu0 %v93
    %v2291 = vpop.f32.mrf.mxu0
    %v2292 = vadd.f32 0.0, %v2291
    %v2293 = vpop.f32.mrf.mxu0
    %v2294 = vpop.f32.mrf.mxu0
    %v2295 = vadd.f32 0.0, %v2294
    %v2296 = vpop.f32.mrf.mxu0
    %2297 = vmatprep.mubr.bf16.mxu0 0
    %2298 = vmatmul.mubr.bf16.gmra.mxu0 %v96
    %v2299 = vpop.f32.mrf.mxu0
    %v2300 = vadd.f32 0.0, %v2299
    %v2301 = vpop.f32.mrf.mxu0
    %v2302 = vpop.f32.mrf.mxu0
    %v2303 = vadd.f32 0.0, %v2302
    %v2304 = vpop.f32.mrf.mxu0
    %2305 = vdwg.mxu0
    %2310 = vrot.lane.b32.xlu0 %v2292, 64
    %v2311 = vpop.permute.xlu0 %2310
    %2312 = vrot.lane.b32.xlu0 %v2295, 64
    %v2313 = vpop.permute.xlu0 %2312
    %2314 = vrot.lane.b32.xlu0 %v2300, 64
    %v2315 = vpop.permute.xlu0 %2314
    %2316 = vrot.lane.b32.xlu0 %v2303, 64
    %v2317 = vpop.permute.xlu0 %2316
    %v2322 = vadd.f32 %v2247, %v2311
    %v2323 = vadd.f32 %v2248, %v2313
    %v2324 = vadd.f32 %v2249, %v2315
    %v2325 = vadd.f32 %v2250, %v2317
    %v2326 = vtanh.pop %v2322
    %v2327 = vtanh.pop %v2323
    %v2328 = vtanh.pop %v2324
    %v2329 = vtanh.pop %v2325
    %2334 = vrot.lane.b32.xlu0 %v2326, 96
    %v2335 = vpop.permute.xlu0 %2334
    %2336 = vrot.lane.b32.xlu0 %v2327, 96
    %v2337 = vpop.permute.xlu0 %2336
    %2338 = vrot.lane.b32.xlu0 %v2328, 96
    %v2339 = vpop.permute.xlu0 %2338
    %2340 = vrot.lane.b32.xlu0 %v2329, 96
    %v2341 = vpop.permute.xlu0 %2340
    %v2346 = vmul.f32 %v2019, %v2335
    %v2347 = vmul.f32 %v2021, %v2337
    %v2348 = vmul.f32 %v2023, %v2339
    %v2349 = vmul.f32 %v2025, %v2341
    %v2350 = vsub.f32 1.0, %v2019
    %v2351 = vsub.f32 1.0, %v2021
    %v2352 = vsub.f32 1.0, %v2023
    %v2353 = vsub.f32 1.0, %v2025
    %v2354 = vmul.f32 %v2350, %v1756
    %v2355 = vmul.f32 %v2351, %v1757
    %v2356 = vmul.f32 %v2352, %v1758
    %v2357 = vmul.f32 %v2353, %v1759
    %v2358 = vadd.f32 %v2346, %v2354
    %v2359 = vadd.f32 %v2347, %v2355
    %v2360 = vadd.f32 %v2348, %v2356
    %v2361 = vadd.f32 %v2349, %v2357
    %v2362 = vld [vmem:[%s447] sm:$0xff]
    %v2363 = vld [vmem:[%s447 + $0x8] sm:$0xff]
    %v2364 = vld [vmem:[%s447 + $0x10] sm:$0xff]
    %v2365 = vld [vmem:[%s447 + $0x18] sm:$0xff]
    %v2366 = vpack.c.bf16 %v2359, %v2358
    %v2367 = vpack.c.bf16 %v2361, %v2360
    %2370 = vrot.lane.b32.xlu0 %v2366, 96
    %v2371 = vpop.permute.xlu0 %2370
    %2372 = vrot.lane.b32.xlu0 %v2367, 96
    %v2373 = vpop.permute.xlu0 %2372
    %v2375 = vsel %vm79, %v2371, 0
    %v2378 = vsel %vm79, %v2373, 0
    %2380 = vmatprep.subr.bf16.mxu0 0
    %2381 = vmatpush1.bf16.msra.mxu0 0
    %2382 = vmatprep.subr.bf16.mxu0 0
    %2383 = vmatpush1.bf16.msra.mxu0 0
    %2384 = vmatprep.subr.bf16.mxu0 0
    %2385 = vmatpush1.bf16.msra.mxu0 0
    %2386 = vmatprep.subr.bf16.mxu0 0
    %2387 = vmatpush1.bf16.msra.mxu0 0
    %2388 = vmatprep.subr.bf16.mxu0 0
    %2389 = vmatpush1.bf16.msra.mxu0 0
    %2390 = vmatprep.subr.bf16.mxu0 0
    %2391 = vmatpush1.bf16.msra.mxu0 0
    %2392 = vmatprep.subr.bf16.mxu0 %v1172
    %2393 = vmatpush1.bf16.msra.mxu0 %v1171
    %2394 = vmatprep.subr.bf16.mxu0 %v1170
    %2395 = vmatpush1.bf16.msra.mxu0 %v1169
    %2396 = vmatprep.subr.bf16.mxu0 0
    %2397 = vmatpush2.bf16.msra.mxu0 0
    %2398 = vmatprep.subr.bf16.mxu0 0
    %2399 = vmatpush2.bf16.msra.mxu0 0
    %2400 = vmatprep.subr.bf16.mxu0 0
    %2401 = vmatpush2.bf16.msra.mxu0 0
    %2402 = vmatprep.subr.bf16.mxu0 0
    %2403 = vmatpush2.bf16.msra.mxu0 0
    %2404 = vmatprep.subr.bf16.mxu0 0
    %2405 = vmatpush2.bf16.msra.mxu0 0
    %2406 = vmatprep.subr.bf16.mxu0 0
    %2407 = vmatpush2.bf16.msra.mxu0 0
    %2408 = vmatprep.subr.bf16.mxu0 0
    %2409 = vmatpush2.bf16.msra.mxu0 0
    %2410 = vmatprep.subr.bf16.mxu0 0
    %2411 = vmatpush2.bf16.msra.mxu0 0
    %2412 = vmatprep.mubr.bf16.mxu0 0
    %2413 = vmatmul.mubr.bf16.gmra.mxu0 %v2375
    %v2414 = vpop.f32.mrf.mxu0
    %v2415 = vadd.f32 0.0, %v2414
    %v2416 = vpop.f32.mrf.mxu0
    %v2417 = vadd.f32 0.0, %v2416
    %v2418 = vpop.f32.mrf.mxu0
    %v2419 = vadd.f32 0.0, %v2418
    %v2420 = vpop.f32.mrf.mxu0
    %v2421 = vadd.f32 0.0, %v2420
    %2422 = vmatprep.mubr.bf16.mxu0 0
    %2423 = vmatmul.mubr.bf16.gmra.mxu0 %v2378
    %v2424 = vpop.f32.mrf.mxu0
    %v2425 = vadd.f32 0.0, %v2424
    %v2426 = vpop.f32.mrf.mxu0
    %v2427 = vadd.f32 0.0, %v2426
    %v2428 = vpop.f32.mrf.mxu0
    %v2429 = vadd.f32 0.0, %v2428
    %v2430 = vpop.f32.mrf.mxu0
    %v2431 = vadd.f32 0.0, %v2430
    %2432 = vdwg.mxu0
    %v2433 = vpack.c.bf16 %v2419, %v2415
    %v2434 = vpack.c.bf16 %v2421, %v2417
    %v2435 = vpack.c.bf16 %v2429, %v2425
    %v2436 = vpack.c.bf16 %v2431, %v2427
    %2437 = vmatprep.subr.bf16.mxu0 0
    %2438 = vmatpush1.bf16.msra.mxu0 0
    %2439 = vmatprep.subr.bf16.mxu0 0
    %2440 = vmatpush1.bf16.msra.mxu0 0
    %2441 = vmatprep.subr.bf16.mxu0 0
    %2442 = vmatpush1.bf16.msra.mxu0 0
    %2443 = vmatprep.subr.bf16.mxu0 0
    %2444 = vmatpush1.bf16.msra.mxu0 0
    %2445 = vmatprep.subr.bf16.mxu0 0
    %2446 = vmatpush1.bf16.msra.mxu0 0
    %2447 = vmatprep.subr.bf16.mxu0 0
    %2448 = vmatpush1.bf16.msra.mxu0 0
    %2449 = vmatprep.subr.bf16.mxu0 0
    %2450 = vmatpush1.bf16.msra.mxu0 %v2435
    %2451 = vmatprep.subr.bf16.mxu0 0
    %2452 = vmatpush1.bf16.msra.mxu0 %v2433
    %2453 = vmatprep.subr.bf16.mxu0 0
    %2454 = vmatpush2.bf16.msra.mxu0 0
    %2455 = vmatprep.subr.bf16.mxu0 0
    %2456 = vmatpush2.bf16.msra.mxu0 0
    %2457 = vmatprep.subr.bf16.mxu0 0
    %2458 = vmatpush2.bf16.msra.mxu0 0
    %2459 = vmatprep.subr.bf16.mxu0 0
    %2460 = vmatpush2.bf16.msra.mxu0 0
    %2461 = vmatprep.subr.bf16.mxu0 0
    %2462 = vmatpush2.bf16.msra.mxu0 0
    %2463 = vmatprep.subr.bf16.mxu0 0
    %2464 = vmatpush2.bf16.msra.mxu0 0
    %2465 = vmatprep.subr.bf16.mxu0 0
    %2466 = vmatpush2.bf16.msra.mxu0 0
    %2467 = vmatprep.subr.bf16.mxu0 0
    %2468 = vmatpush2.bf16.msra.mxu0 0
    %2469 = vmatprep.mubr.bf16.mxu0 0
    %2470 = vmatmul.mubr.bf16.gmra.mxu0 %v81
    %v2471 = vpop.f32.mrf.mxu0
    %v2472 = vadd.f32 0.0, %v2471
    %v2473 = vpop.f32.mrf.mxu0
    %v2474 = vpop.f32.mrf.mxu0
    %v2475 = vadd.f32 0.0, %v2474
    %v2476 = vpop.f32.mrf.mxu0
    %2477 = vmatprep.mubr.bf16.mxu0 0
    %2478 = vmatmul.mubr.bf16.gmra.mxu0 %v84
    %v2479 = vpop.f32.mrf.mxu0
    %v2480 = vadd.f32 0.0, %v2479
    %v2481 = vpop.f32.mrf.mxu0
    %v2482 = vpop.f32.mrf.mxu0
    %v2483 = vadd.f32 0.0, %v2482
    %v2484 = vpop.f32.mrf.mxu0
    %2485 = vdwg.mxu0
    %v2486 = vadd.f32 %v2362, %v2472
    %v2487 = vadd.f32 %v2363, %v2475
    %v2488 = vadd.f32 %v2364, %v2480
    %v2489 = vadd.f32 %v2365, %v2483
    %2492 = vrot.lane.b32.xlu0 %v2433, 64
    %v2493 = vpop.permute.xlu0 %2492
    %2494 = vrot.lane.b32.xlu0 %v2435, 64
    %v2495 = vpop.permute.xlu0 %2494
    %2498 = vmatprep.subr.bf16.mxu0 0
    %2499 = vmatpush1.bf16.msra.mxu0 0
    %2500 = vmatprep.subr.bf16.mxu0 0
    %2501 = vmatpush1.bf16.msra.mxu0 0
    %2502 = vmatprep.subr.bf16.mxu0 0
    %2503 = vmatpush1.bf16.msra.mxu0 0
    %2504 = vmatprep.subr.bf16.mxu0 0
    %2505 = vmatpush1.bf16.msra.mxu0 0
    %2506 = vmatprep.subr.bf16.mxu0 0
    %2507 = vmatpush1.bf16.msra.mxu0 0
    %2508 = vmatprep.subr.bf16.mxu0 0
    %2509 = vmatpush1.bf16.msra.mxu0 0
    %2510 = vmatprep.subr.bf16.mxu0 0
    %2511 = vmatpush1.bf16.msra.mxu0 %v2495
    %2512 = vmatprep.subr.bf16.mxu0 0
    %2513 = vmatpush1.bf16.msra.mxu0 %v2493
    %2514 = vmatprep.subr.bf16.mxu0 0
    %2515 = vmatpush2.bf16.msra.mxu0 0
    %2516 = vmatprep.subr.bf16.mxu0 0
    %2517 = vmatpush2.bf16.msra.mxu0 0
    %2518 = vmatprep.subr.bf16.mxu0 0
    %2519 = vmatpush2.bf16.msra.mxu0 0
    %2520 = vmatprep.subr.bf16.mxu0 0
    %2521 = vmatpush2.bf16.msra.mxu0 0
    %2522 = vmatprep.subr.bf16.mxu0 0
    %2523 = vmatpush2.bf16.msra.mxu0 0
    %2524 = vmatprep.subr.bf16.mxu0 0
    %2525 = vmatpush2.bf16.msra.mxu0 0
    %2526 = vmatprep.subr.bf16.mxu0 0
    %2527 = vmatpush2.bf16.msra.mxu0 0
    %2528 = vmatprep.subr.bf16.mxu0 0
    %2529 = vmatpush2.bf16.msra.mxu0 0
    %2530 = vmatprep.mubr.bf16.mxu0 0
    %2531 = vmatmul.mubr.bf16.gmra.mxu0 %v87
    %v2532 = vpop.f32.mrf.mxu0
    %v2533 = vadd.f32 0.0, %v2532
    %v2534 = vpop.f32.mrf.mxu0
    %v2535 = vpop.f32.mrf.mxu0
    %v2536 = vadd.f32 0.0, %v2535
    %v2537 = vpop.f32.mrf.mxu0
    %2538 = vmatprep.mubr.bf16.mxu0 0
    %2539 = vmatmul.mubr.bf16.gmra.mxu0 %v90
    %v2540 = vpop.f32.mrf.mxu0
    %v2541 = vadd.f32 0.0, %v2540
    %v2542 = vpop.f32.mrf.mxu0
    %v2543 = vpop.f32.mrf.mxu0
    %v2544 = vadd.f32 0.0, %v2543
    %v2545 = vpop.f32.mrf.mxu0
    %2546 = vdwg.mxu0
    %v2547 = vadd.f32 %v2486, %v2533
    %v2548 = vadd.f32 %v2487, %v2536
    %v2549 = vadd.f32 %v2488, %v2541
    %v2550 = vadd.f32 %v2489, %v2544
    %2551 = vmatprep.subr.bf16.mxu0 0
    %2552 = vmatpush1.bf16.msra.mxu0 0
    %2553 = vmatprep.subr.bf16.mxu0 0
    %2554 = vmatpush1.bf16.msra.mxu0 0
    %2555 = vmatprep.subr.bf16.mxu0 0
    %2556 = vmatpush1.bf16.msra.mxu0 0
    %2557 = vmatprep.subr.bf16.mxu0 0
    %2558 = vmatpush1.bf16.msra.mxu0 0
    %2559 = vmatprep.subr.bf16.mxu0 0
    %2560 = vmatpush1.bf16.msra.mxu0 0
    %2561 = vmatprep.subr.bf16.mxu0 0
    %2562 = vmatpush1.bf16.msra.mxu0 0
    %2563 = vmatprep.subr.bf16.mxu0 0
    %2564 = vmatpush1.bf16.msra.mxu0 %v2436
    %2565 = vmatprep.subr.bf16.mxu0 0
    %2566 = vmatpush1.bf16.msra.mxu0 %v2434
    %2567 = vmatprep.subr.bf16.mxu0 0
    %2568 = vmatpush2.bf16.msra.mxu0 0
    %2569 = vmatprep.subr.bf16.mxu0 0
    %2570 = vmatpush2.bf16.msra.mxu0 0
    %2571 = vmatprep.subr.bf16.mxu0 0
    %2572 = vmatpush2.bf16.msra.mxu0 0
    %2573 = vmatprep.subr.bf16.mxu0 0
    %2574 = vmatpush2.bf16.msra.mxu0 0
    %2575 = vmatprep.subr.bf16.mxu0 0
    %2576 = vmatpush2.bf16.msra.mxu0 0
    %2577 = vmatprep.subr.bf16.mxu0 0
    %2578 = vmatpush2.bf16.msra.mxu0 0
    %2579 = vmatprep.subr.bf16.mxu0 0
    %2580 = vmatpush2.bf16.msra.mxu0 0
    %2581 = vmatprep.subr.bf16.mxu0 0
    %2582 = vmatpush2.bf16.msra.mxu0 0
    %2583 = vmatprep.mubr.bf16.mxu0 0
    %2584 = vmatmul.mubr.bf16.gmra.mxu0 %v93
    %v2585 = vpop.f32.mrf.mxu0
    %v2586 = vadd.f32 0.0, %v2585
    %v2587 = vpop.f32.mrf.mxu0
    %v2588 = vpop.f32.mrf.mxu0
    %v2589 = vadd.f32 0.0, %v2588
    %v2590 = vpop.f32.mrf.mxu0
    %2591 = vmatprep.mubr.bf16.mxu0 0
    %2592 = vmatmul.mubr.bf16.gmra.mxu0 %v96
    %v2593 = vpop.f32.mrf.mxu0
    %v2594 = vadd.f32 0.0, %v2593
    %v2595 = vpop.f32.mrf.mxu0
    %v2596 = vpop.f32.mrf.mxu0
    %v2597 = vadd.f32 0.0, %v2596
    %v2598 = vpop.f32.mrf.mxu0
    %2599 = vdwg.mxu0
    %v2600 = vadd.f32 %v2547, %v2586
    %v2601 = vadd.f32 %v2548, %v2589
    %v2602 = vadd.f32 %v2549, %v2594
    %v2603 = vadd.f32 %v2550, %v2597
    %v2604 = vxor.u32 %v2600, 2147483648
    %v2605 = vxor.u32 %v2601, 2147483648
    %v2606 = vxor.u32 %v2602, 2147483648
    %v2607 = vxor.u32 %v2603, 2147483648
    %v2608 = vmul.f32 %v2604, 1.442695
    %v2609 = vpow.pop %v2608
    %v2610 = vmul.f32 %v2605, 1.442695
    %v2611 = vpow.pop %v2610
    %v2612 = vmul.f32 %v2606, 1.442695
    %v2613 = vpow.pop %v2612
    %v2614 = vmul.f32 %v2607, 1.442695
    %v2615 = vpow.pop %v2614
    %v2616 = vadd.f32 %v2609, 1.0
    %v2617 = vadd.f32 %v2611, 1.0
    %v2618 = vadd.f32 %v2613, 1.0
    %v2619 = vadd.f32 %v2615, 1.0
    %v2620 = vrcp.pop %v2616
    %v2621 = vmul.f32 1.0, %v2620
    %v2622 = vrcp.pop %v2617
    %v2623 = vmul.f32 1.0, %v2622
    %v2624 = vrcp.pop %v2618
    %v2625 = vmul.f32 1.0, %v2624
    %v2626 = vrcp.pop %v2619
    %v2627 = vmul.f32 1.0, %v2626
    %2632 = vrot.lane.b32.xlu0 %v2358, 96
    %v2633 = vpop.permute.xlu0 %2632
    %2634 = vrot.lane.b32.xlu0 %v2359, 96
    %v2635 = vpop.permute.xlu0 %2634
    %2636 = vrot.lane.b32.xlu0 %v2360, 96
    %v2637 = vpop.permute.xlu0 %2636
    %2638 = vrot.lane.b32.xlu0 %v2361, 96
    %v2639 = vpop.permute.xlu0 %2638
    %v2644 = vmul.f32 %v2621, %v2633
    %v2645 = vmul.f32 %v2623, %v2635
    %v2646 = vmul.f32 %v2625, %v2637
    %v2647 = vmul.f32 %v2627, %v2639
    %v2648 = vpack.c.bf16 %v2645, %v2644
    %v2649 = vpack.c.bf16 %v2647, %v2646
    %v2651 = vsel %vm79, %v2648, 0
    %v2654 = vsel %vm79, %v2649, 0
    %2656 = vmatprep.subr.bf16.mxu0 0
    %2657 = vmatpush1.bf16.msra.mxu0 0
    %2658 = vmatprep.subr.bf16.mxu0 0
    %2659 = vmatpush1.bf16.msra.mxu0 0
    %2660 = vmatprep.subr.bf16.mxu0 0
    %2661 = vmatpush1.bf16.msra.mxu0 0
    %2662 = vmatprep.subr.bf16.mxu0 0
    %2663 = vmatpush1.bf16.msra.mxu0 0
    %2664 = vmatprep.subr.bf16.mxu0 0
    %2665 = vmatpush1.bf16.msra.mxu0 0
    %2666 = vmatprep.subr.bf16.mxu0 0
    %2667 = vmatpush1.bf16.msra.mxu0 0
    %2668 = vmatprep.subr.bf16.mxu0 0
    %2669 = vmatpush1.bf16.msra.mxu0 %v1443
    %2670 = vmatprep.subr.bf16.mxu0 0
    %2671 = vmatpush1.bf16.msra.mxu0 %v1442
    %2672 = vmatprep.subr.bf16.mxu0 0
    %2673 = vmatpush2.bf16.msra.mxu0 0
    %2674 = vmatprep.subr.bf16.mxu0 0
    %2675 = vmatpush2.bf16.msra.mxu0 0
    %2676 = vmatprep.subr.bf16.mxu0 0
    %2677 = vmatpush2.bf16.msra.mxu0 0
    %2678 = vmatprep.subr.bf16.mxu0 0
    %2679 = vmatpush2.bf16.msra.mxu0 0
    %2680 = vmatprep.subr.bf16.mxu0 0
    %2681 = vmatpush2.bf16.msra.mxu0 0
    %2682 = vmatprep.subr.bf16.mxu0 0
    %2683 = vmatpush2.bf16.msra.mxu0 0
    %2684 = vmatprep.subr.bf16.mxu0 0
    %2685 = vmatpush2.bf16.msra.mxu0 0
    %2686 = vmatprep.subr.bf16.mxu0 0
    %2687 = vmatpush2.bf16.msra.mxu0 0
    %2688 = vmatprep.mubr.bf16.mxu0 0
    %2689 = vmatmul.mubr.bf16.gmra.mxu0 %v2651
    %v2690 = vpop.f32.mrf.mxu0
    %v2691 = vadd.f32 0.0, %v2690
    %v2692 = vpop.f32.mrf.mxu0
    %v2693 = vpop.f32.mrf.mxu0
    %v2694 = vadd.f32 0.0, %v2693
    %v2695 = vpop.f32.mrf.mxu0
    %2696 = vmatprep.mubr.bf16.mxu0 0
    %2697 = vmatmul.mubr.bf16.gmra.mxu0 %v2654
    %v2698 = vpop.f32.mrf.mxu0
    %v2699 = vadd.f32 0.0, %v2698
    %v2700 = vpop.f32.mrf.mxu0
    %v2701 = vpop.f32.mrf.mxu0
    %v2702 = vadd.f32 0.0, %v2701
    %v2703 = vpop.f32.mrf.mxu0
    %2704 = vdwg.mxu0
    %v2705 = vpack.c.bf16 %v2694, %v2691
    %v2706 = vpack.c.bf16 %v2702, %v2699
    %2707 = vmatprep.subr.bf16.mxu0 0
    %2708 = vmatpush1.bf16.msra.mxu0 0
    %2709 = vmatprep.subr.bf16.mxu0 0
    %2710 = vmatpush1.bf16.msra.mxu0 0
    %2711 = vmatprep.subr.bf16.mxu0 0
    %2712 = vmatpush1.bf16.msra.mxu0 0
    %2713 = vmatprep.subr.bf16.mxu0 0
    %2714 = vmatpush1.bf16.msra.mxu0 0
    %2715 = vmatprep.subr.bf16.mxu0 0
    %2716 = vmatpush1.bf16.msra.mxu0 0
    %2717 = vmatprep.subr.bf16.mxu0 0
    %2718 = vmatpush1.bf16.msra.mxu0 0
    %2719 = vmatprep.subr.bf16.mxu0 0
    %2720 = vmatpush1.bf16.msra.mxu0 %v2706
    %2721 = vmatprep.subr.bf16.mxu0 0
    %2722 = vmatpush1.bf16.msra.mxu0 %v2705
    %2723 = vmatprep.subr.bf16.mxu0 0
    %2724 = vmatpush2.bf16.msra.mxu0 0
    %2725 = vmatprep.subr.bf16.mxu0 0
    %2726 = vmatpush2.bf16.msra.mxu0 0
    %2727 = vmatprep.subr.bf16.mxu0 0
    %2728 = vmatpush2.bf16.msra.mxu0 0
    %2729 = vmatprep.subr.bf16.mxu0 0
    %2730 = vmatpush2.bf16.msra.mxu0 0
    %2731 = vmatprep.subr.bf16.mxu0 0
    %2732 = vmatpush2.bf16.msra.mxu0 0
    %2733 = vmatprep.subr.bf16.mxu0 0
    %2734 = vmatpush2.bf16.msra.mxu0 0
    %2735 = vmatprep.subr.bf16.mxu0 0
    %2736 = vmatpush2.bf16.msra.mxu0 0
    %2737 = vmatprep.subr.bf16.mxu0 0
    %2738 = vmatpush2.bf16.msra.mxu0 0
    %2739 = vmatprep.mubr.bf16.mxu0 0
    %2740 = vmatmul.mubr.bf16.gmra.mxu0 %v81
    %v2741 = vpop.f32.mrf.mxu0
    %v2742 = vadd.f32 0.0, %v2741
    %v2743 = vpop.f32.mrf.mxu0
    %v2744 = vpop.f32.mrf.mxu0
    %v2745 = vadd.f32 0.0, %v2744
    %v2746 = vpop.f32.mrf.mxu0
    %2747 = vmatprep.mubr.bf16.mxu0 0
    %2748 = vmatmul.mubr.bf16.gmra.mxu0 %v84
    %v2749 = vpop.f32.mrf.mxu0
    %v2750 = vadd.f32 0.0, %v2749
    %v2751 = vpop.f32.mrf.mxu0
    %v2752 = vpop.f32.mrf.mxu0
    %v2753 = vadd.f32 0.0, %v2752
    %v2754 = vpop.f32.mrf.mxu0
    %2755 = vdwg.mxu0
    %2760 = vrot.lane.b32.xlu0 %v2742, 64
    %v2761 = vpop.permute.xlu0 %2760
    %2762 = vrot.lane.b32.xlu0 %v2745, 64
    %v2763 = vpop.permute.xlu0 %2762
    %2764 = vrot.lane.b32.xlu0 %v2750, 64
    %v2765 = vpop.permute.xlu0 %2764
    %2766 = vrot.lane.b32.xlu0 %v2753, 64
    %v2767 = vpop.permute.xlu0 %2766
    %v2772 = vadd.f32 %v2362, %v2761
    %v2773 = vadd.f32 %v2363, %v2763
    %v2774 = vadd.f32 %v2364, %v2765
    %v2775 = vadd.f32 %v2365, %v2767
    %2778 = vrot.lane.b32.xlu0 %v2705, 96
    %v2779 = vpop.permute.xlu0 %2778
    %2780 = vrot.lane.b32.xlu0 %v2706, 96
    %v2781 = vpop.permute.xlu0 %2780
    %2784 = vmatprep.subr.bf16.mxu0 0
    %2785 = vmatpush1.bf16.msra.mxu0 0
    %2786 = vmatprep.subr.bf16.mxu0 0
    %2787 = vmatpush1.bf16.msra.mxu0 0
    %2788 = vmatprep.subr.bf16.mxu0 0
    %2789 = vmatpush1.bf16.msra.mxu0 0
    %2790 = vmatprep.subr.bf16.mxu0 0
    %2791 = vmatpush1.bf16.msra.mxu0 0
    %2792 = vmatprep.subr.bf16.mxu0 0
    %2793 = vmatpush1.bf16.msra.mxu0 0
    %2794 = vmatprep.subr.bf16.mxu0 0
    %2795 = vmatpush1.bf16.msra.mxu0 0
    %2796 = vmatprep.subr.bf16.mxu0 0
    %2797 = vmatpush1.bf16.msra.mxu0 %v2781
    %2798 = vmatprep.subr.bf16.mxu0 0
    %2799 = vmatpush1.bf16.msra.mxu0 %v2779
    %2800 = vmatprep.subr.bf16.mxu0 0
    %2801 = vmatpush2.bf16.msra.mxu0 0
    %2802 = vmatprep.subr.bf16.mxu0 0
    %2803 = vmatpush2.bf16.msra.mxu0 0
    %2804 = vmatprep.subr.bf16.mxu0 0
    %2805 = vmatpush2.bf16.msra.mxu0 0
    %2806 = vmatprep.subr.bf16.mxu0 0
    %2807 = vmatpush2.bf16.msra.mxu0 0
    %2808 = vmatprep.subr.bf16.mxu0 0
    %2809 = vmatpush2.bf16.msra.mxu0 0
    %2810 = vmatprep.subr.bf16.mxu0 0
    %2811 = vmatpush2.bf16.msra.mxu0 0
    %2812 = vmatprep.subr.bf16.mxu0 0
    %2813 = vmatpush2.bf16.msra.mxu0 0
    %2814 = vmatprep.subr.bf16.mxu0 0
    %2815 = vmatpush2.bf16.msra.mxu0 0
    %2816 = vmatprep.mubr.bf16.mxu0 0
    %2817 = vmatmul.mubr.bf16.gmra.mxu0 %v87
    %v2818 = vpop.f32.mrf.mxu0
    %v2819 = vadd.f32 0.0, %v2818
    %v2820 = vpop.f32.mrf.mxu0
    %v2821 = vpop.f32.mrf.mxu0
    %v2822 = vadd.f32 0.0, %v2821
    %v2823 = vpop.f32.mrf.mxu0
    %2824 = vmatprep.mubr.bf16.mxu0 0
    %2825 = vmatmul.mubr.bf16.gmra.mxu0 %v90
    %v2826 = vpop.f32.mrf.mxu0
    %v2827 = vadd.f32 0.0, %v2826
    %v2828 = vpop.f32.mrf.mxu0
    %v2829 = vpop.f32.mrf.mxu0
    %v2830 = vadd.f32 0.0, %v2829
    %v2831 = vpop.f32.mrf.mxu0
    %2832 = vdwg.mxu0
    %2837 = vrot.lane.b32.xlu0 %v2819, 64
    %v2838 = vpop.permute.xlu0 %2837
    %2839 = vrot.lane.b32.xlu0 %v2822, 64
    %v2840 = vpop.permute.xlu0 %2839
    %2841 = vrot.lane.b32.xlu0 %v2827, 64
    %v2842 = vpop.permute.xlu0 %2841
    %2843 = vrot.lane.b32.xlu0 %v2830, 64
    %v2844 = vpop.permute.xlu0 %2843
    %v2849 = vadd.f32 %v2772, %v2838
    %v2850 = vadd.f32 %v2773, %v2840
    %v2851 = vadd.f32 %v2774, %v2842
    %v2852 = vadd.f32 %v2775, %v2844
    %2853 = vrot.lane.b32.xlu0 %v2705, 64
    %v2854 = vpop.permute.xlu0 %2853
    %2855 = vrot.lane.b32.xlu0 %v2706, 64
    %v2856 = vpop.permute.xlu0 %2855
    %2859 = vmatprep.subr.bf16.mxu0 0
    %2860 = vmatpush1.bf16.msra.mxu0 0
    %2861 = vmatprep.subr.bf16.mxu0 0
    %2862 = vmatpush1.bf16.msra.mxu0 0
    %2863 = vmatprep.subr.bf16.mxu0 0
    %2864 = vmatpush1.bf16.msra.mxu0 0
    %2865 = vmatprep.subr.bf16.mxu0 0
    %2866 = vmatpush1.bf16.msra.mxu0 0
    %2867 = vmatprep.subr.bf16.mxu0 0
    %2868 = vmatpush1.bf16.msra.mxu0 0
    %2869 = vmatprep.subr.bf16.mxu0 0
    %2870 = vmatpush1.bf16.msra.mxu0 0
    %2871 = vmatprep.subr.bf16.mxu0 0
    %2872 = vmatpush1.bf16.msra.mxu0 %v2856
    %2873 = vmatprep.subr.bf16.mxu0 0
    %2874 = vmatpush1.bf16.msra.mxu0 %v2854
    %2875 = vmatprep.subr.bf16.mxu0 0
    %2876 = vmatpush2.bf16.msra.mxu0 0
    %2877 = vmatprep.subr.bf16.mxu0 0
    %2878 = vmatpush2.bf16.msra.mxu0 0
    %2879 = vmatprep.subr.bf16.mxu0 0
    %2880 = vmatpush2.bf16.msra.mxu0 0
    %2881 = vmatprep.subr.bf16.mxu0 0
    %2882 = vmatpush2.bf16.msra.mxu0 0
    %2883 = vmatprep.subr.bf16.mxu0 0
    %2884 = vmatpush2.bf16.msra.mxu0 0
    %2885 = vmatprep.subr.bf16.mxu0 0
    %2886 = vmatpush2.bf16.msra.mxu0 0
    %2887 = vmatprep.subr.bf16.mxu0 0
    %2888 = vmatpush2.bf16.msra.mxu0 0
    %2889 = vmatprep.subr.bf16.mxu0 0
    %2890 = vmatpush2.bf16.msra.mxu0 0
    %2891 = vmatprep.mubr.bf16.mxu0 0
    %2892 = vmatmul.mubr.bf16.gmra.mxu0 %v93
    %v2893 = vpop.f32.mrf.mxu0
    %v2894 = vadd.f32 0.0, %v2893
    %v2895 = vpop.f32.mrf.mxu0
    %v2896 = vpop.f32.mrf.mxu0
    %v2897 = vadd.f32 0.0, %v2896
    %v2898 = vpop.f32.mrf.mxu0
    %2899 = vmatprep.mubr.bf16.mxu0 0
    %2900 = vmatmul.mubr.bf16.gmra.mxu0 %v96
    %v2901 = vpop.f32.mrf.mxu0
    %v2902 = vadd.f32 0.0, %v2901
    %v2903 = vpop.f32.mrf.mxu0
    %v2904 = vpop.f32.mrf.mxu0
    %v2905 = vadd.f32 0.0, %v2904
    %v2906 = vpop.f32.mrf.mxu0
    %2907 = vdwg.mxu0
    %2912 = vrot.lane.b32.xlu0 %v2894, 64
    %v2913 = vpop.permute.xlu0 %2912
    %2914 = vrot.lane.b32.xlu0 %v2897, 64
    %v2915 = vpop.permute.xlu0 %2914
    %2916 = vrot.lane.b32.xlu0 %v2902, 64
    %v2917 = vpop.permute.xlu0 %2916
    %2918 = vrot.lane.b32.xlu0 %v2905, 64
    %v2919 = vpop.permute.xlu0 %2918
    %v2924 = vadd.f32 %v2849, %v2913
    %v2925 = vadd.f32 %v2850, %v2915
    %v2926 = vadd.f32 %v2851, %v2917
    %v2927 = vadd.f32 %v2852, %v2919
    %v2928 = vtanh.pop %v2924
    %v2929 = vtanh.pop %v2925
    %v2930 = vtanh.pop %v2926
    %v2931 = vtanh.pop %v2927
    %2936 = vrot.lane.b32.xlu0 %v2928, 96
    %v2937 = vpop.permute.xlu0 %2936
    %2938 = vrot.lane.b32.xlu0 %v2929, 96
    %v2939 = vpop.permute.xlu0 %2938
    %2940 = vrot.lane.b32.xlu0 %v2930, 96
    %v2941 = vpop.permute.xlu0 %2940
    %2942 = vrot.lane.b32.xlu0 %v2931, 96
    %v2943 = vpop.permute.xlu0 %2942
    %v2948 = vmul.f32 %v2621, %v2937
    %v2949 = vmul.f32 %v2623, %v2939
    %v2950 = vmul.f32 %v2625, %v2941
    %v2951 = vmul.f32 %v2627, %v2943
    %v2952 = vsub.f32 1.0, %v2621
    %v2953 = vsub.f32 1.0, %v2623
    %v2954 = vsub.f32 1.0, %v2625
    %v2955 = vsub.f32 1.0, %v2627
    %v2956 = vmul.f32 %v2952, %v2358
    %v2957 = vmul.f32 %v2953, %v2359
    %v2958 = vmul.f32 %v2954, %v2360
    %v2959 = vmul.f32 %v2955, %v2361
    %v2960 = vadd.f32 %v2948, %v2956
    %v2961 = vadd.f32 %v2949, %v2957
    %v2962 = vadd.f32 %v2950, %v2958
    %v2963 = vadd.f32 %v2951, %v2959
    %v2964 = vld [vmem:[%s524] sm:$0xff]
    %v2965 = vld [vmem:[%s524 + $0x8] sm:$0xff]
    %v2966 = vld [vmem:[%s524 + $0x10] sm:$0xff]
    %v2967 = vld [vmem:[%s524 + $0x18] sm:$0xff]
    %v2968 = vpack.c.bf16 %v2961, %v2960
    %v2969 = vpack.c.bf16 %v2963, %v2962
    %2972 = vrot.lane.b32.xlu0 %v2968, 96
    %v2973 = vpop.permute.xlu0 %2972
    %2974 = vrot.lane.b32.xlu0 %v2969, 96
    %v2975 = vpop.permute.xlu0 %2974
    %v2977 = vsel %vm79, %v2973, 0
    %v2980 = vsel %vm79, %v2975, 0
    %2982 = vmatprep.subr.bf16.mxu0 0
    %2983 = vmatpush1.bf16.msra.mxu0 0
    %2984 = vmatprep.subr.bf16.mxu0 0
    %2985 = vmatpush1.bf16.msra.mxu0 0
    %2986 = vmatprep.subr.bf16.mxu0 0
    %2987 = vmatpush1.bf16.msra.mxu0 0
    %2988 = vmatprep.subr.bf16.mxu0 0
    %2989 = vmatpush1.bf16.msra.mxu0 0
    %2990 = vmatprep.subr.bf16.mxu0 0
    %2991 = vmatpush1.bf16.msra.mxu0 0
    %2992 = vmatprep.subr.bf16.mxu0 0
    %2993 = vmatpush1.bf16.msra.mxu0 0
    %2994 = vmatprep.subr.bf16.mxu0 %v1172
    %2995 = vmatpush1.bf16.msra.mxu0 %v1171
    %2996 = vmatprep.subr.bf16.mxu0 %v1170
    %2997 = vmatpush1.bf16.msra.mxu0 %v1169
    %2998 = vmatprep.subr.bf16.mxu0 0
    %2999 = vmatpush2.bf16.msra.mxu0 0
    %3000 = vmatprep.subr.bf16.mxu0 0
    %3001 = vmatpush2.bf16.msra.mxu0 0
    %3002 = vmatprep.subr.bf16.mxu0 0
    %3003 = vmatpush2.bf16.msra.mxu0 0
    %3004 = vmatprep.subr.bf16.mxu0 0
    %3005 = vmatpush2.bf16.msra.mxu0 0
    %3006 = vmatprep.subr.bf16.mxu0 0
    %3007 = vmatpush2.bf16.msra.mxu0 0
    %3008 = vmatprep.subr.bf16.mxu0 0
    %3009 = vmatpush2.bf16.msra.mxu0 0
    %3010 = vmatprep.subr.bf16.mxu0 0
    %3011 = vmatpush2.bf16.msra.mxu0 0
    %3012 = vmatprep.subr.bf16.mxu0 0
    %3013 = vmatpush2.bf16.msra.mxu0 0
    %3014 = vmatprep.mubr.bf16.mxu0 0
    %3015 = vmatmul.mubr.bf16.gmra.mxu0 %v2977
    %v3016 = vpop.f32.mrf.mxu0
    %v3017 = vadd.f32 0.0, %v3016
    %v3018 = vpop.f32.mrf.mxu0
    %v3019 = vadd.f32 0.0, %v3018
    %v3020 = vpop.f32.mrf.mxu0
    %v3021 = vadd.f32 0.0, %v3020
    %v3022 = vpop.f32.mrf.mxu0
    %v3023 = vadd.f32 0.0, %v3022
    %3024 = vmatprep.mubr.bf16.mxu0 0
    %3025 = vmatmul.mubr.bf16.gmra.mxu0 %v2980
    %v3026 = vpop.f32.mrf.mxu0
    %v3027 = vadd.f32 0.0, %v3026
    %v3028 = vpop.f32.mrf.mxu0
    %v3029 = vadd.f32 0.0, %v3028
    %v3030 = vpop.f32.mrf.mxu0
    %v3031 = vadd.f32 0.0, %v3030
    %v3032 = vpop.f32.mrf.mxu0
    %v3033 = vadd.f32 0.0, %v3032
    %3034 = vdwg.mxu0
    %v3035 = vpack.c.bf16 %v3021, %v3017
    %v3036 = vpack.c.bf16 %v3023, %v3019
    %v3037 = vpack.c.bf16 %v3031, %v3027
    %v3038 = vpack.c.bf16 %v3033, %v3029
    %3039 = vmatprep.subr.bf16.mxu0 0
    %3040 = vmatpush1.bf16.msra.mxu0 0
    %3041 = vmatprep.subr.bf16.mxu0 0
    %3042 = vmatpush1.bf16.msra.mxu0 0
    %3043 = vmatprep.subr.bf16.mxu0 0
    %3044 = vmatpush1.bf16.msra.mxu0 0
    %3045 = vmatprep.subr.bf16.mxu0 0
    %3046 = vmatpush1.bf16.msra.mxu0 0
    %3047 = vmatprep.subr.bf16.mxu0 0
    %3048 = vmatpush1.bf16.msra.mxu0 0
    %3049 = vmatprep.subr.bf16.mxu0 0
    %3050 = vmatpush1.bf16.msra.mxu0 0
    %3051 = vmatprep.subr.bf16.mxu0 0
    %3052 = vmatpush1.bf16.msra.mxu0 %v3037
    %3053 = vmatprep.subr.bf16.mxu0 0
    %3054 = vmatpush1.bf16.msra.mxu0 %v3035
    %3055 = vmatprep.subr.bf16.mxu0 0
    %3056 = vmatpush2.bf16.msra.mxu0 0
    %3057 = vmatprep.subr.bf16.mxu0 0
    %3058 = vmatpush2.bf16.msra.mxu0 0
    %3059 = vmatprep.subr.bf16.mxu0 0
    %3060 = vmatpush2.bf16.msra.mxu0 0
    %3061 = vmatprep.subr.bf16.mxu0 0
    %3062 = vmatpush2.bf16.msra.mxu0 0
    %3063 = vmatprep.subr.bf16.mxu0 0
    %3064 = vmatpush2.bf16.msra.mxu0 0
    %3065 = vmatprep.subr.bf16.mxu0 0
    %3066 = vmatpush2.bf16.msra.mxu0 0
    %3067 = vmatprep.subr.bf16.mxu0 0
    %3068 = vmatpush2.bf16.msra.mxu0 0
    %3069 = vmatprep.subr.bf16.mxu0 0
    %3070 = vmatpush2.bf16.msra.mxu0 0
    %3071 = vmatprep.mubr.bf16.mxu0 0
    %3072 = vmatmul.mubr.bf16.gmra.mxu0 %v81
    %v3073 = vpop.f32.mrf.mxu0
    %v3074 = vadd.f32 0.0, %v3073
    %v3075 = vpop.f32.mrf.mxu0
    %v3076 = vpop.f32.mrf.mxu0
    %v3077 = vadd.f32 0.0, %v3076
    %v3078 = vpop.f32.mrf.mxu0
    %3079 = vmatprep.mubr.bf16.mxu0 0
    %3080 = vmatmul.mubr.bf16.gmra.mxu0 %v84
    %v3081 = vpop.f32.mrf.mxu0
    %v3082 = vadd.f32 0.0, %v3081
    %v3083 = vpop.f32.mrf.mxu0
    %v3084 = vpop.f32.mrf.mxu0
    %v3085 = vadd.f32 0.0, %v3084
    %v3086 = vpop.f32.mrf.mxu0
    %3087 = vdwg.mxu0
    %v3088 = vadd.f32 %v2964, %v3074
    %v3089 = vadd.f32 %v2965, %v3077
    %v3090 = vadd.f32 %v2966, %v3082
    %v3091 = vadd.f32 %v2967, %v3085
    %3094 = vrot.lane.b32.xlu0 %v3035, 64
    %v3095 = vpop.permute.xlu0 %3094
    %3096 = vrot.lane.b32.xlu0 %v3037, 64
    %v3097 = vpop.permute.xlu0 %3096
    %3100 = vmatprep.subr.bf16.mxu0 0
    %3101 = vmatpush1.bf16.msra.mxu0 0
    %3102 = vmatprep.subr.bf16.mxu0 0
    %3103 = vmatpush1.bf16.msra.mxu0 0
    %3104 = vmatprep.subr.bf16.mxu0 0
    %3105 = vmatpush1.bf16.msra.mxu0 0
    %3106 = vmatprep.subr.bf16.mxu0 0
    %3107 = vmatpush1.bf16.msra.mxu0 0
    %3108 = vmatprep.subr.bf16.mxu0 0
    %3109 = vmatpush1.bf16.msra.mxu0 0
    %3110 = vmatprep.subr.bf16.mxu0 0
    %3111 = vmatpush1.bf16.msra.mxu0 0
    %3112 = vmatprep.subr.bf16.mxu0 0
    %3113 = vmatpush1.bf16.msra.mxu0 %v3097
    %3114 = vmatprep.subr.bf16.mxu0 0
    %3115 = vmatpush1.bf16.msra.mxu0 %v3095
    %3116 = vmatprep.subr.bf16.mxu0 0
    %3117 = vmatpush2.bf16.msra.mxu0 0
    %3118 = vmatprep.subr.bf16.mxu0 0
    %3119 = vmatpush2.bf16.msra.mxu0 0
    %3120 = vmatprep.subr.bf16.mxu0 0
    %3121 = vmatpush2.bf16.msra.mxu0 0
    %3122 = vmatprep.subr.bf16.mxu0 0
    %3123 = vmatpush2.bf16.msra.mxu0 0
    %3124 = vmatprep.subr.bf16.mxu0 0
    %3125 = vmatpush2.bf16.msra.mxu0 0
    %3126 = vmatprep.subr.bf16.mxu0 0
    %3127 = vmatpush2.bf16.msra.mxu0 0
    %3128 = vmatprep.subr.bf16.mxu0 0
    %3129 = vmatpush2.bf16.msra.mxu0 0
    %3130 = vmatprep.subr.bf16.mxu0 0
    %3131 = vmatpush2.bf16.msra.mxu0 0
    %3132 = vmatprep.mubr.bf16.mxu0 0
    %3133 = vmatmul.mubr.bf16.gmra.mxu0 %v87
    %v3134 = vpop.f32.mrf.mxu0
    %v3135 = vadd.f32 0.0, %v3134
    %v3136 = vpop.f32.mrf.mxu0
    %v3137 = vpop.f32.mrf.mxu0
    %v3138 = vadd.f32 0.0, %v3137
    %v3139 = vpop.f32.mrf.mxu0
    %3140 = vmatprep.mubr.bf16.mxu0 0
    %3141 = vmatmul.mubr.bf16.gmra.mxu0 %v90
    %v3142 = vpop.f32.mrf.mxu0
    %v3143 = vadd.f32 0.0, %v3142
    %v3144 = vpop.f32.mrf.mxu0
    %v3145 = vpop.f32.mrf.mxu0
    %v3146 = vadd.f32 0.0, %v3145
    %v3147 = vpop.f32.mrf.mxu0
    %3148 = vdwg.mxu0
    %v3149 = vadd.f32 %v3088, %v3135
    %v3150 = vadd.f32 %v3089, %v3138
    %v3151 = vadd.f32 %v3090, %v3143
    %v3152 = vadd.f32 %v3091, %v3146
    %3153 = vmatprep.subr.bf16.mxu0 0
    %3154 = vmatpush1.bf16.msra.mxu0 0
    %3155 = vmatprep.subr.bf16.mxu0 0
    %3156 = vmatpush1.bf16.msra.mxu0 0
    %3157 = vmatprep.subr.bf16.mxu0 0
    %3158 = vmatpush1.bf16.msra.mxu0 0
    %3159 = vmatprep.subr.bf16.mxu0 0
    %3160 = vmatpush1.bf16.msra.mxu0 0
    %3161 = vmatprep.subr.bf16.mxu0 0
    %3162 = vmatpush1.bf16.msra.mxu0 0
    %3163 = vmatprep.subr.bf16.mxu0 0
    %3164 = vmatpush1.bf16.msra.mxu0 0
    %3165 = vmatprep.subr.bf16.mxu0 0
    %3166 = vmatpush1.bf16.msra.mxu0 %v3038
    %3167 = vmatprep.subr.bf16.mxu0 0
    %3168 = vmatpush1.bf16.msra.mxu0 %v3036
    %3169 = vmatprep.subr.bf16.mxu0 0
    %3170 = vmatpush2.bf16.msra.mxu0 0
    %3171 = vmatprep.subr.bf16.mxu0 0
    %3172 = vmatpush2.bf16.msra.mxu0 0
    %3173 = vmatprep.subr.bf16.mxu0 0
    %3174 = vmatpush2.bf16.msra.mxu0 0
    %3175 = vmatprep.subr.bf16.mxu0 0
    %3176 = vmatpush2.bf16.msra.mxu0 0
    %3177 = vmatprep.subr.bf16.mxu0 0
    %3178 = vmatpush2.bf16.msra.mxu0 0
    %3179 = vmatprep.subr.bf16.mxu0 0
    %3180 = vmatpush2.bf16.msra.mxu0 0
    %3181 = vmatprep.subr.bf16.mxu0 0
    %3182 = vmatpush2.bf16.msra.mxu0 0
    %3183 = vmatprep.subr.bf16.mxu0 0
    %3184 = vmatpush2.bf16.msra.mxu0 0
    %3185 = vmatprep.mubr.bf16.mxu0 0
    %3186 = vmatmul.mubr.bf16.gmra.mxu0 %v93
    %v3187 = vpop.f32.mrf.mxu0
    %v3188 = vadd.f32 0.0, %v3187
    %v3189 = vpop.f32.mrf.mxu0
    %v3190 = vpop.f32.mrf.mxu0
    %v3191 = vadd.f32 0.0, %v3190
    %v3192 = vpop.f32.mrf.mxu0
    %3193 = vmatprep.mubr.bf16.mxu0 0
    %3194 = vmatmul.mubr.bf16.gmra.mxu0 %v96
    %v3195 = vpop.f32.mrf.mxu0
    %v3196 = vadd.f32 0.0, %v3195
    %v3197 = vpop.f32.mrf.mxu0
    %v3198 = vpop.f32.mrf.mxu0
    %v3199 = vadd.f32 0.0, %v3198
    %v3200 = vpop.f32.mrf.mxu0
    %3201 = vdwg.mxu0
    %v3202 = vadd.f32 %v3149, %v3188
    %v3203 = vadd.f32 %v3150, %v3191
    %v3204 = vadd.f32 %v3151, %v3196
    %v3205 = vadd.f32 %v3152, %v3199
    %v3206 = vxor.u32 %v3202, 2147483648
    %v3207 = vxor.u32 %v3203, 2147483648
    %v3208 = vxor.u32 %v3204, 2147483648
    %v3209 = vxor.u32 %v3205, 2147483648
    %v3210 = vmul.f32 %v3206, 1.442695
    %v3211 = vpow.pop %v3210
    %v3212 = vmul.f32 %v3207, 1.442695
    %v3213 = vpow.pop %v3212
    %v3214 = vmul.f32 %v3208, 1.442695
    %v3215 = vpow.pop %v3214
    %v3216 = vmul.f32 %v3209, 1.442695
    %v3217 = vpow.pop %v3216
    %v3218 = vadd.f32 %v3211, 1.0
    %v3219 = vadd.f32 %v3213, 1.0
    %v3220 = vadd.f32 %v3215, 1.0
    %v3221 = vadd.f32 %v3217, 1.0
    %v3222 = vrcp.pop %v3218
    %v3223 = vmul.f32 1.0, %v3222
    %v3224 = vrcp.pop %v3219
    %v3225 = vmul.f32 1.0, %v3224
    %v3226 = vrcp.pop %v3220
    %v3227 = vmul.f32 1.0, %v3226
    %v3228 = vrcp.pop %v3221
    %v3229 = vmul.f32 1.0, %v3228
    %3234 = vrot.lane.b32.xlu0 %v2960, 96
    %v3235 = vpop.permute.xlu0 %3234
    %3236 = vrot.lane.b32.xlu0 %v2961, 96
    %v3237 = vpop.permute.xlu0 %3236
    %3238 = vrot.lane.b32.xlu0 %v2962, 96
    %v3239 = vpop.permute.xlu0 %3238
    %3240 = vrot.lane.b32.xlu0 %v2963, 96
    %v3241 = vpop.permute.xlu0 %3240
    %v3246 = vmul.f32 %v3223, %v3235
    %v3247 = vmul.f32 %v3225, %v3237
    %v3248 = vmul.f32 %v3227, %v3239
    %v3249 = vmul.f32 %v3229, %v3241
    %v3250 = vpack.c.bf16 %v3247, %v3246
    %v3251 = vpack.c.bf16 %v3249, %v3248
    %v3253 = vsel %vm79, %v3250, 0
    %v3256 = vsel %vm79, %v3251, 0
    %3258 = vmatprep.subr.bf16.mxu0 0
    %3259 = vmatpush1.bf16.msra.mxu0 0
    %3260 = vmatprep.subr.bf16.mxu0 0
    %3261 = vmatpush1.bf16.msra.mxu0 0
    %3262 = vmatprep.subr.bf16.mxu0 0
    %3263 = vmatpush1.bf16.msra.mxu0 0
    %3264 = vmatprep.subr.bf16.mxu0 0
    %3265 = vmatpush1.bf16.msra.mxu0 0
    %3266 = vmatprep.subr.bf16.mxu0 0
    %3267 = vmatpush1.bf16.msra.mxu0 0
    %3268 = vmatprep.subr.bf16.mxu0 0
    %3269 = vmatpush1.bf16.msra.mxu0 0
    %3270 = vmatprep.subr.bf16.mxu0 0
    %3271 = vmatpush1.bf16.msra.mxu0 %v1443
    %3272 = vmatprep.subr.bf16.mxu0 0
    %3273 = vmatpush1.bf16.msra.mxu0 %v1442
    %3274 = vmatprep.subr.bf16.mxu0 0
    %3275 = vmatpush2.bf16.msra.mxu0 0
    %3276 = vmatprep.subr.bf16.mxu0 0
    %3277 = vmatpush2.bf16.msra.mxu0 0
    %3278 = vmatprep.subr.bf16.mxu0 0
    %3279 = vmatpush2.bf16.msra.mxu0 0
    %3280 = vmatprep.subr.bf16.mxu0 0
    %3281 = vmatpush2.bf16.msra.mxu0 0
    %3282 = vmatprep.subr.bf16.mxu0 0
    %3283 = vmatpush2.bf16.msra.mxu0 0
    %3284 = vmatprep.subr.bf16.mxu0 0
    %3285 = vmatpush2.bf16.msra.mxu0 0
    %3286 = vmatprep.subr.bf16.mxu0 0
    %3287 = vmatpush2.bf16.msra.mxu0 0
    %3288 = vmatprep.subr.bf16.mxu0 0
    %3289 = vmatpush2.bf16.msra.mxu0 0
    %3290 = vmatprep.mubr.bf16.mxu0 0
    %3291 = vmatmul.mubr.bf16.gmra.mxu0 %v3253
    %v3292 = vpop.f32.mrf.mxu0
    %v3293 = vadd.f32 0.0, %v3292
    %v3294 = vpop.f32.mrf.mxu0
    %v3295 = vpop.f32.mrf.mxu0
    %v3296 = vadd.f32 0.0, %v3295
    %v3297 = vpop.f32.mrf.mxu0
    %3298 = vmatprep.mubr.bf16.mxu0 0
    %3299 = vmatmul.mubr.bf16.gmra.mxu0 %v3256
    %v3300 = vpop.f32.mrf.mxu0
    %v3301 = vadd.f32 0.0, %v3300
    %v3302 = vpop.f32.mrf.mxu0
    %v3303 = vpop.f32.mrf.mxu0
    %v3304 = vadd.f32 0.0, %v3303
    %v3305 = vpop.f32.mrf.mxu0
    %3306 = vdwg.mxu0
    %v3307 = vpack.c.bf16 %v3296, %v3293
    %v3308 = vpack.c.bf16 %v3304, %v3301
    %3309 = vmatprep.subr.bf16.mxu0 0
    %3310 = vmatpush1.bf16.msra.mxu0 0
    %3311 = vmatprep.subr.bf16.mxu0 0
    %3312 = vmatpush1.bf16.msra.mxu0 0
    %3313 = vmatprep.subr.bf16.mxu0 0
    %3314 = vmatpush1.bf16.msra.mxu0 0
    %3315 = vmatprep.subr.bf16.mxu0 0
    %3316 = vmatpush1.bf16.msra.mxu0 0
    %3317 = vmatprep.subr.bf16.mxu0 0
    %3318 = vmatpush1.bf16.msra.mxu0 0
    %3319 = vmatprep.subr.bf16.mxu0 0
    %3320 = vmatpush1.bf16.msra.mxu0 0
    %3321 = vmatprep.subr.bf16.mxu0 0
    %3322 = vmatpush1.bf16.msra.mxu0 %v3308
    %3323 = vmatprep.subr.bf16.mxu0 0
    %3324 = vmatpush1.bf16.msra.mxu0 %v3307
    %3325 = vmatprep.subr.bf16.mxu0 0
    %3326 = vmatpush2.bf16.msra.mxu0 0
    %3327 = vmatprep.subr.bf16.mxu0 0
    %3328 = vmatpush2.bf16.msra.mxu0 0
    %3329 = vmatprep.subr.bf16.mxu0 0
    %3330 = vmatpush2.bf16.msra.mxu0 0
    %3331 = vmatprep.subr.bf16.mxu0 0
    %3332 = vmatpush2.bf16.msra.mxu0 0
    %3333 = vmatprep.subr.bf16.mxu0 0
    %3334 = vmatpush2.bf16.msra.mxu0 0
    %3335 = vmatprep.subr.bf16.mxu0 0
    %3336 = vmatpush2.bf16.msra.mxu0 0
    %3337 = vmatprep.subr.bf16.mxu0 0
    %3338 = vmatpush2.bf16.msra.mxu0 0
    %3339 = vmatprep.subr.bf16.mxu0 0
    %3340 = vmatpush2.bf16.msra.mxu0 0
    %3341 = vmatprep.mubr.bf16.mxu0 0
    %3342 = vmatmul.mubr.bf16.gmra.mxu0 %v81
    %v3343 = vpop.f32.mrf.mxu0
    %v3344 = vadd.f32 0.0, %v3343
    %v3345 = vpop.f32.mrf.mxu0
    %v3346 = vpop.f32.mrf.mxu0
    %v3347 = vadd.f32 0.0, %v3346
    %v3348 = vpop.f32.mrf.mxu0
    %3349 = vmatprep.mubr.bf16.mxu0 0
    %3350 = vmatmul.mubr.bf16.gmra.mxu0 %v84
    %v3351 = vpop.f32.mrf.mxu0
    %v3352 = vadd.f32 0.0, %v3351
    %v3353 = vpop.f32.mrf.mxu0
    %v3354 = vpop.f32.mrf.mxu0
    %v3355 = vadd.f32 0.0, %v3354
    %v3356 = vpop.f32.mrf.mxu0
    %3357 = vdwg.mxu0
    %3362 = vrot.lane.b32.xlu0 %v3344, 64
    %v3363 = vpop.permute.xlu0 %3362
    %3364 = vrot.lane.b32.xlu0 %v3347, 64
    %v3365 = vpop.permute.xlu0 %3364
    %3366 = vrot.lane.b32.xlu0 %v3352, 64
    %v3367 = vpop.permute.xlu0 %3366
    %3368 = vrot.lane.b32.xlu0 %v3355, 64
    %v3369 = vpop.permute.xlu0 %3368
    %v3374 = vadd.f32 %v2964, %v3363
    %v3375 = vadd.f32 %v2965, %v3365
    %v3376 = vadd.f32 %v2966, %v3367
    %v3377 = vadd.f32 %v2967, %v3369
    %3380 = vrot.lane.b32.xlu0 %v3307, 96
    %v3381 = vpop.permute.xlu0 %3380
    %3382 = vrot.lane.b32.xlu0 %v3308, 96
    %v3383 = vpop.permute.xlu0 %3382
    %3386 = vmatprep.subr.bf16.mxu0 0
    %3387 = vmatpush1.bf16.msra.mxu0 0
    %3388 = vmatprep.subr.bf16.mxu0 0
    %3389 = vmatpush1.bf16.msra.mxu0 0
    %3390 = vmatprep.subr.bf16.mxu0 0
    %3391 = vmatpush1.bf16.msra.mxu0 0
    %3392 = vmatprep.subr.bf16.mxu0 0
    %3393 = vmatpush1.bf16.msra.mxu0 0
    %3394 = vmatprep.subr.bf16.mxu0 0
    %3395 = vmatpush1.bf16.msra.mxu0 0
    %3396 = vmatprep.subr.bf16.mxu0 0
    %3397 = vmatpush1.bf16.msra.mxu0 0
    %3398 = vmatprep.subr.bf16.mxu0 0
    %3399 = vmatpush1.bf16.msra.mxu0 %v3383
    %3400 = vmatprep.subr.bf16.mxu0 0
    %3401 = vmatpush1.bf16.msra.mxu0 %v3381
    %3402 = vmatprep.subr.bf16.mxu0 0
    %3403 = vmatpush2.bf16.msra.mxu0 0
    %3404 = vmatprep.subr.bf16.mxu0 0
    %3405 = vmatpush2.bf16.msra.mxu0 0
    %3406 = vmatprep.subr.bf16.mxu0 0
    %3407 = vmatpush2.bf16.msra.mxu0 0
    %3408 = vmatprep.subr.bf16.mxu0 0
    %3409 = vmatpush2.bf16.msra.mxu0 0
    %3410 = vmatprep.subr.bf16.mxu0 0
    %3411 = vmatpush2.bf16.msra.mxu0 0
    %3412 = vmatprep.subr.bf16.mxu0 0
    %3413 = vmatpush2.bf16.msra.mxu0 0
    %3414 = vmatprep.subr.bf16.mxu0 0
    %3415 = vmatpush2.bf16.msra.mxu0 0
    %3416 = vmatprep.subr.bf16.mxu0 0
    %3417 = vmatpush2.bf16.msra.mxu0 0
    %3418 = vmatprep.mubr.bf16.mxu0 0
    %3419 = vmatmul.mubr.bf16.gmra.mxu0 %v87
    %v3420 = vpop.f32.mrf.mxu0
    %v3421 = vadd.f32 0.0, %v3420
    %v3422 = vpop.f32.mrf.mxu0
    %v3423 = vpop.f32.mrf.mxu0
    %v3424 = vadd.f32 0.0, %v3423
    %v3425 = vpop.f32.mrf.mxu0
    %3426 = vmatprep.mubr.bf16.mxu0 0
    %3427 = vmatmul.mubr.bf16.gmra.mxu0 %v90
    %v3428 = vpop.f32.mrf.mxu0
    %v3429 = vadd.f32 0.0, %v3428
    %v3430 = vpop.f32.mrf.mxu0
    %v3431 = vpop.f32.mrf.mxu0
    %v3432 = vadd.f32 0.0, %v3431
    %v3433 = vpop.f32.mrf.mxu0
    %3434 = vdwg.mxu0
    %3439 = vrot.lane.b32.xlu0 %v3421, 64
    %v3440 = vpop.permute.xlu0 %3439
    %3441 = vrot.lane.b32.xlu0 %v3424, 64
    %v3442 = vpop.permute.xlu0 %3441
    %3443 = vrot.lane.b32.xlu0 %v3429, 64
    %v3444 = vpop.permute.xlu0 %3443
    %3445 = vrot.lane.b32.xlu0 %v3432, 64
    %v3446 = vpop.permute.xlu0 %3445
    %v3451 = vadd.f32 %v3374, %v3440
    %v3452 = vadd.f32 %v3375, %v3442
    %v3453 = vadd.f32 %v3376, %v3444
    %v3454 = vadd.f32 %v3377, %v3446
    %3455 = vrot.lane.b32.xlu0 %v3307, 64
    %v3456 = vpop.permute.xlu0 %3455
    %3457 = vrot.lane.b32.xlu0 %v3308, 64
    %v3458 = vpop.permute.xlu0 %3457
    %3461 = vmatprep.subr.bf16.mxu0 0
    %3462 = vmatpush1.bf16.msra.mxu0 0
    %3463 = vmatprep.subr.bf16.mxu0 0
    %3464 = vmatpush1.bf16.msra.mxu0 0
    %3465 = vmatprep.subr.bf16.mxu0 0
    %3466 = vmatpush1.bf16.msra.mxu0 0
    %3467 = vmatprep.subr.bf16.mxu0 0
    %3468 = vmatpush1.bf16.msra.mxu0 0
    %3469 = vmatprep.subr.bf16.mxu0 0
    %3470 = vmatpush1.bf16.msra.mxu0 0
    %3471 = vmatprep.subr.bf16.mxu0 0
    %3472 = vmatpush1.bf16.msra.mxu0 0
    %3473 = vmatprep.subr.bf16.mxu0 0
    %3474 = vmatpush1.bf16.msra.mxu0 %v3458
    %3475 = vmatprep.subr.bf16.mxu0 0
    %3476 = vmatpush1.bf16.msra.mxu0 %v3456
    %3477 = vmatprep.subr.bf16.mxu0 0
    %3478 = vmatpush2.bf16.msra.mxu0 0
    %3479 = vmatprep.subr.bf16.mxu0 0
    %3480 = vmatpush2.bf16.msra.mxu0 0
    %3481 = vmatprep.subr.bf16.mxu0 0
    %3482 = vmatpush2.bf16.msra.mxu0 0
    %3483 = vmatprep.subr.bf16.mxu0 0
    %3484 = vmatpush2.bf16.msra.mxu0 0
    %3485 = vmatprep.subr.bf16.mxu0 0
    %3486 = vmatpush2.bf16.msra.mxu0 0
    %3487 = vmatprep.subr.bf16.mxu0 0
    %3488 = vmatpush2.bf16.msra.mxu0 0
    %3489 = vmatprep.subr.bf16.mxu0 0
    %3490 = vmatpush2.bf16.msra.mxu0 0
    %3491 = vmatprep.subr.bf16.mxu0 0
    %3492 = vmatpush2.bf16.msra.mxu0 0
    %3493 = vmatprep.mubr.bf16.mxu0 0
    %3494 = vmatmul.mubr.bf16.gmra.mxu0 %v93
    %v3495 = vpop.f32.mrf.mxu0
    %v3496 = vadd.f32 0.0, %v3495
    %v3497 = vpop.f32.mrf.mxu0
    %v3498 = vpop.f32.mrf.mxu0
    %v3499 = vadd.f32 0.0, %v3498
    %v3500 = vpop.f32.mrf.mxu0
    %3501 = vmatprep.mubr.bf16.mxu0 0
    %3502 = vmatmul.mubr.bf16.gmra.mxu0 %v96
    %v3503 = vpop.f32.mrf.mxu0
    %v3504 = vadd.f32 0.0, %v3503
    %v3505 = vpop.f32.mrf.mxu0
    %v3506 = vpop.f32.mrf.mxu0
    %v3507 = vadd.f32 0.0, %v3506
    %v3508 = vpop.f32.mrf.mxu0
    %3509 = vdwg.mxu0
    %3514 = vrot.lane.b32.xlu0 %v3496, 64
    %v3515 = vpop.permute.xlu0 %3514
    %3516 = vrot.lane.b32.xlu0 %v3499, 64
    %v3517 = vpop.permute.xlu0 %3516
    %3518 = vrot.lane.b32.xlu0 %v3504, 64
    %v3519 = vpop.permute.xlu0 %3518
    %3520 = vrot.lane.b32.xlu0 %v3507, 64
    %v3521 = vpop.permute.xlu0 %3520
    %v3526 = vadd.f32 %v3451, %v3515
    %v3527 = vadd.f32 %v3452, %v3517
    %v3528 = vadd.f32 %v3453, %v3519
    %v3529 = vadd.f32 %v3454, %v3521
    %v3530 = vtanh.pop %v3526
    %v3531 = vtanh.pop %v3527
    %v3532 = vtanh.pop %v3528
    %v3533 = vtanh.pop %v3529
    %3538 = vrot.lane.b32.xlu0 %v3530, 96
    %v3539 = vpop.permute.xlu0 %3538
    %3540 = vrot.lane.b32.xlu0 %v3531, 96
    %v3541 = vpop.permute.xlu0 %3540
    %3542 = vrot.lane.b32.xlu0 %v3532, 96
    %v3543 = vpop.permute.xlu0 %3542
    %3544 = vrot.lane.b32.xlu0 %v3533, 96
    %v3545 = vpop.permute.xlu0 %3544
    %v3550 = vmul.f32 %v3223, %v3539
    %v3551 = vmul.f32 %v3225, %v3541
    %v3552 = vmul.f32 %v3227, %v3543
    %v3553 = vmul.f32 %v3229, %v3545
    %v3554 = vsub.f32 1.0, %v3223
    %v3555 = vsub.f32 1.0, %v3225
    %v3556 = vsub.f32 1.0, %v3227
    %v3557 = vsub.f32 1.0, %v3229
    %v3558 = vmul.f32 %v3554, %v2960
    %v3559 = vmul.f32 %v3555, %v2961
    %v3560 = vmul.f32 %v3556, %v2962
    %v3561 = vmul.f32 %v3557, %v2963
    %v3562 = vadd.f32 %v3550, %v3558
    %v3563 = vadd.f32 %v3551, %v3559
    %v3564 = vadd.f32 %v3552, %v3560
    %v3565 = vadd.f32 %v3553, %v3561
    %v3566 = vld [vmem:[%s601] sm:$0xff]
    %v3567 = vld [vmem:[%s601 + $0x8] sm:$0xff]
    %v3568 = vld [vmem:[%s601 + $0x10] sm:$0xff]
    %v3569 = vld [vmem:[%s601 + $0x18] sm:$0xff]
    %v3570 = vpack.c.bf16 %v3563, %v3562
    %v3571 = vpack.c.bf16 %v3565, %v3564
    %3574 = vrot.lane.b32.xlu0 %v3570, 96
    %v3575 = vpop.permute.xlu0 %3574
    %3576 = vrot.lane.b32.xlu0 %v3571, 96
    %v3577 = vpop.permute.xlu0 %3576
    %v3579 = vsel %vm79, %v3575, 0
    %v3582 = vsel %vm79, %v3577, 0
    %3584 = vmatprep.subr.bf16.mxu0 0
    %3585 = vmatpush1.bf16.msra.mxu0 0
    %3586 = vmatprep.subr.bf16.mxu0 0
    %3587 = vmatpush1.bf16.msra.mxu0 0
    %3588 = vmatprep.subr.bf16.mxu0 0
    %3589 = vmatpush1.bf16.msra.mxu0 0
    %3590 = vmatprep.subr.bf16.mxu0 0
    %3591 = vmatpush1.bf16.msra.mxu0 0
    %3592 = vmatprep.subr.bf16.mxu0 0
    %3593 = vmatpush1.bf16.msra.mxu0 0
    %3594 = vmatprep.subr.bf16.mxu0 0
    %3595 = vmatpush1.bf16.msra.mxu0 0
    %3596 = vmatprep.subr.bf16.mxu0 %v1172
    %3597 = vmatpush1.bf16.msra.mxu0 %v1171
    %3598 = vmatprep.subr.bf16.mxu0 %v1170
    %3599 = vmatpush1.bf16.msra.mxu0 %v1169
    %3600 = vmatprep.subr.bf16.mxu0 0
    %3601 = vmatpush2.bf16.msra.mxu0 0
    %3602 = vmatprep.subr.bf16.mxu0 0
    %3603 = vmatpush2.bf16.msra.mxu0 0
    %3604 = vmatprep.subr.bf16.mxu0 0
    %3605 = vmatpush2.bf16.msra.mxu0 0
    %3606 = vmatprep.subr.bf16.mxu0 0
    %3607 = vmatpush2.bf16.msra.mxu0 0
    %3608 = vmatprep.subr.bf16.mxu0 0
    %3609 = vmatpush2.bf16.msra.mxu0 0
    %3610 = vmatprep.subr.bf16.mxu0 0
    %3611 = vmatpush2.bf16.msra.mxu0 0
    %3612 = vmatprep.subr.bf16.mxu0 0
    %3613 = vmatpush2.bf16.msra.mxu0 0
    %3614 = vmatprep.subr.bf16.mxu0 0
    %3615 = vmatpush2.bf16.msra.mxu0 0
    %3616 = vmatprep.mubr.bf16.mxu0 0
    %3617 = vmatmul.mubr.bf16.gmra.mxu0 %v3579
    %v3618 = vpop.f32.mrf.mxu0
    %v3619 = vadd.f32 0.0, %v3618
    %v3620 = vpop.f32.mrf.mxu0
    %v3621 = vadd.f32 0.0, %v3620
    %v3622 = vpop.f32.mrf.mxu0
    %v3623 = vadd.f32 0.0, %v3622
    %v3624 = vpop.f32.mrf.mxu0
    %v3625 = vadd.f32 0.0, %v3624
    %3626 = vmatprep.mubr.bf16.mxu0 0
    %3627 = vmatmul.mubr.bf16.gmra.mxu0 %v3582
    %v3628 = vpop.f32.mrf.mxu0
    %v3629 = vadd.f32 0.0, %v3628
    %v3630 = vpop.f32.mrf.mxu0
    %v3631 = vadd.f32 0.0, %v3630
    %v3632 = vpop.f32.mrf.mxu0
    %v3633 = vadd.f32 0.0, %v3632
    %v3634 = vpop.f32.mrf.mxu0
    %v3635 = vadd.f32 0.0, %v3634
    %3636 = vdwg.mxu0
    %v3637 = vpack.c.bf16 %v3623, %v3619
    %v3638 = vpack.c.bf16 %v3625, %v3621
    %v3639 = vpack.c.bf16 %v3633, %v3629
    %v3640 = vpack.c.bf16 %v3635, %v3631
    %3641 = vmatprep.subr.bf16.mxu0 0
    %3642 = vmatpush1.bf16.msra.mxu0 0
    %3643 = vmatprep.subr.bf16.mxu0 0
    %3644 = vmatpush1.bf16.msra.mxu0 0
    %3645 = vmatprep.subr.bf16.mxu0 0
    %3646 = vmatpush1.bf16.msra.mxu0 0
    %3647 = vmatprep.subr.bf16.mxu0 0
    %3648 = vmatpush1.bf16.msra.mxu0 0
    %3649 = vmatprep.subr.bf16.mxu0 0
    %3650 = vmatpush1.bf16.msra.mxu0 0
    %3651 = vmatprep.subr.bf16.mxu0 0
    %3652 = vmatpush1.bf16.msra.mxu0 0
    %3653 = vmatprep.subr.bf16.mxu0 0
    %3654 = vmatpush1.bf16.msra.mxu0 %v3639
    %3655 = vmatprep.subr.bf16.mxu0 0
    %3656 = vmatpush1.bf16.msra.mxu0 %v3637
    %3657 = vmatprep.subr.bf16.mxu0 0
    %3658 = vmatpush2.bf16.msra.mxu0 0
    %3659 = vmatprep.subr.bf16.mxu0 0
    %3660 = vmatpush2.bf16.msra.mxu0 0
    %3661 = vmatprep.subr.bf16.mxu0 0
    %3662 = vmatpush2.bf16.msra.mxu0 0
    %3663 = vmatprep.subr.bf16.mxu0 0
    %3664 = vmatpush2.bf16.msra.mxu0 0
    %3665 = vmatprep.subr.bf16.mxu0 0
    %3666 = vmatpush2.bf16.msra.mxu0 0
    %3667 = vmatprep.subr.bf16.mxu0 0
    %3668 = vmatpush2.bf16.msra.mxu0 0
    %3669 = vmatprep.subr.bf16.mxu0 0
    %3670 = vmatpush2.bf16.msra.mxu0 0
    %3671 = vmatprep.subr.bf16.mxu0 0
    %3672 = vmatpush2.bf16.msra.mxu0 0
    %3673 = vmatprep.mubr.bf16.mxu0 0
    %3674 = vmatmul.mubr.bf16.gmra.mxu0 %v81
    %v3675 = vpop.f32.mrf.mxu0
    %v3676 = vadd.f32 0.0, %v3675
    %v3677 = vpop.f32.mrf.mxu0
    %v3678 = vpop.f32.mrf.mxu0
    %v3679 = vadd.f32 0.0, %v3678
    %v3680 = vpop.f32.mrf.mxu0
    %3681 = vmatprep.mubr.bf16.mxu0 0
    %3682 = vmatmul.mubr.bf16.gmra.mxu0 %v84
    %v3683 = vpop.f32.mrf.mxu0
    %v3684 = vadd.f32 0.0, %v3683
    %v3685 = vpop.f32.mrf.mxu0
    %v3686 = vpop.f32.mrf.mxu0
    %v3687 = vadd.f32 0.0, %v3686
    %v3688 = vpop.f32.mrf.mxu0
    %3689 = vdwg.mxu0
    %v3690 = vadd.f32 %v3566, %v3676
    %v3691 = vadd.f32 %v3567, %v3679
    %v3692 = vadd.f32 %v3568, %v3684
    %v3693 = vadd.f32 %v3569, %v3687
    %3696 = vrot.lane.b32.xlu0 %v3637, 64
    %v3697 = vpop.permute.xlu0 %3696
    %3698 = vrot.lane.b32.xlu0 %v3639, 64
    %v3699 = vpop.permute.xlu0 %3698
    %3702 = vmatprep.subr.bf16.mxu0 0
    %3703 = vmatpush1.bf16.msra.mxu0 0
    %3704 = vmatprep.subr.bf16.mxu0 0
    %3705 = vmatpush1.bf16.msra.mxu0 0
    %3706 = vmatprep.subr.bf16.mxu0 0
    %3707 = vmatpush1.bf16.msra.mxu0 0
    %3708 = vmatprep.subr.bf16.mxu0 0
    %3709 = vmatpush1.bf16.msra.mxu0 0
    %3710 = vmatprep.subr.bf16.mxu0 0
    %3711 = vmatpush1.bf16.msra.mxu0 0
    %3712 = vmatprep.subr.bf16.mxu0 0
    %3713 = vmatpush1.bf16.msra.mxu0 0
    %3714 = vmatprep.subr.bf16.mxu0 0
    %3715 = vmatpush1.bf16.msra.mxu0 %v3699
    %3716 = vmatprep.subr.bf16.mxu0 0
    %3717 = vmatpush1.bf16.msra.mxu0 %v3697
    %3718 = vmatprep.subr.bf16.mxu0 0
    %3719 = vmatpush2.bf16.msra.mxu0 0
    %3720 = vmatprep.subr.bf16.mxu0 0
    %3721 = vmatpush2.bf16.msra.mxu0 0
    %3722 = vmatprep.subr.bf16.mxu0 0
    %3723 = vmatpush2.bf16.msra.mxu0 0
    %3724 = vmatprep.subr.bf16.mxu0 0
    %3725 = vmatpush2.bf16.msra.mxu0 0
    %3726 = vmatprep.subr.bf16.mxu0 0
    %3727 = vmatpush2.bf16.msra.mxu0 0
    %3728 = vmatprep.subr.bf16.mxu0 0
    %3729 = vmatpush2.bf16.msra.mxu0 0
    %3730 = vmatprep.subr.bf16.mxu0 0
    %3731 = vmatpush2.bf16.msra.mxu0 0
    %3732 = vmatprep.subr.bf16.mxu0 0
    %3733 = vmatpush2.bf16.msra.mxu0 0
    %3734 = vmatprep.mubr.bf16.mxu0 0
    %3735 = vmatmul.mubr.bf16.gmra.mxu0 %v87
    %v3736 = vpop.f32.mrf.mxu0
    %v3737 = vadd.f32 0.0, %v3736
    %v3738 = vpop.f32.mrf.mxu0
    %v3739 = vpop.f32.mrf.mxu0
    %v3740 = vadd.f32 0.0, %v3739
    %v3741 = vpop.f32.mrf.mxu0
    %3742 = vmatprep.mubr.bf16.mxu0 0
    %3743 = vmatmul.mubr.bf16.gmra.mxu0 %v90
    %v3744 = vpop.f32.mrf.mxu0
    %v3745 = vadd.f32 0.0, %v3744
    %v3746 = vpop.f32.mrf.mxu0
    %v3747 = vpop.f32.mrf.mxu0
    %v3748 = vadd.f32 0.0, %v3747
    %v3749 = vpop.f32.mrf.mxu0
    %3750 = vdwg.mxu0
    %v3751 = vadd.f32 %v3690, %v3737
    %v3752 = vadd.f32 %v3691, %v3740
    %v3753 = vadd.f32 %v3692, %v3745
    %v3754 = vadd.f32 %v3693, %v3748
    %3755 = vmatprep.subr.bf16.mxu0 0
    %3756 = vmatpush1.bf16.msra.mxu0 0
    %3757 = vmatprep.subr.bf16.mxu0 0
    %3758 = vmatpush1.bf16.msra.mxu0 0
    %3759 = vmatprep.subr.bf16.mxu0 0
    %3760 = vmatpush1.bf16.msra.mxu0 0
    %3761 = vmatprep.subr.bf16.mxu0 0
    %3762 = vmatpush1.bf16.msra.mxu0 0
    %3763 = vmatprep.subr.bf16.mxu0 0
    %3764 = vmatpush1.bf16.msra.mxu0 0
    %3765 = vmatprep.subr.bf16.mxu0 0
    %3766 = vmatpush1.bf16.msra.mxu0 0
    %3767 = vmatprep.subr.bf16.mxu0 0
    %3768 = vmatpush1.bf16.msra.mxu0 %v3640
    %3769 = vmatprep.subr.bf16.mxu0 0
    %3770 = vmatpush1.bf16.msra.mxu0 %v3638
    %3771 = vmatprep.subr.bf16.mxu0 0
    %3772 = vmatpush2.bf16.msra.mxu0 0
    %3773 = vmatprep.subr.bf16.mxu0 0
    %3774 = vmatpush2.bf16.msra.mxu0 0
    %3775 = vmatprep.subr.bf16.mxu0 0
    %3776 = vmatpush2.bf16.msra.mxu0 0
    %3777 = vmatprep.subr.bf16.mxu0 0
    %3778 = vmatpush2.bf16.msra.mxu0 0
    %3779 = vmatprep.subr.bf16.mxu0 0
    %3780 = vmatpush2.bf16.msra.mxu0 0
    %3781 = vmatprep.subr.bf16.mxu0 0
    %3782 = vmatpush2.bf16.msra.mxu0 0
    %3783 = vmatprep.subr.bf16.mxu0 0
    %3784 = vmatpush2.bf16.msra.mxu0 0
    %3785 = vmatprep.subr.bf16.mxu0 0
    %3786 = vmatpush2.bf16.msra.mxu0 0
    %3787 = vmatprep.mubr.bf16.mxu0 0
    %3788 = vmatmul.mubr.bf16.gmra.mxu0 %v93
    %v3789 = vpop.f32.mrf.mxu0
    %v3790 = vadd.f32 0.0, %v3789
    %v3791 = vpop.f32.mrf.mxu0
    %v3792 = vpop.f32.mrf.mxu0
    %v3793 = vadd.f32 0.0, %v3792
    %v3794 = vpop.f32.mrf.mxu0
    %3795 = vmatprep.mubr.bf16.mxu0 0
    %3796 = vmatmul.mubr.bf16.gmra.mxu0 %v96
    %v3797 = vpop.f32.mrf.mxu0
    %v3798 = vadd.f32 0.0, %v3797
    %v3799 = vpop.f32.mrf.mxu0
    %v3800 = vpop.f32.mrf.mxu0
    %v3801 = vadd.f32 0.0, %v3800
    %v3802 = vpop.f32.mrf.mxu0
    %3803 = vdwg.mxu0
    %v3804 = vadd.f32 %v3751, %v3790
    %v3805 = vadd.f32 %v3752, %v3793
    %v3806 = vadd.f32 %v3753, %v3798
    %v3807 = vadd.f32 %v3754, %v3801
    %v3808 = vxor.u32 %v3804, 2147483648
    %v3809 = vxor.u32 %v3805, 2147483648
    %v3810 = vxor.u32 %v3806, 2147483648
    %v3811 = vxor.u32 %v3807, 2147483648
    %v3812 = vmul.f32 %v3808, 1.442695
    %v3813 = vpow.pop %v3812
    %v3814 = vmul.f32 %v3809, 1.442695
    %v3815 = vpow.pop %v3814
    %v3816 = vmul.f32 %v3810, 1.442695
    %v3817 = vpow.pop %v3816
    %v3818 = vmul.f32 %v3811, 1.442695
    %v3819 = vpow.pop %v3818
    %v3820 = vadd.f32 %v3813, 1.0
    %v3821 = vadd.f32 %v3815, 1.0
    %v3822 = vadd.f32 %v3817, 1.0
    %v3823 = vadd.f32 %v3819, 1.0
    %v3824 = vrcp.pop %v3820
    %v3825 = vmul.f32 1.0, %v3824
    %v3826 = vrcp.pop %v3821
    %v3827 = vmul.f32 1.0, %v3826
    %v3828 = vrcp.pop %v3822
    %v3829 = vmul.f32 1.0, %v3828
    %v3830 = vrcp.pop %v3823
    %v3831 = vmul.f32 1.0, %v3830
    %3836 = vrot.lane.b32.xlu0 %v3562, 96
    %v3837 = vpop.permute.xlu0 %3836
    %3838 = vrot.lane.b32.xlu0 %v3563, 96
    %v3839 = vpop.permute.xlu0 %3838
    %3840 = vrot.lane.b32.xlu0 %v3564, 96
    %v3841 = vpop.permute.xlu0 %3840
    %3842 = vrot.lane.b32.xlu0 %v3565, 96
    %v3843 = vpop.permute.xlu0 %3842
    %v3848 = vmul.f32 %v3825, %v3837
    %v3849 = vmul.f32 %v3827, %v3839
    %v3850 = vmul.f32 %v3829, %v3841
    %v3851 = vmul.f32 %v3831, %v3843
    %v3852 = vpack.c.bf16 %v3849, %v3848
    %v3853 = vpack.c.bf16 %v3851, %v3850
    %v3855 = vsel %vm79, %v3852, 0
    %v3858 = vsel %vm79, %v3853, 0
    %3860 = vmatprep.subr.bf16.mxu0 0
    %3861 = vmatpush1.bf16.msra.mxu0 0
    %3862 = vmatprep.subr.bf16.mxu0 0
    %3863 = vmatpush1.bf16.msra.mxu0 0
    %3864 = vmatprep.subr.bf16.mxu0 0
    %3865 = vmatpush1.bf16.msra.mxu0 0
    %3866 = vmatprep.subr.bf16.mxu0 0
    %3867 = vmatpush1.bf16.msra.mxu0 0
    %3868 = vmatprep.subr.bf16.mxu0 0
    %3869 = vmatpush1.bf16.msra.mxu0 0
    %3870 = vmatprep.subr.bf16.mxu0 0
    %3871 = vmatpush1.bf16.msra.mxu0 0
    %3872 = vmatprep.subr.bf16.mxu0 0
    %3873 = vmatpush1.bf16.msra.mxu0 %v1443
    %3874 = vmatprep.subr.bf16.mxu0 0
    %3875 = vmatpush1.bf16.msra.mxu0 %v1442
    %3876 = vmatprep.subr.bf16.mxu0 0
    %3877 = vmatpush2.bf16.msra.mxu0 0
    %3878 = vmatprep.subr.bf16.mxu0 0
    %3879 = vmatpush2.bf16.msra.mxu0 0
    %3880 = vmatprep.subr.bf16.mxu0 0
    %3881 = vmatpush2.bf16.msra.mxu0 0
    %3882 = vmatprep.subr.bf16.mxu0 0
    %3883 = vmatpush2.bf16.msra.mxu0 0
    %3884 = vmatprep.subr.bf16.mxu0 0
    %3885 = vmatpush2.bf16.msra.mxu0 0
    %3886 = vmatprep.subr.bf16.mxu0 0
    %3887 = vmatpush2.bf16.msra.mxu0 0
    %3888 = vmatprep.subr.bf16.mxu0 0
    %3889 = vmatpush2.bf16.msra.mxu0 0
    %3890 = vmatprep.subr.bf16.mxu0 0
    %3891 = vmatpush2.bf16.msra.mxu0 0
    %3892 = vmatprep.mubr.bf16.mxu0 0
    %3893 = vmatmul.mubr.bf16.gmra.mxu0 %v3855
    %v3894 = vpop.f32.mrf.mxu0
    %v3895 = vadd.f32 0.0, %v3894
    %v3896 = vpop.f32.mrf.mxu0
    %v3897 = vpop.f32.mrf.mxu0
    %v3898 = vadd.f32 0.0, %v3897
    %v3899 = vpop.f32.mrf.mxu0
    %3900 = vmatprep.mubr.bf16.mxu0 0
    %3901 = vmatmul.mubr.bf16.gmra.mxu0 %v3858
    %v3902 = vpop.f32.mrf.mxu0
    %v3903 = vadd.f32 0.0, %v3902
    %v3904 = vpop.f32.mrf.mxu0
    %v3905 = vpop.f32.mrf.mxu0
    %v3906 = vadd.f32 0.0, %v3905
    %v3907 = vpop.f32.mrf.mxu0
    %3908 = vdwg.mxu0
    %v3909 = vpack.c.bf16 %v3898, %v3895
    %v3910 = vpack.c.bf16 %v3906, %v3903
    %3911 = vmatprep.subr.bf16.mxu0 0
    %3912 = vmatpush1.bf16.msra.mxu0 0
    %3913 = vmatprep.subr.bf16.mxu0 0
    %3914 = vmatpush1.bf16.msra.mxu0 0
    %3915 = vmatprep.subr.bf16.mxu0 0
    %3916 = vmatpush1.bf16.msra.mxu0 0
    %3917 = vmatprep.subr.bf16.mxu0 0
    %3918 = vmatpush1.bf16.msra.mxu0 0
    %3919 = vmatprep.subr.bf16.mxu0 0
    %3920 = vmatpush1.bf16.msra.mxu0 0
    %3921 = vmatprep.subr.bf16.mxu0 0
    %3922 = vmatpush1.bf16.msra.mxu0 0
    %3923 = vmatprep.subr.bf16.mxu0 0
    %3924 = vmatpush1.bf16.msra.mxu0 %v3910
    %3925 = vmatprep.subr.bf16.mxu0 0
    %3926 = vmatpush1.bf16.msra.mxu0 %v3909
    %3927 = vmatprep.subr.bf16.mxu0 0
    %3928 = vmatpush2.bf16.msra.mxu0 0
    %3929 = vmatprep.subr.bf16.mxu0 0
    %3930 = vmatpush2.bf16.msra.mxu0 0
    %3931 = vmatprep.subr.bf16.mxu0 0
    %3932 = vmatpush2.bf16.msra.mxu0 0
    %3933 = vmatprep.subr.bf16.mxu0 0
    %3934 = vmatpush2.bf16.msra.mxu0 0
    %3935 = vmatprep.subr.bf16.mxu0 0
    %3936 = vmatpush2.bf16.msra.mxu0 0
    %3937 = vmatprep.subr.bf16.mxu0 0
    %3938 = vmatpush2.bf16.msra.mxu0 0
    %3939 = vmatprep.subr.bf16.mxu0 0
    %3940 = vmatpush2.bf16.msra.mxu0 0
    %3941 = vmatprep.subr.bf16.mxu0 0
    %3942 = vmatpush2.bf16.msra.mxu0 0
    %3943 = vmatprep.mubr.bf16.mxu0 0
    %3944 = vmatmul.mubr.bf16.gmra.mxu0 %v81
    %v3945 = vpop.f32.mrf.mxu0
    %v3946 = vadd.f32 0.0, %v3945
    %v3947 = vpop.f32.mrf.mxu0
    %v3948 = vpop.f32.mrf.mxu0
    %v3949 = vadd.f32 0.0, %v3948
    %v3950 = vpop.f32.mrf.mxu0
    %3951 = vmatprep.mubr.bf16.mxu0 0
    %3952 = vmatmul.mubr.bf16.gmra.mxu0 %v84
    %v3953 = vpop.f32.mrf.mxu0
    %v3954 = vadd.f32 0.0, %v3953
    %v3955 = vpop.f32.mrf.mxu0
    %v3956 = vpop.f32.mrf.mxu0
    %v3957 = vadd.f32 0.0, %v3956
    %v3958 = vpop.f32.mrf.mxu0
    %3959 = vdwg.mxu0
    %3964 = vrot.lane.b32.xlu0 %v3946, 64
    %v3965 = vpop.permute.xlu0 %3964
    %3966 = vrot.lane.b32.xlu0 %v3949, 64
    %v3967 = vpop.permute.xlu0 %3966
    %3968 = vrot.lane.b32.xlu0 %v3954, 64
    %v3969 = vpop.permute.xlu0 %3968
    %3970 = vrot.lane.b32.xlu0 %v3957, 64
    %v3971 = vpop.permute.xlu0 %3970
    %v3976 = vadd.f32 %v3566, %v3965
    %v3977 = vadd.f32 %v3567, %v3967
    %v3978 = vadd.f32 %v3568, %v3969
    %v3979 = vadd.f32 %v3569, %v3971
    %3982 = vrot.lane.b32.xlu0 %v3909, 96
    %v3983 = vpop.permute.xlu0 %3982
    %3984 = vrot.lane.b32.xlu0 %v3910, 96
    %v3985 = vpop.permute.xlu0 %3984
    %3988 = vmatprep.subr.bf16.mxu0 0
    %3989 = vmatpush1.bf16.msra.mxu0 0
    %3990 = vmatprep.subr.bf16.mxu0 0
    %3991 = vmatpush1.bf16.msra.mxu0 0
    %3992 = vmatprep.subr.bf16.mxu0 0
    %3993 = vmatpush1.bf16.msra.mxu0 0
    %3994 = vmatprep.subr.bf16.mxu0 0
    %3995 = vmatpush1.bf16.msra.mxu0 0
    %3996 = vmatprep.subr.bf16.mxu0 0
    %3997 = vmatpush1.bf16.msra.mxu0 0
    %3998 = vmatprep.subr.bf16.mxu0 0
    %3999 = vmatpush1.bf16.msra.mxu0 0
    %4000 = vmatprep.subr.bf16.mxu0 0
    %4001 = vmatpush1.bf16.msra.mxu0 %v3985
    %4002 = vmatprep.subr.bf16.mxu0 0
    %4003 = vmatpush1.bf16.msra.mxu0 %v3983
    %4004 = vmatprep.subr.bf16.mxu0 0
    %4005 = vmatpush2.bf16.msra.mxu0 0
    %4006 = vmatprep.subr.bf16.mxu0 0
    %4007 = vmatpush2.bf16.msra.mxu0 0
    %4008 = vmatprep.subr.bf16.mxu0 0
    %4009 = vmatpush2.bf16.msra.mxu0 0
    %4010 = vmatprep.subr.bf16.mxu0 0
    %4011 = vmatpush2.bf16.msra.mxu0 0
    %4012 = vmatprep.subr.bf16.mxu0 0
    %4013 = vmatpush2.bf16.msra.mxu0 0
    %4014 = vmatprep.subr.bf16.mxu0 0
    %4015 = vmatpush2.bf16.msra.mxu0 0
    %4016 = vmatprep.subr.bf16.mxu0 0
    %4017 = vmatpush2.bf16.msra.mxu0 0
    %4018 = vmatprep.subr.bf16.mxu0 0
    %4019 = vmatpush2.bf16.msra.mxu0 0
    %4020 = vmatprep.mubr.bf16.mxu0 0
    %4021 = vmatmul.mubr.bf16.gmra.mxu0 %v87
    %v4022 = vpop.f32.mrf.mxu0
    %v4023 = vadd.f32 0.0, %v4022
    %v4024 = vpop.f32.mrf.mxu0
    %v4025 = vpop.f32.mrf.mxu0
    %v4026 = vadd.f32 0.0, %v4025
    %v4027 = vpop.f32.mrf.mxu0
    %4028 = vmatprep.mubr.bf16.mxu0 0
    %4029 = vmatmul.mubr.bf16.gmra.mxu0 %v90
    %v4030 = vpop.f32.mrf.mxu0
    %v4031 = vadd.f32 0.0, %v4030
    %v4032 = vpop.f32.mrf.mxu0
    %v4033 = vpop.f32.mrf.mxu0
    %v4034 = vadd.f32 0.0, %v4033
    %v4035 = vpop.f32.mrf.mxu0
    %4036 = vdwg.mxu0
    %4041 = vrot.lane.b32.xlu0 %v4023, 64
    %v4042 = vpop.permute.xlu0 %4041
    %4043 = vrot.lane.b32.xlu0 %v4026, 64
    %v4044 = vpop.permute.xlu0 %4043
    %4045 = vrot.lane.b32.xlu0 %v4031, 64
    %v4046 = vpop.permute.xlu0 %4045
    %4047 = vrot.lane.b32.xlu0 %v4034, 64
    %v4048 = vpop.permute.xlu0 %4047
    %v4053 = vadd.f32 %v3976, %v4042
    %v4054 = vadd.f32 %v3977, %v4044
    %v4055 = vadd.f32 %v3978, %v4046
    %v4056 = vadd.f32 %v3979, %v4048
    %4057 = vrot.lane.b32.xlu0 %v3909, 64
    %v4058 = vpop.permute.xlu0 %4057
    %4059 = vrot.lane.b32.xlu0 %v3910, 64
    %v4060 = vpop.permute.xlu0 %4059
    %4063 = vmatprep.subr.bf16.mxu0 0
    %4064 = vmatpush1.bf16.msra.mxu0 0
    %4065 = vmatprep.subr.bf16.mxu0 0
    %4066 = vmatpush1.bf16.msra.mxu0 0
    %4067 = vmatprep.subr.bf16.mxu0 0
    %4068 = vmatpush1.bf16.msra.mxu0 0
    %4069 = vmatprep.subr.bf16.mxu0 0
    %4070 = vmatpush1.bf16.msra.mxu0 0
    %4071 = vmatprep.subr.bf16.mxu0 0
    %4072 = vmatpush1.bf16.msra.mxu0 0
    %4073 = vmatprep.subr.bf16.mxu0 0
    %4074 = vmatpush1.bf16.msra.mxu0 0
    %4075 = vmatprep.subr.bf16.mxu0 0
    %4076 = vmatpush1.bf16.msra.mxu0 %v4060
    %4077 = vmatprep.subr.bf16.mxu0 0
    %4078 = vmatpush1.bf16.msra.mxu0 %v4058
    %4079 = vmatprep.subr.bf16.mxu0 0
    %4080 = vmatpush2.bf16.msra.mxu0 0
    %4081 = vmatprep.subr.bf16.mxu0 0
    %4082 = vmatpush2.bf16.msra.mxu0 0
    %4083 = vmatprep.subr.bf16.mxu0 0
    %4084 = vmatpush2.bf16.msra.mxu0 0
    %4085 = vmatprep.subr.bf16.mxu0 0
    %4086 = vmatpush2.bf16.msra.mxu0 0
    %4087 = vmatprep.subr.bf16.mxu0 0
    %4088 = vmatpush2.bf16.msra.mxu0 0
    %4089 = vmatprep.subr.bf16.mxu0 0
    %4090 = vmatpush2.bf16.msra.mxu0 0
    %4091 = vmatprep.subr.bf16.mxu0 0
    %4092 = vmatpush2.bf16.msra.mxu0 0
    %4093 = vmatprep.subr.bf16.mxu0 0
    %4094 = vmatpush2.bf16.msra.mxu0 0
    %4095 = vmatprep.mubr.bf16.mxu0 0
    %4096 = vmatmul.mubr.bf16.gmra.mxu0 %v93
    %v4097 = vpop.f32.mrf.mxu0
    %v4098 = vadd.f32 0.0, %v4097
    %v4099 = vpop.f32.mrf.mxu0
    %v4100 = vpop.f32.mrf.mxu0
    %v4101 = vadd.f32 0.0, %v4100
    %v4102 = vpop.f32.mrf.mxu0
    %4103 = vmatprep.mubr.bf16.mxu0 0
    %4104 = vmatmul.mubr.bf16.gmra.mxu0 %v96
    %v4105 = vpop.f32.mrf.mxu0
    %v4106 = vadd.f32 0.0, %v4105
    %v4107 = vpop.f32.mrf.mxu0
    %v4108 = vpop.f32.mrf.mxu0
    %v4109 = vadd.f32 0.0, %v4108
    %v4110 = vpop.f32.mrf.mxu0
    %4111 = vdwg.mxu0
    %4116 = vrot.lane.b32.xlu0 %v4098, 64
    %v4117 = vpop.permute.xlu0 %4116
    %4118 = vrot.lane.b32.xlu0 %v4101, 64
    %v4119 = vpop.permute.xlu0 %4118
    %4120 = vrot.lane.b32.xlu0 %v4106, 64
    %v4121 = vpop.permute.xlu0 %4120
    %4122 = vrot.lane.b32.xlu0 %v4109, 64
    %v4123 = vpop.permute.xlu0 %4122
    %v4128 = vadd.f32 %v4053, %v4117
    %v4129 = vadd.f32 %v4054, %v4119
    %v4130 = vadd.f32 %v4055, %v4121
    %v4131 = vadd.f32 %v4056, %v4123
    %v4132 = vtanh.pop %v4128
    %v4133 = vtanh.pop %v4129
    %v4134 = vtanh.pop %v4130
    %v4135 = vtanh.pop %v4131
    %4140 = vrot.lane.b32.xlu0 %v4132, 96
    %v4141 = vpop.permute.xlu0 %4140
    %4142 = vrot.lane.b32.xlu0 %v4133, 96
    %v4143 = vpop.permute.xlu0 %4142
    %4144 = vrot.lane.b32.xlu0 %v4134, 96
    %v4145 = vpop.permute.xlu0 %4144
    %4146 = vrot.lane.b32.xlu0 %v4135, 96
    %v4147 = vpop.permute.xlu0 %4146
    %v4152 = vmul.f32 %v3825, %v4141
    %v4153 = vmul.f32 %v3827, %v4143
    %v4154 = vmul.f32 %v3829, %v4145
    %v4155 = vmul.f32 %v3831, %v4147
    %v4156 = vsub.f32 1.0, %v3825
    %v4157 = vsub.f32 1.0, %v3827
    %v4158 = vsub.f32 1.0, %v3829
    %v4159 = vsub.f32 1.0, %v3831
    %v4160 = vmul.f32 %v4156, %v3562
    %v4161 = vmul.f32 %v4157, %v3563
    %v4162 = vmul.f32 %v4158, %v3564
    %v4163 = vmul.f32 %v4159, %v3565
    %v4164 = vadd.f32 %v4152, %v4160
    %v4165 = vadd.f32 %v4153, %v4161
    %v4166 = vadd.f32 %v4154, %v4162
    %v4167 = vadd.f32 %v4155, %v4163
    %v4168 = vld [vmem:[%s678] sm:$0xff]
    %v4169 = vld [vmem:[%s678 + $0x8] sm:$0xff]
    %v4170 = vld [vmem:[%s678 + $0x10] sm:$0xff]
    %v4171 = vld [vmem:[%s678 + $0x18] sm:$0xff]
    %v4172 = vpack.c.bf16 %v4165, %v4164
    %v4173 = vpack.c.bf16 %v4167, %v4166
    %4176 = vrot.lane.b32.xlu0 %v4172, 96
    %v4177 = vpop.permute.xlu0 %4176
    %4178 = vrot.lane.b32.xlu0 %v4173, 96
    %v4179 = vpop.permute.xlu0 %4178
    %v4181 = vsel %vm79, %v4177, 0
    %v4184 = vsel %vm79, %v4179, 0
    %4186 = vmatprep.subr.bf16.mxu0 0
    %4187 = vmatpush1.bf16.msra.mxu0 0
    %4188 = vmatprep.subr.bf16.mxu0 0
    %4189 = vmatpush1.bf16.msra.mxu0 0
    %4190 = vmatprep.subr.bf16.mxu0 0
    %4191 = vmatpush1.bf16.msra.mxu0 0
    %4192 = vmatprep.subr.bf16.mxu0 0
    %4193 = vmatpush1.bf16.msra.mxu0 0
    %4194 = vmatprep.subr.bf16.mxu0 0
    %4195 = vmatpush1.bf16.msra.mxu0 0
    %4196 = vmatprep.subr.bf16.mxu0 0
    %4197 = vmatpush1.bf16.msra.mxu0 0
    %4198 = vmatprep.subr.bf16.mxu0 %v1172
    %4199 = vmatpush1.bf16.msra.mxu0 %v1171
    %4200 = vmatprep.subr.bf16.mxu0 %v1170
    %4201 = vmatpush1.bf16.msra.mxu0 %v1169
    %4202 = vmatprep.subr.bf16.mxu0 0
    %4203 = vmatpush2.bf16.msra.mxu0 0
    %4204 = vmatprep.subr.bf16.mxu0 0
    %4205 = vmatpush2.bf16.msra.mxu0 0
    %4206 = vmatprep.subr.bf16.mxu0 0
    %4207 = vmatpush2.bf16.msra.mxu0 0
    %4208 = vmatprep.subr.bf16.mxu0 0
    %4209 = vmatpush2.bf16.msra.mxu0 0
    %4210 = vmatprep.subr.bf16.mxu0 0
    %4211 = vmatpush2.bf16.msra.mxu0 0
    %4212 = vmatprep.subr.bf16.mxu0 0
    %4213 = vmatpush2.bf16.msra.mxu0 0
    %4214 = vmatprep.subr.bf16.mxu0 0
    %4215 = vmatpush2.bf16.msra.mxu0 0
    %4216 = vmatprep.subr.bf16.mxu0 0
    %4217 = vmatpush2.bf16.msra.mxu0 0
    %4218 = vmatprep.mubr.bf16.mxu0 0
    %4219 = vmatmul.mubr.bf16.gmra.mxu0 %v4181
    %v4220 = vpop.f32.mrf.mxu0
    %v4221 = vadd.f32 0.0, %v4220
    %v4222 = vpop.f32.mrf.mxu0
    %v4223 = vadd.f32 0.0, %v4222
    %v4224 = vpop.f32.mrf.mxu0
    %v4225 = vadd.f32 0.0, %v4224
    %v4226 = vpop.f32.mrf.mxu0
    %v4227 = vadd.f32 0.0, %v4226
    %4228 = vmatprep.mubr.bf16.mxu0 0
    %4229 = vmatmul.mubr.bf16.gmra.mxu0 %v4184
    %v4230 = vpop.f32.mrf.mxu0
    %v4231 = vadd.f32 0.0, %v4230
    %v4232 = vpop.f32.mrf.mxu0
    %v4233 = vadd.f32 0.0, %v4232
    %v4234 = vpop.f32.mrf.mxu0
    %v4235 = vadd.f32 0.0, %v4234
    %v4236 = vpop.f32.mrf.mxu0
    %v4237 = vadd.f32 0.0, %v4236
    %4238 = vdwg.mxu0
    %v4239 = vpack.c.bf16 %v4225, %v4221
    %v4240 = vpack.c.bf16 %v4227, %v4223
    %v4241 = vpack.c.bf16 %v4235, %v4231
    %v4242 = vpack.c.bf16 %v4237, %v4233
    %4243 = vmatprep.subr.bf16.mxu0 0
    %4244 = vmatpush1.bf16.msra.mxu0 0
    %4245 = vmatprep.subr.bf16.mxu0 0
    %4246 = vmatpush1.bf16.msra.mxu0 0
    %4247 = vmatprep.subr.bf16.mxu0 0
    %4248 = vmatpush1.bf16.msra.mxu0 0
    %4249 = vmatprep.subr.bf16.mxu0 0
    %4250 = vmatpush1.bf16.msra.mxu0 0
    %4251 = vmatprep.subr.bf16.mxu0 0
    %4252 = vmatpush1.bf16.msra.mxu0 0
    %4253 = vmatprep.subr.bf16.mxu0 0
    %4254 = vmatpush1.bf16.msra.mxu0 0
    %4255 = vmatprep.subr.bf16.mxu0 0
    %4256 = vmatpush1.bf16.msra.mxu0 %v4241
    %4257 = vmatprep.subr.bf16.mxu0 0
    %4258 = vmatpush1.bf16.msra.mxu0 %v4239
    %4259 = vmatprep.subr.bf16.mxu0 0
    %4260 = vmatpush2.bf16.msra.mxu0 0
    %4261 = vmatprep.subr.bf16.mxu0 0
    %4262 = vmatpush2.bf16.msra.mxu0 0
    %4263 = vmatprep.subr.bf16.mxu0 0
    %4264 = vmatpush2.bf16.msra.mxu0 0
    %4265 = vmatprep.subr.bf16.mxu0 0
    %4266 = vmatpush2.bf16.msra.mxu0 0
    %4267 = vmatprep.subr.bf16.mxu0 0
    %4268 = vmatpush2.bf16.msra.mxu0 0
    %4269 = vmatprep.subr.bf16.mxu0 0
    %4270 = vmatpush2.bf16.msra.mxu0 0
    %4271 = vmatprep.subr.bf16.mxu0 0
    %4272 = vmatpush2.bf16.msra.mxu0 0
    %4273 = vmatprep.subr.bf16.mxu0 0
    %4274 = vmatpush2.bf16.msra.mxu0 0
    %4275 = vmatprep.mubr.bf16.mxu0 0
    %4276 = vmatmul.mubr.bf16.gmra.mxu0 %v81
    %v4277 = vpop.f32.mrf.mxu0
    %v4278 = vadd.f32 0.0, %v4277
    %v4279 = vpop.f32.mrf.mxu0
    %v4280 = vpop.f32.mrf.mxu0
    %v4281 = vadd.f32 0.0, %v4280
    %v4282 = vpop.f32.mrf.mxu0
    %4283 = vmatprep.mubr.bf16.mxu0 0
    %4284 = vmatmul.mubr.bf16.gmra.mxu0 %v84
    %v4285 = vpop.f32.mrf.mxu0
    %v4286 = vadd.f32 0.0, %v4285
    %v4287 = vpop.f32.mrf.mxu0
    %v4288 = vpop.f32.mrf.mxu0
    %v4289 = vadd.f32 0.0, %v4288
    %v4290 = vpop.f32.mrf.mxu0
    %4291 = vdwg.mxu0
    %v4292 = vadd.f32 %v4168, %v4278
    %v4293 = vadd.f32 %v4169, %v4281
    %v4294 = vadd.f32 %v4170, %v4286
    %v4295 = vadd.f32 %v4171, %v4289
    %4298 = vrot.lane.b32.xlu0 %v4239, 64
    %v4299 = vpop.permute.xlu0 %4298
    %4300 = vrot.lane.b32.xlu0 %v4241, 64
    %v4301 = vpop.permute.xlu0 %4300
    %4304 = vmatprep.subr.bf16.mxu0 0
    %4305 = vmatpush1.bf16.msra.mxu0 0
    %4306 = vmatprep.subr.bf16.mxu0 0
    %4307 = vmatpush1.bf16.msra.mxu0 0
    %4308 = vmatprep.subr.bf16.mxu0 0
    %4309 = vmatpush1.bf16.msra.mxu0 0
    %4310 = vmatprep.subr.bf16.mxu0 0
    %4311 = vmatpush1.bf16.msra.mxu0 0
    %4312 = vmatprep.subr.bf16.mxu0 0
    %4313 = vmatpush1.bf16.msra.mxu0 0
    %4314 = vmatprep.subr.bf16.mxu0 0
    %4315 = vmatpush1.bf16.msra.mxu0 0
    %4316 = vmatprep.subr.bf16.mxu0 0
    %4317 = vmatpush1.bf16.msra.mxu0 %v4301
    %4318 = vmatprep.subr.bf16.mxu0 0
    %4319 = vmatpush1.bf16.msra.mxu0 %v4299
    %4320 = vmatprep.subr.bf16.mxu0 0
    %4321 = vmatpush2.bf16.msra.mxu0 0
    %4322 = vmatprep.subr.bf16.mxu0 0
    %4323 = vmatpush2.bf16.msra.mxu0 0
    %4324 = vmatprep.subr.bf16.mxu0 0
    %4325 = vmatpush2.bf16.msra.mxu0 0
    %4326 = vmatprep.subr.bf16.mxu0 0
    %4327 = vmatpush2.bf16.msra.mxu0 0
    %4328 = vmatprep.subr.bf16.mxu0 0
    %4329 = vmatpush2.bf16.msra.mxu0 0
    %4330 = vmatprep.subr.bf16.mxu0 0
    %4331 = vmatpush2.bf16.msra.mxu0 0
    %4332 = vmatprep.subr.bf16.mxu0 0
    %4333 = vmatpush2.bf16.msra.mxu0 0
    %4334 = vmatprep.subr.bf16.mxu0 0
    %4335 = vmatpush2.bf16.msra.mxu0 0
    %4336 = vmatprep.mubr.bf16.mxu0 0
    %4337 = vmatmul.mubr.bf16.gmra.mxu0 %v87
    %v4338 = vpop.f32.mrf.mxu0
    %v4339 = vadd.f32 0.0, %v4338
    %v4340 = vpop.f32.mrf.mxu0
    %v4341 = vpop.f32.mrf.mxu0
    %v4342 = vadd.f32 0.0, %v4341
    %v4343 = vpop.f32.mrf.mxu0
    %4344 = vmatprep.mubr.bf16.mxu0 0
    %4345 = vmatmul.mubr.bf16.gmra.mxu0 %v90
    %v4346 = vpop.f32.mrf.mxu0
    %v4347 = vadd.f32 0.0, %v4346
    %v4348 = vpop.f32.mrf.mxu0
    %v4349 = vpop.f32.mrf.mxu0
    %v4350 = vadd.f32 0.0, %v4349
    %v4351 = vpop.f32.mrf.mxu0
    %4352 = vdwg.mxu0
    %v4353 = vadd.f32 %v4292, %v4339
    %v4354 = vadd.f32 %v4293, %v4342
    %v4355 = vadd.f32 %v4294, %v4347
    %v4356 = vadd.f32 %v4295, %v4350
    %4357 = vmatprep.subr.bf16.mxu0 0
    %4358 = vmatpush1.bf16.msra.mxu0 0
    %4359 = vmatprep.subr.bf16.mxu0 0
    %4360 = vmatpush1.bf16.msra.mxu0 0
    %4361 = vmatprep.subr.bf16.mxu0 0
    %4362 = vmatpush1.bf16.msra.mxu0 0
    %4363 = vmatprep.subr.bf16.mxu0 0
    %4364 = vmatpush1.bf16.msra.mxu0 0
    %4365 = vmatprep.subr.bf16.mxu0 0
    %4366 = vmatpush1.bf16.msra.mxu0 0
    %4367 = vmatprep.subr.bf16.mxu0 0
    %4368 = vmatpush1.bf16.msra.mxu0 0
    %4369 = vmatprep.subr.bf16.mxu0 0
    %4370 = vmatpush1.bf16.msra.mxu0 %v4242
    %4371 = vmatprep.subr.bf16.mxu0 0
    %4372 = vmatpush1.bf16.msra.mxu0 %v4240
    %4373 = vmatprep.subr.bf16.mxu0 0
    %4374 = vmatpush2.bf16.msra.mxu0 0
    %4375 = vmatprep.subr.bf16.mxu0 0
    %4376 = vmatpush2.bf16.msra.mxu0 0
    %4377 = vmatprep.subr.bf16.mxu0 0
    %4378 = vmatpush2.bf16.msra.mxu0 0
    %4379 = vmatprep.subr.bf16.mxu0 0
    %4380 = vmatpush2.bf16.msra.mxu0 0
    %4381 = vmatprep.subr.bf16.mxu0 0
    %4382 = vmatpush2.bf16.msra.mxu0 0
    %4383 = vmatprep.subr.bf16.mxu0 0
    %4384 = vmatpush2.bf16.msra.mxu0 0
    %4385 = vmatprep.subr.bf16.mxu0 0
    %4386 = vmatpush2.bf16.msra.mxu0 0
    %4387 = vmatprep.subr.bf16.mxu0 0
    %4388 = vmatpush2.bf16.msra.mxu0 0
    %4389 = vmatprep.mubr.bf16.mxu0 0
    %4390 = vmatmul.mubr.bf16.gmra.mxu0 %v93
    %v4391 = vpop.f32.mrf.mxu0
    %v4392 = vadd.f32 0.0, %v4391
    %v4393 = vpop.f32.mrf.mxu0
    %v4394 = vpop.f32.mrf.mxu0
    %v4395 = vadd.f32 0.0, %v4394
    %v4396 = vpop.f32.mrf.mxu0
    %4397 = vmatprep.mubr.bf16.mxu0 0
    %4398 = vmatmul.mubr.bf16.gmra.mxu0 %v96
    %v4399 = vpop.f32.mrf.mxu0
    %v4400 = vadd.f32 0.0, %v4399
    %v4401 = vpop.f32.mrf.mxu0
    %v4402 = vpop.f32.mrf.mxu0
    %v4403 = vadd.f32 0.0, %v4402
    %v4404 = vpop.f32.mrf.mxu0
    %4405 = vdwg.mxu0
    %v4406 = vadd.f32 %v4353, %v4392
    %v4407 = vadd.f32 %v4354, %v4395
    %v4408 = vadd.f32 %v4355, %v4400
    %v4409 = vadd.f32 %v4356, %v4403
    %v4410 = vxor.u32 %v4406, 2147483648
    %v4411 = vxor.u32 %v4407, 2147483648
    %v4412 = vxor.u32 %v4408, 2147483648
    %v4413 = vxor.u32 %v4409, 2147483648
    %v4414 = vmul.f32 %v4410, 1.442695
    %v4415 = vpow.pop %v4414
    %v4416 = vmul.f32 %v4411, 1.442695
    %v4417 = vpow.pop %v4416
    %v4418 = vmul.f32 %v4412, 1.442695
    %v4419 = vpow.pop %v4418
    %v4420 = vmul.f32 %v4413, 1.442695
    %v4421 = vpow.pop %v4420
    %v4422 = vadd.f32 %v4415, 1.0
    %v4423 = vadd.f32 %v4417, 1.0
    %v4424 = vadd.f32 %v4419, 1.0
    %v4425 = vadd.f32 %v4421, 1.0
    %v4426 = vrcp.pop %v4422
    %v4427 = vmul.f32 1.0, %v4426
    %v4428 = vrcp.pop %v4423
    %v4429 = vmul.f32 1.0, %v4428
    %v4430 = vrcp.pop %v4424
    %v4431 = vmul.f32 1.0, %v4430
    %v4432 = vrcp.pop %v4425
    %v4433 = vmul.f32 1.0, %v4432
    %4438 = vrot.lane.b32.xlu0 %v4164, 96
    %v4439 = vpop.permute.xlu0 %4438
    %4440 = vrot.lane.b32.xlu0 %v4165, 96
    %v4441 = vpop.permute.xlu0 %4440
    %4442 = vrot.lane.b32.xlu0 %v4166, 96
    %v4443 = vpop.permute.xlu0 %4442
    %4444 = vrot.lane.b32.xlu0 %v4167, 96
    %v4445 = vpop.permute.xlu0 %4444
    %v4450 = vmul.f32 %v4427, %v4439
    %v4451 = vmul.f32 %v4429, %v4441
    %v4452 = vmul.f32 %v4431, %v4443
    %v4453 = vmul.f32 %v4433, %v4445
    %v4454 = vpack.c.bf16 %v4451, %v4450
    %v4455 = vpack.c.bf16 %v4453, %v4452
    %v4457 = vsel %vm79, %v4454, 0
    %v4460 = vsel %vm79, %v4455, 0
    %4462 = vmatprep.subr.bf16.mxu0 0
    %4463 = vmatpush1.bf16.msra.mxu0 0
    %4464 = vmatprep.subr.bf16.mxu0 0
    %4465 = vmatpush1.bf16.msra.mxu0 0
    %4466 = vmatprep.subr.bf16.mxu0 0
    %4467 = vmatpush1.bf16.msra.mxu0 0
    %4468 = vmatprep.subr.bf16.mxu0 0
    %4469 = vmatpush1.bf16.msra.mxu0 0
    %4470 = vmatprep.subr.bf16.mxu0 0
    %4471 = vmatpush1.bf16.msra.mxu0 0
    %4472 = vmatprep.subr.bf16.mxu0 0
    %4473 = vmatpush1.bf16.msra.mxu0 0
    %4474 = vmatprep.subr.bf16.mxu0 0
    %4475 = vmatpush1.bf16.msra.mxu0 %v1443
    %4476 = vmatprep.subr.bf16.mxu0 0
    %4477 = vmatpush1.bf16.msra.mxu0 %v1442
    %4478 = vmatprep.subr.bf16.mxu0 0
    %4479 = vmatpush2.bf16.msra.mxu0 0
    %4480 = vmatprep.subr.bf16.mxu0 0
    %4481 = vmatpush2.bf16.msra.mxu0 0
    %4482 = vmatprep.subr.bf16.mxu0 0
    %4483 = vmatpush2.bf16.msra.mxu0 0
    %4484 = vmatprep.subr.bf16.mxu0 0
    %4485 = vmatpush2.bf16.msra.mxu0 0
    %4486 = vmatprep.subr.bf16.mxu0 0
    %4487 = vmatpush2.bf16.msra.mxu0 0
    %4488 = vmatprep.subr.bf16.mxu0 0
    %4489 = vmatpush2.bf16.msra.mxu0 0
    %4490 = vmatprep.subr.bf16.mxu0 0
    %4491 = vmatpush2.bf16.msra.mxu0 0
    %4492 = vmatprep.subr.bf16.mxu0 0
    %4493 = vmatpush2.bf16.msra.mxu0 0
    %4494 = vmatprep.mubr.bf16.mxu0 0
    %4495 = vmatmul.mubr.bf16.gmra.mxu0 %v4457
    %v4496 = vpop.f32.mrf.mxu0
    %v4497 = vadd.f32 0.0, %v4496
    %v4498 = vpop.f32.mrf.mxu0
    %v4499 = vpop.f32.mrf.mxu0
    %v4500 = vadd.f32 0.0, %v4499
    %v4501 = vpop.f32.mrf.mxu0
    %4502 = vmatprep.mubr.bf16.mxu0 0
    %4503 = vmatmul.mubr.bf16.gmra.mxu0 %v4460
    %v4504 = vpop.f32.mrf.mxu0
    %v4505 = vadd.f32 0.0, %v4504
    %v4506 = vpop.f32.mrf.mxu0
    %v4507 = vpop.f32.mrf.mxu0
    %v4508 = vadd.f32 0.0, %v4507
    %v4509 = vpop.f32.mrf.mxu0
    %4510 = vdwg.mxu0
    %v4511 = vpack.c.bf16 %v4500, %v4497
    %v4512 = vpack.c.bf16 %v4508, %v4505
    %4513 = vmatprep.subr.bf16.mxu0 0
    %4514 = vmatpush1.bf16.msra.mxu0 0
    %4515 = vmatprep.subr.bf16.mxu0 0
    %4516 = vmatpush1.bf16.msra.mxu0 0
    %4517 = vmatprep.subr.bf16.mxu0 0
    %4518 = vmatpush1.bf16.msra.mxu0 0
    %4519 = vmatprep.subr.bf16.mxu0 0
    %4520 = vmatpush1.bf16.msra.mxu0 0
    %4521 = vmatprep.subr.bf16.mxu0 0
    %4522 = vmatpush1.bf16.msra.mxu0 0
    %4523 = vmatprep.subr.bf16.mxu0 0
    %4524 = vmatpush1.bf16.msra.mxu0 0
    %4525 = vmatprep.subr.bf16.mxu0 0
    %4526 = vmatpush1.bf16.msra.mxu0 %v4512
    %4527 = vmatprep.subr.bf16.mxu0 0
    %4528 = vmatpush1.bf16.msra.mxu0 %v4511
    %4529 = vmatprep.subr.bf16.mxu0 0
    %4530 = vmatpush2.bf16.msra.mxu0 0
    %4531 = vmatprep.subr.bf16.mxu0 0
    %4532 = vmatpush2.bf16.msra.mxu0 0
    %4533 = vmatprep.subr.bf16.mxu0 0
    %4534 = vmatpush2.bf16.msra.mxu0 0
    %4535 = vmatprep.subr.bf16.mxu0 0
    %4536 = vmatpush2.bf16.msra.mxu0 0
    %4537 = vmatprep.subr.bf16.mxu0 0
    %4538 = vmatpush2.bf16.msra.mxu0 0
    %4539 = vmatprep.subr.bf16.mxu0 0
    %4540 = vmatpush2.bf16.msra.mxu0 0
    %4541 = vmatprep.subr.bf16.mxu0 0
    %4542 = vmatpush2.bf16.msra.mxu0 0
    %4543 = vmatprep.subr.bf16.mxu0 0
    %4544 = vmatpush2.bf16.msra.mxu0 0
    %4545 = vmatprep.mubr.bf16.mxu0 0
    %4546 = vmatmul.mubr.bf16.gmra.mxu0 %v81
    %v4547 = vpop.f32.mrf.mxu0
    %v4548 = vadd.f32 0.0, %v4547
    %v4549 = vpop.f32.mrf.mxu0
    %v4550 = vpop.f32.mrf.mxu0
    %v4551 = vadd.f32 0.0, %v4550
    %v4552 = vpop.f32.mrf.mxu0
    %4553 = vmatprep.mubr.bf16.mxu0 0
    %4554 = vmatmul.mubr.bf16.gmra.mxu0 %v84
    %v4555 = vpop.f32.mrf.mxu0
    %v4556 = vadd.f32 0.0, %v4555
    %v4557 = vpop.f32.mrf.mxu0
    %v4558 = vpop.f32.mrf.mxu0
    %v4559 = vadd.f32 0.0, %v4558
    %v4560 = vpop.f32.mrf.mxu0
    %4561 = vdwg.mxu0
    %4566 = vrot.lane.b32.xlu0 %v4548, 64
    %v4567 = vpop.permute.xlu0 %4566
    %4568 = vrot.lane.b32.xlu0 %v4551, 64
    %v4569 = vpop.permute.xlu0 %4568
    %4570 = vrot.lane.b32.xlu0 %v4556, 64
    %v4571 = vpop.permute.xlu0 %4570
    %4572 = vrot.lane.b32.xlu0 %v4559, 64
    %v4573 = vpop.permute.xlu0 %4572
    %v4578 = vadd.f32 %v4168, %v4567
    %v4579 = vadd.f32 %v4169, %v4569
    %v4580 = vadd.f32 %v4170, %v4571
    %v4581 = vadd.f32 %v4171, %v4573
    %4584 = vrot.lane.b32.xlu0 %v4511, 96
    %v4585 = vpop.permute.xlu0 %4584
    %4586 = vrot.lane.b32.xlu0 %v4512, 96
    %v4587 = vpop.permute.xlu0 %4586
    %4590 = vmatprep.subr.bf16.mxu0 0
    %4591 = vmatpush1.bf16.msra.mxu0 0
    %4592 = vmatprep.subr.bf16.mxu0 0
    %4593 = vmatpush1.bf16.msra.mxu0 0
    %4594 = vmatprep.subr.bf16.mxu0 0
    %4595 = vmatpush1.bf16.msra.mxu0 0
    %4596 = vmatprep.subr.bf16.mxu0 0
    %4597 = vmatpush1.bf16.msra.mxu0 0
    %4598 = vmatprep.subr.bf16.mxu0 0
    %4599 = vmatpush1.bf16.msra.mxu0 0
    %4600 = vmatprep.subr.bf16.mxu0 0
    %4601 = vmatpush1.bf16.msra.mxu0 0
    %4602 = vmatprep.subr.bf16.mxu0 0
    %4603 = vmatpush1.bf16.msra.mxu0 %v4587
    %4604 = vmatprep.subr.bf16.mxu0 0
    %4605 = vmatpush1.bf16.msra.mxu0 %v4585
    %4606 = vmatprep.subr.bf16.mxu0 0
    %4607 = vmatpush2.bf16.msra.mxu0 0
    %4608 = vmatprep.subr.bf16.mxu0 0
    %4609 = vmatpush2.bf16.msra.mxu0 0
    %4610 = vmatprep.subr.bf16.mxu0 0
    %4611 = vmatpush2.bf16.msra.mxu0 0
    %4612 = vmatprep.subr.bf16.mxu0 0
    %4613 = vmatpush2.bf16.msra.mxu0 0
    %4614 = vmatprep.subr.bf16.mxu0 0
    %4615 = vmatpush2.bf16.msra.mxu0 0
    %4616 = vmatprep.subr.bf16.mxu0 0
    %4617 = vmatpush2.bf16.msra.mxu0 0
    %4618 = vmatprep.subr.bf16.mxu0 0
    %4619 = vmatpush2.bf16.msra.mxu0 0
    %4620 = vmatprep.subr.bf16.mxu0 0
    %4621 = vmatpush2.bf16.msra.mxu0 0
    %4622 = vmatprep.mubr.bf16.mxu0 0
    %4623 = vmatmul.mubr.bf16.gmra.mxu0 %v87
    %v4624 = vpop.f32.mrf.mxu0
    %v4625 = vadd.f32 0.0, %v4624
    %v4626 = vpop.f32.mrf.mxu0
    %v4627 = vpop.f32.mrf.mxu0
    %v4628 = vadd.f32 0.0, %v4627
    %v4629 = vpop.f32.mrf.mxu0
    %4630 = vmatprep.mubr.bf16.mxu0 0
    %4631 = vmatmul.mubr.bf16.gmra.mxu0 %v90
    %v4632 = vpop.f32.mrf.mxu0
    %v4633 = vadd.f32 0.0, %v4632
    %v4634 = vpop.f32.mrf.mxu0
    %v4635 = vpop.f32.mrf.mxu0
    %v4636 = vadd.f32 0.0, %v4635
    %v4637 = vpop.f32.mrf.mxu0
    %4638 = vdwg.mxu0
    %4643 = vrot.lane.b32.xlu0 %v4625, 64
    %v4644 = vpop.permute.xlu0 %4643
    %4645 = vrot.lane.b32.xlu0 %v4628, 64
    %v4646 = vpop.permute.xlu0 %4645
    %4647 = vrot.lane.b32.xlu0 %v4633, 64
    %v4648 = vpop.permute.xlu0 %4647
    %4649 = vrot.lane.b32.xlu0 %v4636, 64
    %v4650 = vpop.permute.xlu0 %4649
    %v4655 = vadd.f32 %v4578, %v4644
    %v4656 = vadd.f32 %v4579, %v4646
    %v4657 = vadd.f32 %v4580, %v4648
    %v4658 = vadd.f32 %v4581, %v4650
    %4659 = vrot.lane.b32.xlu0 %v4511, 64
    %v4660 = vpop.permute.xlu0 %4659
    %4661 = vrot.lane.b32.xlu0 %v4512, 64
    %v4662 = vpop.permute.xlu0 %4661
    %4665 = vmatprep.subr.bf16.mxu0 0
    %4666 = vmatpush1.bf16.msra.mxu0 0
    %4667 = vmatprep.subr.bf16.mxu0 0
    %4668 = vmatpush1.bf16.msra.mxu0 0
    %4669 = vmatprep.subr.bf16.mxu0 0
    %4670 = vmatpush1.bf16.msra.mxu0 0
    %4671 = vmatprep.subr.bf16.mxu0 0
    %4672 = vmatpush1.bf16.msra.mxu0 0
    %4673 = vmatprep.subr.bf16.mxu0 0
    %4674 = vmatpush1.bf16.msra.mxu0 0
    %4675 = vmatprep.subr.bf16.mxu0 0
    %4676 = vmatpush1.bf16.msra.mxu0 0
    %4677 = vmatprep.subr.bf16.mxu0 0
    %4678 = vmatpush1.bf16.msra.mxu0 %v4662
    %4679 = vmatprep.subr.bf16.mxu0 0
    %4680 = vmatpush1.bf16.msra.mxu0 %v4660
    %4681 = vmatprep.subr.bf16.mxu0 0
    %4682 = vmatpush2.bf16.msra.mxu0 0
    %4683 = vmatprep.subr.bf16.mxu0 0
    %4684 = vmatpush2.bf16.msra.mxu0 0
    %4685 = vmatprep.subr.bf16.mxu0 0
    %4686 = vmatpush2.bf16.msra.mxu0 0
    %4687 = vmatprep.subr.bf16.mxu0 0
    %4688 = vmatpush2.bf16.msra.mxu0 0
    %4689 = vmatprep.subr.bf16.mxu0 0
    %4690 = vmatpush2.bf16.msra.mxu0 0
    %4691 = vmatprep.subr.bf16.mxu0 0
    %4692 = vmatpush2.bf16.msra.mxu0 0
    %4693 = vmatprep.subr.bf16.mxu0 0
    %4694 = vmatpush2.bf16.msra.mxu0 0
    %4695 = vmatprep.subr.bf16.mxu0 0
    %4696 = vmatpush2.bf16.msra.mxu0 0
    %4697 = vmatprep.mubr.bf16.mxu0 0
    %4698 = vmatmul.mubr.bf16.gmra.mxu0 %v93
    %v4699 = vpop.f32.mrf.mxu0
    %v4700 = vadd.f32 0.0, %v4699
    %v4701 = vpop.f32.mrf.mxu0
    %v4702 = vpop.f32.mrf.mxu0
    %v4703 = vadd.f32 0.0, %v4702
    %v4704 = vpop.f32.mrf.mxu0
    %4705 = vmatprep.mubr.bf16.mxu0 0
    %4706 = vmatmul.mubr.bf16.gmra.mxu0 %v96
    %v4707 = vpop.f32.mrf.mxu0
    %v4708 = vadd.f32 0.0, %v4707
    %v4709 = vpop.f32.mrf.mxu0
    %v4710 = vpop.f32.mrf.mxu0
    %v4711 = vadd.f32 0.0, %v4710
    %v4712 = vpop.f32.mrf.mxu0
    %4713 = vdwg.mxu0
    %4718 = vrot.lane.b32.xlu0 %v4700, 64
    %v4719 = vpop.permute.xlu0 %4718
    %4720 = vrot.lane.b32.xlu0 %v4703, 64
    %v4721 = vpop.permute.xlu0 %4720
    %4722 = vrot.lane.b32.xlu0 %v4708, 64
    %v4723 = vpop.permute.xlu0 %4722
    %4724 = vrot.lane.b32.xlu0 %v4711, 64
    %v4725 = vpop.permute.xlu0 %4724
    %v4730 = vadd.f32 %v4655, %v4719
    %v4731 = vadd.f32 %v4656, %v4721
    %v4732 = vadd.f32 %v4657, %v4723
    %v4733 = vadd.f32 %v4658, %v4725
    %v4734 = vtanh.pop %v4730
    %v4735 = vtanh.pop %v4731
    %v4736 = vtanh.pop %v4732
    %v4737 = vtanh.pop %v4733
    %4742 = vrot.lane.b32.xlu0 %v4734, 96
    %v4743 = vpop.permute.xlu0 %4742
    %4744 = vrot.lane.b32.xlu0 %v4735, 96
    %v4745 = vpop.permute.xlu0 %4744
    %4746 = vrot.lane.b32.xlu0 %v4736, 96
    %v4747 = vpop.permute.xlu0 %4746
    %4748 = vrot.lane.b32.xlu0 %v4737, 96
    %v4749 = vpop.permute.xlu0 %4748
    %v4754 = vmul.f32 %v4427, %v4743
    %v4755 = vmul.f32 %v4429, %v4745
    %v4756 = vmul.f32 %v4431, %v4747
    %v4757 = vmul.f32 %v4433, %v4749
    %v4758 = vsub.f32 1.0, %v4427
    %v4759 = vsub.f32 1.0, %v4429
    %v4760 = vsub.f32 1.0, %v4431
    %v4761 = vsub.f32 1.0, %v4433
    %v4762 = vmul.f32 %v4758, %v4164
    %v4763 = vmul.f32 %v4759, %v4165
    %v4764 = vmul.f32 %v4760, %v4166
    %v4765 = vmul.f32 %v4761, %v4167
    %v4766 = vadd.f32 %v4754, %v4762
    %v4767 = vadd.f32 %v4755, %v4763
    %v4768 = vadd.f32 %v4756, %v4764
    %v4769 = vadd.f32 %v4757, %v4765
    %v4770 = vld [vmem:[%s755] sm:$0xff]
    %v4771 = vld [vmem:[%s755 + $0x8] sm:$0xff]
    %v4772 = vld [vmem:[%s755 + $0x10] sm:$0xff]
    %v4773 = vld [vmem:[%s755 + $0x18] sm:$0xff]
    %v4774 = vpack.c.bf16 %v4767, %v4766
    %v4775 = vpack.c.bf16 %v4769, %v4768
    %4778 = vrot.lane.b32.xlu0 %v4774, 96
    %v4779 = vpop.permute.xlu0 %4778
    %4780 = vrot.lane.b32.xlu0 %v4775, 96
    %v4781 = vpop.permute.xlu0 %4780
    %v4783 = vsel %vm79, %v4779, 0
    %v4786 = vsel %vm79, %v4781, 0
    %4788 = vmatprep.subr.bf16.mxu0 0
    %4789 = vmatpush1.bf16.msra.mxu0 0
    %4790 = vmatprep.subr.bf16.mxu0 0
    %4791 = vmatpush1.bf16.msra.mxu0 0
    %4792 = vmatprep.subr.bf16.mxu0 0
    %4793 = vmatpush1.bf16.msra.mxu0 0
    %4794 = vmatprep.subr.bf16.mxu0 0
    %4795 = vmatpush1.bf16.msra.mxu0 0
    %4796 = vmatprep.subr.bf16.mxu0 0
    %4797 = vmatpush1.bf16.msra.mxu0 0
    %4798 = vmatprep.subr.bf16.mxu0 0
    %4799 = vmatpush1.bf16.msra.mxu0 0
    %4800 = vmatprep.subr.bf16.mxu0 %v1172
    %4801 = vmatpush1.bf16.msra.mxu0 %v1171
    %4802 = vmatprep.subr.bf16.mxu0 %v1170
    %4803 = vmatpush1.bf16.msra.mxu0 %v1169
    %4804 = vmatprep.subr.bf16.mxu0 0
    %4805 = vmatpush2.bf16.msra.mxu0 0
    %4806 = vmatprep.subr.bf16.mxu0 0
    %4807 = vmatpush2.bf16.msra.mxu0 0
    %4808 = vmatprep.subr.bf16.mxu0 0
    %4809 = vmatpush2.bf16.msra.mxu0 0
    %4810 = vmatprep.subr.bf16.mxu0 0
    %4811 = vmatpush2.bf16.msra.mxu0 0
    %4812 = vmatprep.subr.bf16.mxu0 0
    %4813 = vmatpush2.bf16.msra.mxu0 0
    %4814 = vmatprep.subr.bf16.mxu0 0
    %4815 = vmatpush2.bf16.msra.mxu0 0
    %4816 = vmatprep.subr.bf16.mxu0 0
    %4817 = vmatpush2.bf16.msra.mxu0 0
    %4818 = vmatprep.subr.bf16.mxu0 0
    %4819 = vmatpush2.bf16.msra.mxu0 0
    %4820 = vmatprep.mubr.bf16.mxu0 0
    %4821 = vmatmul.mubr.bf16.gmra.mxu0 %v4783
    %v4822 = vpop.f32.mrf.mxu0
    %v4823 = vadd.f32 0.0, %v4822
    %v4824 = vpop.f32.mrf.mxu0
    %v4825 = vadd.f32 0.0, %v4824
    %v4826 = vpop.f32.mrf.mxu0
    %v4827 = vadd.f32 0.0, %v4826
    %v4828 = vpop.f32.mrf.mxu0
    %v4829 = vadd.f32 0.0, %v4828
    %4830 = vmatprep.mubr.bf16.mxu0 0
    %4831 = vmatmul.mubr.bf16.gmra.mxu0 %v4786
    %v4832 = vpop.f32.mrf.mxu0
    %v4833 = vadd.f32 0.0, %v4832
    %v4834 = vpop.f32.mrf.mxu0
    %v4835 = vadd.f32 0.0, %v4834
    %v4836 = vpop.f32.mrf.mxu0
    %v4837 = vadd.f32 0.0, %v4836
    %v4838 = vpop.f32.mrf.mxu0
    %v4839 = vadd.f32 0.0, %v4838
    %4840 = vdwg.mxu0
    %v4841 = vpack.c.bf16 %v4827, %v4823
    %v4842 = vpack.c.bf16 %v4829, %v4825
    %v4843 = vpack.c.bf16 %v4837, %v4833
    %v4844 = vpack.c.bf16 %v4839, %v4835
    %4845 = vmatprep.subr.bf16.mxu0 0
    %4846 = vmatpush1.bf16.msra.mxu0 0
    %4847 = vmatprep.subr.bf16.mxu0 0
    %4848 = vmatpush1.bf16.msra.mxu0 0
    %4849 = vmatprep.subr.bf16.mxu0 0
    %4850 = vmatpush1.bf16.msra.mxu0 0
    %4851 = vmatprep.subr.bf16.mxu0 0
    %4852 = vmatpush1.bf16.msra.mxu0 0
    %4853 = vmatprep.subr.bf16.mxu0 0
    %4854 = vmatpush1.bf16.msra.mxu0 0
    %4855 = vmatprep.subr.bf16.mxu0 0
    %4856 = vmatpush1.bf16.msra.mxu0 0
    %4857 = vmatprep.subr.bf16.mxu0 0
    %4858 = vmatpush1.bf16.msra.mxu0 %v4843
    %4859 = vmatprep.subr.bf16.mxu0 0
    %4860 = vmatpush1.bf16.msra.mxu0 %v4841
    %4861 = vmatprep.subr.bf16.mxu0 0
    %4862 = vmatpush2.bf16.msra.mxu0 0
    %4863 = vmatprep.subr.bf16.mxu0 0
    %4864 = vmatpush2.bf16.msra.mxu0 0
    %4865 = vmatprep.subr.bf16.mxu0 0
    %4866 = vmatpush2.bf16.msra.mxu0 0
    %4867 = vmatprep.subr.bf16.mxu0 0
    %4868 = vmatpush2.bf16.msra.mxu0 0
    %4869 = vmatprep.subr.bf16.mxu0 0
    %4870 = vmatpush2.bf16.msra.mxu0 0
    %4871 = vmatprep.subr.bf16.mxu0 0
    %4872 = vmatpush2.bf16.msra.mxu0 0
    %4873 = vmatprep.subr.bf16.mxu0 0
    %4874 = vmatpush2.bf16.msra.mxu0 0
    %4875 = vmatprep.subr.bf16.mxu0 0
    %4876 = vmatpush2.bf16.msra.mxu0 0
    %4877 = vmatprep.mubr.bf16.mxu0 0
    %4878 = vmatmul.mubr.bf16.gmra.mxu0 %v81
    %v4879 = vpop.f32.mrf.mxu0
    %v4880 = vadd.f32 0.0, %v4879
    %v4881 = vpop.f32.mrf.mxu0
    %v4882 = vpop.f32.mrf.mxu0
    %v4883 = vadd.f32 0.0, %v4882
    %v4884 = vpop.f32.mrf.mxu0
    %4885 = vmatprep.mubr.bf16.mxu0 0
    %4886 = vmatmul.mubr.bf16.gmra.mxu0 %v84
    %v4887 = vpop.f32.mrf.mxu0
    %v4888 = vadd.f32 0.0, %v4887
    %v4889 = vpop.f32.mrf.mxu0
    %v4890 = vpop.f32.mrf.mxu0
    %v4891 = vadd.f32 0.0, %v4890
    %v4892 = vpop.f32.mrf.mxu0
    %4893 = vdwg.mxu0
    %v4894 = vadd.f32 %v4770, %v4880
    %v4895 = vadd.f32 %v4771, %v4883
    %v4896 = vadd.f32 %v4772, %v4888
    %v4897 = vadd.f32 %v4773, %v4891
    %4900 = vrot.lane.b32.xlu0 %v4841, 64
    %v4901 = vpop.permute.xlu0 %4900
    %4902 = vrot.lane.b32.xlu0 %v4843, 64
    %v4903 = vpop.permute.xlu0 %4902
    %4906 = vmatprep.subr.bf16.mxu0 0
    %4907 = vmatpush1.bf16.msra.mxu0 0
    %4908 = vmatprep.subr.bf16.mxu0 0
    %4909 = vmatpush1.bf16.msra.mxu0 0
    %4910 = vmatprep.subr.bf16.mxu0 0
    %4911 = vmatpush1.bf16.msra.mxu0 0
    %4912 = vmatprep.subr.bf16.mxu0 0
    %4913 = vmatpush1.bf16.msra.mxu0 0
    %4914 = vmatprep.subr.bf16.mxu0 0
    %4915 = vmatpush1.bf16.msra.mxu0 0
    %4916 = vmatprep.subr.bf16.mxu0 0
    %4917 = vmatpush1.bf16.msra.mxu0 0
    %4918 = vmatprep.subr.bf16.mxu0 0
    %4919 = vmatpush1.bf16.msra.mxu0 %v4903
    %4920 = vmatprep.subr.bf16.mxu0 0
    %4921 = vmatpush1.bf16.msra.mxu0 %v4901
    %4922 = vmatprep.subr.bf16.mxu0 0
    %4923 = vmatpush2.bf16.msra.mxu0 0
    %4924 = vmatprep.subr.bf16.mxu0 0
    %4925 = vmatpush2.bf16.msra.mxu0 0
    %4926 = vmatprep.subr.bf16.mxu0 0
    %4927 = vmatpush2.bf16.msra.mxu0 0
    %4928 = vmatprep.subr.bf16.mxu0 0
    %4929 = vmatpush2.bf16.msra.mxu0 0
    %4930 = vmatprep.subr.bf16.mxu0 0
    %4931 = vmatpush2.bf16.msra.mxu0 0
    %4932 = vmatprep.subr.bf16.mxu0 0
    %4933 = vmatpush2.bf16.msra.mxu0 0
    %4934 = vmatprep.subr.bf16.mxu0 0
    %4935 = vmatpush2.bf16.msra.mxu0 0
    %4936 = vmatprep.subr.bf16.mxu0 0
    %4937 = vmatpush2.bf16.msra.mxu0 0
    %4938 = vmatprep.mubr.bf16.mxu0 0
    %4939 = vmatmul.mubr.bf16.gmra.mxu0 %v87
    %v4940 = vpop.f32.mrf.mxu0
    %v4941 = vadd.f32 0.0, %v4940
    %v4942 = vpop.f32.mrf.mxu0
    %v4943 = vpop.f32.mrf.mxu0
    %v4944 = vadd.f32 0.0, %v4943
    %v4945 = vpop.f32.mrf.mxu0
    %4946 = vmatprep.mubr.bf16.mxu0 0
    %4947 = vmatmul.mubr.bf16.gmra.mxu0 %v90
    %v4948 = vpop.f32.mrf.mxu0
    %v4949 = vadd.f32 0.0, %v4948
    %v4950 = vpop.f32.mrf.mxu0
    %v4951 = vpop.f32.mrf.mxu0
    %v4952 = vadd.f32 0.0, %v4951
    %v4953 = vpop.f32.mrf.mxu0
    %4954 = vdwg.mxu0
    %v4955 = vadd.f32 %v4894, %v4941
    %v4956 = vadd.f32 %v4895, %v4944
    %v4957 = vadd.f32 %v4896, %v4949
    %v4958 = vadd.f32 %v4897, %v4952
    %4959 = vmatprep.subr.bf16.mxu0 0
    %4960 = vmatpush1.bf16.msra.mxu0 0
    %4961 = vmatprep.subr.bf16.mxu0 0
    %4962 = vmatpush1.bf16.msra.mxu0 0
    %4963 = vmatprep.subr.bf16.mxu0 0
    %4964 = vmatpush1.bf16.msra.mxu0 0
    %4965 = vmatprep.subr.bf16.mxu0 0
    %4966 = vmatpush1.bf16.msra.mxu0 0
    %4967 = vmatprep.subr.bf16.mxu0 0
    %4968 = vmatpush1.bf16.msra.mxu0 0
    %4969 = vmatprep.subr.bf16.mxu0 0
    %4970 = vmatpush1.bf16.msra.mxu0 0
    %4971 = vmatprep.subr.bf16.mxu0 0
    %4972 = vmatpush1.bf16.msra.mxu0 %v4844
    %4973 = vmatprep.subr.bf16.mxu0 0
    %4974 = vmatpush1.bf16.msra.mxu0 %v4842
    %4975 = vmatprep.subr.bf16.mxu0 0
    %4976 = vmatpush2.bf16.msra.mxu0 0
    %4977 = vmatprep.subr.bf16.mxu0 0
    %4978 = vmatpush2.bf16.msra.mxu0 0
    %4979 = vmatprep.subr.bf16.mxu0 0
    %4980 = vmatpush2.bf16.msra.mxu0 0
    %4981 = vmatprep.subr.bf16.mxu0 0
    %4982 = vmatpush2.bf16.msra.mxu0 0
    %4983 = vmatprep.subr.bf16.mxu0 0
    %4984 = vmatpush2.bf16.msra.mxu0 0
    %4985 = vmatprep.subr.bf16.mxu0 0
    %4986 = vmatpush2.bf16.msra.mxu0 0
    %4987 = vmatprep.subr.bf16.mxu0 0
    %4988 = vmatpush2.bf16.msra.mxu0 0
    %4989 = vmatprep.subr.bf16.mxu0 0
    %4990 = vmatpush2.bf16.msra.mxu0 0
    %4991 = vmatprep.mubr.bf16.mxu0 0
    %4992 = vmatmul.mubr.bf16.gmra.mxu0 %v93
    %v4993 = vpop.f32.mrf.mxu0
    %v4994 = vadd.f32 0.0, %v4993
    %v4995 = vpop.f32.mrf.mxu0
    %v4996 = vpop.f32.mrf.mxu0
    %v4997 = vadd.f32 0.0, %v4996
    %v4998 = vpop.f32.mrf.mxu0
    %4999 = vmatprep.mubr.bf16.mxu0 0
    %5000 = vmatmul.mubr.bf16.gmra.mxu0 %v96
    %v5001 = vpop.f32.mrf.mxu0
    %v5002 = vadd.f32 0.0, %v5001
    %v5003 = vpop.f32.mrf.mxu0
    %v5004 = vpop.f32.mrf.mxu0
    %v5005 = vadd.f32 0.0, %v5004
    %v5006 = vpop.f32.mrf.mxu0
    %5007 = vdwg.mxu0
    %v5008 = vadd.f32 %v4955, %v4994
    %v5009 = vadd.f32 %v4956, %v4997
    %v5010 = vadd.f32 %v4957, %v5002
    %v5011 = vadd.f32 %v4958, %v5005
    %v5012 = vxor.u32 %v5008, 2147483648
    %v5013 = vxor.u32 %v5009, 2147483648
    %v5014 = vxor.u32 %v5010, 2147483648
    %v5015 = vxor.u32 %v5011, 2147483648
    %v5016 = vmul.f32 %v5012, 1.442695
    %v5017 = vpow.pop %v5016
    %v5018 = vmul.f32 %v5013, 1.442695
    %v5019 = vpow.pop %v5018
    %v5020 = vmul.f32 %v5014, 1.442695
    %v5021 = vpow.pop %v5020
    %v5022 = vmul.f32 %v5015, 1.442695
    %v5023 = vpow.pop %v5022
    %v5024 = vadd.f32 %v5017, 1.0
    %v5025 = vadd.f32 %v5019, 1.0
    %v5026 = vadd.f32 %v5021, 1.0
    %v5027 = vadd.f32 %v5023, 1.0
    %v5028 = vrcp.pop %v5024
    %v5029 = vmul.f32 1.0, %v5028
    %v5030 = vrcp.pop %v5025
    %v5031 = vmul.f32 1.0, %v5030
    %v5032 = vrcp.pop %v5026
    %v5033 = vmul.f32 1.0, %v5032
    %v5034 = vrcp.pop %v5027
    %v5035 = vmul.f32 1.0, %v5034
    %5040 = vrot.lane.b32.xlu0 %v4766, 96
    %v5041 = vpop.permute.xlu0 %5040
    %5042 = vrot.lane.b32.xlu0 %v4767, 96
    %v5043 = vpop.permute.xlu0 %5042
    %5044 = vrot.lane.b32.xlu0 %v4768, 96
    %v5045 = vpop.permute.xlu0 %5044
    %5046 = vrot.lane.b32.xlu0 %v4769, 96
    %v5047 = vpop.permute.xlu0 %5046
    %v5052 = vmul.f32 %v5029, %v5041
    %v5053 = vmul.f32 %v5031, %v5043
    %v5054 = vmul.f32 %v5033, %v5045
    %v5055 = vmul.f32 %v5035, %v5047
    %v5056 = vpack.c.bf16 %v5053, %v5052
    %v5057 = vpack.c.bf16 %v5055, %v5054
    %v5059 = vsel %vm79, %v5056, 0
    %v5062 = vsel %vm79, %v5057, 0
    %5064 = vmatprep.subr.bf16.mxu0 0
    %5065 = vmatpush1.bf16.msra.mxu0 0
    %5066 = vmatprep.subr.bf16.mxu0 0
    %5067 = vmatpush1.bf16.msra.mxu0 0
    %5068 = vmatprep.subr.bf16.mxu0 0
    %5069 = vmatpush1.bf16.msra.mxu0 0
    %5070 = vmatprep.subr.bf16.mxu0 0
    %5071 = vmatpush1.bf16.msra.mxu0 0
    %5072 = vmatprep.subr.bf16.mxu0 0
    %5073 = vmatpush1.bf16.msra.mxu0 0
    %5074 = vmatprep.subr.bf16.mxu0 0
    %5075 = vmatpush1.bf16.msra.mxu0 0
    %5076 = vmatprep.subr.bf16.mxu0 0
    %5077 = vmatpush1.bf16.msra.mxu0 %v1443
    %5078 = vmatprep.subr.bf16.mxu0 0
    %5079 = vmatpush1.bf16.msra.mxu0 %v1442
    %5080 = vmatprep.subr.bf16.mxu0 0
    %5081 = vmatpush2.bf16.msra.mxu0 0
    %5082 = vmatprep.subr.bf16.mxu0 0
    %5083 = vmatpush2.bf16.msra.mxu0 0
    %5084 = vmatprep.subr.bf16.mxu0 0
    %5085 = vmatpush2.bf16.msra.mxu0 0
    %5086 = vmatprep.subr.bf16.mxu0 0
    %5087 = vmatpush2.bf16.msra.mxu0 0
    %5088 = vmatprep.subr.bf16.mxu0 0
    %5089 = vmatpush2.bf16.msra.mxu0 0
    %5090 = vmatprep.subr.bf16.mxu0 0
    %5091 = vmatpush2.bf16.msra.mxu0 0
    %5092 = vmatprep.subr.bf16.mxu0 0
    %5093 = vmatpush2.bf16.msra.mxu0 0
    %5094 = vmatprep.subr.bf16.mxu0 0
    %5095 = vmatpush2.bf16.msra.mxu0 0
    %5096 = vmatprep.mubr.bf16.mxu0 0
    %5097 = vmatmul.mubr.bf16.gmra.mxu0 %v5059
    %v5098 = vpop.f32.mrf.mxu0
    %v5099 = vadd.f32 0.0, %v5098
    %v5100 = vpop.f32.mrf.mxu0
    %v5101 = vpop.f32.mrf.mxu0
    %v5102 = vadd.f32 0.0, %v5101
    %v5103 = vpop.f32.mrf.mxu0
    %5104 = vmatprep.mubr.bf16.mxu0 0
    %5105 = vmatmul.mubr.bf16.gmra.mxu0 %v5062
    %v5106 = vpop.f32.mrf.mxu0
    %v5107 = vadd.f32 0.0, %v5106
    %v5108 = vpop.f32.mrf.mxu0
    %v5109 = vpop.f32.mrf.mxu0
    %v5110 = vadd.f32 0.0, %v5109
    %v5111 = vpop.f32.mrf.mxu0
    %5112 = vdwg.mxu0
    %v5113 = vpack.c.bf16 %v5102, %v5099
    %v5114 = vpack.c.bf16 %v5110, %v5107
    %5115 = vmatprep.subr.bf16.mxu0 0
    %5116 = vmatpush1.bf16.msra.mxu0 0
    %5117 = vmatprep.subr.bf16.mxu0 0
    %5118 = vmatpush1.bf16.msra.mxu0 0
    %5119 = vmatprep.subr.bf16.mxu0 0
    %5120 = vmatpush1.bf16.msra.mxu0 0
    %5121 = vmatprep.subr.bf16.mxu0 0
    %5122 = vmatpush1.bf16.msra.mxu0 0
    %5123 = vmatprep.subr.bf16.mxu0 0
    %5124 = vmatpush1.bf16.msra.mxu0 0
    %5125 = vmatprep.subr.bf16.mxu0 0
    %5126 = vmatpush1.bf16.msra.mxu0 0
    %5127 = vmatprep.subr.bf16.mxu0 0
    %5128 = vmatpush1.bf16.msra.mxu0 %v5114
    %5129 = vmatprep.subr.bf16.mxu0 0
    %5130 = vmatpush1.bf16.msra.mxu0 %v5113
    %5131 = vmatprep.subr.bf16.mxu0 0
    %5132 = vmatpush2.bf16.msra.mxu0 0
    %5133 = vmatprep.subr.bf16.mxu0 0
    %5134 = vmatpush2.bf16.msra.mxu0 0
    %5135 = vmatprep.subr.bf16.mxu0 0
    %5136 = vmatpush2.bf16.msra.mxu0 0
    %5137 = vmatprep.subr.bf16.mxu0 0
    %5138 = vmatpush2.bf16.msra.mxu0 0
    %5139 = vmatprep.subr.bf16.mxu0 0
    %5140 = vmatpush2.bf16.msra.mxu0 0
    %5141 = vmatprep.subr.bf16.mxu0 0
    %5142 = vmatpush2.bf16.msra.mxu0 0
    %5143 = vmatprep.subr.bf16.mxu0 0
    %5144 = vmatpush2.bf16.msra.mxu0 0
    %5145 = vmatprep.subr.bf16.mxu0 0
    %5146 = vmatpush2.bf16.msra.mxu0 0
    %5147 = vmatprep.mubr.bf16.mxu0 0
    %5148 = vmatmul.mubr.bf16.gmra.mxu0 %v81
    %v5149 = vpop.f32.mrf.mxu0
    %v5150 = vadd.f32 0.0, %v5149
    %v5151 = vpop.f32.mrf.mxu0
    %v5152 = vpop.f32.mrf.mxu0
    %v5153 = vadd.f32 0.0, %v5152
    %v5154 = vpop.f32.mrf.mxu0
    %5155 = vmatprep.mubr.bf16.mxu0 0
    %5156 = vmatmul.mubr.bf16.gmra.mxu0 %v84
    %v5157 = vpop.f32.mrf.mxu0
    %v5158 = vadd.f32 0.0, %v5157
    %v5159 = vpop.f32.mrf.mxu0
    %v5160 = vpop.f32.mrf.mxu0
    %v5161 = vadd.f32 0.0, %v5160
    %v5162 = vpop.f32.mrf.mxu0
    %5163 = vdwg.mxu0
    %5168 = vrot.lane.b32.xlu0 %v5150, 64
    %v5169 = vpop.permute.xlu0 %5168
    %5170 = vrot.lane.b32.xlu0 %v5153, 64
    %v5171 = vpop.permute.xlu0 %5170
    %5172 = vrot.lane.b32.xlu0 %v5158, 64
    %v5173 = vpop.permute.xlu0 %5172
    %5174 = vrot.lane.b32.xlu0 %v5161, 64
    %v5175 = vpop.permute.xlu0 %5174
    %v5180 = vadd.f32 %v4770, %v5169
    %v5181 = vadd.f32 %v4771, %v5171
    %v5182 = vadd.f32 %v4772, %v5173
    %v5183 = vadd.f32 %v4773, %v5175
    %5186 = vrot.lane.b32.xlu0 %v5113, 96
    %v5187 = vpop.permute.xlu0 %5186
    %5188 = vrot.lane.b32.xlu0 %v5114, 96
    %v5189 = vpop.permute.xlu0 %5188
    %5192 = vmatprep.subr.bf16.mxu0 0
    %5193 = vmatpush1.bf16.msra.mxu0 0
    %5194 = vmatprep.subr.bf16.mxu0 0
    %5195 = vmatpush1.bf16.msra.mxu0 0
    %5196 = vmatprep.subr.bf16.mxu0 0
    %5197 = vmatpush1.bf16.msra.mxu0 0
    %5198 = vmatprep.subr.bf16.mxu0 0
    %5199 = vmatpush1.bf16.msra.mxu0 0
    %5200 = vmatprep.subr.bf16.mxu0 0
    %5201 = vmatpush1.bf16.msra.mxu0 0
    %5202 = vmatprep.subr.bf16.mxu0 0
    %5203 = vmatpush1.bf16.msra.mxu0 0
    %5204 = vmatprep.subr.bf16.mxu0 0
    %5205 = vmatpush1.bf16.msra.mxu0 %v5189
    %5206 = vmatprep.subr.bf16.mxu0 0
    %5207 = vmatpush1.bf16.msra.mxu0 %v5187
    %5208 = vmatprep.subr.bf16.mxu0 0
    %5209 = vmatpush2.bf16.msra.mxu0 0
    %5210 = vmatprep.subr.bf16.mxu0 0
    %5211 = vmatpush2.bf16.msra.mxu0 0
    %5212 = vmatprep.subr.bf16.mxu0 0
    %5213 = vmatpush2.bf16.msra.mxu0 0
    %5214 = vmatprep.subr.bf16.mxu0 0
    %5215 = vmatpush2.bf16.msra.mxu0 0
    %5216 = vmatprep.subr.bf16.mxu0 0
    %5217 = vmatpush2.bf16.msra.mxu0 0
    %5218 = vmatprep.subr.bf16.mxu0 0
    %5219 = vmatpush2.bf16.msra.mxu0 0
    %5220 = vmatprep.subr.bf16.mxu0 0
    %5221 = vmatpush2.bf16.msra.mxu0 0
    %5222 = vmatprep.subr.bf16.mxu0 0
    %5223 = vmatpush2.bf16.msra.mxu0 0
    %5224 = vmatprep.mubr.bf16.mxu0 0
    %5225 = vmatmul.mubr.bf16.gmra.mxu0 %v87
    %v5226 = vpop.f32.mrf.mxu0
    %v5227 = vadd.f32 0.0, %v5226
    %v5228 = vpop.f32.mrf.mxu0
    %v5229 = vpop.f32.mrf.mxu0
    %v5230 = vadd.f32 0.0, %v5229
    %v5231 = vpop.f32.mrf.mxu0
    %5232 = vmatprep.mubr.bf16.mxu0 0
    %5233 = vmatmul.mubr.bf16.gmra.mxu0 %v90
    %v5234 = vpop.f32.mrf.mxu0
    %v5235 = vadd.f32 0.0, %v5234
    %v5236 = vpop.f32.mrf.mxu0
    %v5237 = vpop.f32.mrf.mxu0
    %v5238 = vadd.f32 0.0, %v5237
    %v5239 = vpop.f32.mrf.mxu0
    %5240 = vdwg.mxu0
    %5245 = vrot.lane.b32.xlu0 %v5227, 64
    %v5246 = vpop.permute.xlu0 %5245
    %5247 = vrot.lane.b32.xlu0 %v5230, 64
    %v5248 = vpop.permute.xlu0 %5247
    %5249 = vrot.lane.b32.xlu0 %v5235, 64
    %v5250 = vpop.permute.xlu0 %5249
    %5251 = vrot.lane.b32.xlu0 %v5238, 64
    %v5252 = vpop.permute.xlu0 %5251
    %v5257 = vadd.f32 %v5180, %v5246
    %v5258 = vadd.f32 %v5181, %v5248
    %v5259 = vadd.f32 %v5182, %v5250
    %v5260 = vadd.f32 %v5183, %v5252
    %5261 = vrot.lane.b32.xlu0 %v5113, 64
    %v5262 = vpop.permute.xlu0 %5261
    %5263 = vrot.lane.b32.xlu0 %v5114, 64
    %v5264 = vpop.permute.xlu0 %5263
    %5267 = vmatprep.subr.bf16.mxu0 0
    %5268 = vmatpush1.bf16.msra.mxu0 0
    %5269 = vmatprep.subr.bf16.mxu0 0
    %5270 = vmatpush1.bf16.msra.mxu0 0
    %5271 = vmatprep.subr.bf16.mxu0 0
    %5272 = vmatpush1.bf16.msra.mxu0 0
    %5273 = vmatprep.subr.bf16.mxu0 0
    %5274 = vmatpush1.bf16.msra.mxu0 0
    %5275 = vmatprep.subr.bf16.mxu0 0
    %5276 = vmatpush1.bf16.msra.mxu0 0
    %5277 = vmatprep.subr.bf16.mxu0 0
    %5278 = vmatpush1.bf16.msra.mxu0 0
    %5279 = vmatprep.subr.bf16.mxu0 0
    %5280 = vmatpush1.bf16.msra.mxu0 %v5264
    %5281 = vmatprep.subr.bf16.mxu0 0
    %5282 = vmatpush1.bf16.msra.mxu0 %v5262
    %5283 = vmatprep.subr.bf16.mxu0 0
    %5284 = vmatpush2.bf16.msra.mxu0 0
    %5285 = vmatprep.subr.bf16.mxu0 0
    %5286 = vmatpush2.bf16.msra.mxu0 0
    %5287 = vmatprep.subr.bf16.mxu0 0
    %5288 = vmatpush2.bf16.msra.mxu0 0
    %5289 = vmatprep.subr.bf16.mxu0 0
    %5290 = vmatpush2.bf16.msra.mxu0 0
    %5291 = vmatprep.subr.bf16.mxu0 0
    %5292 = vmatpush2.bf16.msra.mxu0 0
    %5293 = vmatprep.subr.bf16.mxu0 0
    %5294 = vmatpush2.bf16.msra.mxu0 0
    %5295 = vmatprep.subr.bf16.mxu0 0
    %5296 = vmatpush2.bf16.msra.mxu0 0
    %5297 = vmatprep.subr.bf16.mxu0 0
    %5298 = vmatpush2.bf16.msra.mxu0 0
    %5299 = vmatprep.mubr.bf16.mxu0 0
    %5300 = vmatmul.mubr.bf16.gmra.mxu0 %v93
    %v5301 = vpop.f32.mrf.mxu0
    %v5302 = vadd.f32 0.0, %v5301
    %v5303 = vpop.f32.mrf.mxu0
    %v5304 = vpop.f32.mrf.mxu0
    %v5305 = vadd.f32 0.0, %v5304
    %v5306 = vpop.f32.mrf.mxu0
    %5307 = vmatprep.mubr.bf16.mxu0 0
    %5308 = vmatmul.mubr.bf16.gmra.mxu0 %v96
    %v5309 = vpop.f32.mrf.mxu0
    %v5310 = vadd.f32 0.0, %v5309
    %v5311 = vpop.f32.mrf.mxu0
    %v5312 = vpop.f32.mrf.mxu0
    %v5313 = vadd.f32 0.0, %v5312
    %v5314 = vpop.f32.mrf.mxu0
    %5315 = vdwg.mxu0
    %5320 = vrot.lane.b32.xlu0 %v5302, 64
    %v5321 = vpop.permute.xlu0 %5320
    %5322 = vrot.lane.b32.xlu0 %v5305, 64
    %v5323 = vpop.permute.xlu0 %5322
    %5324 = vrot.lane.b32.xlu0 %v5310, 64
    %v5325 = vpop.permute.xlu0 %5324
    %5326 = vrot.lane.b32.xlu0 %v5313, 64
    %v5327 = vpop.permute.xlu0 %5326
    %v5332 = vadd.f32 %v5257, %v5321
    %v5333 = vadd.f32 %v5258, %v5323
    %v5334 = vadd.f32 %v5259, %v5325
    %v5335 = vadd.f32 %v5260, %v5327
    %v5336 = vtanh.pop %v5332
    %v5337 = vtanh.pop %v5333
    %v5338 = vtanh.pop %v5334
    %v5339 = vtanh.pop %v5335
    %5344 = vrot.lane.b32.xlu0 %v5336, 96
    %v5345 = vpop.permute.xlu0 %5344
    %5346 = vrot.lane.b32.xlu0 %v5337, 96
    %v5347 = vpop.permute.xlu0 %5346
    %5348 = vrot.lane.b32.xlu0 %v5338, 96
    %v5349 = vpop.permute.xlu0 %5348
    %5350 = vrot.lane.b32.xlu0 %v5339, 96
    %v5351 = vpop.permute.xlu0 %5350
    %v5356 = vmul.f32 %v5029, %v5345
    %v5357 = vmul.f32 %v5031, %v5347
    %v5358 = vmul.f32 %v5033, %v5349
    %v5359 = vmul.f32 %v5035, %v5351
    %v5360 = vsub.f32 1.0, %v5029
    %v5361 = vsub.f32 1.0, %v5031
    %v5362 = vsub.f32 1.0, %v5033
    %v5363 = vsub.f32 1.0, %v5035
    %v5364 = vmul.f32 %v5360, %v4766
    %v5365 = vmul.f32 %v5361, %v4767
    %v5366 = vmul.f32 %v5362, %v4768
    %v5367 = vmul.f32 %v5363, %v4769
    %v5368 = vadd.f32 %v5356, %v5364
    %v5369 = vadd.f32 %v5357, %v5365
    %v5370 = vadd.f32 %v5358, %v5366
    %v5371 = vadd.f32 %v5359, %v5367
    %v5372 = vld [vmem:[%s832] sm:$0xff]
    %v5373 = vld [vmem:[%s832 + $0x8] sm:$0xff]
    %v5374 = vld [vmem:[%s832 + $0x10] sm:$0xff]
    %v5375 = vld [vmem:[%s832 + $0x18] sm:$0xff]
    %v5376 = vpack.c.bf16 %v5369, %v5368
    %v5377 = vpack.c.bf16 %v5371, %v5370
    %5380 = vrot.lane.b32.xlu0 %v5376, 96
    %v5381 = vpop.permute.xlu0 %5380
    %5382 = vrot.lane.b32.xlu0 %v5377, 96
    %v5383 = vpop.permute.xlu0 %5382
    %v5385 = vsel %vm79, %v5381, 0
    %v5388 = vsel %vm79, %v5383, 0
    %5390 = vmatprep.subr.bf16.mxu0 0
    %5391 = vmatpush1.bf16.msra.mxu0 0
    %5392 = vmatprep.subr.bf16.mxu0 0
    %5393 = vmatpush1.bf16.msra.mxu0 0
    %5394 = vmatprep.subr.bf16.mxu0 0
    %5395 = vmatpush1.bf16.msra.mxu0 0
    %5396 = vmatprep.subr.bf16.mxu0 0
    %5397 = vmatpush1.bf16.msra.mxu0 0
    %5398 = vmatprep.subr.bf16.mxu0 0
    %5399 = vmatpush1.bf16.msra.mxu0 0
    %5400 = vmatprep.subr.bf16.mxu0 0
    %5401 = vmatpush1.bf16.msra.mxu0 0
    %5402 = vmatprep.subr.bf16.mxu0 %v1172
    %5403 = vmatpush1.bf16.msra.mxu0 %v1171
    %5404 = vmatprep.subr.bf16.mxu0 %v1170
    %5405 = vmatpush1.bf16.msra.mxu0 %v1169
    %5406 = vmatprep.subr.bf16.mxu0 0
    %5407 = vmatpush2.bf16.msra.mxu0 0
    %5408 = vmatprep.subr.bf16.mxu0 0
    %5409 = vmatpush2.bf16.msra.mxu0 0
    %5410 = vmatprep.subr.bf16.mxu0 0
    %5411 = vmatpush2.bf16.msra.mxu0 0
    %5412 = vmatprep.subr.bf16.mxu0 0
    %5413 = vmatpush2.bf16.msra.mxu0 0
    %5414 = vmatprep.subr.bf16.mxu0 0
    %5415 = vmatpush2.bf16.msra.mxu0 0
    %5416 = vmatprep.subr.bf16.mxu0 0
    %5417 = vmatpush2.bf16.msra.mxu0 0
    %5418 = vmatprep.subr.bf16.mxu0 0
    %5419 = vmatpush2.bf16.msra.mxu0 0
    %5420 = vmatprep.subr.bf16.mxu0 0
    %5421 = vmatpush2.bf16.msra.mxu0 0
    %5422 = vmatprep.mubr.bf16.mxu0 0
    %5423 = vmatmul.mubr.bf16.gmra.mxu0 %v5385
    %v5424 = vpop.f32.mrf.mxu0
    %v5425 = vadd.f32 0.0, %v5424
    %v5426 = vpop.f32.mrf.mxu0
    %v5427 = vadd.f32 0.0, %v5426
    %v5428 = vpop.f32.mrf.mxu0
    %v5429 = vadd.f32 0.0, %v5428
    %v5430 = vpop.f32.mrf.mxu0
    %v5431 = vadd.f32 0.0, %v5430
    %5432 = vmatprep.mubr.bf16.mxu0 0
    %5433 = vmatmul.mubr.bf16.gmra.mxu0 %v5388
    %v5434 = vpop.f32.mrf.mxu0
    %v5435 = vadd.f32 0.0, %v5434
    %v5436 = vpop.f32.mrf.mxu0
    %v5437 = vadd.f32 0.0, %v5436
    %v5438 = vpop.f32.mrf.mxu0
    %v5439 = vadd.f32 0.0, %v5438
    %v5440 = vpop.f32.mrf.mxu0
    %v5441 = vadd.f32 0.0, %v5440
    %5442 = vdwg.mxu0
    %v5443 = vpack.c.bf16 %v5429, %v5425
    %v5444 = vpack.c.bf16 %v5431, %v5427
    %v5445 = vpack.c.bf16 %v5439, %v5435
    %v5446 = vpack.c.bf16 %v5441, %v5437
    %5447 = vmatprep.subr.bf16.mxu0 0
    %5448 = vmatpush1.bf16.msra.mxu0 0
    %5449 = vmatprep.subr.bf16.mxu0 0
    %5450 = vmatpush1.bf16.msra.mxu0 0
    %5451 = vmatprep.subr.bf16.mxu0 0
    %5452 = vmatpush1.bf16.msra.mxu0 0
    %5453 = vmatprep.subr.bf16.mxu0 0
    %5454 = vmatpush1.bf16.msra.mxu0 0
    %5455 = vmatprep.subr.bf16.mxu0 0
    %5456 = vmatpush1.bf16.msra.mxu0 0
    %5457 = vmatprep.subr.bf16.mxu0 0
    %5458 = vmatpush1.bf16.msra.mxu0 0
    %5459 = vmatprep.subr.bf16.mxu0 0
    %5460 = vmatpush1.bf16.msra.mxu0 %v5445
    %5461 = vmatprep.subr.bf16.mxu0 0
    %5462 = vmatpush1.bf16.msra.mxu0 %v5443
    %5463 = vmatprep.subr.bf16.mxu0 0
    %5464 = vmatpush2.bf16.msra.mxu0 0
    %5465 = vmatprep.subr.bf16.mxu0 0
    %5466 = vmatpush2.bf16.msra.mxu0 0
    %5467 = vmatprep.subr.bf16.mxu0 0
    %5468 = vmatpush2.bf16.msra.mxu0 0
    %5469 = vmatprep.subr.bf16.mxu0 0
    %5470 = vmatpush2.bf16.msra.mxu0 0
    %5471 = vmatprep.subr.bf16.mxu0 0
    %5472 = vmatpush2.bf16.msra.mxu0 0
    %5473 = vmatprep.subr.bf16.mxu0 0
    %5474 = vmatpush2.bf16.msra.mxu0 0
    %5475 = vmatprep.subr.bf16.mxu0 0
    %5476 = vmatpush2.bf16.msra.mxu0 0
    %5477 = vmatprep.subr.bf16.mxu0 0
    %5478 = vmatpush2.bf16.msra.mxu0 0
    %5479 = vmatprep.mubr.bf16.mxu0 0
    %5480 = vmatmul.mubr.bf16.gmra.mxu0 %v81
    %v5481 = vpop.f32.mrf.mxu0
    %v5482 = vadd.f32 0.0, %v5481
    %v5483 = vpop.f32.mrf.mxu0
    %v5484 = vpop.f32.mrf.mxu0
    %v5485 = vadd.f32 0.0, %v5484
    %v5486 = vpop.f32.mrf.mxu0
    %5487 = vmatprep.mubr.bf16.mxu0 0
    %5488 = vmatmul.mubr.bf16.gmra.mxu0 %v84
    %v5489 = vpop.f32.mrf.mxu0
    %v5490 = vadd.f32 0.0, %v5489
    %v5491 = vpop.f32.mrf.mxu0
    %v5492 = vpop.f32.mrf.mxu0
    %v5493 = vadd.f32 0.0, %v5492
    %v5494 = vpop.f32.mrf.mxu0
    %5495 = vdwg.mxu0
    %v5496 = vadd.f32 %v5372, %v5482
    %v5497 = vadd.f32 %v5373, %v5485
    %v5498 = vadd.f32 %v5374, %v5490
    %v5499 = vadd.f32 %v5375, %v5493
    %5502 = vrot.lane.b32.xlu0 %v5443, 64
    %v5503 = vpop.permute.xlu0 %5502
    %5504 = vrot.lane.b32.xlu0 %v5445, 64
    %v5505 = vpop.permute.xlu0 %5504
    %5508 = vmatprep.subr.bf16.mxu0 0
    %5509 = vmatpush1.bf16.msra.mxu0 0
    %5510 = vmatprep.subr.bf16.mxu0 0
    %5511 = vmatpush1.bf16.msra.mxu0 0
    %5512 = vmatprep.subr.bf16.mxu0 0
    %5513 = vmatpush1.bf16.msra.mxu0 0
    %5514 = vmatprep.subr.bf16.mxu0 0
    %5515 = vmatpush1.bf16.msra.mxu0 0
    %5516 = vmatprep.subr.bf16.mxu0 0
    %5517 = vmatpush1.bf16.msra.mxu0 0
    %5518 = vmatprep.subr.bf16.mxu0 0
    %5519 = vmatpush1.bf16.msra.mxu0 0
    %5520 = vmatprep.subr.bf16.mxu0 0
    %5521 = vmatpush1.bf16.msra.mxu0 %v5505
    %5522 = vmatprep.subr.bf16.mxu0 0
    %5523 = vmatpush1.bf16.msra.mxu0 %v5503
    %5524 = vmatprep.subr.bf16.mxu0 0
    %5525 = vmatpush2.bf16.msra.mxu0 0
    %5526 = vmatprep.subr.bf16.mxu0 0
    %5527 = vmatpush2.bf16.msra.mxu0 0
    %5528 = vmatprep.subr.bf16.mxu0 0
    %5529 = vmatpush2.bf16.msra.mxu0 0
    %5530 = vmatprep.subr.bf16.mxu0 0
    %5531 = vmatpush2.bf16.msra.mxu0 0
    %5532 = vmatprep.subr.bf16.mxu0 0
    %5533 = vmatpush2.bf16.msra.mxu0 0
    %5534 = vmatprep.subr.bf16.mxu0 0
    %5535 = vmatpush2.bf16.msra.mxu0 0
    %5536 = vmatprep.subr.bf16.mxu0 0
    %5537 = vmatpush2.bf16.msra.mxu0 0
    %5538 = vmatprep.subr.bf16.mxu0 0
    %5539 = vmatpush2.bf16.msra.mxu0 0
    %5540 = vmatprep.mubr.bf16.mxu0 0
    %5541 = vmatmul.mubr.bf16.gmra.mxu0 %v87
    %v5542 = vpop.f32.mrf.mxu0
    %v5543 = vadd.f32 0.0, %v5542
    %v5544 = vpop.f32.mrf.mxu0
    %v5545 = vpop.f32.mrf.mxu0
    %v5546 = vadd.f32 0.0, %v5545
    %v5547 = vpop.f32.mrf.mxu0
    %5548 = vmatprep.mubr.bf16.mxu0 0
    %5549 = vmatmul.mubr.bf16.gmra.mxu0 %v90
    %v5550 = vpop.f32.mrf.mxu0
    %v5551 = vadd.f32 0.0, %v5550
    %v5552 = vpop.f32.mrf.mxu0
    %v5553 = vpop.f32.mrf.mxu0
    %v5554 = vadd.f32 0.0, %v5553
    %v5555 = vpop.f32.mrf.mxu0
    %5556 = vdwg.mxu0
    %v5557 = vadd.f32 %v5496, %v5543
    %v5558 = vadd.f32 %v5497, %v5546
    %v5559 = vadd.f32 %v5498, %v5551
    %v5560 = vadd.f32 %v5499, %v5554
    %5561 = vmatprep.subr.bf16.mxu0 0
    %5562 = vmatpush1.bf16.msra.mxu0 0
    %5563 = vmatprep.subr.bf16.mxu0 0
    %5564 = vmatpush1.bf16.msra.mxu0 0
    %5565 = vmatprep.subr.bf16.mxu0 0
    %5566 = vmatpush1.bf16.msra.mxu0 0
    %5567 = vmatprep.subr.bf16.mxu0 0
    %5568 = vmatpush1.bf16.msra.mxu0 0
    %5569 = vmatprep.subr.bf16.mxu0 0
    %5570 = vmatpush1.bf16.msra.mxu0 0
    %5571 = vmatprep.subr.bf16.mxu0 0
    %5572 = vmatpush1.bf16.msra.mxu0 0
    %5573 = vmatprep.subr.bf16.mxu0 0
    %5574 = vmatpush1.bf16.msra.mxu0 %v5446
    %5575 = vmatprep.subr.bf16.mxu0 0
    %5576 = vmatpush1.bf16.msra.mxu0 %v5444
    %5577 = vmatprep.subr.bf16.mxu0 0
    %5578 = vmatpush2.bf16.msra.mxu0 0
    %5579 = vmatprep.subr.bf16.mxu0 0
    %5580 = vmatpush2.bf16.msra.mxu0 0
    %5581 = vmatprep.subr.bf16.mxu0 0
    %5582 = vmatpush2.bf16.msra.mxu0 0
    %5583 = vmatprep.subr.bf16.mxu0 0
    %5584 = vmatpush2.bf16.msra.mxu0 0
    %5585 = vmatprep.subr.bf16.mxu0 0
    %5586 = vmatpush2.bf16.msra.mxu0 0
    %5587 = vmatprep.subr.bf16.mxu0 0
    %5588 = vmatpush2.bf16.msra.mxu0 0
    %5589 = vmatprep.subr.bf16.mxu0 0
    %5590 = vmatpush2.bf16.msra.mxu0 0
    %5591 = vmatprep.subr.bf16.mxu0 0
    %5592 = vmatpush2.bf16.msra.mxu0 0
    %5593 = vmatprep.mubr.bf16.mxu0 0
    %5594 = vmatmul.mubr.bf16.gmra.mxu0 %v93
    %v5595 = vpop.f32.mrf.mxu0
    %v5596 = vadd.f32 0.0, %v5595
    %v5597 = vpop.f32.mrf.mxu0
    %v5598 = vpop.f32.mrf.mxu0
    %v5599 = vadd.f32 0.0, %v5598
    %v5600 = vpop.f32.mrf.mxu0
    %5601 = vmatprep.mubr.bf16.mxu0 0
    %5602 = vmatmul.mubr.bf16.gmra.mxu0 %v96
    %v5603 = vpop.f32.mrf.mxu0
    %v5604 = vadd.f32 0.0, %v5603
    %v5605 = vpop.f32.mrf.mxu0
    %v5606 = vpop.f32.mrf.mxu0
    %v5607 = vadd.f32 0.0, %v5606
    %v5608 = vpop.f32.mrf.mxu0
    %5609 = vdwg.mxu0
    %v5610 = vadd.f32 %v5557, %v5596
    %v5611 = vadd.f32 %v5558, %v5599
    %v5612 = vadd.f32 %v5559, %v5604
    %v5613 = vadd.f32 %v5560, %v5607
    %v5614 = vxor.u32 %v5610, 2147483648
    %v5615 = vxor.u32 %v5611, 2147483648
    %v5616 = vxor.u32 %v5612, 2147483648
    %v5617 = vxor.u32 %v5613, 2147483648
    %v5618 = vmul.f32 %v5614, 1.442695
    %v5619 = vpow.pop %v5618
    %v5620 = vmul.f32 %v5615, 1.442695
    %v5621 = vpow.pop %v5620
    %v5622 = vmul.f32 %v5616, 1.442695
    %v5623 = vpow.pop %v5622
    %v5624 = vmul.f32 %v5617, 1.442695
    %v5625 = vpow.pop %v5624
    %v5626 = vadd.f32 %v5619, 1.0
    %v5627 = vadd.f32 %v5621, 1.0
    %v5628 = vadd.f32 %v5623, 1.0
    %v5629 = vadd.f32 %v5625, 1.0
    %v5630 = vrcp.pop %v5626
    %v5631 = vmul.f32 1.0, %v5630
    %v5632 = vrcp.pop %v5627
    %v5633 = vmul.f32 1.0, %v5632
    %v5634 = vrcp.pop %v5628
    %v5635 = vmul.f32 1.0, %v5634
    %v5636 = vrcp.pop %v5629
    %v5637 = vmul.f32 1.0, %v5636
    %5642 = vrot.lane.b32.xlu0 %v5368, 96
    %v5643 = vpop.permute.xlu0 %5642
    %5644 = vrot.lane.b32.xlu0 %v5369, 96
    %v5645 = vpop.permute.xlu0 %5644
    %5646 = vrot.lane.b32.xlu0 %v5370, 96
    %v5647 = vpop.permute.xlu0 %5646
    %5648 = vrot.lane.b32.xlu0 %v5371, 96
    %v5649 = vpop.permute.xlu0 %5648
    %v5654 = vmul.f32 %v5631, %v5643
    %v5655 = vmul.f32 %v5633, %v5645
    %v5656 = vmul.f32 %v5635, %v5647
    %v5657 = vmul.f32 %v5637, %v5649
    %v5658 = vpack.c.bf16 %v5655, %v5654
    %v5659 = vpack.c.bf16 %v5657, %v5656
    %v5661 = vsel %vm79, %v5658, 0
    %v5664 = vsel %vm79, %v5659, 0
    %5666 = vmatprep.subr.bf16.mxu0 0
    %5667 = vmatpush1.bf16.msra.mxu0 0
    %5668 = vmatprep.subr.bf16.mxu0 0
    %5669 = vmatpush1.bf16.msra.mxu0 0
    %5670 = vmatprep.subr.bf16.mxu0 0
    %5671 = vmatpush1.bf16.msra.mxu0 0
    %5672 = vmatprep.subr.bf16.mxu0 0
    %5673 = vmatpush1.bf16.msra.mxu0 0
    %5674 = vmatprep.subr.bf16.mxu0 0
    %5675 = vmatpush1.bf16.msra.mxu0 0
    %5676 = vmatprep.subr.bf16.mxu0 0
    %5677 = vmatpush1.bf16.msra.mxu0 0
    %5678 = vmatprep.subr.bf16.mxu0 0
    %5679 = vmatpush1.bf16.msra.mxu0 %v1443
    %5680 = vmatprep.subr.bf16.mxu0 0
    %5681 = vmatpush1.bf16.msra.mxu0 %v1442
    %5682 = vmatprep.subr.bf16.mxu0 0
    %5683 = vmatpush2.bf16.msra.mxu0 0
    %5684 = vmatprep.subr.bf16.mxu0 0
    %5685 = vmatpush2.bf16.msra.mxu0 0
    %5686 = vmatprep.subr.bf16.mxu0 0
    %5687 = vmatpush2.bf16.msra.mxu0 0
    %5688 = vmatprep.subr.bf16.mxu0 0
    %5689 = vmatpush2.bf16.msra.mxu0 0
    %5690 = vmatprep.subr.bf16.mxu0 0
    %5691 = vmatpush2.bf16.msra.mxu0 0
    %5692 = vmatprep.subr.bf16.mxu0 0
    %5693 = vmatpush2.bf16.msra.mxu0 0
    %5694 = vmatprep.subr.bf16.mxu0 0
    %5695 = vmatpush2.bf16.msra.mxu0 0
    %5696 = vmatprep.subr.bf16.mxu0 0
    %5697 = vmatpush2.bf16.msra.mxu0 0
    %5698 = vmatprep.mubr.bf16.mxu0 0
    %5699 = vmatmul.mubr.bf16.gmra.mxu0 %v5661
    %v5700 = vpop.f32.mrf.mxu0
    %v5701 = vadd.f32 0.0, %v5700
    %v5702 = vpop.f32.mrf.mxu0
    %v5703 = vpop.f32.mrf.mxu0
    %v5704 = vadd.f32 0.0, %v5703
    %v5705 = vpop.f32.mrf.mxu0
    %5706 = vmatprep.mubr.bf16.mxu0 0
    %5707 = vmatmul.mubr.bf16.gmra.mxu0 %v5664
    %v5708 = vpop.f32.mrf.mxu0
    %v5709 = vadd.f32 0.0, %v5708
    %v5710 = vpop.f32.mrf.mxu0
    %v5711 = vpop.f32.mrf.mxu0
    %v5712 = vadd.f32 0.0, %v5711
    %v5713 = vpop.f32.mrf.mxu0
    %5714 = vdwg.mxu0
    %v5715 = vpack.c.bf16 %v5704, %v5701
    %v5716 = vpack.c.bf16 %v5712, %v5709
    %5717 = vmatprep.subr.bf16.mxu0 0
    %5718 = vmatpush1.bf16.msra.mxu0 0
    %5719 = vmatprep.subr.bf16.mxu0 0
    %5720 = vmatpush1.bf16.msra.mxu0 0
    %5721 = vmatprep.subr.bf16.mxu0 0
    %5722 = vmatpush1.bf16.msra.mxu0 0
    %5723 = vmatprep.subr.bf16.mxu0 0
    %5724 = vmatpush1.bf16.msra.mxu0 0
    %5725 = vmatprep.subr.bf16.mxu0 0
    %5726 = vmatpush1.bf16.msra.mxu0 0
    %5727 = vmatprep.subr.bf16.mxu0 0
    %5728 = vmatpush1.bf16.msra.mxu0 0
    %5729 = vmatprep.subr.bf16.mxu0 0
    %5730 = vmatpush1.bf16.msra.mxu0 %v5716
    %5731 = vmatprep.subr.bf16.mxu0 0
    %5732 = vmatpush1.bf16.msra.mxu0 %v5715
    %5733 = vmatprep.subr.bf16.mxu0 0
    %5734 = vmatpush2.bf16.msra.mxu0 0
    %5735 = vmatprep.subr.bf16.mxu0 0
    %5736 = vmatpush2.bf16.msra.mxu0 0
    %5737 = vmatprep.subr.bf16.mxu0 0
    %5738 = vmatpush2.bf16.msra.mxu0 0
    %5739 = vmatprep.subr.bf16.mxu0 0
    %5740 = vmatpush2.bf16.msra.mxu0 0
    %5741 = vmatprep.subr.bf16.mxu0 0
    %5742 = vmatpush2.bf16.msra.mxu0 0
    %5743 = vmatprep.subr.bf16.mxu0 0
    %5744 = vmatpush2.bf16.msra.mxu0 0
    %5745 = vmatprep.subr.bf16.mxu0 0
    %5746 = vmatpush2.bf16.msra.mxu0 0
    %5747 = vmatprep.subr.bf16.mxu0 0
    %5748 = vmatpush2.bf16.msra.mxu0 0
    %5749 = vmatprep.mubr.bf16.mxu0 0
    %5750 = vmatmul.mubr.bf16.gmra.mxu0 %v81
    %v5751 = vpop.f32.mrf.mxu0
    %v5752 = vadd.f32 0.0, %v5751
    %v5753 = vpop.f32.mrf.mxu0
    %v5754 = vpop.f32.mrf.mxu0
    %v5755 = vadd.f32 0.0, %v5754
    %v5756 = vpop.f32.mrf.mxu0
    %5757 = vmatprep.mubr.bf16.mxu0 0
    %5758 = vmatmul.mubr.bf16.gmra.mxu0 %v84
    %v5759 = vpop.f32.mrf.mxu0
    %v5760 = vadd.f32 0.0, %v5759
    %v5761 = vpop.f32.mrf.mxu0
    %v5762 = vpop.f32.mrf.mxu0
    %v5763 = vadd.f32 0.0, %v5762
    %v5764 = vpop.f32.mrf.mxu0
    %5765 = vdwg.mxu0
    %5770 = vrot.lane.b32.xlu0 %v5752, 64
    %v5771 = vpop.permute.xlu0 %5770
    %5772 = vrot.lane.b32.xlu0 %v5755, 64
    %v5773 = vpop.permute.xlu0 %5772
    %5774 = vrot.lane.b32.xlu0 %v5760, 64
    %v5775 = vpop.permute.xlu0 %5774
    %5776 = vrot.lane.b32.xlu0 %v5763, 64
    %v5777 = vpop.permute.xlu0 %5776
    %v5782 = vadd.f32 %v5372, %v5771
    %v5783 = vadd.f32 %v5373, %v5773
    %v5784 = vadd.f32 %v5374, %v5775
    %v5785 = vadd.f32 %v5375, %v5777
    %5788 = vrot.lane.b32.xlu0 %v5715, 96
    %v5789 = vpop.permute.xlu0 %5788
    %5790 = vrot.lane.b32.xlu0 %v5716, 96
    %v5791 = vpop.permute.xlu0 %5790
    %5794 = vmatprep.subr.bf16.mxu0 0
    %5795 = vmatpush1.bf16.msra.mxu0 0
    %5796 = vmatprep.subr.bf16.mxu0 0
    %5797 = vmatpush1.bf16.msra.mxu0 0
    %5798 = vmatprep.subr.bf16.mxu0 0
    %5799 = vmatpush1.bf16.msra.mxu0 0
    %5800 = vmatprep.subr.bf16.mxu0 0
    %5801 = vmatpush1.bf16.msra.mxu0 0
    %5802 = vmatprep.subr.bf16.mxu0 0
    %5803 = vmatpush1.bf16.msra.mxu0 0
    %5804 = vmatprep.subr.bf16.mxu0 0
    %5805 = vmatpush1.bf16.msra.mxu0 0
    %5806 = vmatprep.subr.bf16.mxu0 0
    %5807 = vmatpush1.bf16.msra.mxu0 %v5791
    %5808 = vmatprep.subr.bf16.mxu0 0
    %5809 = vmatpush1.bf16.msra.mxu0 %v5789
    %5810 = vmatprep.subr.bf16.mxu0 0
    %5811 = vmatpush2.bf16.msra.mxu0 0
    %5812 = vmatprep.subr.bf16.mxu0 0
    %5813 = vmatpush2.bf16.msra.mxu0 0
    %5814 = vmatprep.subr.bf16.mxu0 0
    %5815 = vmatpush2.bf16.msra.mxu0 0
    %5816 = vmatprep.subr.bf16.mxu0 0
    %5817 = vmatpush2.bf16.msra.mxu0 0
    %5818 = vmatprep.subr.bf16.mxu0 0
    %5819 = vmatpush2.bf16.msra.mxu0 0
    %5820 = vmatprep.subr.bf16.mxu0 0
    %5821 = vmatpush2.bf16.msra.mxu0 0
    %5822 = vmatprep.subr.bf16.mxu0 0
    %5823 = vmatpush2.bf16.msra.mxu0 0
    %5824 = vmatprep.subr.bf16.mxu0 0
    %5825 = vmatpush2.bf16.msra.mxu0 0
    %5826 = vmatprep.mubr.bf16.mxu0 0
    %5827 = vmatmul.mubr.bf16.gmra.mxu0 %v87
    %v5828 = vpop.f32.mrf.mxu0
    %v5829 = vadd.f32 0.0, %v5828
    %v5830 = vpop.f32.mrf.mxu0
    %v5831 = vpop.f32.mrf.mxu0
    %v5832 = vadd.f32 0.0, %v5831
    %v5833 = vpop.f32.mrf.mxu0
    %5834 = vmatprep.mubr.bf16.mxu0 0
    %5835 = vmatmul.mubr.bf16.gmra.mxu0 %v90
    %v5836 = vpop.f32.mrf.mxu0
    %v5837 = vadd.f32 0.0, %v5836
    %v5838 = vpop.f32.mrf.mxu0
    %v5839 = vpop.f32.mrf.mxu0
    %v5840 = vadd.f32 0.0, %v5839
    %v5841 = vpop.f32.mrf.mxu0
    %5842 = vdwg.mxu0
    %5847 = vrot.lane.b32.xlu0 %v5829, 64
    %v5848 = vpop.permute.xlu0 %5847
    %5849 = vrot.lane.b32.xlu0 %v5832, 64
    %v5850 = vpop.permute.xlu0 %5849
    %5851 = vrot.lane.b32.xlu0 %v5837, 64
    %v5852 = vpop.permute.xlu0 %5851
    %5853 = vrot.lane.b32.xlu0 %v5840, 64
    %v5854 = vpop.permute.xlu0 %5853
    %v5859 = vadd.f32 %v5782, %v5848
    %v5860 = vadd.f32 %v5783, %v5850
    %v5861 = vadd.f32 %v5784, %v5852
    %v5862 = vadd.f32 %v5785, %v5854
    %5863 = vrot.lane.b32.xlu0 %v5715, 64
    %v5864 = vpop.permute.xlu0 %5863
    %5865 = vrot.lane.b32.xlu0 %v5716, 64
    %v5866 = vpop.permute.xlu0 %5865
    %5869 = vmatprep.subr.bf16.mxu0 0
    %5870 = vmatpush1.bf16.msra.mxu0 0
    %5871 = vmatprep.subr.bf16.mxu0 0
    %5872 = vmatpush1.bf16.msra.mxu0 0
    %5873 = vmatprep.subr.bf16.mxu0 0
    %5874 = vmatpush1.bf16.msra.mxu0 0
    %5875 = vmatprep.subr.bf16.mxu0 0
    %5876 = vmatpush1.bf16.msra.mxu0 0
    %5877 = vmatprep.subr.bf16.mxu0 0
    %5878 = vmatpush1.bf16.msra.mxu0 0
    %5879 = vmatprep.subr.bf16.mxu0 0
    %5880 = vmatpush1.bf16.msra.mxu0 0
    %5881 = vmatprep.subr.bf16.mxu0 0
    %5882 = vmatpush1.bf16.msra.mxu0 %v5866
    %5883 = vmatprep.subr.bf16.mxu0 0
    %5884 = vmatpush1.bf16.msra.mxu0 %v5864
    %5885 = vmatprep.subr.bf16.mxu0 0
    %5886 = vmatpush2.bf16.msra.mxu0 0
    %5887 = vmatprep.subr.bf16.mxu0 0
    %5888 = vmatpush2.bf16.msra.mxu0 0
    %5889 = vmatprep.subr.bf16.mxu0 0
    %5890 = vmatpush2.bf16.msra.mxu0 0
    %5891 = vmatprep.subr.bf16.mxu0 0
    %5892 = vmatpush2.bf16.msra.mxu0 0
    %5893 = vmatprep.subr.bf16.mxu0 0
    %5894 = vmatpush2.bf16.msra.mxu0 0
    %5895 = vmatprep.subr.bf16.mxu0 0
    %5896 = vmatpush2.bf16.msra.mxu0 0
    %5897 = vmatprep.subr.bf16.mxu0 0
    %5898 = vmatpush2.bf16.msra.mxu0 0
    %5899 = vmatprep.subr.bf16.mxu0 0
    %5900 = vmatpush2.bf16.msra.mxu0 0
    %5901 = vmatprep.mubr.bf16.mxu0 0
    %5902 = vmatmul.mubr.bf16.gmra.mxu0 %v93
    %v5903 = vpop.f32.mrf.mxu0
    %v5904 = vadd.f32 0.0, %v5903
    %v5905 = vpop.f32.mrf.mxu0
    %v5906 = vpop.f32.mrf.mxu0
    %v5907 = vadd.f32 0.0, %v5906
    %v5908 = vpop.f32.mrf.mxu0
    %5909 = vmatprep.mubr.bf16.mxu0 0
    %5910 = vmatmul.mubr.bf16.gmra.mxu0 %v96
    %v5911 = vpop.f32.mrf.mxu0
    %v5912 = vadd.f32 0.0, %v5911
    %v5913 = vpop.f32.mrf.mxu0
    %v5914 = vpop.f32.mrf.mxu0
    %v5915 = vadd.f32 0.0, %v5914
    %v5916 = vpop.f32.mrf.mxu0
    %5917 = vdwg.mxu0
    %5922 = vrot.lane.b32.xlu0 %v5904, 64
    %v5923 = vpop.permute.xlu0 %5922
    %5924 = vrot.lane.b32.xlu0 %v5907, 64
    %v5925 = vpop.permute.xlu0 %5924
    %5926 = vrot.lane.b32.xlu0 %v5912, 64
    %v5927 = vpop.permute.xlu0 %5926
    %5928 = vrot.lane.b32.xlu0 %v5915, 64
    %v5929 = vpop.permute.xlu0 %5928
    %v5934 = vadd.f32 %v5859, %v5923
    %v5935 = vadd.f32 %v5860, %v5925
    %v5936 = vadd.f32 %v5861, %v5927
    %v5937 = vadd.f32 %v5862, %v5929
    %v5938 = vtanh.pop %v5934
    %v5939 = vtanh.pop %v5935
    %v5940 = vtanh.pop %v5936
    %v5941 = vtanh.pop %v5937
    %5946 = vrot.lane.b32.xlu0 %v5938, 96
    %v5947 = vpop.permute.xlu0 %5946
    %5948 = vrot.lane.b32.xlu0 %v5939, 96
    %v5949 = vpop.permute.xlu0 %5948
    %5950 = vrot.lane.b32.xlu0 %v5940, 96
    %v5951 = vpop.permute.xlu0 %5950
    %5952 = vrot.lane.b32.xlu0 %v5941, 96
    %v5953 = vpop.permute.xlu0 %5952
    %v5958 = vmul.f32 %v5631, %v5947
    %v5959 = vmul.f32 %v5633, %v5949
    %v5960 = vmul.f32 %v5635, %v5951
    %v5961 = vmul.f32 %v5637, %v5953
    %v5962 = vsub.f32 1.0, %v5631
    %v5963 = vsub.f32 1.0, %v5633
    %v5964 = vsub.f32 1.0, %v5635
    %v5965 = vsub.f32 1.0, %v5637
    %v5966 = vmul.f32 %v5962, %v5368
    %v5967 = vmul.f32 %v5963, %v5369
    %v5968 = vmul.f32 %v5964, %v5370
    %v5969 = vmul.f32 %v5965, %v5371
    %v5970 = vadd.f32 %v5958, %v5966
    %v5971 = vadd.f32 %v5959, %v5967
    %v5972 = vadd.f32 %v5960, %v5968
    %v5973 = vadd.f32 %v5961, %v5969
    %v5974 = vld [vmem:[%s909] sm:$0xff]
    %v5975 = vld [vmem:[%s909 + $0x8] sm:$0xff]
    %v5976 = vld [vmem:[%s909 + $0x10] sm:$0xff]
    %v5977 = vld [vmem:[%s909 + $0x18] sm:$0xff]
    %v5978 = vpack.c.bf16 %v5971, %v5970
    %v5979 = vpack.c.bf16 %v5973, %v5972
    %5982 = vrot.lane.b32.xlu0 %v5978, 96
    %v5983 = vpop.permute.xlu0 %5982
    %5984 = vrot.lane.b32.xlu0 %v5979, 96
    %v5985 = vpop.permute.xlu0 %5984
    %v5987 = vsel %vm79, %v5983, 0
    %v5990 = vsel %vm79, %v5985, 0
    %5992 = vmatprep.subr.bf16.mxu0 0
    %5993 = vmatpush1.bf16.msra.mxu0 0
    %5994 = vmatprep.subr.bf16.mxu0 0
    %5995 = vmatpush1.bf16.msra.mxu0 0
    %5996 = vmatprep.subr.bf16.mxu0 0
    %5997 = vmatpush1.bf16.msra.mxu0 0
    %5998 = vmatprep.subr.bf16.mxu0 0
    %5999 = vmatpush1.bf16.msra.mxu0 0
    %6000 = vmatprep.subr.bf16.mxu0 0
    %6001 = vmatpush1.bf16.msra.mxu0 0
    %6002 = vmatprep.subr.bf16.mxu0 0
    %6003 = vmatpush1.bf16.msra.mxu0 0
    %6004 = vmatprep.subr.bf16.mxu0 %v1172
    %6005 = vmatpush1.bf16.msra.mxu0 %v1171
    %6006 = vmatprep.subr.bf16.mxu0 %v1170
    %6007 = vmatpush1.bf16.msra.mxu0 %v1169
    %6008 = vmatprep.subr.bf16.mxu0 0
    %6009 = vmatpush2.bf16.msra.mxu0 0
    %6010 = vmatprep.subr.bf16.mxu0 0
    %6011 = vmatpush2.bf16.msra.mxu0 0
    %6012 = vmatprep.subr.bf16.mxu0 0
    %6013 = vmatpush2.bf16.msra.mxu0 0
    %6014 = vmatprep.subr.bf16.mxu0 0
    %6015 = vmatpush2.bf16.msra.mxu0 0
    %6016 = vmatprep.subr.bf16.mxu0 0
    %6017 = vmatpush2.bf16.msra.mxu0 0
    %6018 = vmatprep.subr.bf16.mxu0 0
    %6019 = vmatpush2.bf16.msra.mxu0 0
    %6020 = vmatprep.subr.bf16.mxu0 0
    %6021 = vmatpush2.bf16.msra.mxu0 0
    %6022 = vmatprep.subr.bf16.mxu0 0
    %6023 = vmatpush2.bf16.msra.mxu0 0
    %6024 = vmatprep.mubr.bf16.mxu0 0
    %6025 = vmatmul.mubr.bf16.gmra.mxu0 %v5987
    %v6026 = vpop.f32.mrf.mxu0
    %v6027 = vadd.f32 0.0, %v6026
    %v6028 = vpop.f32.mrf.mxu0
    %v6029 = vadd.f32 0.0, %v6028
    %v6030 = vpop.f32.mrf.mxu0
    %v6031 = vadd.f32 0.0, %v6030
    %v6032 = vpop.f32.mrf.mxu0
    %v6033 = vadd.f32 0.0, %v6032
    %6034 = vmatprep.mubr.bf16.mxu0 0
    %6035 = vmatmul.mubr.bf16.gmra.mxu0 %v5990
    %v6036 = vpop.f32.mrf.mxu0
    %v6037 = vadd.f32 0.0, %v6036
    %v6038 = vpop.f32.mrf.mxu0
    %v6039 = vadd.f32 0.0, %v6038
    %v6040 = vpop.f32.mrf.mxu0
    %v6041 = vadd.f32 0.0, %v6040
    %v6042 = vpop.f32.mrf.mxu0
    %v6043 = vadd.f32 0.0, %v6042
    %6044 = vdwg.mxu0
    %v6045 = vpack.c.bf16 %v6031, %v6027
    %v6046 = vpack.c.bf16 %v6033, %v6029
    %v6047 = vpack.c.bf16 %v6041, %v6037
    %v6048 = vpack.c.bf16 %v6043, %v6039
    %6049 = vmatprep.subr.bf16.mxu0 0
    %6050 = vmatpush1.bf16.msra.mxu0 0
    %6051 = vmatprep.subr.bf16.mxu0 0
    %6052 = vmatpush1.bf16.msra.mxu0 0
    %6053 = vmatprep.subr.bf16.mxu0 0
    %6054 = vmatpush1.bf16.msra.mxu0 0
    %6055 = vmatprep.subr.bf16.mxu0 0
    %6056 = vmatpush1.bf16.msra.mxu0 0
    %6057 = vmatprep.subr.bf16.mxu0 0
    %6058 = vmatpush1.bf16.msra.mxu0 0
    %6059 = vmatprep.subr.bf16.mxu0 0
    %6060 = vmatpush1.bf16.msra.mxu0 0
    %6061 = vmatprep.subr.bf16.mxu0 0
    %6062 = vmatpush1.bf16.msra.mxu0 %v6047
    %6063 = vmatprep.subr.bf16.mxu0 0
    %6064 = vmatpush1.bf16.msra.mxu0 %v6045
    %6065 = vmatprep.subr.bf16.mxu0 0
    %6066 = vmatpush2.bf16.msra.mxu0 0
    %6067 = vmatprep.subr.bf16.mxu0 0
    %6068 = vmatpush2.bf16.msra.mxu0 0
    %6069 = vmatprep.subr.bf16.mxu0 0
    %6070 = vmatpush2.bf16.msra.mxu0 0
    %6071 = vmatprep.subr.bf16.mxu0 0
    %6072 = vmatpush2.bf16.msra.mxu0 0
    %6073 = vmatprep.subr.bf16.mxu0 0
    %6074 = vmatpush2.bf16.msra.mxu0 0
    %6075 = vmatprep.subr.bf16.mxu0 0
    %6076 = vmatpush2.bf16.msra.mxu0 0
    %6077 = vmatprep.subr.bf16.mxu0 0
    %6078 = vmatpush2.bf16.msra.mxu0 0
    %6079 = vmatprep.subr.bf16.mxu0 0
    %6080 = vmatpush2.bf16.msra.mxu0 0
    %6081 = vmatprep.mubr.bf16.mxu0 0
    %6082 = vmatmul.mubr.bf16.gmra.mxu0 %v81
    %v6083 = vpop.f32.mrf.mxu0
    %v6084 = vadd.f32 0.0, %v6083
    %v6085 = vpop.f32.mrf.mxu0
    %v6086 = vpop.f32.mrf.mxu0
    %v6087 = vadd.f32 0.0, %v6086
    %v6088 = vpop.f32.mrf.mxu0
    %6089 = vmatprep.mubr.bf16.mxu0 0
    %6090 = vmatmul.mubr.bf16.gmra.mxu0 %v84
    %v6091 = vpop.f32.mrf.mxu0
    %v6092 = vadd.f32 0.0, %v6091
    %v6093 = vpop.f32.mrf.mxu0
    %v6094 = vpop.f32.mrf.mxu0
    %v6095 = vadd.f32 0.0, %v6094
    %v6096 = vpop.f32.mrf.mxu0
    %6097 = vdwg.mxu0
    %v6098 = vadd.f32 %v5974, %v6084
    %v6099 = vadd.f32 %v5975, %v6087
    %v6100 = vadd.f32 %v5976, %v6092
    %v6101 = vadd.f32 %v5977, %v6095
    %6104 = vrot.lane.b32.xlu0 %v6045, 64
    %v6105 = vpop.permute.xlu0 %6104
    %6106 = vrot.lane.b32.xlu0 %v6047, 64
    %v6107 = vpop.permute.xlu0 %6106
    %6110 = vmatprep.subr.bf16.mxu0 0
    %6111 = vmatpush1.bf16.msra.mxu0 0
    %6112 = vmatprep.subr.bf16.mxu0 0
    %6113 = vmatpush1.bf16.msra.mxu0 0
    %6114 = vmatprep.subr.bf16.mxu0 0
    %6115 = vmatpush1.bf16.msra.mxu0 0
    %6116 = vmatprep.subr.bf16.mxu0 0
    %6117 = vmatpush1.bf16.msra.mxu0 0
    %6118 = vmatprep.subr.bf16.mxu0 0
    %6119 = vmatpush1.bf16.msra.mxu0 0
    %6120 = vmatprep.subr.bf16.mxu0 0
    %6121 = vmatpush1.bf16.msra.mxu0 0
    %6122 = vmatprep.subr.bf16.mxu0 0
    %6123 = vmatpush1.bf16.msra.mxu0 %v6107
    %6124 = vmatprep.subr.bf16.mxu0 0
    %6125 = vmatpush1.bf16.msra.mxu0 %v6105
    %6126 = vmatprep.subr.bf16.mxu0 0
    %6127 = vmatpush2.bf16.msra.mxu0 0
    %6128 = vmatprep.subr.bf16.mxu0 0
    %6129 = vmatpush2.bf16.msra.mxu0 0
    %6130 = vmatprep.subr.bf16.mxu0 0
    %6131 = vmatpush2.bf16.msra.mxu0 0
    %6132 = vmatprep.subr.bf16.mxu0 0
    %6133 = vmatpush2.bf16.msra.mxu0 0
    %6134 = vmatprep.subr.bf16.mxu0 0
    %6135 = vmatpush2.bf16.msra.mxu0 0
    %6136 = vmatprep.subr.bf16.mxu0 0
    %6137 = vmatpush2.bf16.msra.mxu0 0
    %6138 = vmatprep.subr.bf16.mxu0 0
    %6139 = vmatpush2.bf16.msra.mxu0 0
    %6140 = vmatprep.subr.bf16.mxu0 0
    %6141 = vmatpush2.bf16.msra.mxu0 0
    %6142 = vmatprep.mubr.bf16.mxu0 0
    %6143 = vmatmul.mubr.bf16.gmra.mxu0 %v87
    %v6144 = vpop.f32.mrf.mxu0
    %v6145 = vadd.f32 0.0, %v6144
    %v6146 = vpop.f32.mrf.mxu0
    %v6147 = vpop.f32.mrf.mxu0
    %v6148 = vadd.f32 0.0, %v6147
    %v6149 = vpop.f32.mrf.mxu0
    %6150 = vmatprep.mubr.bf16.mxu0 0
    %6151 = vmatmul.mubr.bf16.gmra.mxu0 %v90
    %v6152 = vpop.f32.mrf.mxu0
    %v6153 = vadd.f32 0.0, %v6152
    %v6154 = vpop.f32.mrf.mxu0
    %v6155 = vpop.f32.mrf.mxu0
    %v6156 = vadd.f32 0.0, %v6155
    %v6157 = vpop.f32.mrf.mxu0
    %6158 = vdwg.mxu0
    %v6159 = vadd.f32 %v6098, %v6145
    %v6160 = vadd.f32 %v6099, %v6148
    %v6161 = vadd.f32 %v6100, %v6153
    %v6162 = vadd.f32 %v6101, %v6156
    %6163 = vmatprep.subr.bf16.mxu0 0
    %6164 = vmatpush1.bf16.msra.mxu0 0
    %6165 = vmatprep.subr.bf16.mxu0 0
    %6166 = vmatpush1.bf16.msra.mxu0 0
    %6167 = vmatprep.subr.bf16.mxu0 0
    %6168 = vmatpush1.bf16.msra.mxu0 0
    %6169 = vmatprep.subr.bf16.mxu0 0
    %6170 = vmatpush1.bf16.msra.mxu0 0
    %6171 = vmatprep.subr.bf16.mxu0 0
    %6172 = vmatpush1.bf16.msra.mxu0 0
    %6173 = vmatprep.subr.bf16.mxu0 0
    %6174 = vmatpush1.bf16.msra.mxu0 0
    %6175 = vmatprep.subr.bf16.mxu0 0
    %6176 = vmatpush1.bf16.msra.mxu0 %v6048
    %6177 = vmatprep.subr.bf16.mxu0 0
    %6178 = vmatpush1.bf16.msra.mxu0 %v6046
    %6179 = vmatprep.subr.bf16.mxu0 0
    %6180 = vmatpush2.bf16.msra.mxu0 0
    %6181 = vmatprep.subr.bf16.mxu0 0
    %6182 = vmatpush2.bf16.msra.mxu0 0
    %6183 = vmatprep.subr.bf16.mxu0 0
    %6184 = vmatpush2.bf16.msra.mxu0 0
    %6185 = vmatprep.subr.bf16.mxu0 0
    %6186 = vmatpush2.bf16.msra.mxu0 0
    %6187 = vmatprep.subr.bf16.mxu0 0
    %6188 = vmatpush2.bf16.msra.mxu0 0
    %6189 = vmatprep.subr.bf16.mxu0 0
    %6190 = vmatpush2.bf16.msra.mxu0 0
    %6191 = vmatprep.subr.bf16.mxu0 0
    %6192 = vmatpush2.bf16.msra.mxu0 0
    %6193 = vmatprep.subr.bf16.mxu0 0
    %6194 = vmatpush2.bf16.msra.mxu0 0
    %6195 = vmatprep.mubr.bf16.mxu0 0
    %6196 = vmatmul.mubr.bf16.gmra.mxu0 %v93
    %v6197 = vpop.f32.mrf.mxu0
    %v6198 = vadd.f32 0.0, %v6197
    %v6199 = vpop.f32.mrf.mxu0
    %v6200 = vpop.f32.mrf.mxu0
    %v6201 = vadd.f32 0.0, %v6200
    %v6202 = vpop.f32.mrf.mxu0
    %6203 = vmatprep.mubr.bf16.mxu0 0
    %6204 = vmatmul.mubr.bf16.gmra.mxu0 %v96
    %v6205 = vpop.f32.mrf.mxu0
    %v6206 = vadd.f32 0.0, %v6205
    %v6207 = vpop.f32.mrf.mxu0
    %v6208 = vpop.f32.mrf.mxu0
    %v6209 = vadd.f32 0.0, %v6208
    %v6210 = vpop.f32.mrf.mxu0
    %6211 = vdwg.mxu0
    %v6212 = vadd.f32 %v6159, %v6198
    %v6213 = vadd.f32 %v6160, %v6201
    %v6214 = vadd.f32 %v6161, %v6206
    %v6215 = vadd.f32 %v6162, %v6209
    %v6216 = vxor.u32 %v6212, 2147483648
    %v6217 = vxor.u32 %v6213, 2147483648
    %v6218 = vxor.u32 %v6214, 2147483648
    %v6219 = vxor.u32 %v6215, 2147483648
    %v6220 = vmul.f32 %v6216, 1.442695
    %v6221 = vpow.pop %v6220
    %v6222 = vmul.f32 %v6217, 1.442695
    %v6223 = vpow.pop %v6222
    %v6224 = vmul.f32 %v6218, 1.442695
    %v6225 = vpow.pop %v6224
    %v6226 = vmul.f32 %v6219, 1.442695
    %v6227 = vpow.pop %v6226
    %v6228 = vadd.f32 %v6221, 1.0
    %v6229 = vadd.f32 %v6223, 1.0
    %v6230 = vadd.f32 %v6225, 1.0
    %v6231 = vadd.f32 %v6227, 1.0
    %v6232 = vrcp.pop %v6228
    %v6233 = vmul.f32 1.0, %v6232
    %v6234 = vrcp.pop %v6229
    %v6235 = vmul.f32 1.0, %v6234
    %v6236 = vrcp.pop %v6230
    %v6237 = vmul.f32 1.0, %v6236
    %v6238 = vrcp.pop %v6231
    %v6239 = vmul.f32 1.0, %v6238
    %6244 = vrot.lane.b32.xlu0 %v5970, 96
    %v6245 = vpop.permute.xlu0 %6244
    %6246 = vrot.lane.b32.xlu0 %v5971, 96
    %v6247 = vpop.permute.xlu0 %6246
    %6248 = vrot.lane.b32.xlu0 %v5972, 96
    %v6249 = vpop.permute.xlu0 %6248
    %6250 = vrot.lane.b32.xlu0 %v5973, 96
    %v6251 = vpop.permute.xlu0 %6250
    %v6256 = vmul.f32 %v6233, %v6245
    %v6257 = vmul.f32 %v6235, %v6247
    %v6258 = vmul.f32 %v6237, %v6249
    %v6259 = vmul.f32 %v6239, %v6251
    %v6260 = vpack.c.bf16 %v6257, %v6256
    %v6261 = vpack.c.bf16 %v6259, %v6258
    %v6263 = vsel %vm79, %v6260, 0
    %v6266 = vsel %vm79, %v6261, 0
    %6268 = vmatprep.subr.bf16.mxu0 0
    %6269 = vmatpush1.bf16.msra.mxu0 0
    %6270 = vmatprep.subr.bf16.mxu0 0
    %6271 = vmatpush1.bf16.msra.mxu0 0
    %6272 = vmatprep.subr.bf16.mxu0 0
    %6273 = vmatpush1.bf16.msra.mxu0 0
    %6274 = vmatprep.subr.bf16.mxu0 0
    %6275 = vmatpush1.bf16.msra.mxu0 0
    %6276 = vmatprep.subr.bf16.mxu0 0
    %6277 = vmatpush1.bf16.msra.mxu0 0
    %6278 = vmatprep.subr.bf16.mxu0 0
    %6279 = vmatpush1.bf16.msra.mxu0 0
    %6280 = vmatprep.subr.bf16.mxu0 0
    %6281 = vmatpush1.bf16.msra.mxu0 %v1443
    %6282 = vmatprep.subr.bf16.mxu0 0
    %6283 = vmatpush1.bf16.msra.mxu0 %v1442
    %6284 = vmatprep.subr.bf16.mxu0 0
    %6285 = vmatpush2.bf16.msra.mxu0 0
    %6286 = vmatprep.subr.bf16.mxu0 0
    %6287 = vmatpush2.bf16.msra.mxu0 0
    %6288 = vmatprep.subr.bf16.mxu0 0
    %6289 = vmatpush2.bf16.msra.mxu0 0
    %6290 = vmatprep.subr.bf16.mxu0 0
    %6291 = vmatpush2.bf16.msra.mxu0 0
    %6292 = vmatprep.subr.bf16.mxu0 0
    %6293 = vmatpush2.bf16.msra.mxu0 0
    %6294 = vmatprep.subr.bf16.mxu0 0
    %6295 = vmatpush2.bf16.msra.mxu0 0
    %6296 = vmatprep.subr.bf16.mxu0 0
    %6297 = vmatpush2.bf16.msra.mxu0 0
    %6298 = vmatprep.subr.bf16.mxu0 0
    %6299 = vmatpush2.bf16.msra.mxu0 0
    %6300 = vmatprep.mubr.bf16.mxu0 0
    %6301 = vmatmul.mubr.bf16.gmra.mxu0 %v6263
    %v6302 = vpop.f32.mrf.mxu0
    %v6303 = vadd.f32 0.0, %v6302
    %v6304 = vpop.f32.mrf.mxu0
    %v6305 = vpop.f32.mrf.mxu0
    %v6306 = vadd.f32 0.0, %v6305
    %v6307 = vpop.f32.mrf.mxu0
    %6308 = vmatprep.mubr.bf16.mxu0 0
    %6309 = vmatmul.mubr.bf16.gmra.mxu0 %v6266
    %v6310 = vpop.f32.mrf.mxu0
    %v6311 = vadd.f32 0.0, %v6310
    %v6312 = vpop.f32.mrf.mxu0
    %v6313 = vpop.f32.mrf.mxu0
    %v6314 = vadd.f32 0.0, %v6313
    %v6315 = vpop.f32.mrf.mxu0
    %6316 = vdwg.mxu0
    %v6317 = vpack.c.bf16 %v6306, %v6303
    %v6318 = vpack.c.bf16 %v6314, %v6311
    %6319 = vmatprep.subr.bf16.mxu0 0
    %6320 = vmatpush1.bf16.msra.mxu0 0
    %6321 = vmatprep.subr.bf16.mxu0 0
    %6322 = vmatpush1.bf16.msra.mxu0 0
    %6323 = vmatprep.subr.bf16.mxu0 0
    %6324 = vmatpush1.bf16.msra.mxu0 0
    %6325 = vmatprep.subr.bf16.mxu0 0
    %6326 = vmatpush1.bf16.msra.mxu0 0
    %6327 = vmatprep.subr.bf16.mxu0 0
    %6328 = vmatpush1.bf16.msra.mxu0 0
    %6329 = vmatprep.subr.bf16.mxu0 0
    %6330 = vmatpush1.bf16.msra.mxu0 0
    %6331 = vmatprep.subr.bf16.mxu0 0
    %6332 = vmatpush1.bf16.msra.mxu0 %v6318
    %6333 = vmatprep.subr.bf16.mxu0 0
    %6334 = vmatpush1.bf16.msra.mxu0 %v6317
    %6335 = vmatprep.subr.bf16.mxu0 0
    %6336 = vmatpush2.bf16.msra.mxu0 0
    %6337 = vmatprep.subr.bf16.mxu0 0
    %6338 = vmatpush2.bf16.msra.mxu0 0
    %6339 = vmatprep.subr.bf16.mxu0 0
    %6340 = vmatpush2.bf16.msra.mxu0 0
    %6341 = vmatprep.subr.bf16.mxu0 0
    %6342 = vmatpush2.bf16.msra.mxu0 0
    %6343 = vmatprep.subr.bf16.mxu0 0
    %6344 = vmatpush2.bf16.msra.mxu0 0
    %6345 = vmatprep.subr.bf16.mxu0 0
    %6346 = vmatpush2.bf16.msra.mxu0 0
    %6347 = vmatprep.subr.bf16.mxu0 0
    %6348 = vmatpush2.bf16.msra.mxu0 0
    %6349 = vmatprep.subr.bf16.mxu0 0
    %6350 = vmatpush2.bf16.msra.mxu0 0
    %6351 = vmatprep.mubr.bf16.mxu0 0
    %6352 = vmatmul.mubr.bf16.gmra.mxu0 %v81
    %v6353 = vpop.f32.mrf.mxu0
    %v6354 = vadd.f32 0.0, %v6353
    %v6355 = vpop.f32.mrf.mxu0
    %v6356 = vpop.f32.mrf.mxu0
    %v6357 = vadd.f32 0.0, %v6356
    %v6358 = vpop.f32.mrf.mxu0
    %6359 = vmatprep.mubr.bf16.mxu0 0
    %6360 = vmatmul.mubr.bf16.gmra.mxu0 %v84
    %v6361 = vpop.f32.mrf.mxu0
    %v6362 = vadd.f32 0.0, %v6361
    %v6363 = vpop.f32.mrf.mxu0
    %v6364 = vpop.f32.mrf.mxu0
    %v6365 = vadd.f32 0.0, %v6364
    %v6366 = vpop.f32.mrf.mxu0
    %6367 = vdwg.mxu0
    %6372 = vrot.lane.b32.xlu0 %v6354, 64
    %v6373 = vpop.permute.xlu0 %6372
    %6374 = vrot.lane.b32.xlu0 %v6357, 64
    %v6375 = vpop.permute.xlu0 %6374
    %6376 = vrot.lane.b32.xlu0 %v6362, 64
    %v6377 = vpop.permute.xlu0 %6376
    %6378 = vrot.lane.b32.xlu0 %v6365, 64
    %v6379 = vpop.permute.xlu0 %6378
    %v6384 = vadd.f32 %v5974, %v6373
    %v6385 = vadd.f32 %v5975, %v6375
    %v6386 = vadd.f32 %v5976, %v6377
    %v6387 = vadd.f32 %v5977, %v6379
    %6390 = vrot.lane.b32.xlu0 %v6317, 96
    %v6391 = vpop.permute.xlu0 %6390
    %6392 = vrot.lane.b32.xlu0 %v6318, 96
    %v6393 = vpop.permute.xlu0 %6392
    %6396 = vmatprep.subr.bf16.mxu0 0
    %6397 = vmatpush1.bf16.msra.mxu0 0
    %6398 = vmatprep.subr.bf16.mxu0 0
    %6399 = vmatpush1.bf16.msra.mxu0 0
    %6400 = vmatprep.subr.bf16.mxu0 0
    %6401 = vmatpush1.bf16.msra.mxu0 0
    %6402 = vmatprep.subr.bf16.mxu0 0
    %6403 = vmatpush1.bf16.msra.mxu0 0
    %6404 = vmatprep.subr.bf16.mxu0 0
    %6405 = vmatpush1.bf16.msra.mxu0 0
    %6406 = vmatprep.subr.bf16.mxu0 0
    %6407 = vmatpush1.bf16.msra.mxu0 0
    %6408 = vmatprep.subr.bf16.mxu0 0
    %6409 = vmatpush1.bf16.msra.mxu0 %v6393
    %6410 = vmatprep.subr.bf16.mxu0 0
    %6411 = vmatpush1.bf16.msra.mxu0 %v6391
    %6412 = vmatprep.subr.bf16.mxu0 0
    %6413 = vmatpush2.bf16.msra.mxu0 0
    %6414 = vmatprep.subr.bf16.mxu0 0
    %6415 = vmatpush2.bf16.msra.mxu0 0
    %6416 = vmatprep.subr.bf16.mxu0 0
    %6417 = vmatpush2.bf16.msra.mxu0 0
    %6418 = vmatprep.subr.bf16.mxu0 0
    %6419 = vmatpush2.bf16.msra.mxu0 0
    %6420 = vmatprep.subr.bf16.mxu0 0
    %6421 = vmatpush2.bf16.msra.mxu0 0
    %6422 = vmatprep.subr.bf16.mxu0 0
    %6423 = vmatpush2.bf16.msra.mxu0 0
    %6424 = vmatprep.subr.bf16.mxu0 0
    %6425 = vmatpush2.bf16.msra.mxu0 0
    %6426 = vmatprep.subr.bf16.mxu0 0
    %6427 = vmatpush2.bf16.msra.mxu0 0
    %6428 = vmatprep.mubr.bf16.mxu0 0
    %6429 = vmatmul.mubr.bf16.gmra.mxu0 %v87
    %v6430 = vpop.f32.mrf.mxu0
    %v6431 = vadd.f32 0.0, %v6430
    %v6432 = vpop.f32.mrf.mxu0
    %v6433 = vpop.f32.mrf.mxu0
    %v6434 = vadd.f32 0.0, %v6433
    %v6435 = vpop.f32.mrf.mxu0
    %6436 = vmatprep.mubr.bf16.mxu0 0
    %6437 = vmatmul.mubr.bf16.gmra.mxu0 %v90
    %v6438 = vpop.f32.mrf.mxu0
    %v6439 = vadd.f32 0.0, %v6438
    %v6440 = vpop.f32.mrf.mxu0
    %v6441 = vpop.f32.mrf.mxu0
    %v6442 = vadd.f32 0.0, %v6441
    %v6443 = vpop.f32.mrf.mxu0
    %6444 = vdwg.mxu0
    %6449 = vrot.lane.b32.xlu0 %v6431, 64
    %v6450 = vpop.permute.xlu0 %6449
    %6451 = vrot.lane.b32.xlu0 %v6434, 64
    %v6452 = vpop.permute.xlu0 %6451
    %6453 = vrot.lane.b32.xlu0 %v6439, 64
    %v6454 = vpop.permute.xlu0 %6453
    %6455 = vrot.lane.b32.xlu0 %v6442, 64
    %v6456 = vpop.permute.xlu0 %6455
    %v6461 = vadd.f32 %v6384, %v6450
    %v6462 = vadd.f32 %v6385, %v6452
    %v6463 = vadd.f32 %v6386, %v6454
    %v6464 = vadd.f32 %v6387, %v6456
    %6465 = vrot.lane.b32.xlu0 %v6317, 64
    %v6466 = vpop.permute.xlu0 %6465
    %6467 = vrot.lane.b32.xlu0 %v6318, 64
    %v6468 = vpop.permute.xlu0 %6467
    %6471 = vmatprep.subr.bf16.mxu0 0
    %6472 = vmatpush1.bf16.msra.mxu0 0
    %6473 = vmatprep.subr.bf16.mxu0 0
    %6474 = vmatpush1.bf16.msra.mxu0 0
    %6475 = vmatprep.subr.bf16.mxu0 0
    %6476 = vmatpush1.bf16.msra.mxu0 0
    %6477 = vmatprep.subr.bf16.mxu0 0
    %6478 = vmatpush1.bf16.msra.mxu0 0
    %6479 = vmatprep.subr.bf16.mxu0 0
    %6480 = vmatpush1.bf16.msra.mxu0 0
    %6481 = vmatprep.subr.bf16.mxu0 0
    %6482 = vmatpush1.bf16.msra.mxu0 0
    %6483 = vmatprep.subr.bf16.mxu0 0
    %6484 = vmatpush1.bf16.msra.mxu0 %v6468
    %6485 = vmatprep.subr.bf16.mxu0 0
    %6486 = vmatpush1.bf16.msra.mxu0 %v6466
    %6487 = vmatprep.subr.bf16.mxu0 0
    %6488 = vmatpush2.bf16.msra.mxu0 0
    %6489 = vmatprep.subr.bf16.mxu0 0
    %6490 = vmatpush2.bf16.msra.mxu0 0
    %6491 = vmatprep.subr.bf16.mxu0 0
    %6492 = vmatpush2.bf16.msra.mxu0 0
    %6493 = vmatprep.subr.bf16.mxu0 0
    %6494 = vmatpush2.bf16.msra.mxu0 0
    %6495 = vmatprep.subr.bf16.mxu0 0
    %6496 = vmatpush2.bf16.msra.mxu0 0
    %6497 = vmatprep.subr.bf16.mxu0 0
    %6498 = vmatpush2.bf16.msra.mxu0 0
    %6499 = vmatprep.subr.bf16.mxu0 0
    %6500 = vmatpush2.bf16.msra.mxu0 0
    %6501 = vmatprep.subr.bf16.mxu0 0
    %6502 = vmatpush2.bf16.msra.mxu0 0
    %6503 = vmatprep.mubr.bf16.mxu0 0
    %6504 = vmatmul.mubr.bf16.gmra.mxu0 %v93
    %v6505 = vpop.f32.mrf.mxu0
    %v6506 = vadd.f32 0.0, %v6505
    %v6507 = vpop.f32.mrf.mxu0
    %v6508 = vpop.f32.mrf.mxu0
    %v6509 = vadd.f32 0.0, %v6508
    %v6510 = vpop.f32.mrf.mxu0
    %6511 = vmatprep.mubr.bf16.mxu0 0
    %6512 = vmatmul.mubr.bf16.gmra.mxu0 %v96
    %v6513 = vpop.f32.mrf.mxu0
    %v6514 = vadd.f32 0.0, %v6513
    %v6515 = vpop.f32.mrf.mxu0
    %v6516 = vpop.f32.mrf.mxu0
    %v6517 = vadd.f32 0.0, %v6516
    %v6518 = vpop.f32.mrf.mxu0
    %6519 = vdwg.mxu0
    %6524 = vrot.lane.b32.xlu0 %v6506, 64
    %v6525 = vpop.permute.xlu0 %6524
    %6526 = vrot.lane.b32.xlu0 %v6509, 64
    %v6527 = vpop.permute.xlu0 %6526
    %6528 = vrot.lane.b32.xlu0 %v6514, 64
    %v6529 = vpop.permute.xlu0 %6528
    %6530 = vrot.lane.b32.xlu0 %v6517, 64
    %v6531 = vpop.permute.xlu0 %6530
    %v6536 = vadd.f32 %v6461, %v6525
    %v6537 = vadd.f32 %v6462, %v6527
    %v6538 = vadd.f32 %v6463, %v6529
    %v6539 = vadd.f32 %v6464, %v6531
    %v6540 = vtanh.pop %v6536
    %v6541 = vtanh.pop %v6537
    %v6542 = vtanh.pop %v6538
    %v6543 = vtanh.pop %v6539
    %6548 = vrot.lane.b32.xlu0 %v6540, 96
    %v6549 = vpop.permute.xlu0 %6548
    %6550 = vrot.lane.b32.xlu0 %v6541, 96
    %v6551 = vpop.permute.xlu0 %6550
    %6552 = vrot.lane.b32.xlu0 %v6542, 96
    %v6553 = vpop.permute.xlu0 %6552
    %6554 = vrot.lane.b32.xlu0 %v6543, 96
    %v6555 = vpop.permute.xlu0 %6554
    %v6560 = vmul.f32 %v6233, %v6549
    %v6561 = vmul.f32 %v6235, %v6551
    %v6562 = vmul.f32 %v6237, %v6553
    %v6563 = vmul.f32 %v6239, %v6555
    %v6564 = vsub.f32 1.0, %v6233
    %v6565 = vsub.f32 1.0, %v6235
    %v6566 = vsub.f32 1.0, %v6237
    %v6567 = vsub.f32 1.0, %v6239
    %v6568 = vmul.f32 %v6564, %v5970
    %v6569 = vmul.f32 %v6565, %v5971
    %v6570 = vmul.f32 %v6566, %v5972
    %v6571 = vmul.f32 %v6567, %v5973
    %v6572 = vadd.f32 %v6560, %v6568
    %v6573 = vadd.f32 %v6561, %v6569
    %v6574 = vadd.f32 %v6562, %v6570
    %v6575 = vadd.f32 %v6563, %v6571
    %v6576 = vld [vmem:[%s986] sm:$0xff]
    %v6577 = vld [vmem:[%s986 + $0x8] sm:$0xff]
    %v6578 = vld [vmem:[%s986 + $0x10] sm:$0xff]
    %v6579 = vld [vmem:[%s986 + $0x18] sm:$0xff]
    %v6580 = vpack.c.bf16 %v6573, %v6572
    %v6581 = vpack.c.bf16 %v6575, %v6574
    %6584 = vrot.lane.b32.xlu0 %v6580, 96
    %v6585 = vpop.permute.xlu0 %6584
    %6586 = vrot.lane.b32.xlu0 %v6581, 96
    %v6587 = vpop.permute.xlu0 %6586
    %v6589 = vsel %vm79, %v6585, 0
    %v6592 = vsel %vm79, %v6587, 0
    %6594 = vmatprep.subr.bf16.mxu0 0
    %6595 = vmatpush1.bf16.msra.mxu0 0
    %6596 = vmatprep.subr.bf16.mxu0 0
    %6597 = vmatpush1.bf16.msra.mxu0 0
    %6598 = vmatprep.subr.bf16.mxu0 0
    %6599 = vmatpush1.bf16.msra.mxu0 0
    %6600 = vmatprep.subr.bf16.mxu0 0
    %6601 = vmatpush1.bf16.msra.mxu0 0
    %6602 = vmatprep.subr.bf16.mxu0 0
    %6603 = vmatpush1.bf16.msra.mxu0 0
    %6604 = vmatprep.subr.bf16.mxu0 0
    %6605 = vmatpush1.bf16.msra.mxu0 0
    %6606 = vmatprep.subr.bf16.mxu0 %v1172
    %6607 = vmatpush1.bf16.msra.mxu0 %v1171
    %6608 = vmatprep.subr.bf16.mxu0 %v1170
    %6609 = vmatpush1.bf16.msra.mxu0 %v1169
    %6610 = vmatprep.subr.bf16.mxu0 0
    %6611 = vmatpush2.bf16.msra.mxu0 0
    %6612 = vmatprep.subr.bf16.mxu0 0
    %6613 = vmatpush2.bf16.msra.mxu0 0
    %6614 = vmatprep.subr.bf16.mxu0 0
    %6615 = vmatpush2.bf16.msra.mxu0 0
    %6616 = vmatprep.subr.bf16.mxu0 0
    %6617 = vmatpush2.bf16.msra.mxu0 0
    %6618 = vmatprep.subr.bf16.mxu0 0
    %6619 = vmatpush2.bf16.msra.mxu0 0
    %6620 = vmatprep.subr.bf16.mxu0 0
    %6621 = vmatpush2.bf16.msra.mxu0 0
    %6622 = vmatprep.subr.bf16.mxu0 0
    %6623 = vmatpush2.bf16.msra.mxu0 0
    %6624 = vmatprep.subr.bf16.mxu0 0
    %6625 = vmatpush2.bf16.msra.mxu0 0
    %6626 = vmatprep.mubr.bf16.mxu0 0
    %6627 = vmatmul.mubr.bf16.gmra.mxu0 %v6589
    %v6628 = vpop.f32.mrf.mxu0
    %v6629 = vadd.f32 0.0, %v6628
    %v6630 = vpop.f32.mrf.mxu0
    %v6631 = vadd.f32 0.0, %v6630
    %v6632 = vpop.f32.mrf.mxu0
    %v6633 = vadd.f32 0.0, %v6632
    %v6634 = vpop.f32.mrf.mxu0
    %v6635 = vadd.f32 0.0, %v6634
    %6636 = vmatprep.mubr.bf16.mxu0 0
    %6637 = vmatmul.mubr.bf16.gmra.mxu0 %v6592
    %v6638 = vpop.f32.mrf.mxu0
    %v6639 = vadd.f32 0.0, %v6638
    %v6640 = vpop.f32.mrf.mxu0
    %v6641 = vadd.f32 0.0, %v6640
    %v6642 = vpop.f32.mrf.mxu0
    %v6643 = vadd.f32 0.0, %v6642
    %v6644 = vpop.f32.mrf.mxu0
    %v6645 = vadd.f32 0.0, %v6644
    %6646 = vdwg.mxu0
    %v6647 = vpack.c.bf16 %v6633, %v6629
    %v6648 = vpack.c.bf16 %v6635, %v6631
    %v6649 = vpack.c.bf16 %v6643, %v6639
    %v6650 = vpack.c.bf16 %v6645, %v6641
    %6651 = vmatprep.subr.bf16.mxu0 0
    %6652 = vmatpush1.bf16.msra.mxu0 0
    %6653 = vmatprep.subr.bf16.mxu0 0
    %6654 = vmatpush1.bf16.msra.mxu0 0
    %6655 = vmatprep.subr.bf16.mxu0 0
    %6656 = vmatpush1.bf16.msra.mxu0 0
    %6657 = vmatprep.subr.bf16.mxu0 0
    %6658 = vmatpush1.bf16.msra.mxu0 0
    %6659 = vmatprep.subr.bf16.mxu0 0
    %6660 = vmatpush1.bf16.msra.mxu0 0
    %6661 = vmatprep.subr.bf16.mxu0 0
    %6662 = vmatpush1.bf16.msra.mxu0 0
    %6663 = vmatprep.subr.bf16.mxu0 0
    %6664 = vmatpush1.bf16.msra.mxu0 %v6649
    %6665 = vmatprep.subr.bf16.mxu0 0
    %6666 = vmatpush1.bf16.msra.mxu0 %v6647
    %6667 = vmatprep.subr.bf16.mxu0 0
    %6668 = vmatpush2.bf16.msra.mxu0 0
    %6669 = vmatprep.subr.bf16.mxu0 0
    %6670 = vmatpush2.bf16.msra.mxu0 0
    %6671 = vmatprep.subr.bf16.mxu0 0
    %6672 = vmatpush2.bf16.msra.mxu0 0
    %6673 = vmatprep.subr.bf16.mxu0 0
    %6674 = vmatpush2.bf16.msra.mxu0 0
    %6675 = vmatprep.subr.bf16.mxu0 0
    %6676 = vmatpush2.bf16.msra.mxu0 0
    %6677 = vmatprep.subr.bf16.mxu0 0
    %6678 = vmatpush2.bf16.msra.mxu0 0
    %6679 = vmatprep.subr.bf16.mxu0 0
    %6680 = vmatpush2.bf16.msra.mxu0 0
    %6681 = vmatprep.subr.bf16.mxu0 0
    %6682 = vmatpush2.bf16.msra.mxu0 0
    %6683 = vmatprep.mubr.bf16.mxu0 0
    %6684 = vmatmul.mubr.bf16.gmra.mxu0 %v81
    %v6685 = vpop.f32.mrf.mxu0
    %v6686 = vadd.f32 0.0, %v6685
    %v6687 = vpop.f32.mrf.mxu0
    %v6688 = vpop.f32.mrf.mxu0
    %v6689 = vadd.f32 0.0, %v6688
    %v6690 = vpop.f32.mrf.mxu0
    %6691 = vmatprep.mubr.bf16.mxu0 0
    %6692 = vmatmul.mubr.bf16.gmra.mxu0 %v84
    %v6693 = vpop.f32.mrf.mxu0
    %v6694 = vadd.f32 0.0, %v6693
    %v6695 = vpop.f32.mrf.mxu0
    %v6696 = vpop.f32.mrf.mxu0
    %v6697 = vadd.f32 0.0, %v6696
    %v6698 = vpop.f32.mrf.mxu0
    %6699 = vdwg.mxu0
    %v6700 = vadd.f32 %v6576, %v6686
    %v6701 = vadd.f32 %v6577, %v6689
    %v6702 = vadd.f32 %v6578, %v6694
    %v6703 = vadd.f32 %v6579, %v6697
    %6706 = vrot.lane.b32.xlu0 %v6647, 64
    %v6707 = vpop.permute.xlu0 %6706
    %6708 = vrot.lane.b32.xlu0 %v6649, 64
    %v6709 = vpop.permute.xlu0 %6708
    %6712 = vmatprep.subr.bf16.mxu0 0
    %6713 = vmatpush1.bf16.msra.mxu0 0
    %6714 = vmatprep.subr.bf16.mxu0 0
    %6715 = vmatpush1.bf16.msra.mxu0 0
    %6716 = vmatprep.subr.bf16.mxu0 0
    %6717 = vmatpush1.bf16.msra.mxu0 0
    %6718 = vmatprep.subr.bf16.mxu0 0
    %6719 = vmatpush1.bf16.msra.mxu0 0
    %6720 = vmatprep.subr.bf16.mxu0 0
    %6721 = vmatpush1.bf16.msra.mxu0 0
    %6722 = vmatprep.subr.bf16.mxu0 0
    %6723 = vmatpush1.bf16.msra.mxu0 0
    %6724 = vmatprep.subr.bf16.mxu0 0
    %6725 = vmatpush1.bf16.msra.mxu0 %v6709
    %6726 = vmatprep.subr.bf16.mxu0 0
    %6727 = vmatpush1.bf16.msra.mxu0 %v6707
    %6728 = vmatprep.subr.bf16.mxu0 0
    %6729 = vmatpush2.bf16.msra.mxu0 0
    %6730 = vmatprep.subr.bf16.mxu0 0
    %6731 = vmatpush2.bf16.msra.mxu0 0
    %6732 = vmatprep.subr.bf16.mxu0 0
    %6733 = vmatpush2.bf16.msra.mxu0 0
    %6734 = vmatprep.subr.bf16.mxu0 0
    %6735 = vmatpush2.bf16.msra.mxu0 0
    %6736 = vmatprep.subr.bf16.mxu0 0
    %6737 = vmatpush2.bf16.msra.mxu0 0
    %6738 = vmatprep.subr.bf16.mxu0 0
    %6739 = vmatpush2.bf16.msra.mxu0 0
    %6740 = vmatprep.subr.bf16.mxu0 0
    %6741 = vmatpush2.bf16.msra.mxu0 0
    %6742 = vmatprep.subr.bf16.mxu0 0
    %6743 = vmatpush2.bf16.msra.mxu0 0
    %6744 = vmatprep.mubr.bf16.mxu0 0
    %6745 = vmatmul.mubr.bf16.gmra.mxu0 %v87
    %v6746 = vpop.f32.mrf.mxu0
    %v6747 = vadd.f32 0.0, %v6746
    %v6748 = vpop.f32.mrf.mxu0
    %v6749 = vpop.f32.mrf.mxu0
    %v6750 = vadd.f32 0.0, %v6749
    %v6751 = vpop.f32.mrf.mxu0
    %6752 = vmatprep.mubr.bf16.mxu0 0
    %6753 = vmatmul.mubr.bf16.gmra.mxu0 %v90
    %v6754 = vpop.f32.mrf.mxu0
    %v6755 = vadd.f32 0.0, %v6754
    %v6756 = vpop.f32.mrf.mxu0
    %v6757 = vpop.f32.mrf.mxu0
    %v6758 = vadd.f32 0.0, %v6757
    %v6759 = vpop.f32.mrf.mxu0
    %6760 = vdwg.mxu0
    %v6761 = vadd.f32 %v6700, %v6747
    %v6762 = vadd.f32 %v6701, %v6750
    %v6763 = vadd.f32 %v6702, %v6755
    %v6764 = vadd.f32 %v6703, %v6758
    %6765 = vmatprep.subr.bf16.mxu0 0
    %6766 = vmatpush1.bf16.msra.mxu0 0
    %6767 = vmatprep.subr.bf16.mxu0 0
    %6768 = vmatpush1.bf16.msra.mxu0 0
    %6769 = vmatprep.subr.bf16.mxu0 0
    %6770 = vmatpush1.bf16.msra.mxu0 0
    %6771 = vmatprep.subr.bf16.mxu0 0
    %6772 = vmatpush1.bf16.msra.mxu0 0
    %6773 = vmatprep.subr.bf16.mxu0 0
    %6774 = vmatpush1.bf16.msra.mxu0 0
    %6775 = vmatprep.subr.bf16.mxu0 0
    %6776 = vmatpush1.bf16.msra.mxu0 0
    %6777 = vmatprep.subr.bf16.mxu0 0
    %6778 = vmatpush1.bf16.msra.mxu0 %v6650
    %6779 = vmatprep.subr.bf16.mxu0 0
    %6780 = vmatpush1.bf16.msra.mxu0 %v6648
    %6781 = vmatprep.subr.bf16.mxu0 0
    %6782 = vmatpush2.bf16.msra.mxu0 0
    %6783 = vmatprep.subr.bf16.mxu0 0
    %6784 = vmatpush2.bf16.msra.mxu0 0
    %6785 = vmatprep.subr.bf16.mxu0 0
    %6786 = vmatpush2.bf16.msra.mxu0 0
    %6787 = vmatprep.subr.bf16.mxu0 0
    %6788 = vmatpush2.bf16.msra.mxu0 0
    %6789 = vmatprep.subr.bf16.mxu0 0
    %6790 = vmatpush2.bf16.msra.mxu0 0
    %6791 = vmatprep.subr.bf16.mxu0 0
    %6792 = vmatpush2.bf16.msra.mxu0 0
    %6793 = vmatprep.subr.bf16.mxu0 0
    %6794 = vmatpush2.bf16.msra.mxu0 0
    %6795 = vmatprep.subr.bf16.mxu0 0
    %6796 = vmatpush2.bf16.msra.mxu0 0
    %6797 = vmatprep.mubr.bf16.mxu0 0
    %6798 = vmatmul.mubr.bf16.gmra.mxu0 %v93
    %v6799 = vpop.f32.mrf.mxu0
    %v6800 = vadd.f32 0.0, %v6799
    %v6801 = vpop.f32.mrf.mxu0
    %v6802 = vpop.f32.mrf.mxu0
    %v6803 = vadd.f32 0.0, %v6802
    %v6804 = vpop.f32.mrf.mxu0
    %6805 = vmatprep.mubr.bf16.mxu0 0
    %6806 = vmatmul.mubr.bf16.gmra.mxu0 %v96
    %v6807 = vpop.f32.mrf.mxu0
    %v6808 = vadd.f32 0.0, %v6807
    %v6809 = vpop.f32.mrf.mxu0
    %v6810 = vpop.f32.mrf.mxu0
    %v6811 = vadd.f32 0.0, %v6810
    %v6812 = vpop.f32.mrf.mxu0
    %6813 = vdwg.mxu0
    %v6814 = vadd.f32 %v6761, %v6800
    %v6815 = vadd.f32 %v6762, %v6803
    %v6816 = vadd.f32 %v6763, %v6808
    %v6817 = vadd.f32 %v6764, %v6811
    %v6818 = vxor.u32 %v6814, 2147483648
    %v6819 = vxor.u32 %v6815, 2147483648
    %v6820 = vxor.u32 %v6816, 2147483648
    %v6821 = vxor.u32 %v6817, 2147483648
    %v6822 = vmul.f32 %v6818, 1.442695
    %v6823 = vpow.pop %v6822
    %v6824 = vmul.f32 %v6819, 1.442695
    %v6825 = vpow.pop %v6824
    %v6826 = vmul.f32 %v6820, 1.442695
    %v6827 = vpow.pop %v6826
    %v6828 = vmul.f32 %v6821, 1.442695
    %v6829 = vpow.pop %v6828
    %v6830 = vadd.f32 %v6823, 1.0
    %v6831 = vadd.f32 %v6825, 1.0
    %v6832 = vadd.f32 %v6827, 1.0
    %v6833 = vadd.f32 %v6829, 1.0
    %v6834 = vrcp.pop %v6830
    %v6835 = vmul.f32 1.0, %v6834
    %v6836 = vrcp.pop %v6831
    %v6837 = vmul.f32 1.0, %v6836
    %v6838 = vrcp.pop %v6832
    %v6839 = vmul.f32 1.0, %v6838
    %v6840 = vrcp.pop %v6833
    %v6841 = vmul.f32 1.0, %v6840
    %6846 = vrot.lane.b32.xlu0 %v6572, 96
    %v6847 = vpop.permute.xlu0 %6846
    %6848 = vrot.lane.b32.xlu0 %v6573, 96
    %v6849 = vpop.permute.xlu0 %6848
    %6850 = vrot.lane.b32.xlu0 %v6574, 96
    %v6851 = vpop.permute.xlu0 %6850
    %6852 = vrot.lane.b32.xlu0 %v6575, 96
    %v6853 = vpop.permute.xlu0 %6852
    %v6858 = vmul.f32 %v6835, %v6847
    %v6859 = vmul.f32 %v6837, %v6849
    %v6860 = vmul.f32 %v6839, %v6851
    %v6861 = vmul.f32 %v6841, %v6853
    %v6862 = vpack.c.bf16 %v6859, %v6858
    %v6863 = vpack.c.bf16 %v6861, %v6860
    %v6865 = vsel %vm79, %v6862, 0
    %v6868 = vsel %vm79, %v6863, 0
    %6870 = vmatprep.subr.bf16.mxu0 0
    %6871 = vmatpush1.bf16.msra.mxu0 0
    %6872 = vmatprep.subr.bf16.mxu0 0
    %6873 = vmatpush1.bf16.msra.mxu0 0
    %6874 = vmatprep.subr.bf16.mxu0 0
    %6875 = vmatpush1.bf16.msra.mxu0 0
    %6876 = vmatprep.subr.bf16.mxu0 0
    %6877 = vmatpush1.bf16.msra.mxu0 0
    %6878 = vmatprep.subr.bf16.mxu0 0
    %6879 = vmatpush1.bf16.msra.mxu0 0
    %6880 = vmatprep.subr.bf16.mxu0 0
    %6881 = vmatpush1.bf16.msra.mxu0 0
    %6882 = vmatprep.subr.bf16.mxu0 0
    %6883 = vmatpush1.bf16.msra.mxu0 %v1443
    %6884 = vmatprep.subr.bf16.mxu0 0
    %6885 = vmatpush1.bf16.msra.mxu0 %v1442
    %6886 = vmatprep.subr.bf16.mxu0 0
    %6887 = vmatpush2.bf16.msra.mxu0 0
    %6888 = vmatprep.subr.bf16.mxu0 0
    %6889 = vmatpush2.bf16.msra.mxu0 0
    %6890 = vmatprep.subr.bf16.mxu0 0
    %6891 = vmatpush2.bf16.msra.mxu0 0
    %6892 = vmatprep.subr.bf16.mxu0 0
    %6893 = vmatpush2.bf16.msra.mxu0 0
    %6894 = vmatprep.subr.bf16.mxu0 0
    %6895 = vmatpush2.bf16.msra.mxu0 0
    %6896 = vmatprep.subr.bf16.mxu0 0
    %6897 = vmatpush2.bf16.msra.mxu0 0
    %6898 = vmatprep.subr.bf16.mxu0 0
    %6899 = vmatpush2.bf16.msra.mxu0 0
    %6900 = vmatprep.subr.bf16.mxu0 0
    %6901 = vmatpush2.bf16.msra.mxu0 0
    %6902 = vmatprep.mubr.bf16.mxu0 0
    %6903 = vmatmul.mubr.bf16.gmra.mxu0 %v6865
    %v6904 = vpop.f32.mrf.mxu0
    %v6905 = vadd.f32 0.0, %v6904
    %v6906 = vpop.f32.mrf.mxu0
    %v6907 = vpop.f32.mrf.mxu0
    %v6908 = vadd.f32 0.0, %v6907
    %v6909 = vpop.f32.mrf.mxu0
    %6910 = vmatprep.mubr.bf16.mxu0 0
    %6911 = vmatmul.mubr.bf16.gmra.mxu0 %v6868
    %v6912 = vpop.f32.mrf.mxu0
    %v6913 = vadd.f32 0.0, %v6912
    %v6914 = vpop.f32.mrf.mxu0
    %v6915 = vpop.f32.mrf.mxu0
    %v6916 = vadd.f32 0.0, %v6915
    %v6917 = vpop.f32.mrf.mxu0
    %6918 = vdwg.mxu0
    %v6919 = vpack.c.bf16 %v6908, %v6905
    %v6920 = vpack.c.bf16 %v6916, %v6913
    %6921 = vmatprep.subr.bf16.mxu0 0
    %6922 = vmatpush1.bf16.msra.mxu0 0
    %6923 = vmatprep.subr.bf16.mxu0 0
    %6924 = vmatpush1.bf16.msra.mxu0 0
    %6925 = vmatprep.subr.bf16.mxu0 0
    %6926 = vmatpush1.bf16.msra.mxu0 0
    %6927 = vmatprep.subr.bf16.mxu0 0
    %6928 = vmatpush1.bf16.msra.mxu0 0
    %6929 = vmatprep.subr.bf16.mxu0 0
    %6930 = vmatpush1.bf16.msra.mxu0 0
    %6931 = vmatprep.subr.bf16.mxu0 0
    %6932 = vmatpush1.bf16.msra.mxu0 0
    %6933 = vmatprep.subr.bf16.mxu0 0
    %6934 = vmatpush1.bf16.msra.mxu0 %v6920
    %6935 = vmatprep.subr.bf16.mxu0 0
    %6936 = vmatpush1.bf16.msra.mxu0 %v6919
    %6937 = vmatprep.subr.bf16.mxu0 0
    %6938 = vmatpush2.bf16.msra.mxu0 0
    %6939 = vmatprep.subr.bf16.mxu0 0
    %6940 = vmatpush2.bf16.msra.mxu0 0
    %6941 = vmatprep.subr.bf16.mxu0 0
    %6942 = vmatpush2.bf16.msra.mxu0 0
    %6943 = vmatprep.subr.bf16.mxu0 0
    %6944 = vmatpush2.bf16.msra.mxu0 0
    %6945 = vmatprep.subr.bf16.mxu0 0
    %6946 = vmatpush2.bf16.msra.mxu0 0
    %6947 = vmatprep.subr.bf16.mxu0 0
    %6948 = vmatpush2.bf16.msra.mxu0 0
    %6949 = vmatprep.subr.bf16.mxu0 0
    %6950 = vmatpush2.bf16.msra.mxu0 0
    %6951 = vmatprep.subr.bf16.mxu0 0
    %6952 = vmatpush2.bf16.msra.mxu0 0
    %6953 = vmatprep.mubr.bf16.mxu0 0
    %6954 = vmatmul.mubr.bf16.gmra.mxu0 %v81
    %v6955 = vpop.f32.mrf.mxu0
    %v6956 = vadd.f32 0.0, %v6955
    %v6957 = vpop.f32.mrf.mxu0
    %v6958 = vpop.f32.mrf.mxu0
    %v6959 = vadd.f32 0.0, %v6958
    %v6960 = vpop.f32.mrf.mxu0
    %6961 = vmatprep.mubr.bf16.mxu0 0
    %6962 = vmatmul.mubr.bf16.gmra.mxu0 %v84
    %v6963 = vpop.f32.mrf.mxu0
    %v6964 = vadd.f32 0.0, %v6963
    %v6965 = vpop.f32.mrf.mxu0
    %v6966 = vpop.f32.mrf.mxu0
    %v6967 = vadd.f32 0.0, %v6966
    %v6968 = vpop.f32.mrf.mxu0
    %6969 = vdwg.mxu0
    %6974 = vrot.lane.b32.xlu0 %v6956, 64
    %v6975 = vpop.permute.xlu0 %6974
    %6976 = vrot.lane.b32.xlu0 %v6959, 64
    %v6977 = vpop.permute.xlu0 %6976
    %6978 = vrot.lane.b32.xlu0 %v6964, 64
    %v6979 = vpop.permute.xlu0 %6978
    %6980 = vrot.lane.b32.xlu0 %v6967, 64
    %v6981 = vpop.permute.xlu0 %6980
    %v6986 = vadd.f32 %v6576, %v6975
    %v6987 = vadd.f32 %v6577, %v6977
    %v6988 = vadd.f32 %v6578, %v6979
    %v6989 = vadd.f32 %v6579, %v6981
    %6992 = vrot.lane.b32.xlu0 %v6919, 96
    %v6993 = vpop.permute.xlu0 %6992
    %6994 = vrot.lane.b32.xlu0 %v6920, 96
    %v6995 = vpop.permute.xlu0 %6994
    %6998 = vmatprep.subr.bf16.mxu0 0
    %6999 = vmatpush1.bf16.msra.mxu0 0
    %7000 = vmatprep.subr.bf16.mxu0 0
    %7001 = vmatpush1.bf16.msra.mxu0 0
    %7002 = vmatprep.subr.bf16.mxu0 0
    %7003 = vmatpush1.bf16.msra.mxu0 0
    %7004 = vmatprep.subr.bf16.mxu0 0
    %7005 = vmatpush1.bf16.msra.mxu0 0
    %7006 = vmatprep.subr.bf16.mxu0 0
    %7007 = vmatpush1.bf16.msra.mxu0 0
    %7008 = vmatprep.subr.bf16.mxu0 0
    %7009 = vmatpush1.bf16.msra.mxu0 0
    %7010 = vmatprep.subr.bf16.mxu0 0
    %7011 = vmatpush1.bf16.msra.mxu0 %v6995
    %7012 = vmatprep.subr.bf16.mxu0 0
    %7013 = vmatpush1.bf16.msra.mxu0 %v6993
    %7014 = vmatprep.subr.bf16.mxu0 0
    %7015 = vmatpush2.bf16.msra.mxu0 0
    %7016 = vmatprep.subr.bf16.mxu0 0
    %7017 = vmatpush2.bf16.msra.mxu0 0
    %7018 = vmatprep.subr.bf16.mxu0 0
    %7019 = vmatpush2.bf16.msra.mxu0 0
    %7020 = vmatprep.subr.bf16.mxu0 0
    %7021 = vmatpush2.bf16.msra.mxu0 0
    %7022 = vmatprep.subr.bf16.mxu0 0
    %7023 = vmatpush2.bf16.msra.mxu0 0
    %7024 = vmatprep.subr.bf16.mxu0 0
    %7025 = vmatpush2.bf16.msra.mxu0 0
    %7026 = vmatprep.subr.bf16.mxu0 0
    %7027 = vmatpush2.bf16.msra.mxu0 0
    %7028 = vmatprep.subr.bf16.mxu0 0
    %7029 = vmatpush2.bf16.msra.mxu0 0
    %7030 = vmatprep.mubr.bf16.mxu0 0
    %7031 = vmatmul.mubr.bf16.gmra.mxu0 %v87
    %v7032 = vpop.f32.mrf.mxu0
    %v7033 = vadd.f32 0.0, %v7032
    %v7034 = vpop.f32.mrf.mxu0
    %v7035 = vpop.f32.mrf.mxu0
    %v7036 = vadd.f32 0.0, %v7035
    %v7037 = vpop.f32.mrf.mxu0
    %7038 = vmatprep.mubr.bf16.mxu0 0
    %7039 = vmatmul.mubr.bf16.gmra.mxu0 %v90
    %v7040 = vpop.f32.mrf.mxu0
    %v7041 = vadd.f32 0.0, %v7040
    %v7042 = vpop.f32.mrf.mxu0
    %v7043 = vpop.f32.mrf.mxu0
    %v7044 = vadd.f32 0.0, %v7043
    %v7045 = vpop.f32.mrf.mxu0
    %7046 = vdwg.mxu0
    %7051 = vrot.lane.b32.xlu0 %v7033, 64
    %v7052 = vpop.permute.xlu0 %7051
    %7053 = vrot.lane.b32.xlu0 %v7036, 64
    %v7054 = vpop.permute.xlu0 %7053
    %7055 = vrot.lane.b32.xlu0 %v7041, 64
    %v7056 = vpop.permute.xlu0 %7055
    %7057 = vrot.lane.b32.xlu0 %v7044, 64
    %v7058 = vpop.permute.xlu0 %7057
    %v7063 = vadd.f32 %v6986, %v7052
    %v7064 = vadd.f32 %v6987, %v7054
    %v7065 = vadd.f32 %v6988, %v7056
    %v7066 = vadd.f32 %v6989, %v7058
    %7067 = vrot.lane.b32.xlu0 %v6919, 64
    %v7068 = vpop.permute.xlu0 %7067
    %7069 = vrot.lane.b32.xlu0 %v6920, 64
    %v7070 = vpop.permute.xlu0 %7069
    %7073 = vmatprep.subr.bf16.mxu0 0
    %7074 = vmatpush1.bf16.msra.mxu0 0
    %7075 = vmatprep.subr.bf16.mxu0 0
    %7076 = vmatpush1.bf16.msra.mxu0 0
    %7077 = vmatprep.subr.bf16.mxu0 0
    %7078 = vmatpush1.bf16.msra.mxu0 0
    %7079 = vmatprep.subr.bf16.mxu0 0
    %7080 = vmatpush1.bf16.msra.mxu0 0
    %7081 = vmatprep.subr.bf16.mxu0 0
    %7082 = vmatpush1.bf16.msra.mxu0 0
    %7083 = vmatprep.subr.bf16.mxu0 0
    %7084 = vmatpush1.bf16.msra.mxu0 0
    %7085 = vmatprep.subr.bf16.mxu0 0
    %7086 = vmatpush1.bf16.msra.mxu0 %v7070
    %7087 = vmatprep.subr.bf16.mxu0 0
    %7088 = vmatpush1.bf16.msra.mxu0 %v7068
    %7089 = vmatprep.subr.bf16.mxu0 0
    %7090 = vmatpush2.bf16.msra.mxu0 0
    %7091 = vmatprep.subr.bf16.mxu0 0
    %7092 = vmatpush2.bf16.msra.mxu0 0
    %7093 = vmatprep.subr.bf16.mxu0 0
    %7094 = vmatpush2.bf16.msra.mxu0 0
    %7095 = vmatprep.subr.bf16.mxu0 0
    %7096 = vmatpush2.bf16.msra.mxu0 0
    %7097 = vmatprep.subr.bf16.mxu0 0
    %7098 = vmatpush2.bf16.msra.mxu0 0
    %7099 = vmatprep.subr.bf16.mxu0 0
    %7100 = vmatpush2.bf16.msra.mxu0 0
    %7101 = vmatprep.subr.bf16.mxu0 0
    %7102 = vmatpush2.bf16.msra.mxu0 0
    %7103 = vmatprep.subr.bf16.mxu0 0
    %7104 = vmatpush2.bf16.msra.mxu0 0
    %7105 = vmatprep.mubr.bf16.mxu0 0
    %7106 = vmatmul.mubr.bf16.gmra.mxu0 %v93
    %v7107 = vpop.f32.mrf.mxu0
    %v7108 = vadd.f32 0.0, %v7107
    %v7109 = vpop.f32.mrf.mxu0
    %v7110 = vpop.f32.mrf.mxu0
    %v7111 = vadd.f32 0.0, %v7110
    %v7112 = vpop.f32.mrf.mxu0
    %7113 = vmatprep.mubr.bf16.mxu0 0
    %7114 = vmatmul.mubr.bf16.gmra.mxu0 %v96
    %v7115 = vpop.f32.mrf.mxu0
    %v7116 = vadd.f32 0.0, %v7115
    %v7117 = vpop.f32.mrf.mxu0
    %v7118 = vpop.f32.mrf.mxu0
    %v7119 = vadd.f32 0.0, %v7118
    %v7120 = vpop.f32.mrf.mxu0
    %7121 = vdwg.mxu0
    %7126 = vrot.lane.b32.xlu0 %v7108, 64
    %v7127 = vpop.permute.xlu0 %7126
    %7128 = vrot.lane.b32.xlu0 %v7111, 64
    %v7129 = vpop.permute.xlu0 %7128
    %7130 = vrot.lane.b32.xlu0 %v7116, 64
    %v7131 = vpop.permute.xlu0 %7130
    %7132 = vrot.lane.b32.xlu0 %v7119, 64
    %v7133 = vpop.permute.xlu0 %7132
    %v7138 = vadd.f32 %v7063, %v7127
    %v7139 = vadd.f32 %v7064, %v7129
    %v7140 = vadd.f32 %v7065, %v7131
    %v7141 = vadd.f32 %v7066, %v7133
    %v7142 = vtanh.pop %v7138
    %v7143 = vtanh.pop %v7139
    %v7144 = vtanh.pop %v7140
    %v7145 = vtanh.pop %v7141
    %7150 = vrot.lane.b32.xlu0 %v7142, 96
    %v7151 = vpop.permute.xlu0 %7150
    %7152 = vrot.lane.b32.xlu0 %v7143, 96
    %v7153 = vpop.permute.xlu0 %7152
    %7154 = vrot.lane.b32.xlu0 %v7144, 96
    %v7155 = vpop.permute.xlu0 %7154
    %7156 = vrot.lane.b32.xlu0 %v7145, 96
    %v7157 = vpop.permute.xlu0 %7156
    %v7162 = vmul.f32 %v6835, %v7151
    %v7163 = vmul.f32 %v6837, %v7153
    %v7164 = vmul.f32 %v6839, %v7155
    %v7165 = vmul.f32 %v6841, %v7157
    %v7166 = vsub.f32 1.0, %v6835
    %v7167 = vsub.f32 1.0, %v6837
    %v7168 = vsub.f32 1.0, %v6839
    %v7169 = vsub.f32 1.0, %v6841
    %v7170 = vmul.f32 %v7166, %v6572
    %v7171 = vmul.f32 %v7167, %v6573
    %v7172 = vmul.f32 %v7168, %v6574
    %v7173 = vmul.f32 %v7169, %v6575
    %v7174 = vadd.f32 %v7162, %v7170
    %v7175 = vadd.f32 %v7163, %v7171
    %v7176 = vadd.f32 %v7164, %v7172
    %v7177 = vadd.f32 %v7165, %v7173
    %v7178 = vld [vmem:[%s1063] sm:$0xff]
    %v7179 = vld [vmem:[%s1063 + $0x8] sm:$0xff]
    %v7180 = vld [vmem:[%s1063 + $0x10] sm:$0xff]
    %v7181 = vld [vmem:[%s1063 + $0x18] sm:$0xff]
    %v7182 = vpack.c.bf16 %v7175, %v7174
    %v7183 = vpack.c.bf16 %v7177, %v7176
    %7186 = vrot.lane.b32.xlu0 %v7182, 96
    %v7187 = vpop.permute.xlu0 %7186
    %7188 = vrot.lane.b32.xlu0 %v7183, 96
    %v7189 = vpop.permute.xlu0 %7188
    %v7191 = vsel %vm79, %v7187, 0
    %v7194 = vsel %vm79, %v7189, 0
    %7196 = vmatprep.subr.bf16.mxu0 0
    %7197 = vmatpush1.bf16.msra.mxu0 0
    %7198 = vmatprep.subr.bf16.mxu0 0
    %7199 = vmatpush1.bf16.msra.mxu0 0
    %7200 = vmatprep.subr.bf16.mxu0 0
    %7201 = vmatpush1.bf16.msra.mxu0 0
    %7202 = vmatprep.subr.bf16.mxu0 0
    %7203 = vmatpush1.bf16.msra.mxu0 0
    %7204 = vmatprep.subr.bf16.mxu0 0
    %7205 = vmatpush1.bf16.msra.mxu0 0
    %7206 = vmatprep.subr.bf16.mxu0 0
    %7207 = vmatpush1.bf16.msra.mxu0 0
    %7208 = vmatprep.subr.bf16.mxu0 %v1172
    %7209 = vmatpush1.bf16.msra.mxu0 %v1171
    %7210 = vmatprep.subr.bf16.mxu0 %v1170
    %7211 = vmatpush1.bf16.msra.mxu0 %v1169
    %7212 = vmatprep.subr.bf16.mxu0 0
    %7213 = vmatpush2.bf16.msra.mxu0 0
    %7214 = vmatprep.subr.bf16.mxu0 0
    %7215 = vmatpush2.bf16.msra.mxu0 0
    %7216 = vmatprep.subr.bf16.mxu0 0
    %7217 = vmatpush2.bf16.msra.mxu0 0
    %7218 = vmatprep.subr.bf16.mxu0 0
    %7219 = vmatpush2.bf16.msra.mxu0 0
    %7220 = vmatprep.subr.bf16.mxu0 0
    %7221 = vmatpush2.bf16.msra.mxu0 0
    %7222 = vmatprep.subr.bf16.mxu0 0
    %7223 = vmatpush2.bf16.msra.mxu0 0
    %7224 = vmatprep.subr.bf16.mxu0 0
    %7225 = vmatpush2.bf16.msra.mxu0 0
    %7226 = vmatprep.subr.bf16.mxu0 0
    %7227 = vmatpush2.bf16.msra.mxu0 0
    %7228 = vmatprep.mubr.bf16.mxu0 0
    %7229 = vmatmul.mubr.bf16.gmra.mxu0 %v7191
    %v7230 = vpop.f32.mrf.mxu0
    %v7231 = vadd.f32 0.0, %v7230
    %v7232 = vpop.f32.mrf.mxu0
    %v7233 = vadd.f32 0.0, %v7232
    %v7234 = vpop.f32.mrf.mxu0
    %v7235 = vadd.f32 0.0, %v7234
    %v7236 = vpop.f32.mrf.mxu0
    %v7237 = vadd.f32 0.0, %v7236
    %7238 = vmatprep.mubr.bf16.mxu0 0
    %7239 = vmatmul.mubr.bf16.gmra.mxu0 %v7194
    %v7240 = vpop.f32.mrf.mxu0
    %v7241 = vadd.f32 0.0, %v7240
    %v7242 = vpop.f32.mrf.mxu0
    %v7243 = vadd.f32 0.0, %v7242
    %v7244 = vpop.f32.mrf.mxu0
    %v7245 = vadd.f32 0.0, %v7244
    %v7246 = vpop.f32.mrf.mxu0
    %v7247 = vadd.f32 0.0, %v7246
    %7248 = vdwg.mxu0
    %v7249 = vpack.c.bf16 %v7235, %v7231
    %v7250 = vpack.c.bf16 %v7237, %v7233
    %v7251 = vpack.c.bf16 %v7245, %v7241
    %v7252 = vpack.c.bf16 %v7247, %v7243
    %7253 = vmatprep.subr.bf16.mxu0 0
    %7254 = vmatpush1.bf16.msra.mxu0 0
    %7255 = vmatprep.subr.bf16.mxu0 0
    %7256 = vmatpush1.bf16.msra.mxu0 0
    %7257 = vmatprep.subr.bf16.mxu0 0
    %7258 = vmatpush1.bf16.msra.mxu0 0
    %7259 = vmatprep.subr.bf16.mxu0 0
    %7260 = vmatpush1.bf16.msra.mxu0 0
    %7261 = vmatprep.subr.bf16.mxu0 0
    %7262 = vmatpush1.bf16.msra.mxu0 0
    %7263 = vmatprep.subr.bf16.mxu0 0
    %7264 = vmatpush1.bf16.msra.mxu0 0
    %7265 = vmatprep.subr.bf16.mxu0 0
    %7266 = vmatpush1.bf16.msra.mxu0 %v7251
    %7267 = vmatprep.subr.bf16.mxu0 0
    %7268 = vmatpush1.bf16.msra.mxu0 %v7249
    %7269 = vmatprep.subr.bf16.mxu0 0
    %7270 = vmatpush2.bf16.msra.mxu0 0
    %7271 = vmatprep.subr.bf16.mxu0 0
    %7272 = vmatpush2.bf16.msra.mxu0 0
    %7273 = vmatprep.subr.bf16.mxu0 0
    %7274 = vmatpush2.bf16.msra.mxu0 0
    %7275 = vmatprep.subr.bf16.mxu0 0
    %7276 = vmatpush2.bf16.msra.mxu0 0
    %7277 = vmatprep.subr.bf16.mxu0 0
    %7278 = vmatpush2.bf16.msra.mxu0 0
    %7279 = vmatprep.subr.bf16.mxu0 0
    %7280 = vmatpush2.bf16.msra.mxu0 0
    %7281 = vmatprep.subr.bf16.mxu0 0
    %7282 = vmatpush2.bf16.msra.mxu0 0
    %7283 = vmatprep.subr.bf16.mxu0 0
    %7284 = vmatpush2.bf16.msra.mxu0 0
    %7285 = vmatprep.mubr.bf16.mxu0 0
    %7286 = vmatmul.mubr.bf16.gmra.mxu0 %v81
    %v7287 = vpop.f32.mrf.mxu0
    %v7288 = vadd.f32 0.0, %v7287
    %v7289 = vpop.f32.mrf.mxu0
    %v7290 = vpop.f32.mrf.mxu0
    %v7291 = vadd.f32 0.0, %v7290
    %v7292 = vpop.f32.mrf.mxu0
    %7293 = vmatprep.mubr.bf16.mxu0 0
    %7294 = vmatmul.mubr.bf16.gmra.mxu0 %v84
    %v7295 = vpop.f32.mrf.mxu0
    %v7296 = vadd.f32 0.0, %v7295
    %v7297 = vpop.f32.mrf.mxu0
    %v7298 = vpop.f32.mrf.mxu0
    %v7299 = vadd.f32 0.0, %v7298
    %v7300 = vpop.f32.mrf.mxu0
    %7301 = vdwg.mxu0
    %v7302 = vadd.f32 %v7178, %v7288
    %v7303 = vadd.f32 %v7179, %v7291
    %v7304 = vadd.f32 %v7180, %v7296
    %v7305 = vadd.f32 %v7181, %v7299
    %7308 = vrot.lane.b32.xlu0 %v7249, 64
    %v7309 = vpop.permute.xlu0 %7308
    %7310 = vrot.lane.b32.xlu0 %v7251, 64
    %v7311 = vpop.permute.xlu0 %7310
    %7314 = vmatprep.subr.bf16.mxu0 0
    %7315 = vmatpush1.bf16.msra.mxu0 0
    %7316 = vmatprep.subr.bf16.mxu0 0
    %7317 = vmatpush1.bf16.msra.mxu0 0
    %7318 = vmatprep.subr.bf16.mxu0 0
    %7319 = vmatpush1.bf16.msra.mxu0 0
    %7320 = vmatprep.subr.bf16.mxu0 0
    %7321 = vmatpush1.bf16.msra.mxu0 0
    %7322 = vmatprep.subr.bf16.mxu0 0
    %7323 = vmatpush1.bf16.msra.mxu0 0
    %7324 = vmatprep.subr.bf16.mxu0 0
    %7325 = vmatpush1.bf16.msra.mxu0 0
    %7326 = vmatprep.subr.bf16.mxu0 0
    %7327 = vmatpush1.bf16.msra.mxu0 %v7311
    %7328 = vmatprep.subr.bf16.mxu0 0
    %7329 = vmatpush1.bf16.msra.mxu0 %v7309
    %7330 = vmatprep.subr.bf16.mxu0 0
    %7331 = vmatpush2.bf16.msra.mxu0 0
    %7332 = vmatprep.subr.bf16.mxu0 0
    %7333 = vmatpush2.bf16.msra.mxu0 0
    %7334 = vmatprep.subr.bf16.mxu0 0
    %7335 = vmatpush2.bf16.msra.mxu0 0
    %7336 = vmatprep.subr.bf16.mxu0 0
    %7337 = vmatpush2.bf16.msra.mxu0 0
    %7338 = vmatprep.subr.bf16.mxu0 0
    %7339 = vmatpush2.bf16.msra.mxu0 0
    %7340 = vmatprep.subr.bf16.mxu0 0
    %7341 = vmatpush2.bf16.msra.mxu0 0
    %7342 = vmatprep.subr.bf16.mxu0 0
    %7343 = vmatpush2.bf16.msra.mxu0 0
    %7344 = vmatprep.subr.bf16.mxu0 0
    %7345 = vmatpush2.bf16.msra.mxu0 0
    %7346 = vmatprep.mubr.bf16.mxu0 0
    %7347 = vmatmul.mubr.bf16.gmra.mxu0 %v87
    %v7348 = vpop.f32.mrf.mxu0
    %v7349 = vadd.f32 0.0, %v7348
    %v7350 = vpop.f32.mrf.mxu0
    %v7351 = vpop.f32.mrf.mxu0
    %v7352 = vadd.f32 0.0, %v7351
    %v7353 = vpop.f32.mrf.mxu0
    %7354 = vmatprep.mubr.bf16.mxu0 0
    %7355 = vmatmul.mubr.bf16.gmra.mxu0 %v90
    %v7356 = vpop.f32.mrf.mxu0
    %v7357 = vadd.f32 0.0, %v7356
    %v7358 = vpop.f32.mrf.mxu0
    %v7359 = vpop.f32.mrf.mxu0
    %v7360 = vadd.f32 0.0, %v7359
    %v7361 = vpop.f32.mrf.mxu0
    %7362 = vdwg.mxu0
    %v7363 = vadd.f32 %v7302, %v7349
    %v7364 = vadd.f32 %v7303, %v7352
    %v7365 = vadd.f32 %v7304, %v7357
    %v7366 = vadd.f32 %v7305, %v7360
    %7367 = vmatprep.subr.bf16.mxu0 0
    %7368 = vmatpush1.bf16.msra.mxu0 0
    %7369 = vmatprep.subr.bf16.mxu0 0
    %7370 = vmatpush1.bf16.msra.mxu0 0
    %7371 = vmatprep.subr.bf16.mxu0 0
    %7372 = vmatpush1.bf16.msra.mxu0 0
    %7373 = vmatprep.subr.bf16.mxu0 0
    %7374 = vmatpush1.bf16.msra.mxu0 0
    %7375 = vmatprep.subr.bf16.mxu0 0
    %7376 = vmatpush1.bf16.msra.mxu0 0
    %7377 = vmatprep.subr.bf16.mxu0 0
    %7378 = vmatpush1.bf16.msra.mxu0 0
    %7379 = vmatprep.subr.bf16.mxu0 0
    %7380 = vmatpush1.bf16.msra.mxu0 %v7252
    %7381 = vmatprep.subr.bf16.mxu0 0
    %7382 = vmatpush1.bf16.msra.mxu0 %v7250
    %7383 = vmatprep.subr.bf16.mxu0 0
    %7384 = vmatpush2.bf16.msra.mxu0 0
    %7385 = vmatprep.subr.bf16.mxu0 0
    %7386 = vmatpush2.bf16.msra.mxu0 0
    %7387 = vmatprep.subr.bf16.mxu0 0
    %7388 = vmatpush2.bf16.msra.mxu0 0
    %7389 = vmatprep.subr.bf16.mxu0 0
    %7390 = vmatpush2.bf16.msra.mxu0 0
    %7391 = vmatprep.subr.bf16.mxu0 0
    %7392 = vmatpush2.bf16.msra.mxu0 0
    %7393 = vmatprep.subr.bf16.mxu0 0
    %7394 = vmatpush2.bf16.msra.mxu0 0
    %7395 = vmatprep.subr.bf16.mxu0 0
    %7396 = vmatpush2.bf16.msra.mxu0 0
    %7397 = vmatprep.subr.bf16.mxu0 0
    %7398 = vmatpush2.bf16.msra.mxu0 0
    %7399 = vmatprep.mubr.bf16.mxu0 0
    %7400 = vmatmul.mubr.bf16.gmra.mxu0 %v93
    %v7401 = vpop.f32.mrf.mxu0
    %v7402 = vadd.f32 0.0, %v7401
    %v7403 = vpop.f32.mrf.mxu0
    %v7404 = vpop.f32.mrf.mxu0
    %v7405 = vadd.f32 0.0, %v7404
    %v7406 = vpop.f32.mrf.mxu0
    %7407 = vmatprep.mubr.bf16.mxu0 0
    %7408 = vmatmul.mubr.bf16.gmra.mxu0 %v96
    %v7409 = vpop.f32.mrf.mxu0
    %v7410 = vadd.f32 0.0, %v7409
    %v7411 = vpop.f32.mrf.mxu0
    %v7412 = vpop.f32.mrf.mxu0
    %v7413 = vadd.f32 0.0, %v7412
    %v7414 = vpop.f32.mrf.mxu0
    %7415 = vdwg.mxu0
    %v7416 = vadd.f32 %v7363, %v7402
    %v7417 = vadd.f32 %v7364, %v7405
    %v7418 = vadd.f32 %v7365, %v7410
    %v7419 = vadd.f32 %v7366, %v7413
    %v7420 = vxor.u32 %v7416, 2147483648
    %v7421 = vxor.u32 %v7417, 2147483648
    %v7422 = vxor.u32 %v7418, 2147483648
    %v7423 = vxor.u32 %v7419, 2147483648
    %v7424 = vmul.f32 %v7420, 1.442695
    %v7425 = vpow.pop %v7424
    %v7426 = vmul.f32 %v7421, 1.442695
    %v7427 = vpow.pop %v7426
    %v7428 = vmul.f32 %v7422, 1.442695
    %v7429 = vpow.pop %v7428
    %v7430 = vmul.f32 %v7423, 1.442695
    %v7431 = vpow.pop %v7430
    %v7432 = vadd.f32 %v7425, 1.0
    %v7433 = vadd.f32 %v7427, 1.0
    %v7434 = vadd.f32 %v7429, 1.0
    %v7435 = vadd.f32 %v7431, 1.0
    %v7436 = vrcp.pop %v7432
    %v7437 = vmul.f32 1.0, %v7436
    %v7438 = vrcp.pop %v7433
    %v7439 = vmul.f32 1.0, %v7438
    %v7440 = vrcp.pop %v7434
    %v7441 = vmul.f32 1.0, %v7440
    %v7442 = vrcp.pop %v7435
    %v7443 = vmul.f32 1.0, %v7442
    %7448 = vrot.lane.b32.xlu0 %v7174, 96
    %v7449 = vpop.permute.xlu0 %7448
    %7450 = vrot.lane.b32.xlu0 %v7175, 96
    %v7451 = vpop.permute.xlu0 %7450
    %7452 = vrot.lane.b32.xlu0 %v7176, 96
    %v7453 = vpop.permute.xlu0 %7452
    %7454 = vrot.lane.b32.xlu0 %v7177, 96
    %v7455 = vpop.permute.xlu0 %7454
    %v7460 = vmul.f32 %v7437, %v7449
    %v7461 = vmul.f32 %v7439, %v7451
    %v7462 = vmul.f32 %v7441, %v7453
    %v7463 = vmul.f32 %v7443, %v7455
    %v7464 = vpack.c.bf16 %v7461, %v7460
    %v7465 = vpack.c.bf16 %v7463, %v7462
    %v7467 = vsel %vm79, %v7464, 0
    %v7470 = vsel %vm79, %v7465, 0
    %7472 = vmatprep.subr.bf16.mxu0 0
    %7473 = vmatpush1.bf16.msra.mxu0 0
    %7474 = vmatprep.subr.bf16.mxu0 0
    %7475 = vmatpush1.bf16.msra.mxu0 0
    %7476 = vmatprep.subr.bf16.mxu0 0
    %7477 = vmatpush1.bf16.msra.mxu0 0
    %7478 = vmatprep.subr.bf16.mxu0 0
    %7479 = vmatpush1.bf16.msra.mxu0 0
    %7480 = vmatprep.subr.bf16.mxu0 0
    %7481 = vmatpush1.bf16.msra.mxu0 0
    %7482 = vmatprep.subr.bf16.mxu0 0
    %7483 = vmatpush1.bf16.msra.mxu0 0
    %7484 = vmatprep.subr.bf16.mxu0 0
    %7485 = vmatpush1.bf16.msra.mxu0 %v1443
    %7486 = vmatprep.subr.bf16.mxu0 0
    %7487 = vmatpush1.bf16.msra.mxu0 %v1442
    %7488 = vmatprep.subr.bf16.mxu0 0
    %7489 = vmatpush2.bf16.msra.mxu0 0
    %7490 = vmatprep.subr.bf16.mxu0 0
    %7491 = vmatpush2.bf16.msra.mxu0 0
    %7492 = vmatprep.subr.bf16.mxu0 0
    %7493 = vmatpush2.bf16.msra.mxu0 0
    %7494 = vmatprep.subr.bf16.mxu0 0
    %7495 = vmatpush2.bf16.msra.mxu0 0
    %7496 = vmatprep.subr.bf16.mxu0 0
    %7497 = vmatpush2.bf16.msra.mxu0 0
    %7498 = vmatprep.subr.bf16.mxu0 0
    %7499 = vmatpush2.bf16.msra.mxu0 0
    %7500 = vmatprep.subr.bf16.mxu0 0
    %7501 = vmatpush2.bf16.msra.mxu0 0
    %7502 = vmatprep.subr.bf16.mxu0 0
    %7503 = vmatpush2.bf16.msra.mxu0 0
    %7504 = vmatprep.mubr.bf16.mxu0 0
    %7505 = vmatmul.mubr.bf16.gmra.mxu0 %v7467
    %v7506 = vpop.f32.mrf.mxu0
    %v7507 = vadd.f32 0.0, %v7506
    %v7508 = vpop.f32.mrf.mxu0
    %v7509 = vpop.f32.mrf.mxu0
    %v7510 = vadd.f32 0.0, %v7509
    %v7511 = vpop.f32.mrf.mxu0
    %7512 = vmatprep.mubr.bf16.mxu0 0
    %7513 = vmatmul.mubr.bf16.gmra.mxu0 %v7470
    %v7514 = vpop.f32.mrf.mxu0
    %v7515 = vadd.f32 0.0, %v7514
    %v7516 = vpop.f32.mrf.mxu0
    %v7517 = vpop.f32.mrf.mxu0
    %v7518 = vadd.f32 0.0, %v7517
    %v7519 = vpop.f32.mrf.mxu0
    %7520 = vdwg.mxu0
    %v7521 = vpack.c.bf16 %v7510, %v7507
    %v7522 = vpack.c.bf16 %v7518, %v7515
    %7523 = vmatprep.subr.bf16.mxu0 0
    %7524 = vmatpush1.bf16.msra.mxu0 0
    %7525 = vmatprep.subr.bf16.mxu0 0
    %7526 = vmatpush1.bf16.msra.mxu0 0
    %7527 = vmatprep.subr.bf16.mxu0 0
    %7528 = vmatpush1.bf16.msra.mxu0 0
    %7529 = vmatprep.subr.bf16.mxu0 0
    %7530 = vmatpush1.bf16.msra.mxu0 0
    %7531 = vmatprep.subr.bf16.mxu0 0
    %7532 = vmatpush1.bf16.msra.mxu0 0
    %7533 = vmatprep.subr.bf16.mxu0 0
    %7534 = vmatpush1.bf16.msra.mxu0 0
    %7535 = vmatprep.subr.bf16.mxu0 0
    %7536 = vmatpush1.bf16.msra.mxu0 %v7522
    %7537 = vmatprep.subr.bf16.mxu0 0
    %7538 = vmatpush1.bf16.msra.mxu0 %v7521
    %7539 = vmatprep.subr.bf16.mxu0 0
    %7540 = vmatpush2.bf16.msra.mxu0 0
    %7541 = vmatprep.subr.bf16.mxu0 0
    %7542 = vmatpush2.bf16.msra.mxu0 0
    %7543 = vmatprep.subr.bf16.mxu0 0
    %7544 = vmatpush2.bf16.msra.mxu0 0
    %7545 = vmatprep.subr.bf16.mxu0 0
    %7546 = vmatpush2.bf16.msra.mxu0 0
    %7547 = vmatprep.subr.bf16.mxu0 0
    %7548 = vmatpush2.bf16.msra.mxu0 0
    %7549 = vmatprep.subr.bf16.mxu0 0
    %7550 = vmatpush2.bf16.msra.mxu0 0
    %7551 = vmatprep.subr.bf16.mxu0 0
    %7552 = vmatpush2.bf16.msra.mxu0 0
    %7553 = vmatprep.subr.bf16.mxu0 0
    %7554 = vmatpush2.bf16.msra.mxu0 0
    %7555 = vmatprep.mubr.bf16.mxu0 0
    %7556 = vmatmul.mubr.bf16.gmra.mxu0 %v81
    %v7557 = vpop.f32.mrf.mxu0
    %v7558 = vadd.f32 0.0, %v7557
    %v7559 = vpop.f32.mrf.mxu0
    %v7560 = vpop.f32.mrf.mxu0
    %v7561 = vadd.f32 0.0, %v7560
    %v7562 = vpop.f32.mrf.mxu0
    %7563 = vmatprep.mubr.bf16.mxu0 0
    %7564 = vmatmul.mubr.bf16.gmra.mxu0 %v84
    %v7565 = vpop.f32.mrf.mxu0
    %v7566 = vadd.f32 0.0, %v7565
    %v7567 = vpop.f32.mrf.mxu0
    %v7568 = vpop.f32.mrf.mxu0
    %v7569 = vadd.f32 0.0, %v7568
    %v7570 = vpop.f32.mrf.mxu0
    %7571 = vdwg.mxu0
    %7576 = vrot.lane.b32.xlu0 %v7558, 64
    %v7577 = vpop.permute.xlu0 %7576
    %7578 = vrot.lane.b32.xlu0 %v7561, 64
    %v7579 = vpop.permute.xlu0 %7578
    %7580 = vrot.lane.b32.xlu0 %v7566, 64
    %v7581 = vpop.permute.xlu0 %7580
    %7582 = vrot.lane.b32.xlu0 %v7569, 64
    %v7583 = vpop.permute.xlu0 %7582
    %v7588 = vadd.f32 %v7178, %v7577
    %v7589 = vadd.f32 %v7179, %v7579
    %v7590 = vadd.f32 %v7180, %v7581
    %v7591 = vadd.f32 %v7181, %v7583
    %7594 = vrot.lane.b32.xlu0 %v7521, 96
    %v7595 = vpop.permute.xlu0 %7594
    %7596 = vrot.lane.b32.xlu0 %v7522, 96
    %v7597 = vpop.permute.xlu0 %7596
    %7600 = vmatprep.subr.bf16.mxu0 0
    %7601 = vmatpush1.bf16.msra.mxu0 0
    %7602 = vmatprep.subr.bf16.mxu0 0
    %7603 = vmatpush1.bf16.msra.mxu0 0
    %7604 = vmatprep.subr.bf16.mxu0 0
    %7605 = vmatpush1.bf16.msra.mxu0 0
    %7606 = vmatprep.subr.bf16.mxu0 0
    %7607 = vmatpush1.bf16.msra.mxu0 0
    %7608 = vmatprep.subr.bf16.mxu0 0
    %7609 = vmatpush1.bf16.msra.mxu0 0
    %7610 = vmatprep.subr.bf16.mxu0 0
    %7611 = vmatpush1.bf16.msra.mxu0 0
    %7612 = vmatprep.subr.bf16.mxu0 0
    %7613 = vmatpush1.bf16.msra.mxu0 %v7597
    %7614 = vmatprep.subr.bf16.mxu0 0
    %7615 = vmatpush1.bf16.msra.mxu0 %v7595
    %7616 = vmatprep.subr.bf16.mxu0 0
    %7617 = vmatpush2.bf16.msra.mxu0 0
    %7618 = vmatprep.subr.bf16.mxu0 0
    %7619 = vmatpush2.bf16.msra.mxu0 0
    %7620 = vmatprep.subr.bf16.mxu0 0
    %7621 = vmatpush2.bf16.msra.mxu0 0
    %7622 = vmatprep.subr.bf16.mxu0 0
    %7623 = vmatpush2.bf16.msra.mxu0 0
    %7624 = vmatprep.subr.bf16.mxu0 0
    %7625 = vmatpush2.bf16.msra.mxu0 0
    %7626 = vmatprep.subr.bf16.mxu0 0
    %7627 = vmatpush2.bf16.msra.mxu0 0
    %7628 = vmatprep.subr.bf16.mxu0 0
    %7629 = vmatpush2.bf16.msra.mxu0 0
    %7630 = vmatprep.subr.bf16.mxu0 0
    %7631 = vmatpush2.bf16.msra.mxu0 0
    %7632 = vmatprep.mubr.bf16.mxu0 0
    %7633 = vmatmul.mubr.bf16.gmra.mxu0 %v87
    %v7634 = vpop.f32.mrf.mxu0
    %v7635 = vadd.f32 0.0, %v7634
    %v7636 = vpop.f32.mrf.mxu0
    %v7637 = vpop.f32.mrf.mxu0
    %v7638 = vadd.f32 0.0, %v7637
    %v7639 = vpop.f32.mrf.mxu0
    %7640 = vmatprep.mubr.bf16.mxu0 0
    %7641 = vmatmul.mubr.bf16.gmra.mxu0 %v90
    %v7642 = vpop.f32.mrf.mxu0
    %v7643 = vadd.f32 0.0, %v7642
    %v7644 = vpop.f32.mrf.mxu0
    %v7645 = vpop.f32.mrf.mxu0
    %v7646 = vadd.f32 0.0, %v7645
    %v7647 = vpop.f32.mrf.mxu0
    %7648 = vdwg.mxu0
    %7653 = vrot.lane.b32.xlu0 %v7635, 64
    %v7654 = vpop.permute.xlu0 %7653
    %7655 = vrot.lane.b32.xlu0 %v7638, 64
    %v7656 = vpop.permute.xlu0 %7655
    %7657 = vrot.lane.b32.xlu0 %v7643, 64
    %v7658 = vpop.permute.xlu0 %7657
    %7659 = vrot.lane.b32.xlu0 %v7646, 64
    %v7660 = vpop.permute.xlu0 %7659
    %v7665 = vadd.f32 %v7588, %v7654
    %v7666 = vadd.f32 %v7589, %v7656
    %v7667 = vadd.f32 %v7590, %v7658
    %v7668 = vadd.f32 %v7591, %v7660
    %7669 = vrot.lane.b32.xlu0 %v7521, 64
    %v7670 = vpop.permute.xlu0 %7669
    %7671 = vrot.lane.b32.xlu0 %v7522, 64
    %v7672 = vpop.permute.xlu0 %7671
    %7675 = vmatprep.subr.bf16.mxu0 0
    %7676 = vmatpush1.bf16.msra.mxu0 0
    %7677 = vmatprep.subr.bf16.mxu0 0
    %7678 = vmatpush1.bf16.msra.mxu0 0
    %7679 = vmatprep.subr.bf16.mxu0 0
    %7680 = vmatpush1.bf16.msra.mxu0 0
    %7681 = vmatprep.subr.bf16.mxu0 0
    %7682 = vmatpush1.bf16.msra.mxu0 0
    %7683 = vmatprep.subr.bf16.mxu0 0
    %7684 = vmatpush1.bf16.msra.mxu0 0
    %7685 = vmatprep.subr.bf16.mxu0 0
    %7686 = vmatpush1.bf16.msra.mxu0 0
    %7687 = vmatprep.subr.bf16.mxu0 0
    %7688 = vmatpush1.bf16.msra.mxu0 %v7672
    %7689 = vmatprep.subr.bf16.mxu0 0
    %7690 = vmatpush1.bf16.msra.mxu0 %v7670
    %7691 = vmatprep.subr.bf16.mxu0 0
    %7692 = vmatpush2.bf16.msra.mxu0 0
    %7693 = vmatprep.subr.bf16.mxu0 0
    %7694 = vmatpush2.bf16.msra.mxu0 0
    %7695 = vmatprep.subr.bf16.mxu0 0
    %7696 = vmatpush2.bf16.msra.mxu0 0
    %7697 = vmatprep.subr.bf16.mxu0 0
    %7698 = vmatpush2.bf16.msra.mxu0 0
    %7699 = vmatprep.subr.bf16.mxu0 0
    %7700 = vmatpush2.bf16.msra.mxu0 0
    %7701 = vmatprep.subr.bf16.mxu0 0
    %7702 = vmatpush2.bf16.msra.mxu0 0
    %7703 = vmatprep.subr.bf16.mxu0 0
    %7704 = vmatpush2.bf16.msra.mxu0 0
    %7705 = vmatprep.subr.bf16.mxu0 0
    %7706 = vmatpush2.bf16.msra.mxu0 0
    %7707 = vmatprep.mubr.bf16.mxu0 0
    %7708 = vmatmul.mubr.bf16.gmra.mxu0 %v93
    %v7709 = vpop.f32.mrf.mxu0
    %v7710 = vadd.f32 0.0, %v7709
    %v7711 = vpop.f32.mrf.mxu0
    %v7712 = vpop.f32.mrf.mxu0
    %v7713 = vadd.f32 0.0, %v7712
    %v7714 = vpop.f32.mrf.mxu0
    %7715 = vmatprep.mubr.bf16.mxu0 0
    %7716 = vmatmul.mubr.bf16.gmra.mxu0 %v96
    %v7717 = vpop.f32.mrf.mxu0
    %v7718 = vadd.f32 0.0, %v7717
    %v7719 = vpop.f32.mrf.mxu0
    %v7720 = vpop.f32.mrf.mxu0
    %v7721 = vadd.f32 0.0, %v7720
    %v7722 = vpop.f32.mrf.mxu0
    %7723 = vdwg.mxu0
    %7728 = vrot.lane.b32.xlu0 %v7710, 64
    %v7729 = vpop.permute.xlu0 %7728
    %7730 = vrot.lane.b32.xlu0 %v7713, 64
    %v7731 = vpop.permute.xlu0 %7730
    %7732 = vrot.lane.b32.xlu0 %v7718, 64
    %v7733 = vpop.permute.xlu0 %7732
    %7734 = vrot.lane.b32.xlu0 %v7721, 64
    %v7735 = vpop.permute.xlu0 %7734
    %v7740 = vadd.f32 %v7665, %v7729
    %v7741 = vadd.f32 %v7666, %v7731
    %v7742 = vadd.f32 %v7667, %v7733
    %v7743 = vadd.f32 %v7668, %v7735
    %v7744 = vtanh.pop %v7740
    %v7745 = vtanh.pop %v7741
    %v7746 = vtanh.pop %v7742
    %v7747 = vtanh.pop %v7743
    %7752 = vrot.lane.b32.xlu0 %v7744, 96
    %v7753 = vpop.permute.xlu0 %7752
    %7754 = vrot.lane.b32.xlu0 %v7745, 96
    %v7755 = vpop.permute.xlu0 %7754
    %7756 = vrot.lane.b32.xlu0 %v7746, 96
    %v7757 = vpop.permute.xlu0 %7756
    %7758 = vrot.lane.b32.xlu0 %v7747, 96
    %v7759 = vpop.permute.xlu0 %7758
    %v7764 = vmul.f32 %v7437, %v7753
    %v7765 = vmul.f32 %v7439, %v7755
    %v7766 = vmul.f32 %v7441, %v7757
    %v7767 = vmul.f32 %v7443, %v7759
    %v7768 = vsub.f32 1.0, %v7437
    %v7769 = vsub.f32 1.0, %v7439
    %v7770 = vsub.f32 1.0, %v7441
    %v7771 = vsub.f32 1.0, %v7443
    %v7772 = vmul.f32 %v7768, %v7174
    %v7773 = vmul.f32 %v7769, %v7175
    %v7774 = vmul.f32 %v7770, %v7176
    %v7775 = vmul.f32 %v7771, %v7177
    %v7776 = vadd.f32 %v7764, %v7772
    %v7777 = vadd.f32 %v7765, %v7773
    %v7778 = vadd.f32 %v7766, %v7774
    %v7779 = vadd.f32 %v7767, %v7775
    %v7780 = vld [vmem:[%s1140] sm:$0xff]
    %v7781 = vld [vmem:[%s1140 + $0x8] sm:$0xff]
    %v7782 = vld [vmem:[%s1140 + $0x10] sm:$0xff]
    %v7783 = vld [vmem:[%s1140 + $0x18] sm:$0xff]
    %v7784 = vpack.c.bf16 %v7777, %v7776
    %v7785 = vpack.c.bf16 %v7779, %v7778
    %7788 = vrot.lane.b32.xlu0 %v7784, 96
    %v7789 = vpop.permute.xlu0 %7788
    %7790 = vrot.lane.b32.xlu0 %v7785, 96
    %v7791 = vpop.permute.xlu0 %7790
    %v7793 = vsel %vm79, %v7789, 0
    %v7796 = vsel %vm79, %v7791, 0
    %7798 = vmatprep.subr.bf16.mxu0 0
    %7799 = vmatpush1.bf16.msra.mxu0 0
    %7800 = vmatprep.subr.bf16.mxu0 0
    %7801 = vmatpush1.bf16.msra.mxu0 0
    %7802 = vmatprep.subr.bf16.mxu0 0
    %7803 = vmatpush1.bf16.msra.mxu0 0
    %7804 = vmatprep.subr.bf16.mxu0 0
    %7805 = vmatpush1.bf16.msra.mxu0 0
    %7806 = vmatprep.subr.bf16.mxu0 0
    %7807 = vmatpush1.bf16.msra.mxu0 0
    %7808 = vmatprep.subr.bf16.mxu0 0
    %7809 = vmatpush1.bf16.msra.mxu0 0
    %7810 = vmatprep.subr.bf16.mxu0 %v1172
    %7811 = vmatpush1.bf16.msra.mxu0 %v1171
    %7812 = vmatprep.subr.bf16.mxu0 %v1170
    %7813 = vmatpush1.bf16.msra.mxu0 %v1169
    %7814 = vmatprep.subr.bf16.mxu0 0
    %7815 = vmatpush2.bf16.msra.mxu0 0
    %7816 = vmatprep.subr.bf16.mxu0 0
    %7817 = vmatpush2.bf16.msra.mxu0 0
    %7818 = vmatprep.subr.bf16.mxu0 0
    %7819 = vmatpush2.bf16.msra.mxu0 0
    %7820 = vmatprep.subr.bf16.mxu0 0
    %7821 = vmatpush2.bf16.msra.mxu0 0
    %7822 = vmatprep.subr.bf16.mxu0 0
    %7823 = vmatpush2.bf16.msra.mxu0 0
    %7824 = vmatprep.subr.bf16.mxu0 0
    %7825 = vmatpush2.bf16.msra.mxu0 0
    %7826 = vmatprep.subr.bf16.mxu0 0
    %7827 = vmatpush2.bf16.msra.mxu0 0
    %7828 = vmatprep.subr.bf16.mxu0 0
    %7829 = vmatpush2.bf16.msra.mxu0 0
    %7830 = vmatprep.mubr.bf16.mxu0 0
    %7831 = vmatmul.mubr.bf16.gmra.mxu0 %v7793
    %v7832 = vpop.f32.mrf.mxu0
    %v7833 = vadd.f32 0.0, %v7832
    %v7834 = vpop.f32.mrf.mxu0
    %v7835 = vadd.f32 0.0, %v7834
    %v7836 = vpop.f32.mrf.mxu0
    %v7837 = vadd.f32 0.0, %v7836
    %v7838 = vpop.f32.mrf.mxu0
    %v7839 = vadd.f32 0.0, %v7838
    %7840 = vmatprep.mubr.bf16.mxu0 0
    %7841 = vmatmul.mubr.bf16.gmra.mxu0 %v7796
    %v7842 = vpop.f32.mrf.mxu0
    %v7843 = vadd.f32 0.0, %v7842
    %v7844 = vpop.f32.mrf.mxu0
    %v7845 = vadd.f32 0.0, %v7844
    %v7846 = vpop.f32.mrf.mxu0
    %v7847 = vadd.f32 0.0, %v7846
    %v7848 = vpop.f32.mrf.mxu0
    %v7849 = vadd.f32 0.0, %v7848
    %7850 = vdwg.mxu0
    %v7851 = vpack.c.bf16 %v7837, %v7833
    %v7852 = vpack.c.bf16 %v7839, %v7835
    %v7853 = vpack.c.bf16 %v7847, %v7843
    %v7854 = vpack.c.bf16 %v7849, %v7845
    %7855 = vmatprep.subr.bf16.mxu0 0
    %7856 = vmatpush1.bf16.msra.mxu0 0
    %7857 = vmatprep.subr.bf16.mxu0 0
    %7858 = vmatpush1.bf16.msra.mxu0 0
    %7859 = vmatprep.subr.bf16.mxu0 0
    %7860 = vmatpush1.bf16.msra.mxu0 0
    %7861 = vmatprep.subr.bf16.mxu0 0
    %7862 = vmatpush1.bf16.msra.mxu0 0
    %7863 = vmatprep.subr.bf16.mxu0 0
    %7864 = vmatpush1.bf16.msra.mxu0 0
    %7865 = vmatprep.subr.bf16.mxu0 0
    %7866 = vmatpush1.bf16.msra.mxu0 0
    %7867 = vmatprep.subr.bf16.mxu0 0
    %7868 = vmatpush1.bf16.msra.mxu0 %v7853
    %7869 = vmatprep.subr.bf16.mxu0 0
    %7870 = vmatpush1.bf16.msra.mxu0 %v7851
    %7871 = vmatprep.subr.bf16.mxu0 0
    %7872 = vmatpush2.bf16.msra.mxu0 0
    %7873 = vmatprep.subr.bf16.mxu0 0
    %7874 = vmatpush2.bf16.msra.mxu0 0
    %7875 = vmatprep.subr.bf16.mxu0 0
    %7876 = vmatpush2.bf16.msra.mxu0 0
    %7877 = vmatprep.subr.bf16.mxu0 0
    %7878 = vmatpush2.bf16.msra.mxu0 0
    %7879 = vmatprep.subr.bf16.mxu0 0
    %7880 = vmatpush2.bf16.msra.mxu0 0
    %7881 = vmatprep.subr.bf16.mxu0 0
    %7882 = vmatpush2.bf16.msra.mxu0 0
    %7883 = vmatprep.subr.bf16.mxu0 0
    %7884 = vmatpush2.bf16.msra.mxu0 0
    %7885 = vmatprep.subr.bf16.mxu0 0
    %7886 = vmatpush2.bf16.msra.mxu0 0
    %7887 = vmatprep.mubr.bf16.mxu0 0
    %7888 = vmatmul.mubr.bf16.gmra.mxu0 %v81
    %v7889 = vpop.f32.mrf.mxu0
    %v7890 = vadd.f32 0.0, %v7889
    %v7891 = vpop.f32.mrf.mxu0
    %v7892 = vpop.f32.mrf.mxu0
    %v7893 = vadd.f32 0.0, %v7892
    %v7894 = vpop.f32.mrf.mxu0
    %7895 = vmatprep.mubr.bf16.mxu0 0
    %7896 = vmatmul.mubr.bf16.gmra.mxu0 %v84
    %v7897 = vpop.f32.mrf.mxu0
    %v7898 = vadd.f32 0.0, %v7897
    %v7899 = vpop.f32.mrf.mxu0
    %v7900 = vpop.f32.mrf.mxu0
    %v7901 = vadd.f32 0.0, %v7900
    %v7902 = vpop.f32.mrf.mxu0
    %7903 = vdwg.mxu0
    %v7904 = vadd.f32 %v7780, %v7890
    %v7905 = vadd.f32 %v7781, %v7893
    %v7906 = vadd.f32 %v7782, %v7898
    %v7907 = vadd.f32 %v7783, %v7901
    %7910 = vrot.lane.b32.xlu0 %v7851, 64
    %v7911 = vpop.permute.xlu0 %7910
    %7912 = vrot.lane.b32.xlu0 %v7853, 64
    %v7913 = vpop.permute.xlu0 %7912
    %7916 = vmatprep.subr.bf16.mxu0 0
    %7917 = vmatpush1.bf16.msra.mxu0 0
    %7918 = vmatprep.subr.bf16.mxu0 0
    %7919 = vmatpush1.bf16.msra.mxu0 0
    %7920 = vmatprep.subr.bf16.mxu0 0
    %7921 = vmatpush1.bf16.msra.mxu0 0
    %7922 = vmatprep.subr.bf16.mxu0 0
    %7923 = vmatpush1.bf16.msra.mxu0 0
    %7924 = vmatprep.subr.bf16.mxu0 0
    %7925 = vmatpush1.bf16.msra.mxu0 0
    %7926 = vmatprep.subr.bf16.mxu0 0
    %7927 = vmatpush1.bf16.msra.mxu0 0
    %7928 = vmatprep.subr.bf16.mxu0 0
    %7929 = vmatpush1.bf16.msra.mxu0 %v7913
    %7930 = vmatprep.subr.bf16.mxu0 0
    %7931 = vmatpush1.bf16.msra.mxu0 %v7911
    %7932 = vmatprep.subr.bf16.mxu0 0
    %7933 = vmatpush2.bf16.msra.mxu0 0
    %7934 = vmatprep.subr.bf16.mxu0 0
    %7935 = vmatpush2.bf16.msra.mxu0 0
    %7936 = vmatprep.subr.bf16.mxu0 0
    %7937 = vmatpush2.bf16.msra.mxu0 0
    %7938 = vmatprep.subr.bf16.mxu0 0
    %7939 = vmatpush2.bf16.msra.mxu0 0
    %7940 = vmatprep.subr.bf16.mxu0 0
    %7941 = vmatpush2.bf16.msra.mxu0 0
    %7942 = vmatprep.subr.bf16.mxu0 0
    %7943 = vmatpush2.bf16.msra.mxu0 0
    %7944 = vmatprep.subr.bf16.mxu0 0
    %7945 = vmatpush2.bf16.msra.mxu0 0
    %7946 = vmatprep.subr.bf16.mxu0 0
    %7947 = vmatpush2.bf16.msra.mxu0 0
    %7948 = vmatprep.mubr.bf16.mxu0 0
    %7949 = vmatmul.mubr.bf16.gmra.mxu0 %v87
    %v7950 = vpop.f32.mrf.mxu0
    %v7951 = vadd.f32 0.0, %v7950
    %v7952 = vpop.f32.mrf.mxu0
    %v7953 = vpop.f32.mrf.mxu0
    %v7954 = vadd.f32 0.0, %v7953
    %v7955 = vpop.f32.mrf.mxu0
    %7956 = vmatprep.mubr.bf16.mxu0 0
    %7957 = vmatmul.mubr.bf16.gmra.mxu0 %v90
    %v7958 = vpop.f32.mrf.mxu0
    %v7959 = vadd.f32 0.0, %v7958
    %v7960 = vpop.f32.mrf.mxu0
    %v7961 = vpop.f32.mrf.mxu0
    %v7962 = vadd.f32 0.0, %v7961
    %v7963 = vpop.f32.mrf.mxu0
    %7964 = vdwg.mxu0
    %v7965 = vadd.f32 %v7904, %v7951
    %v7966 = vadd.f32 %v7905, %v7954
    %v7967 = vadd.f32 %v7906, %v7959
    %v7968 = vadd.f32 %v7907, %v7962
    %7969 = vmatprep.subr.bf16.mxu0 0
    %7970 = vmatpush1.bf16.msra.mxu0 0
    %7971 = vmatprep.subr.bf16.mxu0 0
    %7972 = vmatpush1.bf16.msra.mxu0 0
    %7973 = vmatprep.subr.bf16.mxu0 0
    %7974 = vmatpush1.bf16.msra.mxu0 0
    %7975 = vmatprep.subr.bf16.mxu0 0
    %7976 = vmatpush1.bf16.msra.mxu0 0
    %7977 = vmatprep.subr.bf16.mxu0 0
    %7978 = vmatpush1.bf16.msra.mxu0 0
    %7979 = vmatprep.subr.bf16.mxu0 0
    %7980 = vmatpush1.bf16.msra.mxu0 0
    %7981 = vmatprep.subr.bf16.mxu0 0
    %7982 = vmatpush1.bf16.msra.mxu0 %v7854
    %7983 = vmatprep.subr.bf16.mxu0 0
    %7984 = vmatpush1.bf16.msra.mxu0 %v7852
    %7985 = vmatprep.subr.bf16.mxu0 0
    %7986 = vmatpush2.bf16.msra.mxu0 0
    %7987 = vmatprep.subr.bf16.mxu0 0
    %7988 = vmatpush2.bf16.msra.mxu0 0
    %7989 = vmatprep.subr.bf16.mxu0 0
    %7990 = vmatpush2.bf16.msra.mxu0 0
    %7991 = vmatprep.subr.bf16.mxu0 0
    %7992 = vmatpush2.bf16.msra.mxu0 0
    %7993 = vmatprep.subr.bf16.mxu0 0
    %7994 = vmatpush2.bf16.msra.mxu0 0
    %7995 = vmatprep.subr.bf16.mxu0 0
    %7996 = vmatpush2.bf16.msra.mxu0 0
    %7997 = vmatprep.subr.bf16.mxu0 0
    %7998 = vmatpush2.bf16.msra.mxu0 0
    %7999 = vmatprep.subr.bf16.mxu0 0
    %8000 = vmatpush2.bf16.msra.mxu0 0
    %8001 = vmatprep.mubr.bf16.mxu0 0
    %8002 = vmatmul.mubr.bf16.gmra.mxu0 %v93
    %v8003 = vpop.f32.mrf.mxu0
    %v8004 = vadd.f32 0.0, %v8003
    %v8005 = vpop.f32.mrf.mxu0
    %v8006 = vpop.f32.mrf.mxu0
    %v8007 = vadd.f32 0.0, %v8006
    %v8008 = vpop.f32.mrf.mxu0
    %8009 = vmatprep.mubr.bf16.mxu0 0
    %8010 = vmatmul.mubr.bf16.gmra.mxu0 %v96
    %v8011 = vpop.f32.mrf.mxu0
    %v8012 = vadd.f32 0.0, %v8011
    %v8013 = vpop.f32.mrf.mxu0
    %v8014 = vpop.f32.mrf.mxu0
    %v8015 = vadd.f32 0.0, %v8014
    %v8016 = vpop.f32.mrf.mxu0
    %8017 = vdwg.mxu0
    %v8018 = vadd.f32 %v7965, %v8004
    %v8019 = vadd.f32 %v7966, %v8007
    %v8020 = vadd.f32 %v7967, %v8012
    %v8021 = vadd.f32 %v7968, %v8015
    %v8022 = vxor.u32 %v8018, 2147483648
    %v8023 = vxor.u32 %v8019, 2147483648
    %v8024 = vxor.u32 %v8020, 2147483648
    %v8025 = vxor.u32 %v8021, 2147483648
    %v8026 = vmul.f32 %v8022, 1.442695
    %v8027 = vpow.pop %v8026
    %v8028 = vmul.f32 %v8023, 1.442695
    %v8029 = vpow.pop %v8028
    %v8030 = vmul.f32 %v8024, 1.442695
    %v8031 = vpow.pop %v8030
    %v8032 = vmul.f32 %v8025, 1.442695
    %v8033 = vpow.pop %v8032
    %v8034 = vadd.f32 %v8027, 1.0
    %v8035 = vadd.f32 %v8029, 1.0
    %v8036 = vadd.f32 %v8031, 1.0
    %v8037 = vadd.f32 %v8033, 1.0
    %v8038 = vrcp.pop %v8034
    %v8039 = vmul.f32 1.0, %v8038
    %v8040 = vrcp.pop %v8035
    %v8041 = vmul.f32 1.0, %v8040
    %v8042 = vrcp.pop %v8036
    %v8043 = vmul.f32 1.0, %v8042
    %v8044 = vrcp.pop %v8037
    %v8045 = vmul.f32 1.0, %v8044
    %8050 = vrot.lane.b32.xlu0 %v7776, 96
    %v8051 = vpop.permute.xlu0 %8050
    %8052 = vrot.lane.b32.xlu0 %v7777, 96
    %v8053 = vpop.permute.xlu0 %8052
    %8054 = vrot.lane.b32.xlu0 %v7778, 96
    %v8055 = vpop.permute.xlu0 %8054
    %8056 = vrot.lane.b32.xlu0 %v7779, 96
    %v8057 = vpop.permute.xlu0 %8056
    %v8062 = vmul.f32 %v8039, %v8051
    %v8063 = vmul.f32 %v8041, %v8053
    %v8064 = vmul.f32 %v8043, %v8055
    %v8065 = vmul.f32 %v8045, %v8057
    %v8066 = vpack.c.bf16 %v8063, %v8062
    %v8067 = vpack.c.bf16 %v8065, %v8064
    %v8069 = vsel %vm79, %v8066, 0
    %v8072 = vsel %vm79, %v8067, 0
    %8074 = vmatprep.subr.bf16.mxu0 0
    %8075 = vmatpush1.bf16.msra.mxu0 0
    %8076 = vmatprep.subr.bf16.mxu0 0
    %8077 = vmatpush1.bf16.msra.mxu0 0
    %8078 = vmatprep.subr.bf16.mxu0 0
    %8079 = vmatpush1.bf16.msra.mxu0 0
    %8080 = vmatprep.subr.bf16.mxu0 0
    %8081 = vmatpush1.bf16.msra.mxu0 0
    %8082 = vmatprep.subr.bf16.mxu0 0
    %8083 = vmatpush1.bf16.msra.mxu0 0
    %8084 = vmatprep.subr.bf16.mxu0 0
    %8085 = vmatpush1.bf16.msra.mxu0 0
    %8086 = vmatprep.subr.bf16.mxu0 0
    %8087 = vmatpush1.bf16.msra.mxu0 %v1443
    %8088 = vmatprep.subr.bf16.mxu0 0
    %8089 = vmatpush1.bf16.msra.mxu0 %v1442
    %8090 = vmatprep.subr.bf16.mxu0 0
    %8091 = vmatpush2.bf16.msra.mxu0 0
    %8092 = vmatprep.subr.bf16.mxu0 0
    %8093 = vmatpush2.bf16.msra.mxu0 0
    %8094 = vmatprep.subr.bf16.mxu0 0
    %8095 = vmatpush2.bf16.msra.mxu0 0
    %8096 = vmatprep.subr.bf16.mxu0 0
    %8097 = vmatpush2.bf16.msra.mxu0 0
    %8098 = vmatprep.subr.bf16.mxu0 0
    %8099 = vmatpush2.bf16.msra.mxu0 0
    %8100 = vmatprep.subr.bf16.mxu0 0
    %8101 = vmatpush2.bf16.msra.mxu0 0
    %8102 = vmatprep.subr.bf16.mxu0 0
    %8103 = vmatpush2.bf16.msra.mxu0 0
    %8104 = vmatprep.subr.bf16.mxu0 0
    %8105 = vmatpush2.bf16.msra.mxu0 0
    %8106 = vmatprep.mubr.bf16.mxu0 0
    %8107 = vmatmul.mubr.bf16.gmra.mxu0 %v8069
    %v8108 = vpop.f32.mrf.mxu0
    %v8109 = vadd.f32 0.0, %v8108
    %v8110 = vpop.f32.mrf.mxu0
    %v8111 = vpop.f32.mrf.mxu0
    %v8112 = vadd.f32 0.0, %v8111
    %v8113 = vpop.f32.mrf.mxu0
    %8114 = vmatprep.mubr.bf16.mxu0 0
    %8115 = vmatmul.mubr.bf16.gmra.mxu0 %v8072
    %v8116 = vpop.f32.mrf.mxu0
    %v8117 = vadd.f32 0.0, %v8116
    %v8118 = vpop.f32.mrf.mxu0
    %v8119 = vpop.f32.mrf.mxu0
    %v8120 = vadd.f32 0.0, %v8119
    %v8121 = vpop.f32.mrf.mxu0
    %8122 = vdwg.mxu0
    %v8123 = vpack.c.bf16 %v8112, %v8109
    %v8124 = vpack.c.bf16 %v8120, %v8117
    %8125 = vmatprep.subr.bf16.mxu0 0
    %8126 = vmatpush1.bf16.msra.mxu0 0
    %8127 = vmatprep.subr.bf16.mxu0 0
    %8128 = vmatpush1.bf16.msra.mxu0 0
    %8129 = vmatprep.subr.bf16.mxu0 0
    %8130 = vmatpush1.bf16.msra.mxu0 0
    %8131 = vmatprep.subr.bf16.mxu0 0
    %8132 = vmatpush1.bf16.msra.mxu0 0
    %8133 = vmatprep.subr.bf16.mxu0 0
    %8134 = vmatpush1.bf16.msra.mxu0 0
    %8135 = vmatprep.subr.bf16.mxu0 0
    %8136 = vmatpush1.bf16.msra.mxu0 0
    %8137 = vmatprep.subr.bf16.mxu0 0
    %8138 = vmatpush1.bf16.msra.mxu0 %v8124
    %8139 = vmatprep.subr.bf16.mxu0 0
    %8140 = vmatpush1.bf16.msra.mxu0 %v8123
    %8141 = vmatprep.subr.bf16.mxu0 0
    %8142 = vmatpush2.bf16.msra.mxu0 0
    %8143 = vmatprep.subr.bf16.mxu0 0
    %8144 = vmatpush2.bf16.msra.mxu0 0
    %8145 = vmatprep.subr.bf16.mxu0 0
    %8146 = vmatpush2.bf16.msra.mxu0 0
    %8147 = vmatprep.subr.bf16.mxu0 0
    %8148 = vmatpush2.bf16.msra.mxu0 0
    %8149 = vmatprep.subr.bf16.mxu0 0
    %8150 = vmatpush2.bf16.msra.mxu0 0
    %8151 = vmatprep.subr.bf16.mxu0 0
    %8152 = vmatpush2.bf16.msra.mxu0 0
    %8153 = vmatprep.subr.bf16.mxu0 0
    %8154 = vmatpush2.bf16.msra.mxu0 0
    %8155 = vmatprep.subr.bf16.mxu0 0
    %8156 = vmatpush2.bf16.msra.mxu0 0
    %8157 = vmatprep.mubr.bf16.mxu0 0
    %8158 = vmatmul.mubr.bf16.gmra.mxu0 %v81
    %v8159 = vpop.f32.mrf.mxu0
    %v8160 = vadd.f32 0.0, %v8159
    %v8161 = vpop.f32.mrf.mxu0
    %v8162 = vpop.f32.mrf.mxu0
    %v8163 = vadd.f32 0.0, %v8162
    %v8164 = vpop.f32.mrf.mxu0
    %8165 = vmatprep.mubr.bf16.mxu0 0
    %8166 = vmatmul.mubr.bf16.gmra.mxu0 %v84
    %v8167 = vpop.f32.mrf.mxu0
    %v8168 = vadd.f32 0.0, %v8167
    %v8169 = vpop.f32.mrf.mxu0
    %v8170 = vpop.f32.mrf.mxu0
    %v8171 = vadd.f32 0.0, %v8170
    %v8172 = vpop.f32.mrf.mxu0
    %8173 = vdwg.mxu0
    %8178 = vrot.lane.b32.xlu0 %v8160, 64
    %v8179 = vpop.permute.xlu0 %8178
    %8180 = vrot.lane.b32.xlu0 %v8163, 64
    %v8181 = vpop.permute.xlu0 %8180
    %8182 = vrot.lane.b32.xlu0 %v8168, 64
    %v8183 = vpop.permute.xlu0 %8182
    %8184 = vrot.lane.b32.xlu0 %v8171, 64
    %v8185 = vpop.permute.xlu0 %8184
    %v8190 = vadd.f32 %v7780, %v8179
    %v8191 = vadd.f32 %v7781, %v8181
    %v8192 = vadd.f32 %v7782, %v8183
    %v8193 = vadd.f32 %v7783, %v8185
    %8196 = vrot.lane.b32.xlu0 %v8123, 96
    %v8197 = vpop.permute.xlu0 %8196
    %8198 = vrot.lane.b32.xlu0 %v8124, 96
    %v8199 = vpop.permute.xlu0 %8198
    %8202 = vmatprep.subr.bf16.mxu0 0
    %8203 = vmatpush1.bf16.msra.mxu0 0
    %8204 = vmatprep.subr.bf16.mxu0 0
    %8205 = vmatpush1.bf16.msra.mxu0 0
    %8206 = vmatprep.subr.bf16.mxu0 0
    %8207 = vmatpush1.bf16.msra.mxu0 0
    %8208 = vmatprep.subr.bf16.mxu0 0
    %8209 = vmatpush1.bf16.msra.mxu0 0
    %8210 = vmatprep.subr.bf16.mxu0 0
    %8211 = vmatpush1.bf16.msra.mxu0 0
    %8212 = vmatprep.subr.bf16.mxu0 0
    %8213 = vmatpush1.bf16.msra.mxu0 0
    %8214 = vmatprep.subr.bf16.mxu0 0
    %8215 = vmatpush1.bf16.msra.mxu0 %v8199
    %8216 = vmatprep.subr.bf16.mxu0 0
    %8217 = vmatpush1.bf16.msra.mxu0 %v8197
    %8218 = vmatprep.subr.bf16.mxu0 0
    %8219 = vmatpush2.bf16.msra.mxu0 0
    %8220 = vmatprep.subr.bf16.mxu0 0
    %8221 = vmatpush2.bf16.msra.mxu0 0
    %8222 = vmatprep.subr.bf16.mxu0 0
    %8223 = vmatpush2.bf16.msra.mxu0 0
    %8224 = vmatprep.subr.bf16.mxu0 0
    %8225 = vmatpush2.bf16.msra.mxu0 0
    %8226 = vmatprep.subr.bf16.mxu0 0
    %8227 = vmatpush2.bf16.msra.mxu0 0
    %8228 = vmatprep.subr.bf16.mxu0 0
    %8229 = vmatpush2.bf16.msra.mxu0 0
    %8230 = vmatprep.subr.bf16.mxu0 0
    %8231 = vmatpush2.bf16.msra.mxu0 0
    %8232 = vmatprep.subr.bf16.mxu0 0
    %8233 = vmatpush2.bf16.msra.mxu0 0
    %8234 = vmatprep.mubr.bf16.mxu0 0
    %8235 = vmatmul.mubr.bf16.gmra.mxu0 %v87
    %v8236 = vpop.f32.mrf.mxu0
    %v8237 = vadd.f32 0.0, %v8236
    %v8238 = vpop.f32.mrf.mxu0
    %v8239 = vpop.f32.mrf.mxu0
    %v8240 = vadd.f32 0.0, %v8239
    %v8241 = vpop.f32.mrf.mxu0
    %8242 = vmatprep.mubr.bf16.mxu0 0
    %8243 = vmatmul.mubr.bf16.gmra.mxu0 %v90
    %v8244 = vpop.f32.mrf.mxu0
    %v8245 = vadd.f32 0.0, %v8244
    %v8246 = vpop.f32.mrf.mxu0
    %v8247 = vpop.f32.mrf.mxu0
    %v8248 = vadd.f32 0.0, %v8247
    %v8249 = vpop.f32.mrf.mxu0
    %8250 = vdwg.mxu0
    %8255 = vrot.lane.b32.xlu0 %v8237, 64
    %v8256 = vpop.permute.xlu0 %8255
    %8257 = vrot.lane.b32.xlu0 %v8240, 64
    %v8258 = vpop.permute.xlu0 %8257
    %8259 = vrot.lane.b32.xlu0 %v8245, 64
    %v8260 = vpop.permute.xlu0 %8259
    %8261 = vrot.lane.b32.xlu0 %v8248, 64
    %v8262 = vpop.permute.xlu0 %8261
    %v8267 = vadd.f32 %v8190, %v8256
    %v8268 = vadd.f32 %v8191, %v8258
    %v8269 = vadd.f32 %v8192, %v8260
    %v8270 = vadd.f32 %v8193, %v8262
    %8271 = vrot.lane.b32.xlu0 %v8123, 64
    %v8272 = vpop.permute.xlu0 %8271
    %8273 = vrot.lane.b32.xlu0 %v8124, 64
    %v8274 = vpop.permute.xlu0 %8273
    %8277 = vmatprep.subr.bf16.mxu0 0
    %8278 = vmatpush1.bf16.msra.mxu0 0
    %8279 = vmatprep.subr.bf16.mxu0 0
    %8280 = vmatpush1.bf16.msra.mxu0 0
    %8281 = vmatprep.subr.bf16.mxu0 0
    %8282 = vmatpush1.bf16.msra.mxu0 0
    %8283 = vmatprep.subr.bf16.mxu0 0
    %8284 = vmatpush1.bf16.msra.mxu0 0
    %8285 = vmatprep.subr.bf16.mxu0 0
    %8286 = vmatpush1.bf16.msra.mxu0 0
    %8287 = vmatprep.subr.bf16.mxu0 0
    %8288 = vmatpush1.bf16.msra.mxu0 0
    %8289 = vmatprep.subr.bf16.mxu0 0
    %8290 = vmatpush1.bf16.msra.mxu0 %v8274
    %8291 = vmatprep.subr.bf16.mxu0 0
    %8292 = vmatpush1.bf16.msra.mxu0 %v8272
    %8293 = vmatprep.subr.bf16.mxu0 0
    %8294 = vmatpush2.bf16.msra.mxu0 0
    %8295 = vmatprep.subr.bf16.mxu0 0
    %8296 = vmatpush2.bf16.msra.mxu0 0
    %8297 = vmatprep.subr.bf16.mxu0 0
    %8298 = vmatpush2.bf16.msra.mxu0 0
    %8299 = vmatprep.subr.bf16.mxu0 0
    %8300 = vmatpush2.bf16.msra.mxu0 0
    %8301 = vmatprep.subr.bf16.mxu0 0
    %8302 = vmatpush2.bf16.msra.mxu0 0
    %8303 = vmatprep.subr.bf16.mxu0 0
    %8304 = vmatpush2.bf16.msra.mxu0 0
    %8305 = vmatprep.subr.bf16.mxu0 0
    %8306 = vmatpush2.bf16.msra.mxu0 0
    %8307 = vmatprep.subr.bf16.mxu0 0
    %8308 = vmatpush2.bf16.msra.mxu0 0
    %8309 = vmatprep.mubr.bf16.mxu0 0
    %8310 = vmatmul.mubr.bf16.gmra.mxu0 %v93
    %v8311 = vpop.f32.mrf.mxu0
    %v8312 = vadd.f32 0.0, %v8311
    %v8313 = vpop.f32.mrf.mxu0
    %v8314 = vpop.f32.mrf.mxu0
    %v8315 = vadd.f32 0.0, %v8314
    %v8316 = vpop.f32.mrf.mxu0
    %8317 = vmatprep.mubr.bf16.mxu0 0
    %8318 = vmatmul.mubr.bf16.gmra.mxu0 %v96
    %v8319 = vpop.f32.mrf.mxu0
    %v8320 = vadd.f32 0.0, %v8319
    %v8321 = vpop.f32.mrf.mxu0
    %v8322 = vpop.f32.mrf.mxu0
    %v8323 = vadd.f32 0.0, %v8322
    %v8324 = vpop.f32.mrf.mxu0
    %8325 = vdwg.mxu0
    %8330 = vrot.lane.b32.xlu0 %v8312, 64
    %v8331 = vpop.permute.xlu0 %8330
    %8332 = vrot.lane.b32.xlu0 %v8315, 64
    %v8333 = vpop.permute.xlu0 %8332
    %8334 = vrot.lane.b32.xlu0 %v8320, 64
    %v8335 = vpop.permute.xlu0 %8334
    %8336 = vrot.lane.b32.xlu0 %v8323, 64
    %v8337 = vpop.permute.xlu0 %8336
    %v8342 = vadd.f32 %v8267, %v8331
    %v8343 = vadd.f32 %v8268, %v8333
    %v8344 = vadd.f32 %v8269, %v8335
    %v8345 = vadd.f32 %v8270, %v8337
    %v8346 = vtanh.pop %v8342
    %v8347 = vtanh.pop %v8343
    %v8348 = vtanh.pop %v8344
    %v8349 = vtanh.pop %v8345
    %8354 = vrot.lane.b32.xlu0 %v8346, 96
    %v8355 = vpop.permute.xlu0 %8354
    %8356 = vrot.lane.b32.xlu0 %v8347, 96
    %v8357 = vpop.permute.xlu0 %8356
    %8358 = vrot.lane.b32.xlu0 %v8348, 96
    %v8359 = vpop.permute.xlu0 %8358
    %8360 = vrot.lane.b32.xlu0 %v8349, 96
    %v8361 = vpop.permute.xlu0 %8360
    %v8366 = vmul.f32 %v8039, %v8355
    %v8367 = vmul.f32 %v8041, %v8357
    %v8368 = vmul.f32 %v8043, %v8359
    %v8369 = vmul.f32 %v8045, %v8361
    %v8370 = vsub.f32 1.0, %v8039
    %v8371 = vsub.f32 1.0, %v8041
    %v8372 = vsub.f32 1.0, %v8043
    %v8373 = vsub.f32 1.0, %v8045
    %v8374 = vmul.f32 %v8370, %v7776
    %v8375 = vmul.f32 %v8371, %v7777
    %v8376 = vmul.f32 %v8372, %v7778
    %v8377 = vmul.f32 %v8373, %v7779
    %v8378 = vadd.f32 %v8366, %v8374
    %v8379 = vadd.f32 %v8367, %v8375
    %v8380 = vadd.f32 %v8368, %v8376
    %v8381 = vadd.f32 %v8369, %v8377
    %v8382 = vld [vmem:[%s6] sm:$0xff]
    %v8383 = vld [vmem:[%s6 + $0x8] sm:$0xff]
    %v8384 = vld [vmem:[%s6 + $0x10] sm:$0xff]
    %v8385 = vld [vmem:[%s6 + $0x18] sm:$0xff]
    %v8386 = vld [vmem:[%s7] sm:$0x1]
    %v8388 = vlaneseq
    %v8389 = vshrl.u32 %v8388, 7
    %v8390 = vsub.s32 0, %v8389
    %v8391 = vrot.slane %v8386, %v8390
    %8397 = vrot.lane.b32.xlu0 %v8378, 96
    %v8398 = vpop.permute.xlu0 %8397
    %8399 = vrot.lane.b32.xlu0 %v8379, 96
    %v8400 = vpop.permute.xlu0 %8399
    %8401 = vrot.lane.b32.xlu0 %v8380, 96
    %v8402 = vpop.permute.xlu0 %8401
    %8403 = vrot.lane.b32.xlu0 %v8381, 96
    %v8404 = vpop.permute.xlu0 %8403
    %v8405 = vsel %vm79, %v8398, 0
    %v8407 = vsel %vm79, %v8400, 0
    %v8409 = vsel %vm79, %v8402, 0
    %v8411 = vsel %vm79, %v8404, 0
    %8413 = vmatprep.subr.mxu0 0.0
    %8414 = vmatpush1.msra.mxu0 0.0
    %8415 = vmatprep.subr.mxu0 0.0
    %8416 = vmatpush1.msra.mxu0 0.0
    %8417 = vmatprep.subr.mxu0 0.0
    %8418 = vmatpush1.msra.mxu0 0.0
    %8419 = vmatprep.subr.mxu0 0.0
    %8420 = vmatpush1.msra.mxu0 0.0
    %8421 = vmatprep.subr.mxu0 0.0
    %8422 = vmatpush1.msra.mxu0 0.0
    %8423 = vmatprep.subr.mxu0 0.0
    %8424 = vmatpush1.msra.mxu0 0.0
    %8425 = vmatprep.subr.mxu0 0.0
    %8426 = vmatpush1.msra.mxu0 0.0
    %8427 = vmatprep.subr.mxu0 0.0
    %8428 = vmatpush1.msra.mxu0 0.0
    %8429 = vmatprep.subr.mxu0 0.0
    %8430 = vmatpush1.msra.mxu0 0.0
    %8431 = vmatprep.subr.mxu0 0.0
    %8432 = vmatpush1.msra.mxu0 0.0
    %8433 = vmatprep.subr.mxu0 0.0
    %8434 = vmatpush1.msra.mxu0 0.0
    %8435 = vmatprep.subr.mxu0 0.0
    %8436 = vmatpush1.msra.mxu0 0.0
    %8437 = vmatprep.subr.mxu0 0.0
    %8438 = vmatpush1.msra.mxu0 %v8385
    %8439 = vmatprep.subr.mxu0 0.0
    %8440 = vmatpush1.msra.mxu0 %v8384
    %8441 = vmatprep.subr.mxu0 0.0
    %8442 = vmatpush1.msra.mxu0 %v8383
    %8443 = vmatprep.subr.mxu0 0.0
    %8444 = vmatpush1.msra.mxu0 %v8382
    %8445 = vmatprep.subr.mxu0 0.0
    %8446 = vmatpush2.msra.mxu0 0.0
    %8447 = vmatprep.subr.mxu0 0.0
    %8448 = vmatpush2.msra.mxu0 0.0
    %8449 = vmatprep.subr.mxu0 0.0
    %8450 = vmatpush2.msra.mxu0 0.0
    %8451 = vmatprep.subr.mxu0 0.0
    %8452 = vmatpush2.msra.mxu0 0.0
    %8453 = vmatprep.subr.mxu0 0.0
    %8454 = vmatpush2.msra.mxu0 0.0
    %8455 = vmatprep.subr.mxu0 0.0
    %8456 = vmatpush2.msra.mxu0 0.0
    %8457 = vmatprep.subr.mxu0 0.0
    %8458 = vmatpush2.msra.mxu0 0.0
    %8459 = vmatprep.subr.mxu0 0.0
    %8460 = vmatpush2.msra.mxu0 0.0
    %8461 = vmatprep.subr.mxu0 0.0
    %8462 = vmatpush2.msra.mxu0 0.0
    %8463 = vmatprep.subr.mxu0 0.0
    %8464 = vmatpush2.msra.mxu0 0.0
    %8465 = vmatprep.subr.mxu0 0.0
    %8466 = vmatpush2.msra.mxu0 0.0
    %8467 = vmatprep.subr.mxu0 0.0
    %8468 = vmatpush2.msra.mxu0 0.0
    %8469 = vmatprep.subr.mxu0 0.0
    %8470 = vmatpush2.msra.mxu0 0.0
    %8471 = vmatprep.subr.mxu0 0.0
    %8472 = vmatpush2.msra.mxu0 0.0
    %8473 = vmatprep.subr.mxu0 0.0
    %8474 = vmatpush2.msra.mxu0 0.0
    %8475 = vmatprep.subr.mxu0 0.0
    %8476 = vmatpush2.msra.mxu0 0.0
    %8477 = vmatprep.mubr.f32.mxu0 0.0
    %8478 = vmatmul.mubr.f32.gmra.mxu0 %v8405
    %v8479 = vpop.f32.mrf.mxu0
    %v8480 = vadd.f32 %v8391, %v8479
    %v8481 = vpop.f32.mrf.mxu0
    %8482 = vmatprep.mubr.f32.mxu0 0.0
    %8483 = vmatmul.mubr.f32.gmra.mxu0 %v8407
    %v8484 = vpop.f32.mrf.mxu0
    %v8485 = vadd.f32 %v8391, %v8484
    %v8486 = vpop.f32.mrf.mxu0
    %8487 = vmatprep.mubr.f32.mxu0 0.0
    %8488 = vmatmul.mubr.f32.gmra.mxu0 %v8409
    %v8489 = vpop.f32.mrf.mxu0
    %v8490 = vadd.f32 %v8391, %v8489
    %v8491 = vpop.f32.mrf.mxu0
    %8492 = vmatprep.mubr.f32.mxu0 0.0
    %8493 = vmatmul.mubr.f32.gmra.mxu0 %v8411
    %v8494 = vpop.f32.mrf.mxu0
    %v8495 = vadd.f32 %v8391, %v8494
    %v8496 = vpop.f32.mrf.mxu0
    %8497 = vdwg.mxu0
    %8498 = vst [vmem:[#allocation3] sm:$0xff] %v8480
    %8499 = vst [vmem:[#allocation3 + $0x8] sm:$0xff] %v8485
    %8500 = vst [vmem:[#allocation3 + $0x10] sm:$0xff] %v8490
    %8501 = vst [vmem:[#allocation3 + $0x18] sm:$0xff] %v8495
    // Predicated region
    $region34: #{tpu_custom_call.1} parent=1 // pred_check
      _
    $region35: #{tpu_custom_call.1} parent=1 // pred_check_branch
      %8503 = sbr.rel (0) target = $region37
    $region36: #{tpu_custom_call.1} parent=1 // pred_region
      %s8505 = ssub.s32 512, 512
      %8506 = vsyncadd [#allocation4], %s8505
      %s8507 = sshll.u32 [#allocation3], 4
      %s8508 = int_to_ptr.vmem [resolvable:$true] %s8507
      %8513 = dma.vmem_to_hbm [thread:$0]  %s8508, 512, %s8, [#allocation4], 128, 128, 8
    $region37: #{tpu_custom_call.1} parent=1 // pred_fallthru
      _
    // Predicated region
    $region38: #{tpu_custom_call.1} parent=1 // pred_check
      _
    $region39: #{tpu_custom_call.1} parent=1 // pred_check_branch
      %8515 = sbr.rel (0) target = $region41
    $region40: #{tpu_custom_call.1} parent=1 // pred_region
      %8516 = dma.done [#allocation4], 512
    $region41: #{tpu_custom_call.1} parent=1 // pred_fallthru
      _
    %8517 = vsyncpa [#allocation4], 1

</llo_original>
